<compile_context>
chip_gen: v7x
topology: tpu7x:2x2x1
jax: 0.10.0
libtpu: 0.0.40
codegen_flags: <defaults>
</compile_context>

<pallas_src>
import functools

import jax
import jax.numpy as jnp
from jax import lax
from jax.experimental import pallas as pl
from jax.experimental.pallas import tpu as pltpu

GN_GROUPS = 32
GN_EPS = 1e-5


def _double_conv_kernel(x_ref, w1_ref, p1_ref, w2_ref, p2_ref, gmat_ref, o_ref,
                        xpad1, col1, xpad2, col2, *, H, W, Cin, Cout):
    """Fused (conv3x3 + GroupNorm + ReLU) x 2 for one batch element.

    x_ref:    (1, H, W, Cin)      bf16 NHWC input block
    w1_ref:   (9*Cin, Cout)       bf16 conv-1 weights, rows ordered (dy*3+dx)*Cin+ci
    p1_ref:   (3, Cout)           f32  [bias; gamma; beta] for stage 1
    w2_ref:   (9*Cout, Cout)      bf16 conv-2 weights
    p2_ref:   (3, Cout)           f32  [bias; gamma; beta] for stage 2
    gmat_ref: (Cout, Cout)        f32  same-group indicator / (cpg*H*W)
    o_ref:    (1, H, W, Cout)     f32  output block
    xpad1:    (H+2, W+2, Cin)     bf16 VMEM scratch (zero halo, stage-1 input)
    col1:     (H, W, 9*Cin)       bf16 VMEM scratch (stage-1 im2col slab)
    xpad2:    (H+2, W+2, Cout)    bf16 VMEM scratch (zero halo, stage-2 input)
    col2:     (H, W, 9*Cout)      bf16 VMEM scratch (stage-2 im2col slab)
    """

    def conv_gn_relu(xpad, col, w_ref, p_ref, C):
        # ---- im2col: pack the 9 shifted windows into one slab, once ----
        for dy in range(3):
            for dx in range(3):
                k = dy * 3 + dx
                col[:, :, k * C:(k + 1) * C] = xpad[dy:dy + H, dx:dx + W, :]
        a = col[...].reshape(H * W, 9 * C)                       # bf16 (H*W, 9C)

        # ---- single MXU matmul with K = 9*C, f32 accumulation ----
        acc = jnp.dot(a, w_ref[...], preferred_element_type=jnp.float32)
        acc = acc + p_ref[0:1, :]                                # + bias, f32

        # ---- GroupNorm(32): per-group stats via membership matmul (1/n folded) ----
        gmat = gmat_ref[...]                                     # (Cout, Cout) f32
        mean = jnp.dot(jnp.sum(acc, axis=0, keepdims=True), gmat,
                       preferred_element_type=jnp.float32)       # (1, Cout)
        d = acc - mean
        var = jnp.dot(jnp.sum(d * d, axis=0, keepdims=True), gmat,
                      preferred_element_type=jnp.float32)        # two-pass variance
        inv_std = lax.rsqrt(var + GN_EPS)
        y = d * (inv_std * p_ref[1:2, :]) + p_ref[2:3, :]        # * gamma + beta
        return jnp.maximum(y, 0.0)                               # ReLU, (H*W, Cout) f32

    # ---- stage 1: zero-padded halo lives only in VMEM (no jnp.pad in the wrapper) ----
    xpad1[...] = jnp.zeros_like(xpad1)
    xpad1[1:1 + H, 1:1 + W, :] = x_ref[0]
    h1 = conv_gn_relu(xpad1, col1, w1_ref, p1_ref, Cin)

    # ---- stage 2: intermediate activation never leaves VMEM ----
    xpad2[...] = jnp.zeros_like(xpad2)
    xpad2[1:1 + H, 1:1 + W, :] = h1.reshape(H, W, Cout).astype(xpad2.dtype)
    h2 = conv_gn_relu(xpad2, col2, w2_ref, p2_ref, Cout)

    o_ref[0] = h2.reshape(H, W, Cout).astype(o_ref.dtype)


def double_conv(x_nchw, params):
    """Full DoubleConv forward. Input/output are NCHW (PyTorch convention), f32."""
    N, Cin, H, W = x_nchw.shape
    Cout = params["w1"].shape[-1]
    assert Cout % GN_GROUPS == 0
    cpg = Cout // GN_GROUPS

    # NCHW -> NHWC; bf16 for the MXU operands (accumulation stays f32 in-kernel).
    x = jnp.transpose(x_nchw, (0, 2, 3, 1)).astype(jnp.bfloat16)

    # Weights as (9*C, Cout) contraction matrices; row index = (dy*3+dx)*C + ci.
    w1 = params["w1"].reshape(9 * Cin, Cout).astype(jnp.bfloat16)
    w2 = params["w2"].reshape(9 * Cout, Cout).astype(jnp.bfloat16)
    # Pack bias / gamma / beta into one (3, Cout) block per stage.
    p1 = jnp.stack([params["b1"], params["g1"], params["beta1"]]).astype(jnp.float32)
    p2 = jnp.stack([params["b2"], params["g2"], params["beta2"]]).astype(jnp.float32)
    # Group-membership matrix with the 1/group_elems normalisation folded in.
    gid = jnp.arange(Cout) // cpg
    gmat = (gid[:, None] == gid[None, :]).astype(jnp.float32) / float(cpg * H * W)

    kernel = functools.partial(_double_conv_kernel, H=H, W=W, Cin=Cin, Cout=Cout)

    out_nhwc = pl.pallas_call(
        kernel,
        out_shape=jax.ShapeDtypeStruct((N, H, W, Cout), jnp.float32),
        grid_spec=pltpu.PrefetchScalarGridSpec(
            num_scalar_prefetch=0,
            grid=(N,),
            in_specs=[
                pl.BlockSpec((1, H, W, Cin), lambda n: (n, 0, 0, 0)),   # x
                pl.BlockSpec((9 * Cin, Cout), lambda n: (0, 0)),        # w1
                pl.BlockSpec((3, Cout), lambda n: (0, 0)),              # bias/gamma/beta 1
                pl.BlockSpec((9 * Cout, Cout), lambda n: (0, 0)),       # w2
                pl.BlockSpec((3, Cout), lambda n: (0, 0)),              # bias/gamma/beta 2
                pl.BlockSpec((Cout, Cout), lambda n: (0, 0)),           # gmat
            ],
            out_specs=pl.BlockSpec((1, H, W, Cout), lambda n: (n, 0, 0, 0)),
            scratch_shapes=[
                pltpu.VMEM((H + 2, W + 2, Cin), jnp.bfloat16),
                pltpu.VMEM((H, W, 9 * Cin), jnp.bfloat16),
                pltpu.VMEM((H + 2, W + 2, Cout), jnp.bfloat16),
                pltpu.VMEM((H, W, 9 * Cout), jnp.bfloat16),
            ],
        ),
        compiler_params=pltpu.CompilerParams(dimension_semantics=("parallel",)),
    )(x, w1, p1, w2, p2, gmat)

    return jnp.transpose(out_nhwc, (0, 3, 1, 2))                        # NHWC -> NCHW


# ------------------------------ pure-JAX reference ------------------------------
# Same precision policy as the kernel: bf16 conv operands, f32 accumulation,
# f32 GroupNorm math, bf16 hand-off between the two stages.
def _ref_conv3x3(x_bf16, w_f32):
    N, H, W, C = x_bf16.shape
    Cout = w_f32.shape[-1]
    w_bf16 = w_f32.astype(jnp.bfloat16)
    xp = jnp.pad(x_bf16, ((0, 0), (1, 1), (1, 1), (0, 0)))
    out = jnp.zeros((N, H, W, Cout), jnp.float32)
    for dy in range(3):
        for dx in range(3):
            out = out + jnp.einsum("nhwc,co->nhwo",
                                   xp[:, dy:dy + H, dx:dx + W, :], w_bf16[dy, dx],
                                   preferred_element_type=jnp.float32)
    return out


def _ref_conv_gn_relu(x_bf16, w, b, gamma, beta):
    y = _ref_conv3x3(x_bf16, w) + b.reshape(1, 1, 1, -1)
    N, H, W, C = y.shape
    cpg = C // GN_GROUPS
    yr = y.reshape(N, H, W, GN_GROUPS, cpg)
    mean = jnp.mean(yr, axis=(1, 2, 4), keepdims=True)
    var = jnp.mean((yr - mean) ** 2, axis=(1, 2, 4), keepdims=True)
    yn = ((yr - mean) / jnp.sqrt(var + GN_EPS)).reshape(N, H, W, C)
    yn = yn * gamma.reshape(1, 1, 1, -1) + beta.reshape(1, 1, 1, -1)
    return jnp.maximum(yn, 0.0)


def _ref_double_conv(x_nchw, p):
    x = jnp.transpose(x_nchw, (0, 2, 3, 1)).astype(jnp.bfloat16)
    h = _ref_conv_gn_relu(x, p["w1"], p["b1"], p["g1"], p["beta1"])
    h = h.astype(jnp.bfloat16)          # matches the bf16 VMEM-resident intermediate
    y = _ref_conv_gn_relu(h, p["w2"], p["b2"], p["g2"], p["beta2"])
    return jnp.transpose(y, (0, 3, 1, 2))


if __name__ == "__main__":
    # GroupNorm(32, out_ch) requires out_ch % 32 == 0 -> minimal out_ch = 32.
    N, IN_CH, OUT_CH, H, W = 2, 4, 32, 16, 16

    key = jax.random.PRNGKey(0)
    ks = jax.random.split(key, 9)
    params = {
        "w1": jax.random.normal(ks[0], (3, 3, IN_CH, OUT_CH), jnp.float32) * 0.1,
        "b1": jax.random.normal(ks[1], (OUT_CH,), jnp.float32) * 0.05,
        "g1": 1.0 + 0.1 * jax.random.normal(ks[2], (OUT_CH,), jnp.float32),
        "beta1": 0.05 * jax.random.normal(ks[3], (OUT_CH,), jnp.float32),
        "w2": jax.random.normal(ks[4], (3, 3, OUT_CH, OUT_CH), jnp.float32) * 0.1,
        "b2": jax.random.normal(ks[5], (OUT_CH,), jnp.float32) * 0.05,
        "g2": 1.0 + 0.1 * jax.random.normal(ks[6], (OUT_CH,), jnp.float32),
        "beta2": 0.05 * jax.random.normal(ks[7], (OUT_CH,), jnp.float32),
    }
    x = jax.random.normal(ks[8], (N, IN_CH, H, W), jnp.float32)

    out = jax.block_until_ready(double_conv(x, params))
    ref = jax.block_until_ready(_ref_double_conv(x, params))

    assert out.shape == (N, OUT_CH, H, W), out.shape
    err = float(jnp.max(jnp.abs(out - ref)))
    assert err < 2e-3, f"max abs err = {err}"
    print("KERNEL_OK")
</pallas_src>

<mosaic_0001>
module attributes {stable_mosaic.version = 11 : i64} {
  func.func @_double_conv_kernel(%arg0: i32, %arg1: memref<1x16x16x4xbf16, #tpu.memory_space<vmem>>, %arg2: memref<36x32xbf16, #tpu.memory_space<vmem>>, %arg3: memref<3x32xf32, #tpu.memory_space<vmem>>, %arg4: memref<288x32xbf16, #tpu.memory_space<vmem>>, %arg5: memref<3x32xf32, #tpu.memory_space<vmem>>, %arg6: memref<32x32xf32, #tpu.memory_space<vmem>>, %arg7: memref<1x16x16x32xf32, #tpu.memory_space<vmem>>, %arg8: memref<18x18x4xbf16, #tpu.memory_space<vmem>>, %arg9: memref<16x16x36xbf16, #tpu.memory_space<vmem>>, %arg10: memref<18x18x32xbf16, #tpu.memory_space<vmem>>, %arg11: memref<16x16x288xbf16, #tpu.memory_space<vmem>>) attributes {dimension_semantics = [#tpu.dimension_semantics<parallel>], iteration_bounds = array<i64: 2>, scalar_prefetch = 0 : i64, scratch_operands = 4 : i64, tpu.core_type = #tpu.core_type<tc>, window_params = [{transform_indices = @transform_0, window_bounds = array<i64: 1, 16, 16, 4>}, {pipeline_mode = #tpu.pipeline_mode<synchronous>, transform_indices = @transform_1, window_bounds = array<i64: 36, 32>}, {pipeline_mode = #tpu.pipeline_mode<synchronous>, transform_indices = @transform_2, window_bounds = array<i64: 3, 32>}, {pipeline_mode = #tpu.pipeline_mode<synchronous>, transform_indices = @transform_3, window_bounds = array<i64: 288, 32>}, {pipeline_mode = #tpu.pipeline_mode<synchronous>, transform_indices = @transform_4, window_bounds = array<i64: 3, 32>}, {pipeline_mode = #tpu.pipeline_mode<synchronous>, transform_indices = @transform_5, window_bounds = array<i64: 32, 32>}, {transform_indices = @transform_6, window_bounds = array<i64: 1, 16, 16, 32>}]} {
    %cst = arith.constant 0.000000e+00 : bf16
    %0 = vector.broadcast %cst : bf16 to vector<18x18x4xbf16>
    %c0 = arith.constant 0 : index
    %c0_0 = arith.constant 0 : index
    %c0_1 = arith.constant 0 : index
    %1 = vector.load %arg8[%c0, %c0_0, %c0_1] : memref<18x18x4xbf16, #tpu.memory_space<vmem>>, vector<18x18x4xbf16>
    tpu.vector_store %arg8[%c0, %c0_0, %c0_1], %0 {strides = array<i32>} : memref<18x18x4xbf16, #tpu.memory_space<vmem>>, vector<18x18x4xbf16>,
    %c0_2 = arith.constant 0 : index
    %c0_3 = arith.constant 0 : index
    %c0_4 = arith.constant 0 : index
    %c0_5 = arith.constant 0 : index
    %2 = vector.load %arg1[%c0_2, %c0_3, %c0_4, %c0_5] : memref<1x16x16x4xbf16, #tpu.memory_space<vmem>>, vector<1x16x16x4xbf16>
    %3 = vector.shape_cast %2 : vector<1x16x16x4xbf16> to vector<16x16x4xbf16>
    %c1 = arith.constant 1 : index
    %c1_6 = arith.constant 1 : index
    %c0_7 = arith.constant 0 : index
    %4 = vector.load %arg8[%c1, %c1_6, %c0_7] : memref<18x18x4xbf16, #tpu.memory_space<vmem>>, vector<16x16x4xbf16>
    tpu.vector_store %arg8[%c1, %c1_6, %c0_7], %3 {strides = array<i32>} : memref<18x18x4xbf16, #tpu.memory_space<vmem>>, vector<16x16x4xbf16>,
    %c0_8 = arith.constant 0 : index
    %c0_9 = arith.constant 0 : index
    %c0_10 = arith.constant 0 : index
    %5 = vector.load %arg8[%c0_8, %c0_9, %c0_10] : memref<18x18x4xbf16, #tpu.memory_space<vmem>>, vector<16x16x4xbf16>
    %c0_11 = arith.constant 0 : index
    %c0_12 = arith.constant 0 : index
    %c0_13 = arith.constant 0 : index
    %6 = vector.load %arg9[%c0_11, %c0_12, %c0_13] : memref<16x16x36xbf16, #tpu.memory_space<vmem>>, vector<16x16x4xbf16>
    tpu.vector_store %arg9[%c0_11, %c0_12, %c0_13], %5 {strides = array<i32>} : memref<16x16x36xbf16, #tpu.memory_space<vmem>>, vector<16x16x4xbf16>,
    %c0_14 = arith.constant 0 : index
    %c1_15 = arith.constant 1 : index
    %c0_16 = arith.constant 0 : index
    %7 = vector.load %arg8[%c0_14, %c1_15, %c0_16] : memref<18x18x4xbf16, #tpu.memory_space<vmem>>, vector<16x16x4xbf16>
    %c0_17 = arith.constant 0 : index
    %c0_18 = arith.constant 0 : index
    %c4 = arith.constant 4 : index
    %8 = vector.load %arg9[%c0_17, %c0_18, %c4] : memref<16x16x36xbf16, #tpu.memory_space<vmem>>, vector<16x16x4xbf16>
    tpu.vector_store %arg9[%c0_17, %c0_18, %c4], %7 {strides = array<i32>} : memref<16x16x36xbf16, #tpu.memory_space<vmem>>, vector<16x16x4xbf16>,
    %c0_19 = arith.constant 0 : index
    %c2 = arith.constant 2 : index
    %c0_20 = arith.constant 0 : index
    %9 = vector.load %arg8[%c0_19, %c2, %c0_20] : memref<18x18x4xbf16, #tpu.memory_space<vmem>>, vector<16x16x4xbf16>
    %c0_21 = arith.constant 0 : index
    %c0_22 = arith.constant 0 : index
    %c8 = arith.constant 8 : index
    %10 = vector.load %arg9[%c0_21, %c0_22, %c8] : memref<16x16x36xbf16, #tpu.memory_space<vmem>>, vector<16x16x4xbf16>
    tpu.vector_store %arg9[%c0_21, %c0_22, %c8], %9 {strides = array<i32>} : memref<16x16x36xbf16, #tpu.memory_space<vmem>>, vector<16x16x4xbf16>,
    %c1_23 = arith.constant 1 : index
    %c0_24 = arith.constant 0 : index
    %c0_25 = arith.constant 0 : index
    %11 = vector.load %arg8[%c1_23, %c0_24, %c0_25] : memref<18x18x4xbf16, #tpu.memory_space<vmem>>, vector<16x16x4xbf16>
    %c0_26 = arith.constant 0 : index
    %c0_27 = arith.constant 0 : index
    %c12 = arith.constant 12 : index
    %12 = vector.load %arg9[%c0_26, %c0_27, %c12] : memref<16x16x36xbf16, #tpu.memory_space<vmem>>, vector<16x16x4xbf16>
    tpu.vector_store %arg9[%c0_26, %c0_27, %c12], %11 {strides = array<i32>} : memref<16x16x36xbf16, #tpu.memory_space<vmem>>, vector<16x16x4xbf16>,
    %c1_28 = arith.constant 1 : index
    %c1_29 = arith.constant 1 : index
    %c0_30 = arith.constant 0 : index
    %13 = vector.load %arg8[%c1_28, %c1_29, %c0_30] : memref<18x18x4xbf16, #tpu.memory_space<vmem>>, vector<16x16x4xbf16>
    %c0_31 = arith.constant 0 : index
    %c0_32 = arith.constant 0 : index
    %c16 = arith.constant 16 : index
    %14 = vector.load %arg9[%c0_31, %c0_32, %c16] : memref<16x16x36xbf16, #tpu.memory_space<vmem>>, vector<16x16x4xbf16>
    tpu.vector_store %arg9[%c0_31, %c0_32, %c16], %13 {strides = array<i32>} : memref<16x16x36xbf16, #tpu.memory_space<vmem>>, vector<16x16x4xbf16>,
    %c1_33 = arith.constant 1 : index
    %c2_34 = arith.constant 2 : index
    %c0_35 = arith.constant 0 : index
    %15 = vector.load %arg8[%c1_33, %c2_34, %c0_35] : memref<18x18x4xbf16, #tpu.memory_space<vmem>>, vector<16x16x4xbf16>
    %c0_36 = arith.constant 0 : index
    %c0_37 = arith.constant 0 : index
    %c20 = arith.constant 20 : index
    %16 = vector.load %arg9[%c0_36, %c0_37, %c20] : memref<16x16x36xbf16, #tpu.memory_space<vmem>>, vector<16x16x4xbf16>
    tpu.vector_store %arg9[%c0_36, %c0_37, %c20], %15 {strides = array<i32>} : memref<16x16x36xbf16, #tpu.memory_space<vmem>>, vector<16x16x4xbf16>,
    %c2_38 = arith.constant 2 : index
    %c0_39 = arith.constant 0 : index
    %c0_40 = arith.constant 0 : index
    %17 = vector.load %arg8[%c2_38, %c0_39, %c0_40] : memref<18x18x4xbf16, #tpu.memory_space<vmem>>, vector<16x16x4xbf16>
    %c0_41 = arith.constant 0 : index
    %c0_42 = arith.constant 0 : index
    %c24 = arith.constant 24 : index
    %18 = vector.load %arg9[%c0_41, %c0_42, %c24] : memref<16x16x36xbf16, #tpu.memory_space<vmem>>, vector<16x16x4xbf16>
    tpu.vector_store %arg9[%c0_41, %c0_42, %c24], %17 {strides = array<i32>} : memref<16x16x36xbf16, #tpu.memory_space<vmem>>, vector<16x16x4xbf16>,
    %c2_43 = arith.constant 2 : index
    %c1_44 = arith.constant 1 : index
    %c0_45 = arith.constant 0 : index
    %19 = vector.load %arg8[%c2_43, %c1_44, %c0_45] : memref<18x18x4xbf16, #tpu.memory_space<vmem>>, vector<16x16x4xbf16>
    %c0_46 = arith.constant 0 : index
    %c0_47 = arith.constant 0 : index
    %c28 = arith.constant 28 : index
    %20 = vector.load %arg9[%c0_46, %c0_47, %c28] : memref<16x16x36xbf16, #tpu.memory_space<vmem>>, vector<16x16x4xbf16>
    tpu.vector_store %arg9[%c0_46, %c0_47, %c28], %19 {strides = array<i32>} : memref<16x16x36xbf16, #tpu.memory_space<vmem>>, vector<16x16x4xbf16>,
    %c2_48 = arith.constant 2 : index
    %c2_49 = arith.constant 2 : index
    %c0_50 = arith.constant 0 : index
    %21 = vector.load %arg8[%c2_48, %c2_49, %c0_50] : memref<18x18x4xbf16, #tpu.memory_space<vmem>>, vector<16x16x4xbf16>
    %c0_51 = arith.constant 0 : index
    %c0_52 = arith.constant 0 : index
    %c32 = arith.constant 32 : index
    %22 = vector.load %arg9[%c0_51, %c0_52, %c32] : memref<16x16x36xbf16, #tpu.memory_space<vmem>>, vector<16x16x4xbf16>
    tpu.vector_store %arg9[%c0_51, %c0_52, %c32], %21 {strides = array<i32>} : memref<16x16x36xbf16, #tpu.memory_space<vmem>>, vector<16x16x4xbf16>,
    %c0_53 = arith.constant 0 : index
    %c0_54 = arith.constant 0 : index
    %c0_55 = arith.constant 0 : index
    %23 = vector.load %arg9[%c0_53, %c0_54, %c0_55] : memref<16x16x36xbf16, #tpu.memory_space<vmem>>, vector<16x16x36xbf16>
    %24 = vector.shape_cast %23 : vector<16x16x36xbf16> to vector<256x36xbf16>
    %c0_56 = arith.constant 0 : index
    %c0_57 = arith.constant 0 : index
    %25 = vector.load %arg2[%c0_56, %c0_57] : memref<36x32xbf16, #tpu.memory_space<vmem>>, vector<36x32xbf16>
    %cst_58 = arith.constant dense<0.000000e+00> : vector<256x32xf32>
    %26 = tpu.matmul %24, %25, %cst_58 {dimension_numbers = #tpu.dot_dimension_numbers<[1], [0], [0], [1], [0, 0, 1, 1], [], []>} : vector<256x36xbf16>, vector<36x32xbf16>, vector<256x32xf32> -> vector<256x32xf32>
    %c0_59 = arith.constant 0 : index
    %c0_60 = arith.constant 0 : index
    %27 = vector.load %arg3[%c0_59, %c0_60] : memref<3x32xf32, #tpu.memory_space<vmem>>, vector<1x32xf32>
    %28 = vector.broadcast %27 : vector<1x32xf32> to vector<256x32xf32>
    %29 = arith.addf %26, %28 : vector<256x32xf32>
    %c0_61 = arith.constant 0 : index
    %c0_62 = arith.constant 0 : index
    %30 = vector.load %arg6[%c0_61, %c0_62] : memref<32x32xf32, #tpu.memory_space<vmem>>, vector<32x32xf32>
    %cst_63 = arith.constant dense<0.000000e+00> : vector<32xf32>
    %31 = vector.multi_reduction <add>, %29, %cst_63 [0] : vector<256x32xf32> to vector<32xf32>
    %32 = vector.shape_cast %31 : vector<32xf32> to vector<1x32xf32>
    %cst_64 = arith.constant dense<0.000000e+00> : vector<1x32xf32>
    %33 = tpu.matmul %32, %30, %cst_64 {dimension_numbers = #tpu.dot_dimension_numbers<[1], [0], [0], [1], [0, 0, 1, 1], [], []>} : vector<1x32xf32>, vector<32x32xf32>, vector<1x32xf32> -> vector<1x32xf32>
    %34 = vector.broadcast %33 : vector<1x32xf32> to vector<256x32xf32>
    %35 = arith.subf %29, %34 : vector<256x32xf32>
    %36 = arith.mulf %35, %35 : vector<256x32xf32>
    %cst_65 = arith.constant dense<0.000000e+00> : vector<32xf32>
    %37 = vector.multi_reduction <add>, %36, %cst_65 [0] : vector<256x32xf32> to vector<32xf32>
    %38 = vector.shape_cast %37 : vector<32xf32> to vector<1x32xf32>
    %cst_66 = arith.constant dense<0.000000e+00> : vector<1x32xf32>
    %39 = tpu.matmul %38, %30, %cst_66 {dimension_numbers = #tpu.dot_dimension_numbers<[1], [0], [0], [1], [0, 0, 1, 1], [], []>} : vector<1x32xf32>, vector<32x32xf32>, vector<1x32xf32> -> vector<1x32xf32>
    %cst_67 = arith.constant 9.99999974E-6 : f32
    %40 = vector.broadcast %cst_67 : f32 to vector<1x32xf32>
    %41 = arith.addf %39, %40 : vector<1x32xf32>
    %42 = math.rsqrt %41 : vector<1x32xf32>
    %c1_68 = arith.constant 1 : index
    %c0_69 = arith.constant 0 : index
    %43 = vector.load %arg3[%c1_68, %c0_69] : memref<3x32xf32, #tpu.memory_space<vmem>>, vector<1x32xf32>
    %44 = arith.mulf %42, %43 : vector<1x32xf32>
    %45 = vector.broadcast %44 : vector<1x32xf32> to vector<256x32xf32>
    %46 = arith.mulf %35, %45 : vector<256x32xf32>
    %c2_70 = arith.constant 2 : index
    %c0_71 = arith.constant 0 : index
    %47 = vector.load %arg3[%c2_70, %c0_71] : memref<3x32xf32, #tpu.memory_space<vmem>>, vector<1x32xf32>
    %48 = vector.broadcast %47 : vector<1x32xf32> to vector<256x32xf32>
    %49 = arith.addf %46, %48 : vector<256x32xf32>
    %cst_72 = arith.constant 0.000000e+00 : f32
    %50 = vector.broadcast %cst_72 : f32 to vector<256x32xf32>
    %51 = arith.maximumf %49, %50 : vector<256x32xf32>
    %cst_73 = arith.constant 0.000000e+00 : bf16
    %52 = vector.broadcast %cst_73 : bf16 to vector<18x18x32xbf16>
    %c0_74 = arith.constant 0 : index
    %c0_75 = arith.constant 0 : index
    %c0_76 = arith.constant 0 : index
    %53 = vector.load %arg10[%c0_74, %c0_75, %c0_76] : memref<18x18x32xbf16, #tpu.memory_space<vmem>>, vector<18x18x32xbf16>
    tpu.vector_store %arg10[%c0_74, %c0_75, %c0_76], %52 {strides = array<i32>} : memref<18x18x32xbf16, #tpu.memory_space<vmem>>, vector<18x18x32xbf16>,
    %54 = vector.shape_cast %51 : vector<256x32xf32> to vector<16x16x32xf32>
    %55 = arith.truncf %54 : vector<16x16x32xf32> to vector<16x16x32xbf16>
    %c1_77 = arith.constant 1 : index
    %c1_78 = arith.constant 1 : index
    %c0_79 = arith.constant 0 : index
    %56 = vector.load %arg10[%c1_77, %c1_78, %c0_79] : memref<18x18x32xbf16, #tpu.memory_space<vmem>>, vector<16x16x32xbf16>
    tpu.vector_store %arg10[%c1_77, %c1_78, %c0_79], %55 {strides = array<i32>} : memref<18x18x32xbf16, #tpu.memory_space<vmem>>, vector<16x16x32xbf16>,
    %c0_80 = arith.constant 0 : index
    %c0_81 = arith.constant 0 : index
    %c0_82 = arith.constant 0 : index
    %57 = vector.load %arg10[%c0_80, %c0_81, %c0_82] : memref<18x18x32xbf16, #tpu.memory_space<vmem>>, vector<16x16x32xbf16>
    %c0_83 = arith.constant 0 : index
    %c0_84 = arith.constant 0 : index
    %c0_85 = arith.constant 0 : index
    %58 = vector.load %arg11[%c0_83, %c0_84, %c0_85] : memref<16x16x288xbf16, #tpu.memory_space<vmem>>, vector<16x16x32xbf16>
    tpu.vector_store %arg11[%c0_83, %c0_84, %c0_85], %57 {strides = array<i32>} : memref<16x16x288xbf16, #tpu.memory_space<vmem>>, vector<16x16x32xbf16>,
    %c0_86 = arith.constant 0 : index
    %c1_87 = arith.constant 1 : index
    %c0_88 = arith.constant 0 : index
    %59 = vector.load %arg10[%c0_86, %c1_87, %c0_88] : memref<18x18x32xbf16, #tpu.memory_space<vmem>>, vector<16x16x32xbf16>
    %c0_89 = arith.constant 0 : index
    %c0_90 = arith.constant 0 : index
    %c32_91 = arith.constant 32 : index
    %60 = vector.load %arg11[%c0_89, %c0_90, %c32_91] : memref<16x16x288xbf16, #tpu.memory_space<vmem>>, vector<16x16x32xbf16>
    tpu.vector_store %arg11[%c0_89, %c0_90, %c32_91], %59 {strides = array<i32>} : memref<16x16x288xbf16, #tpu.memory_space<vmem>>, vector<16x16x32xbf16>,
    %c0_92 = arith.constant 0 : index
    %c2_93 = arith.constant 2 : index
    %c0_94 = arith.constant 0 : index
    %61 = vector.load %arg10[%c0_92, %c2_93, %c0_94] : memref<18x18x32xbf16, #tpu.memory_space<vmem>>, vector<16x16x32xbf16>
    %c0_95 = arith.constant 0 : index
    %c0_96 = arith.constant 0 : index
    %c64 = arith.constant 64 : index
    %62 = vector.load %arg11[%c0_95, %c0_96, %c64] : memref<16x16x288xbf16, #tpu.memory_space<vmem>>, vector<16x16x32xbf16>
    tpu.vector_store %arg11[%c0_95, %c0_96, %c64], %61 {strides = array<i32>} : memref<16x16x288xbf16, #tpu.memory_space<vmem>>, vector<16x16x32xbf16>,
    %c1_97 = arith.constant 1 : index
    %c0_98 = arith.constant 0 : index
    %c0_99 = arith.constant 0 : index
    %63 = vector.load %arg10[%c1_97, %c0_98, %c0_99] : memref<18x18x32xbf16, #tpu.memory_space<vmem>>, vector<16x16x32xbf16>
    %c0_100 = arith.constant 0 : index
    %c0_101 = arith.constant 0 : index
    %c96 = arith.constant 96 : index
    %64 = vector.load %arg11[%c0_100, %c0_101, %c96] : memref<16x16x288xbf16, #tpu.memory_space<vmem>>, vector<16x16x32xbf16>
    tpu.vector_store %arg11[%c0_100, %c0_101, %c96], %63 {strides = array<i32>} : memref<16x16x288xbf16, #tpu.memory_space<vmem>>, vector<16x16x32xbf16>,
    %c1_102 = arith.constant 1 : index
    %c1_103 = arith.constant 1 : index
    %c0_104 = arith.constant 0 : index
    %65 = vector.load %arg10[%c1_102, %c1_103, %c0_104] : memref<18x18x32xbf16, #tpu.memory_space<vmem>>, vector<16x16x32xbf16>
    %c0_105 = arith.constant 0 : index
    %c0_106 = arith.constant 0 : index
    %c128 = arith.constant 128 : index
    %66 = vector.load %arg11[%c0_105, %c0_106, %c128] : memref<16x16x288xbf16, #tpu.memory_space<vmem>>, vector<16x16x32xbf16>
    tpu.vector_store %arg11[%c0_105, %c0_106, %c128], %65 {strides = array<i32>} : memref<16x16x288xbf16, #tpu.memory_space<vmem>>, vector<16x16x32xbf16>,
    %c1_107 = arith.constant 1 : index
    %c2_108 = arith.constant 2 : index
    %c0_109 = arith.constant 0 : index
    %67 = vector.load %arg10[%c1_107, %c2_108, %c0_109] : memref<18x18x32xbf16, #tpu.memory_space<vmem>>, vector<16x16x32xbf16>
    %c0_110 = arith.constant 0 : index
    %c0_111 = arith.constant 0 : index
    %c160 = arith.constant 160 : index
    %68 = vector.load %arg11[%c0_110, %c0_111, %c160] : memref<16x16x288xbf16, #tpu.memory_space<vmem>>, vector<16x16x32xbf16>
    tpu.vector_store %arg11[%c0_110, %c0_111, %c160], %67 {strides = array<i32>} : memref<16x16x288xbf16, #tpu.memory_space<vmem>>, vector<16x16x32xbf16>,
    %c2_112 = arith.constant 2 : index
    %c0_113 = arith.constant 0 : index
    %c0_114 = arith.constant 0 : index
    %69 = vector.load %arg10[%c2_112, %c0_113, %c0_114] : memref<18x18x32xbf16, #tpu.memory_space<vmem>>, vector<16x16x32xbf16>
    %c0_115 = arith.constant 0 : index
    %c0_116 = arith.constant 0 : index
    %c192 = arith.constant 192 : index
    %70 = vector.load %arg11[%c0_115, %c0_116, %c192] : memref<16x16x288xbf16, #tpu.memory_space<vmem>>, vector<16x16x32xbf16>
    tpu.vector_store %arg11[%c0_115, %c0_116, %c192], %69 {strides = array<i32>} : memref<16x16x288xbf16, #tpu.memory_space<vmem>>, vector<16x16x32xbf16>,
    %c2_117 = arith.constant 2 : index
    %c1_118 = arith.constant 1 : index
    %c0_119 = arith.constant 0 : index
    %71 = vector.load %arg10[%c2_117, %c1_118, %c0_119] : memref<18x18x32xbf16, #tpu.memory_space<vmem>>, vector<16x16x32xbf16>
    %c0_120 = arith.constant 0 : index
    %c0_121 = arith.constant 0 : index
    %c224 = arith.constant 224 : index
    %72 = vector.load %arg11[%c0_120, %c0_121, %c224] : memref<16x16x288xbf16, #tpu.memory_space<vmem>>, vector<16x16x32xbf16>
    tpu.vector_store %arg11[%c0_120, %c0_121, %c224], %71 {strides = array<i32>} : memref<16x16x288xbf16, #tpu.memory_space<vmem>>, vector<16x16x32xbf16>,
    %c2_122 = arith.constant 2 : index
    %c2_123 = arith.constant 2 : index
    %c0_124 = arith.constant 0 : index
    %73 = vector.load %arg10[%c2_122, %c2_123, %c0_124] : memref<18x18x32xbf16, #tpu.memory_space<vmem>>, vector<16x16x32xbf16>
    %c0_125 = arith.constant 0 : index
    %c0_126 = arith.constant 0 : index
    %c256 = arith.constant 256 : index
    %74 = vector.load %arg11[%c0_125, %c0_126, %c256] : memref<16x16x288xbf16, #tpu.memory_space<vmem>>, vector<16x16x32xbf16>
    tpu.vector_store %arg11[%c0_125, %c0_126, %c256], %73 {strides = array<i32>} : memref<16x16x288xbf16, #tpu.memory_space<vmem>>, vector<16x16x32xbf16>,
    %c0_127 = arith.constant 0 : index
    %c0_128 = arith.constant 0 : index
    %c0_129 = arith.constant 0 : index
    %75 = vector.load %arg11[%c0_127, %c0_128, %c0_129] : memref<16x16x288xbf16, #tpu.memory_space<vmem>>, vector<16x16x288xbf16>
    %76 = vector.shape_cast %75 : vector<16x16x288xbf16> to vector<256x288xbf16>
    %c0_130 = arith.constant 0 : index
    %c0_131 = arith.constant 0 : index
    %77 = vector.load %arg4[%c0_130, %c0_131] : memref<288x32xbf16, #tpu.memory_space<vmem>>, vector<288x32xbf16>
    %cst_132 = arith.constant dense<0.000000e+00> : vector<256x32xf32>
    %78 = tpu.matmul %76, %77, %cst_132 {dimension_numbers = #tpu.dot_dimension_numbers<[1], [0], [0], [1], [0, 0, 1, 1], [], []>} : vector<256x288xbf16>, vector<288x32xbf16>, vector<256x32xf32> -> vector<256x32xf32>
    %c0_133 = arith.constant 0 : index
    %c0_134 = arith.constant 0 : index
    %79 = vector.load %arg5[%c0_133, %c0_134] : memref<3x32xf32, #tpu.memory_space<vmem>>, vector<1x32xf32>
    %80 = vector.broadcast %79 : vector<1x32xf32> to vector<256x32xf32>
    %81 = arith.addf %78, %80 : vector<256x32xf32>
    %c0_135 = arith.constant 0 : index
    %c0_136 = arith.constant 0 : index
    %82 = vector.load %arg6[%c0_135, %c0_136] : memref<32x32xf32, #tpu.memory_space<vmem>>, vector<32x32xf32>
    %cst_137 = arith.constant dense<0.000000e+00> : vector<32xf32>
    %83 = vector.multi_reduction <add>, %81, %cst_137 [0] : vector<256x32xf32> to vector<32xf32>
    %84 = vector.shape_cast %83 : vector<32xf32> to vector<1x32xf32>
    %cst_138 = arith.constant dense<0.000000e+00> : vector<1x32xf32>
    %85 = tpu.matmul %84, %82, %cst_138 {dimension_numbers = #tpu.dot_dimension_numbers<[1], [0], [0], [1], [0, 0, 1, 1], [], []>} : vector<1x32xf32>, vector<32x32xf32>, vector<1x32xf32> -> vector<1x32xf32>
    %86 = vector.broadcast %85 : vector<1x32xf32> to vector<256x32xf32>
    %87 = arith.subf %81, %86 : vector<256x32xf32>
    %88 = arith.mulf %87, %87 : vector<256x32xf32>
    %cst_139 = arith.constant dense<0.000000e+00> : vector<32xf32>
    %89 = vector.multi_reduction <add>, %88, %cst_139 [0] : vector<256x32xf32> to vector<32xf32>
    %90 = vector.shape_cast %89 : vector<32xf32> to vector<1x32xf32>
    %cst_140 = arith.constant dense<0.000000e+00> : vector<1x32xf32>
    %91 = tpu.matmul %90, %82, %cst_140 {dimension_numbers = #tpu.dot_dimension_numbers<[1], [0], [0], [1], [0, 0, 1, 1], [], []>} : vector<1x32xf32>, vector<32x32xf32>, vector<1x32xf32> -> vector<1x32xf32>
    %cst_141 = arith.constant 9.99999974E-6 : f32
    %92 = vector.broadcast %cst_141 : f32 to vector<1x32xf32>
    %93 = arith.addf %91, %92 : vector<1x32xf32>
    %94 = math.rsqrt %93 : vector<1x32xf32>
    %c1_142 = arith.constant 1 : index
    %c0_143 = arith.constant 0 : index
    %95 = vector.load %arg5[%c1_142, %c0_143] : memref<3x32xf32, #tpu.memory_space<vmem>>, vector<1x32xf32>
    %96 = arith.mulf %94, %95 : vector<1x32xf32>
    %97 = vector.broadcast %96 : vector<1x32xf32> to vector<256x32xf32>
    %98 = arith.mulf %87, %97 : vector<256x32xf32>
    %c2_144 = arith.constant 2 : index
    %c0_145 = arith.constant 0 : index
    %99 = vector.load %arg5[%c2_144, %c0_145] : memref<3x32xf32, #tpu.memory_space<vmem>>, vector<1x32xf32>
    %100 = vector.broadcast %99 : vector<1x32xf32> to vector<256x32xf32>
    %101 = arith.addf %98, %100 : vector<256x32xf32>
    %cst_146 = arith.constant 0.000000e+00 : f32
    %102 = vector.broadcast %cst_146 : f32 to vector<256x32xf32>
    %103 = arith.maximumf %101, %102 : vector<256x32xf32>
    %104 = vector.shape_cast %103 : vector<256x32xf32> to vector<16x16x32xf32>
    %c0_147 = arith.constant 0 : index
    %c0_148 = arith.constant 0 : index
    %c0_149 = arith.constant 0 : index
    %c0_150 = arith.constant 0 : index
    %105 = vector.load %arg7[%c0_147, %c0_148, %c0_149, %c0_150] : memref<1x16x16x32xf32, #tpu.memory_space<vmem>>, vector<1x16x16x32xf32>
    %106 = vector.shape_cast %105 : vector<1x16x16x32xf32> to vector<16x16x32xf32>
    %107 = vector.shape_cast %104 : vector<16x16x32xf32> to vector<1x16x16x32xf32>
    tpu.vector_store %arg7[%c0_147, %c0_148, %c0_149, %c0_150], %107 {strides = array<i32>} : memref<1x16x16x32xf32, #tpu.memory_space<vmem>>, vector<1x16x16x32xf32>,
    return
  }
  func.func @transform_0(%arg0: i32) -> (i32, i32, i32, i32) {
    %c0_i32 = arith.constant 0 : i32
    %c0_i32_0 = arith.constant 0 : i32
    %c0_i32_1 = arith.constant 0 : i32
    %c0_i32_2 = arith.constant 0 : i32
    return %arg0, %c0_i32, %c0_i32_0, %c0_i32_1 : i32, i32, i32, i32
  }
  func.func @transform_1(%arg0: i32) -> (i32, i32) {
    %c0_i32 = arith.constant 0 : i32
    %c0_i32_0 = arith.constant 0 : i32
    %c0_i32_1 = arith.constant 0 : i32
    return %c0_i32, %c0_i32_0 : i32, i32
  }
  func.func @transform_2(%arg0: i32) -> (i32, i32) {
    %c0_i32 = arith.constant 0 : i32
    %c0_i32_0 = arith.constant 0 : i32
    %c0_i32_1 = arith.constant 0 : i32
    return %c0_i32, %c0_i32_0 : i32, i32
  }
  func.func @transform_3(%arg0: i32) -> (i32, i32) {
    %c0_i32 = arith.constant 0 : i32
    %c0_i32_0 = arith.constant 0 : i32
    %c0_i32_1 = arith.constant 0 : i32
    return %c0_i32, %c0_i32_0 : i32, i32
  }
  func.func @transform_4(%arg0: i32) -> (i32, i32) {
    %c0_i32 = arith.constant 0 : i32
    %c0_i32_0 = arith.constant 0 : i32
    %c0_i32_1 = arith.constant 0 : i32
    return %c0_i32, %c0_i32_0 : i32, i32
  }
  func.func @transform_5(%arg0: i32) -> (i32, i32) {
    %c0_i32 = arith.constant 0 : i32
    %c0_i32_0 = arith.constant 0 : i32
    %c0_i32_1 = arith.constant 0 : i32
    return %c0_i32, %c0_i32_0 : i32, i32
  }
  func.func @transform_6(%arg0: i32) -> (i32, i32, i32, i32) {
    %c0_i32 = arith.constant 0 : i32
    %c0_i32_0 = arith.constant 0 : i32
    %c0_i32_1 = arith.constant 0 : i32
    %c0_i32_2 = arith.constant 0 : i32
    return %arg0, %c0_i32, %c0_i32_0, %c0_i32_1 : i32, i32, i32, i32
  }
}

</mosaic_0001>

<llo_original>
// kernel: tpu_custom_call.1
$region0: #{tpu_custom_call.1}
  #allocation0 [shape = 'u32[]', space=smem, size = 0x4, offset = 0x4, fixed_abs, tag = 'smem constant byte address 0x4 - core index']
  #allocation1 [shape = 'u32[144,128]{1,0:T(1,128)}', space=vmem, size = 0x12000, scoped, tag = 'internal scratch']
  #allocation2 [shape = 'bf16[18,18,4]{2,1,0:T(8,128)(2,1)}', space=vmem, size = 0x1b000, scoped, tag = 'scratch operand']
  #allocation3 [shape = 'bf16[16,16,36]{2,1,0:T(16,128)(2,1)}', space=vmem, size = 0x10000, scoped, tag = 'scratch operand']
  #allocation4 [shape = 'bf16[18,18,32]{2,1,0:T(8,128)(2,1)}', space=vmem, size = 0x1b000, scoped, tag = 'scratch operand']
  #allocation5 [shape = 'bf16[16,16,288]{2,1,0:T(16,128)(2,1)}', space=vmem, size = 0x30000, scoped, tag = 'scratch operand']
  %s0 = inlined_call_operand.vmem [shape: bf16[2,16,16,4], index: 0, kind: input, shape index: {}]
  %s1 = inlined_call_operand.vmem [shape: bf16[36,32], index: 1, kind: input, shape index: {}]
  %s2 = inlined_call_operand.vmem [shape: f32[3,32], index: 2, kind: input, shape index: {}]
  %s3 = inlined_call_operand.vmem [shape: bf16[288,32], index: 3, kind: input, shape index: {}]
  %s4 = inlined_call_operand.vmem [shape: f32[3,32], index: 4, kind: input, shape index: {}]
  %s5 = inlined_call_operand.vmem [shape: f32[32,32], index: 5, kind: input, shape index: {}]
  %s6 = inlined_call_operand.hbm [shape: f32[2,16,16,32], index: 6, kind: output, shape index: {}]
  %s7 = sld [smem:[#allocation0]]
  $region57: #{tpu_custom_call.1} parent=0
    _
  %s9 = ssub.s32 1, %s7
  %s10 = scalar_select 0, %s9, %s7
  $region1: #{tpu_custom_call.1} parent=0
    #allocation6 [shape = 'u8[262144]{0}', space=vmem, size = 0x40000, scoped, tag = 'output window, operand 0']
    #allocation7 [shape = 's32[2]{0}', space=sflag, size = 0x8, scoped, tag = 'scoped memory for tpu_custom_call.1']
    %11 = vsyncpa [#allocation7], 0
    %s12 = scalar_lea.sflag [#allocation7], 1
    %13 = vsyncpa %s12, 0
    loop: start=0, step=1, limit=4
    $region2: #{tpu_custom_call.1} parent=1 // loop_pre_header
      _
    $region3: #{tpu_custom_call.1} parent=1 // loop_header
      %s15 = sphi 0, %s19
      %p16 = scmp.ge.s32.totalorder %s15, 4
      %s25 = sphi 0, %s27
      %s28 = sphi 0, %s25
      %s29 = sphi 0, %s28
      %s45 = sphi 0, %s29
      %s49 = sphi 0, %s49
      %s51 = sphi 0, %s49
      %s52 = sphi 0, %s51
      %s66 = sphi 0, %s52
      %s70 = sphi 0, %s70
      %s72 = sphi 0, %s70
      %s73 = sphi 0, %s72
      %s87 = sphi 0, %s73
      %s91 = sphi 0, %s91
      %s93 = sphi 0, %s91
      %s94 = sphi 0, %s93
      %s108 = sphi 0, %s94
      %s112 = sphi 0, %s112
      %s114 = sphi 0, %s112
      %s115 = sphi 0, %s114
      %s129 = sphi 0, %s115
      %s133 = sphi 0, %s133
      %s135 = sphi 0, %s133
      %s136 = sphi 0, %s135
      %s150 = sphi 0, %s136
      %s156 = sphi 0, %s158
      %s159 = sphi 0, %s156
      %s160 = sphi 0, %s159
      %s176 = sphi 0, %s160
    $region4: #{tpu_custom_call.1} parent=1 // loop_header_branch
      %18 = sbr.rel (%p16) target = $region8
    $region5: #{tpu_custom_call.1} parent=1 // loop_body
      %s20 = ssub.s32 %s15, 1
      %s21 = ssub.s32 %s15, 2
      %s22 = sadd.s32 %s15, 1
      %s23 = ssub.s32 %s15, %s22
      %p24 = scmp.eq.s32.totalorder %s23, 0
      %s26 = sadd.s32 %s25, 1
      %s27 = scalar_select %p24, %s25, %s26
      %p30 = pneg %p24
      %p31 = scmp.eq.s32.totalorder %s15, 1
      %p32 = por %p30, %p31
      %p33 = scmp.ne.s32.totalorder %s25, %s28
      %p34 = scmp.eq.s32.totalorder %s15, 0
      %p35 = por %p33, %p34
      %p36 = scmp.ne.s32.totalorder %s25, %s28
      %p37 = scmp.eq.s32.totalorder %s20, 1
      %p38 = por %p36, %p37
      %p39 = scmp.ne.s32.totalorder %s28, %s29
      %p40 = scmp.eq.s32.totalorder %s20, 0
      %p41 = por %p39, %p40
      %p42 = scmp.ne.s32.totalorder %s28, %s29
      %p43 = scmp.eq.s32.totalorder %s21, 1
      %p44 = por %p42, %p43
      %p46 = scmp.ne.s32.totalorder %s29, %s45
      %p47 = scmp.eq.s32.totalorder %s21, 0
      %p48 = por %p46, %p47
      %s50 = sadd.s32 %s49, 1
      %p53 = scmp.eq.s32.totalorder %s15, 1
      %p54 = scmp.ne.s32.totalorder %s49, %s51
      %p55 = scmp.eq.s32.totalorder %s15, 0
      %p56 = por %p54, %p55
      %p57 = scmp.ne.s32.totalorder %s49, %s51
      %p58 = scmp.eq.s32.totalorder %s20, 1
      %p59 = por %p57, %p58
      %p60 = scmp.ne.s32.totalorder %s51, %s52
      %p61 = scmp.eq.s32.totalorder %s20, 0
      %p62 = por %p60, %p61
      %p63 = scmp.ne.s32.totalorder %s51, %s52
      %p64 = scmp.eq.s32.totalorder %s21, 1
      %p65 = por %p63, %p64
      %p67 = scmp.ne.s32.totalorder %s52, %s66
      %p68 = scmp.eq.s32.totalorder %s21, 0
      %p69 = por %p67, %p68
      %s71 = sadd.s32 %s70, 1
      %p74 = scmp.eq.s32.totalorder %s15, 1
      %p75 = scmp.ne.s32.totalorder %s70, %s72
      %p76 = scmp.eq.s32.totalorder %s15, 0
      %p77 = por %p75, %p76
      %p78 = scmp.ne.s32.totalorder %s70, %s72
      %p79 = scmp.eq.s32.totalorder %s20, 1
      %p80 = por %p78, %p79
      %p81 = scmp.ne.s32.totalorder %s72, %s73
      %p82 = scmp.eq.s32.totalorder %s20, 0
      %p83 = por %p81, %p82
      %p84 = scmp.ne.s32.totalorder %s72, %s73
      %p85 = scmp.eq.s32.totalorder %s21, 1
      %p86 = por %p84, %p85
      %p88 = scmp.ne.s32.totalorder %s73, %s87
      %p89 = scmp.eq.s32.totalorder %s21, 0
      %p90 = por %p88, %p89
      %s92 = sadd.s32 %s91, 1
      %p95 = scmp.eq.s32.totalorder %s15, 1
      %p96 = scmp.ne.s32.totalorder %s91, %s93
      %p97 = scmp.eq.s32.totalorder %s15, 0
      %p98 = por %p96, %p97
      %p99 = scmp.ne.s32.totalorder %s91, %s93
      %p100 = scmp.eq.s32.totalorder %s20, 1
      %p101 = por %p99, %p100
      %p102 = scmp.ne.s32.totalorder %s93, %s94
      %p103 = scmp.eq.s32.totalorder %s20, 0
      %p104 = por %p102, %p103
      %p105 = scmp.ne.s32.totalorder %s93, %s94
      %p106 = scmp.eq.s32.totalorder %s21, 1
      %p107 = por %p105, %p106
      %p109 = scmp.ne.s32.totalorder %s94, %s108
      %p110 = scmp.eq.s32.totalorder %s21, 0
      %p111 = por %p109, %p110
      %s113 = sadd.s32 %s112, 1
      %p116 = scmp.eq.s32.totalorder %s15, 1
      %p117 = scmp.ne.s32.totalorder %s112, %s114
      %p118 = scmp.eq.s32.totalorder %s15, 0
      %p119 = por %p117, %p118
      %p120 = scmp.ne.s32.totalorder %s112, %s114
      %p121 = scmp.eq.s32.totalorder %s20, 1
      %p122 = por %p120, %p121
      %p123 = scmp.ne.s32.totalorder %s114, %s115
      %p124 = scmp.eq.s32.totalorder %s20, 0
      %p125 = por %p123, %p124
      %p126 = scmp.ne.s32.totalorder %s114, %s115
      %p127 = scmp.eq.s32.totalorder %s21, 1
      %p128 = por %p126, %p127
      %p130 = scmp.ne.s32.totalorder %s115, %s129
      %p131 = scmp.eq.s32.totalorder %s21, 0
      %p132 = por %p130, %p131
      %s134 = sadd.s32 %s133, 1
      %p137 = scmp.eq.s32.totalorder %s15, 1
      %p138 = scmp.ne.s32.totalorder %s133, %s135
      %p139 = scmp.eq.s32.totalorder %s15, 0
      %p140 = por %p138, %p139
      %p141 = scmp.ne.s32.totalorder %s133, %s135
      %p142 = scmp.eq.s32.totalorder %s20, 1
      %p143 = por %p141, %p142
      %p144 = scmp.ne.s32.totalorder %s135, %s136
      %p145 = scmp.eq.s32.totalorder %s20, 0
      %p146 = por %p144, %p145
      %p147 = scmp.ne.s32.totalorder %s135, %s136
      %p148 = scmp.eq.s32.totalorder %s21, 1
      %p149 = por %p147, %p148
      %p151 = scmp.ne.s32.totalorder %s136, %s150
      %p152 = scmp.eq.s32.totalorder %s21, 0
      %p153 = por %p151, %p152
      %s154 = ssub.s32 %s15, %s22
      %p155 = scmp.eq.s32.totalorder %s154, 0
      %s157 = sadd.s32 %s156, 1
      %s158 = scalar_select %p155, %s156, %s157
      %p161 = pneg %p155
      %p162 = scmp.eq.s32.totalorder %s15, 1
      %p163 = por %p161, %p162
      %p164 = scmp.ne.s32.totalorder %s156, %s159
      %p165 = scmp.eq.s32.totalorder %s15, 0
      %p166 = por %p164, %p165
      %p167 = scmp.ne.s32.totalorder %s156, %s159
      %p168 = scmp.eq.s32.totalorder %s20, 1
      %p169 = por %p167, %p168
      %p170 = scmp.ne.s32.totalorder %s159, %s160
      %p171 = scmp.eq.s32.totalorder %s20, 0
      %p172 = por %p170, %p171
      %p173 = scmp.ne.s32.totalorder %s159, %s160
      %p174 = scmp.eq.s32.totalorder %s21, 1
      %p175 = por %p173, %p174
      %p177 = scmp.ne.s32.totalorder %s160, %s176
      %p178 = scmp.eq.s32.totalorder %s21, 0
      %p179 = por %p177, %p178
      %p180 = scmp.le.s32.totalorder 1, %s15
      %p181 = scmp.lt.s32.totalorder %s15, 3
      %p182 = pnand %p180, %p181
      %p183 = pneg %p182
      // Predicated region
      $region9: #{tpu_custom_call.1} parent=5 // pred_check
        _
      $region10: #{tpu_custom_call.1} parent=5 // pred_check_branch
        %185 = sbr.rel (%p182) target = $region12
      $region11: #{tpu_custom_call.1} parent=5 // pred_region
        %s186 = ssub.s32 %s15, 1
        // Predicated region
        $region13: #{tpu_custom_call.1} parent=11 // pred_check
          %p187 = pneg %p62
        $region14: #{tpu_custom_call.1} parent=11 // pred_check_branch
          %189 = sbr.rel (%p187) target = $region16
        $region15: #{tpu_custom_call.1} parent=11 // pred_region
          _
        $region16: #{tpu_custom_call.1} parent=11 // pred_fallthru
          _
        // Predicated region
        $region17: #{tpu_custom_call.1} parent=11 // pred_check
          %p190 = pneg %p83
        $region18: #{tpu_custom_call.1} parent=11 // pred_check_branch
          %192 = sbr.rel (%p190) target = $region20
        $region19: #{tpu_custom_call.1} parent=11 // pred_region
          _
        $region20: #{tpu_custom_call.1} parent=11 // pred_fallthru
          _
        // Predicated region
        $region21: #{tpu_custom_call.1} parent=11 // pred_check
          %p193 = pneg %p104
        $region22: #{tpu_custom_call.1} parent=11 // pred_check_branch
          %195 = sbr.rel (%p193) target = $region24
        $region23: #{tpu_custom_call.1} parent=11 // pred_region
          _
        $region24: #{tpu_custom_call.1} parent=11 // pred_fallthru
          _
        // Predicated region
        $region25: #{tpu_custom_call.1} parent=11 // pred_check
          %p196 = pneg %p125
        $region26: #{tpu_custom_call.1} parent=11 // pred_check_branch
          %198 = sbr.rel (%p196) target = $region28
        $region27: #{tpu_custom_call.1} parent=11 // pred_region
          _
        $region28: #{tpu_custom_call.1} parent=11 // pred_fallthru
          _
        // Predicated region
        $region29: #{tpu_custom_call.1} parent=11 // pred_check
          %p199 = pneg %p146
        $region30: #{tpu_custom_call.1} parent=11 // pred_check_branch
          %201 = sbr.rel (%p199) target = $region32
        $region31: #{tpu_custom_call.1} parent=11 // pred_region
          _
        $region32: #{tpu_custom_call.1} parent=11 // pred_fallthru
          _
      $region12: #{tpu_custom_call.1} parent=5 // pred_fallthru
        _
      %p202 = scmp.lt.s32.totalorder %s15, 2
      // Predicated region
      $region33: #{tpu_custom_call.1} parent=5 // pred_check
        %p203 = pneg %p202
      $region34: #{tpu_custom_call.1} parent=5 // pred_check_branch
        %205 = sbr.rel (%p203) target = $region36
      $region35: #{tpu_custom_call.1} parent=5 // pred_region
        // Predicated region
        $region37: #{tpu_custom_call.1} parent=35 // pred_check
          %p206 = pneg %p35
        $region38: #{tpu_custom_call.1} parent=35 // pred_check_branch
          %208 = sbr.rel (%p206) target = $region40
        $region39: #{tpu_custom_call.1} parent=35 // pred_region
          %p209 = scmp.lt.s32.totalorder %s15, 1
          %s210 = scalar_select %p209, %s15, 1
          %s211 = smul.addr %s210, 32
          %s212 = smul.addr %s211, 4
          %s213 = scalar_lea.vmem %s0, %s212
        $region40: #{tpu_custom_call.1} parent=35 // pred_fallthru
          _
      $region36: #{tpu_custom_call.1} parent=5 // pred_fallthru
        _
      %p214 = scmp.le.s32.totalorder 1, %s15
      %p215 = scmp.lt.s32.totalorder %s15, 3
      %p216 = pnand %p214, %p215
      %p217 = pneg %p216
      // Predicated region
      $region41: #{tpu_custom_call.1} parent=5 // pred_check
        _
      $region42: #{tpu_custom_call.1} parent=5 // pred_check_branch
        %219 = sbr.rel (%p216) target = $region44
      $region43: #{tpu_custom_call.1} parent=5 // pred_region
        %s220 = ssub.s32 %s15, 1
        %p221 = scmp.lt.s32.totalorder %s20, 1
        %s222 = scalar_select %p221, %s20, 1
        %s223 = smul.addr %s222, 32
        %s224 = smul.addr %s223, 4
        %s225 = scalar_lea.vmem %s0, %s224
        %p226 = pneg %p41
        %p227 = pneg %p38
        %p228 = pneg %p62
        %p229 = pneg %p59
        %p230 = pneg %p83
        %p231 = pneg %p80
        %p232 = pneg %p104
        %p233 = pneg %p101
        %p234 = pneg %p125
        %p235 = pneg %p122
        %p236 = pneg %p146
        %p237 = pneg %p143
        %p238 = pneg %p172
        %p239 = pneg %p169
        %s240 = sand.u32 %s159, 1
        %s241 = scalar_lea.sflag [#allocation7], %s240
        %s242 = sand.u32 %s159, 1
        %s243 = smul.addr %s242, 256
        %s244 = scalar_lea.vmem [#allocation6], %s243
        %p245 = scmp.lt.s32.totalorder %s20, 1
        %s246 = scalar_select %p245, %s20, 1
        %s247 = smul.addr %s246, 32
        %s248 = smul.addr %s247, 4
        %s249 = scalar_lea.vmem %s0, %s248
        %vm251 = vcmask 27648
        %252 = vst.msk [vmem:[#allocation2] sm:$0xf] %vm251, 0
        %253 = vst.msk [vmem:[#allocation2 + $0x4] sm:$0xf] %vm251, 0
        %vm254 = vcmask 24576
        %255 = vst.msk [vmem:[#allocation2 + $0x8] sm:$0x1] %vm254, 0
        %256 = vst.msk [vmem:[#allocation2 + $0xc] sm:$0xf] %vm251, 0
        %257 = vst.msk [vmem:[#allocation2 + $0x10] sm:$0xf] %vm251, 0
        %258 = vst.msk [vmem:[#allocation2 + $0x14] sm:$0x1] %vm254, 0
        %259 = vst.msk [vmem:[#allocation2 + $0x18] sm:$0xf] %vm251, 0
        %260 = vst.msk [vmem:[#allocation2 + $0x1c] sm:$0xf] %vm251, 0
        %261 = vst.msk [vmem:[#allocation2 + $0x20] sm:$0x1] %vm254, 0
        %262 = vst.msk [vmem:[#allocation2 + $0x24] sm:$0xf] %vm251, 0
        %263 = vst.msk [vmem:[#allocation2 + $0x28] sm:$0xf] %vm251, 0
        %264 = vst.msk [vmem:[#allocation2 + $0x2c] sm:$0x1] %vm254, 0
        %265 = vst.msk [vmem:[#allocation2 + $0x30] sm:$0xf] %vm251, 0
        %266 = vst.msk [vmem:[#allocation2 + $0x34] sm:$0xf] %vm251, 0
        %267 = vst.msk [vmem:[#allocation2 + $0x38] sm:$0x1] %vm254, 0
        %268 = vst.msk [vmem:[#allocation2 + $0x3c] sm:$0xf] %vm251, 0
        %269 = vst.msk [vmem:[#allocation2 + $0x40] sm:$0xf] %vm251, 0
        %270 = vst.msk [vmem:[#allocation2 + $0x44] sm:$0x1] %vm254, 0
        %271 = vst.msk [vmem:[#allocation2 + $0x48] sm:$0xf] %vm251, 0
        %272 = vst.msk [vmem:[#allocation2 + $0x4c] sm:$0xf] %vm251, 0
        %273 = vst.msk [vmem:[#allocation2 + $0x50] sm:$0x1] %vm254, 0
        %274 = vst.msk [vmem:[#allocation2 + $0x54] sm:$0xf] %vm251, 0
        %275 = vst.msk [vmem:[#allocation2 + $0x58] sm:$0xf] %vm251, 0
        %276 = vst.msk [vmem:[#allocation2 + $0x5c] sm:$0x1] %vm254, 0
        %277 = vst.msk [vmem:[#allocation2 + $0x60] sm:$0xf] %vm251, 0
        %278 = vst.msk [vmem:[#allocation2 + $0x64] sm:$0xf] %vm251, 0
        %279 = vst.msk [vmem:[#allocation2 + $0x68] sm:$0x1] %vm254, 0
        %280 = vst.msk [vmem:[#allocation2 + $0x6c] sm:$0xf] %vm251, 0
        %281 = vst.msk [vmem:[#allocation2 + $0x70] sm:$0xf] %vm251, 0
        %282 = vst.msk [vmem:[#allocation2 + $0x74] sm:$0x1] %vm254, 0
        %283 = vst.msk [vmem:[#allocation2 + $0x78] sm:$0xf] %vm251, 0
        %284 = vst.msk [vmem:[#allocation2 + $0x7c] sm:$0xf] %vm251, 0
        %285 = vst.msk [vmem:[#allocation2 + $0x80] sm:$0x1] %vm254, 0
        %286 = vst.msk [vmem:[#allocation2 + $0x84] sm:$0xf] %vm251, 0
        %287 = vst.msk [vmem:[#allocation2 + $0x88] sm:$0xf] %vm251, 0
        %288 = vst.msk [vmem:[#allocation2 + $0x8c] sm:$0x1] %vm254, 0
        %289 = vst.msk [vmem:[#allocation2 + $0x90] sm:$0xf] %vm251, 0
        %290 = vst.msk [vmem:[#allocation2 + $0x94] sm:$0xf] %vm251, 0
        %291 = vst.msk [vmem:[#allocation2 + $0x98] sm:$0x1] %vm254, 0
        %292 = vst.msk [vmem:[#allocation2 + $0x9c] sm:$0xf] %vm251, 0
        %293 = vst.msk [vmem:[#allocation2 + $0xa0] sm:$0xf] %vm251, 0
        %294 = vst.msk [vmem:[#allocation2 + $0xa4] sm:$0x1] %vm254, 0
        %295 = vst.msk [vmem:[#allocation2 + $0xa8] sm:$0xf] %vm251, 0
        %296 = vst.msk [vmem:[#allocation2 + $0xac] sm:$0xf] %vm251, 0
        %297 = vst.msk [vmem:[#allocation2 + $0xb0] sm:$0x1] %vm254, 0
        %298 = vst.msk [vmem:[#allocation2 + $0xb4] sm:$0xf] %vm251, 0
        %299 = vst.msk [vmem:[#allocation2 + $0xb8] sm:$0xf] %vm251, 0
        %300 = vst.msk [vmem:[#allocation2 + $0xbc] sm:$0x1] %vm254, 0
        %301 = vst.msk [vmem:[#allocation2 + $0xc0] sm:$0xf] %vm251, 0
        %302 = vst.msk [vmem:[#allocation2 + $0xc4] sm:$0xf] %vm251, 0
        %303 = vst.msk [vmem:[#allocation2 + $0xc8] sm:$0x1] %vm254, 0
        %304 = vst.msk [vmem:[#allocation2 + $0xcc] sm:$0xf] %vm251, 0
        %305 = vst.msk [vmem:[#allocation2 + $0xd0] sm:$0xf] %vm251, 0
        %306 = vst.msk [vmem:[#allocation2 + $0xd4] sm:$0x1] %vm254, 0
        %v307 = vld [vmem:[%s249] sm:$0xf]
        %v308 = vld [vmem:[%s249 + $0x4] sm:$0xf]
        %v309 = vld [vmem:[%s249 + $0x8] sm:$0xf]
        %v310 = vld [vmem:[%s249 + $0xc] sm:$0xf]
        %v311 = vld [vmem:[%s249 + $0x10] sm:$0xf]
        %v312 = vld [vmem:[%s249 + $0x14] sm:$0xf]
        %v313 = vld [vmem:[%s249 + $0x18] sm:$0xf]
        %v314 = vld [vmem:[%s249 + $0x1c] sm:$0xf]
        %v315 = vld [vmem:[%s249 + $0x20] sm:$0xf]
        %v316 = vld [vmem:[%s249 + $0x24] sm:$0xf]
        %v317 = vld [vmem:[%s249 + $0x28] sm:$0xf]
        %v318 = vld [vmem:[%s249 + $0x2c] sm:$0xf]
        %v319 = vld [vmem:[%s249 + $0x30] sm:$0xf]
        %v320 = vld [vmem:[%s249 + $0x34] sm:$0xf]
        %v321 = vld [vmem:[%s249 + $0x38] sm:$0xf]
        %v322 = vld [vmem:[%s249 + $0x3c] sm:$0xf]
        %v323 = vld [vmem:[%s249 + $0x40] sm:$0xf]
        %v324 = vld [vmem:[%s249 + $0x44] sm:$0xf]
        %v325 = vld [vmem:[%s249 + $0x48] sm:$0xf]
        %v326 = vld [vmem:[%s249 + $0x4c] sm:$0xf]
        %v327 = vld [vmem:[%s249 + $0x50] sm:$0xf]
        %v328 = vld [vmem:[%s249 + $0x54] sm:$0xf]
        %v329 = vld [vmem:[%s249 + $0x58] sm:$0xf]
        %v330 = vld [vmem:[%s249 + $0x5c] sm:$0xf]
        %v331 = vld [vmem:[%s249 + $0x60] sm:$0xf]
        %v332 = vld [vmem:[%s249 + $0x64] sm:$0xf]
        %v333 = vld [vmem:[%s249 + $0x68] sm:$0xf]
        %v334 = vld [vmem:[%s249 + $0x6c] sm:$0xf]
        %v335 = vld [vmem:[%s249 + $0x70] sm:$0xf]
        %v336 = vld [vmem:[%s249 + $0x74] sm:$0xf]
        %v337 = vld [vmem:[%s249 + $0x78] sm:$0xf]
        %v338 = vld [vmem:[%s249 + $0x7c] sm:$0xf]
        %vm339 = vsmask.f32 256
        %vm340 = vsmask.f32 4368
        %vm341 = vmor %vm339, %vm340
        %v343 = vshrl.u32 %v307, 16
        %v345 = vrot.slane %v343, 7
        %v346 = vshll.u32 %v307, 16
        %v348 = vor.u32 %v345, %v346
        %v349 = vrot.slane %v345, 4
        %v351 = vshrl.u32 %v308, 16
        %v353 = vrot.slane %v351, 7
        %v354 = vshll.u32 %v308, 16
        %v356 = vor.u32 %v353, %v354
        %v357 = vsel %vm341, %v349, %v356
        %v358 = vrot.slane %v353, 4
        %v360 = vshrl.u32 %v309, 16
        %v362 = vrot.slane %v360, 7
        %v363 = vshll.u32 %v309, 16
        %v365 = vor.u32 %v362, %v363
        %v366 = vrot.slane %v362, 4
        %v368 = vshrl.u32 %v310, 16
        %v370 = vrot.slane %v368, 7
        %v371 = vshll.u32 %v310, 16
        %v373 = vor.u32 %v370, %v371
        %v374 = vsel %vm341, %v366, %v373
        %v375 = vrot.slane %v370, 4
        %v377 = vshrl.u32 %v311, 16
        %v379 = vrot.slane %v377, 7
        %v380 = vshll.u32 %v311, 16
        %v382 = vor.u32 %v379, %v380
        %v383 = vrot.slane %v379, 4
        %v385 = vshrl.u32 %v312, 16
        %v387 = vrot.slane %v385, 7
        %v388 = vshll.u32 %v312, 16
        %v390 = vor.u32 %v387, %v388
        %v391 = vsel %vm341, %v383, %v390
        %v392 = vrot.slane %v387, 4
        %v394 = vshrl.u32 %v313, 16
        %v396 = vrot.slane %v394, 7
        %v397 = vshll.u32 %v313, 16
        %v399 = vor.u32 %v396, %v397
        %v400 = vrot.slane %v396, 4
        %v402 = vshrl.u32 %v314, 16
        %v404 = vrot.slane %v402, 7
        %v405 = vshll.u32 %v314, 16
        %v407 = vor.u32 %v404, %v405
        %v408 = vsel %vm341, %v400, %v407
        %v409 = vrot.slane %v404, 4
        %v411 = vshrl.u32 %v315, 16
        %v413 = vrot.slane %v411, 7
        %v414 = vshll.u32 %v315, 16
        %v416 = vor.u32 %v413, %v414
        %v417 = vrot.slane %v413, 4
        %v419 = vshrl.u32 %v316, 16
        %v421 = vrot.slane %v419, 7
        %v422 = vshll.u32 %v316, 16
        %v424 = vor.u32 %v421, %v422
        %v425 = vsel %vm341, %v417, %v424
        %v426 = vrot.slane %v421, 4
        %v428 = vshrl.u32 %v317, 16
        %v430 = vrot.slane %v428, 7
        %v431 = vshll.u32 %v317, 16
        %v433 = vor.u32 %v430, %v431
        %v434 = vrot.slane %v430, 4
        %v436 = vshrl.u32 %v318, 16
        %v438 = vrot.slane %v436, 7
        %v439 = vshll.u32 %v318, 16
        %v441 = vor.u32 %v438, %v439
        %v442 = vsel %vm341, %v434, %v441
        %v443 = vrot.slane %v438, 4
        %v445 = vshrl.u32 %v319, 16
        %v447 = vrot.slane %v445, 7
        %v448 = vshll.u32 %v319, 16
        %v450 = vor.u32 %v447, %v448
        %v451 = vrot.slane %v447, 4
        %v453 = vshrl.u32 %v320, 16
        %v455 = vrot.slane %v453, 7
        %v456 = vshll.u32 %v320, 16
        %v458 = vor.u32 %v455, %v456
        %v459 = vsel %vm341, %v451, %v458
        %v460 = vrot.slane %v455, 4
        %v462 = vshrl.u32 %v321, 16
        %v464 = vrot.slane %v462, 7
        %v465 = vshll.u32 %v321, 16
        %v467 = vor.u32 %v464, %v465
        %v468 = vrot.slane %v464, 4
        %v470 = vshrl.u32 %v322, 16
        %v472 = vrot.slane %v470, 7
        %v473 = vshll.u32 %v322, 16
        %v475 = vor.u32 %v472, %v473
        %v476 = vsel %vm341, %v468, %v475
        %v477 = vrot.slane %v472, 4
        %v479 = vshrl.u32 %v323, 16
        %v481 = vrot.slane %v479, 7
        %v482 = vshll.u32 %v323, 16
        %v484 = vor.u32 %v481, %v482
        %v485 = vrot.slane %v481, 4
        %v487 = vshrl.u32 %v324, 16
        %v489 = vrot.slane %v487, 7
        %v490 = vshll.u32 %v324, 16
        %v492 = vor.u32 %v489, %v490
        %v493 = vsel %vm341, %v485, %v492
        %v494 = vrot.slane %v489, 4
        %v496 = vshrl.u32 %v325, 16
        %v498 = vrot.slane %v496, 7
        %v499 = vshll.u32 %v325, 16
        %v501 = vor.u32 %v498, %v499
        %v502 = vrot.slane %v498, 4
        %v504 = vshrl.u32 %v326, 16
        %v506 = vrot.slane %v504, 7
        %v507 = vshll.u32 %v326, 16
        %v509 = vor.u32 %v506, %v507
        %v510 = vsel %vm341, %v502, %v509
        %v511 = vrot.slane %v506, 4
        %v513 = vshrl.u32 %v327, 16
        %v515 = vrot.slane %v513, 7
        %v516 = vshll.u32 %v327, 16
        %v518 = vor.u32 %v515, %v516
        %v519 = vrot.slane %v515, 4
        %v521 = vshrl.u32 %v328, 16
        %v523 = vrot.slane %v521, 7
        %v524 = vshll.u32 %v328, 16
        %v526 = vor.u32 %v523, %v524
        %v527 = vsel %vm341, %v519, %v526
        %v528 = vrot.slane %v523, 4
        %v530 = vshrl.u32 %v329, 16
        %v532 = vrot.slane %v530, 7
        %v533 = vshll.u32 %v329, 16
        %v535 = vor.u32 %v532, %v533
        %v536 = vrot.slane %v532, 4
        %v538 = vshrl.u32 %v330, 16
        %v540 = vrot.slane %v538, 7
        %v541 = vshll.u32 %v330, 16
        %v543 = vor.u32 %v540, %v541
        %v544 = vsel %vm341, %v536, %v543
        %v545 = vrot.slane %v540, 4
        %v547 = vshrl.u32 %v331, 16
        %v549 = vrot.slane %v547, 7
        %v550 = vshll.u32 %v331, 16
        %v552 = vor.u32 %v549, %v550
        %v553 = vrot.slane %v549, 4
        %v555 = vshrl.u32 %v332, 16
        %v557 = vrot.slane %v555, 7
        %v558 = vshll.u32 %v332, 16
        %v560 = vor.u32 %v557, %v558
        %v561 = vsel %vm341, %v553, %v560
        %v562 = vrot.slane %v557, 4
        %v564 = vshrl.u32 %v333, 16
        %v566 = vrot.slane %v564, 7
        %v567 = vshll.u32 %v333, 16
        %v569 = vor.u32 %v566, %v567
        %v570 = vrot.slane %v566, 4
        %v572 = vshrl.u32 %v334, 16
        %v574 = vrot.slane %v572, 7
        %v575 = vshll.u32 %v334, 16
        %v577 = vor.u32 %v574, %v575
        %v578 = vsel %vm341, %v570, %v577
        %v579 = vrot.slane %v574, 4
        %v581 = vshrl.u32 %v335, 16
        %v583 = vrot.slane %v581, 7
        %v584 = vshll.u32 %v335, 16
        %v586 = vor.u32 %v583, %v584
        %v587 = vrot.slane %v583, 4
        %v589 = vshrl.u32 %v336, 16
        %v591 = vrot.slane %v589, 7
        %v592 = vshll.u32 %v336, 16
        %v594 = vor.u32 %v591, %v592
        %v595 = vsel %vm341, %v587, %v594
        %v596 = vrot.slane %v591, 4
        %v598 = vshrl.u32 %v337, 16
        %v600 = vrot.slane %v598, 7
        %v601 = vshll.u32 %v337, 16
        %v603 = vor.u32 %v600, %v601
        %v604 = vrot.slane %v600, 4
        %v606 = vshrl.u32 %v338, 16
        %v608 = vrot.slane %v606, 7
        %v609 = vshll.u32 %v338, 16
        %v611 = vor.u32 %v608, %v609
        %v612 = vsel %vm341, %v604, %v611
        %v613 = vrot.slane %v608, 4
        %s662 = scalar_lea.vmem [#allocation2], 12
        %vm663 = vcmask 27648
        %vm664 = vsmask.f32 7938
        %vm665 = vmand %vm663, %vm664
        %v666 = vld [vmem:[%s662] sm:$0xf]
        %v667 = vsel %vm665, %v348, %v666
        %668 = vst [vmem:[%s662] sm:$0xf] %v667
        %669 = vst.msk [vmem:[%s662 + $0x4] sm:$0xf] %vm251, %v357
        %vm670 = vcmask 24576
        %vm671 = vmand %vm670, %vm339
        %v672 = vld [vmem:[%s662 + $0x8] sm:$0x1]
        %v673 = vsel %vm671, %v358, %v672
        %674 = vst [vmem:[%s662 + $0x8] sm:$0x1] %v673
        %v675 = vld [vmem:[%s662 + $0xc] sm:$0xf]
        %v676 = vsel %vm665, %v365, %v675
        %677 = vst [vmem:[%s662 + $0xc] sm:$0xf] %v676
        %678 = vst.msk [vmem:[%s662 + $0x10] sm:$0xf] %vm251, %v374
        %v679 = vld [vmem:[%s662 + $0x14] sm:$0x1]
        %v680 = vsel %vm671, %v375, %v679
        %681 = vst [vmem:[%s662 + $0x14] sm:$0x1] %v680
        %v682 = vld [vmem:[%s662 + $0x18] sm:$0xf]
        %v683 = vsel %vm665, %v382, %v682
        %684 = vst [vmem:[%s662 + $0x18] sm:$0xf] %v683
        %685 = vst.msk [vmem:[%s662 + $0x1c] sm:$0xf] %vm251, %v391
        %v686 = vld [vmem:[%s662 + $0x20] sm:$0x1]
        %v687 = vsel %vm671, %v392, %v686
        %688 = vst [vmem:[%s662 + $0x20] sm:$0x1] %v687
        %v689 = vld [vmem:[%s662 + $0x24] sm:$0xf]
        %v690 = vsel %vm665, %v399, %v689
        %691 = vst [vmem:[%s662 + $0x24] sm:$0xf] %v690
        %692 = vst.msk [vmem:[%s662 + $0x28] sm:$0xf] %vm251, %v408
        %v693 = vld [vmem:[%s662 + $0x2c] sm:$0x1]
        %v694 = vsel %vm671, %v409, %v693
        %695 = vst [vmem:[%s662 + $0x2c] sm:$0x1] %v694
        %v696 = vld [vmem:[%s662 + $0x30] sm:$0xf]
        %v697 = vsel %vm665, %v416, %v696
        %698 = vst [vmem:[%s662 + $0x30] sm:$0xf] %v697
        %699 = vst.msk [vmem:[%s662 + $0x34] sm:$0xf] %vm251, %v425
        %v700 = vld [vmem:[%s662 + $0x38] sm:$0x1]
        %v701 = vsel %vm671, %v426, %v700
        %702 = vst [vmem:[%s662 + $0x38] sm:$0x1] %v701
        %v703 = vld [vmem:[%s662 + $0x3c] sm:$0xf]
        %v704 = vsel %vm665, %v433, %v703
        %705 = vst [vmem:[%s662 + $0x3c] sm:$0xf] %v704
        %706 = vst.msk [vmem:[%s662 + $0x40] sm:$0xf] %vm251, %v442
        %v707 = vld [vmem:[%s662 + $0x44] sm:$0x1]
        %v708 = vsel %vm671, %v443, %v707
        %709 = vst [vmem:[%s662 + $0x44] sm:$0x1] %v708
        %v710 = vld [vmem:[%s662 + $0x48] sm:$0xf]
        %v711 = vsel %vm665, %v450, %v710
        %712 = vst [vmem:[%s662 + $0x48] sm:$0xf] %v711
        %713 = vst.msk [vmem:[%s662 + $0x4c] sm:$0xf] %vm251, %v459
        %v714 = vld [vmem:[%s662 + $0x50] sm:$0x1]
        %v715 = vsel %vm671, %v460, %v714
        %716 = vst [vmem:[%s662 + $0x50] sm:$0x1] %v715
        %v717 = vld [vmem:[%s662 + $0x54] sm:$0xf]
        %v718 = vsel %vm665, %v467, %v717
        %719 = vst [vmem:[%s662 + $0x54] sm:$0xf] %v718
        %720 = vst.msk [vmem:[%s662 + $0x58] sm:$0xf] %vm251, %v476
        %v721 = vld [vmem:[%s662 + $0x5c] sm:$0x1]
        %v722 = vsel %vm671, %v477, %v721
        %723 = vst [vmem:[%s662 + $0x5c] sm:$0x1] %v722
        %v724 = vld [vmem:[%s662 + $0x60] sm:$0xf]
        %v725 = vsel %vm665, %v484, %v724
        %726 = vst [vmem:[%s662 + $0x60] sm:$0xf] %v725
        %727 = vst.msk [vmem:[%s662 + $0x64] sm:$0xf] %vm251, %v493
        %v728 = vld [vmem:[%s662 + $0x68] sm:$0x1]
        %v729 = vsel %vm671, %v494, %v728
        %730 = vst [vmem:[%s662 + $0x68] sm:$0x1] %v729
        %v731 = vld [vmem:[%s662 + $0x6c] sm:$0xf]
        %v732 = vsel %vm665, %v501, %v731
        %733 = vst [vmem:[%s662 + $0x6c] sm:$0xf] %v732
        %734 = vst.msk [vmem:[%s662 + $0x70] sm:$0xf] %vm251, %v510
        %v735 = vld [vmem:[%s662 + $0x74] sm:$0x1]
        %v736 = vsel %vm671, %v511, %v735
        %737 = vst [vmem:[%s662 + $0x74] sm:$0x1] %v736
        %v738 = vld [vmem:[%s662 + $0x78] sm:$0xf]
        %v739 = vsel %vm665, %v518, %v738
        %740 = vst [vmem:[%s662 + $0x78] sm:$0xf] %v739
        %741 = vst.msk [vmem:[%s662 + $0x7c] sm:$0xf] %vm251, %v527
        %v742 = vld [vmem:[%s662 + $0x80] sm:$0x1]
        %v743 = vsel %vm671, %v528, %v742
        %744 = vst [vmem:[%s662 + $0x80] sm:$0x1] %v743
        %v745 = vld [vmem:[%s662 + $0x84] sm:$0xf]
        %v746 = vsel %vm665, %v535, %v745
        %747 = vst [vmem:[%s662 + $0x84] sm:$0xf] %v746
        %748 = vst.msk [vmem:[%s662 + $0x88] sm:$0xf] %vm251, %v544
        %v749 = vld [vmem:[%s662 + $0x8c] sm:$0x1]
        %v750 = vsel %vm671, %v545, %v749
        %751 = vst [vmem:[%s662 + $0x8c] sm:$0x1] %v750
        %v752 = vld [vmem:[%s662 + $0x90] sm:$0xf]
        %v753 = vsel %vm665, %v552, %v752
        %754 = vst [vmem:[%s662 + $0x90] sm:$0xf] %v753
        %755 = vst.msk [vmem:[%s662 + $0x94] sm:$0xf] %vm251, %v561
        %v756 = vld [vmem:[%s662 + $0x98] sm:$0x1]
        %v757 = vsel %vm671, %v562, %v756
        %758 = vst [vmem:[%s662 + $0x98] sm:$0x1] %v757
        %v759 = vld [vmem:[%s662 + $0x9c] sm:$0xf]
        %v760 = vsel %vm665, %v569, %v759
        %761 = vst [vmem:[%s662 + $0x9c] sm:$0xf] %v760
        %762 = vst.msk [vmem:[%s662 + $0xa0] sm:$0xf] %vm251, %v578
        %v763 = vld [vmem:[%s662 + $0xa4] sm:$0x1]
        %v764 = vsel %vm671, %v579, %v763
        %765 = vst [vmem:[%s662 + $0xa4] sm:$0x1] %v764
        %v766 = vld [vmem:[%s662 + $0xa8] sm:$0xf]
        %v767 = vsel %vm665, %v586, %v766
        %768 = vst [vmem:[%s662 + $0xa8] sm:$0xf] %v767
        %769 = vst.msk [vmem:[%s662 + $0xac] sm:$0xf] %vm251, %v595
        %v770 = vld [vmem:[%s662 + $0xb0] sm:$0x1]
        %v771 = vsel %vm671, %v596, %v770
        %772 = vst [vmem:[%s662 + $0xb0] sm:$0x1] %v771
        %v773 = vld [vmem:[%s662 + $0xb4] sm:$0xf]
        %v774 = vsel %vm665, %v603, %v773
        %775 = vst [vmem:[%s662 + $0xb4] sm:$0xf] %v774
        %776 = vst.msk [vmem:[%s662 + $0xb8] sm:$0xf] %vm251, %v612
        %v777 = vld [vmem:[%s662 + $0xbc] sm:$0x1]
        %v778 = vsel %vm671, %v613, %v777
        %779 = vst [vmem:[%s662 + $0xbc] sm:$0x1] %v778
        %v780 = vld [vmem:[#allocation2] sm:$0xf]
        %v781 = vld [vmem:[#allocation2 + $0x4] sm:$0xf]
        %v782 = vld [vmem:[#allocation2 + $0xc] sm:$0xf]
        %v783 = vld [vmem:[#allocation2 + $0x10] sm:$0xf]
        %v784 = vld [vmem:[#allocation2 + $0x18] sm:$0xf]
        %v785 = vld [vmem:[#allocation2 + $0x1c] sm:$0xf]
        %v786 = vld [vmem:[#allocation2 + $0x24] sm:$0xf]
        %v787 = vld [vmem:[#allocation2 + $0x28] sm:$0xf]
        %v788 = vld [vmem:[#allocation2 + $0x30] sm:$0xf]
        %v789 = vld [vmem:[#allocation2 + $0x34] sm:$0xf]
        %v790 = vld [vmem:[#allocation2 + $0x3c] sm:$0xf]
        %v791 = vld [vmem:[#allocation2 + $0x40] sm:$0xf]
        %v792 = vld [vmem:[#allocation2 + $0x48] sm:$0xf]
        %v793 = vld [vmem:[#allocation2 + $0x4c] sm:$0xf]
        %v794 = vld [vmem:[#allocation2 + $0x54] sm:$0xf]
        %v795 = vld [vmem:[#allocation2 + $0x58] sm:$0xf]
        %v796 = vld [vmem:[#allocation2 + $0x60] sm:$0xf]
        %v797 = vld [vmem:[#allocation2 + $0x64] sm:$0xf]
        %v798 = vld [vmem:[#allocation2 + $0x6c] sm:$0xf]
        %v799 = vld [vmem:[#allocation2 + $0x70] sm:$0xf]
        %v800 = vld [vmem:[#allocation2 + $0x78] sm:$0xf]
        %v801 = vld [vmem:[#allocation2 + $0x7c] sm:$0xf]
        %v802 = vld [vmem:[#allocation2 + $0x84] sm:$0xf]
        %v803 = vld [vmem:[#allocation2 + $0x88] sm:$0xf]
        %v804 = vld [vmem:[#allocation2 + $0x90] sm:$0xf]
        %v805 = vld [vmem:[#allocation2 + $0x94] sm:$0xf]
        %v806 = vld [vmem:[#allocation2 + $0x9c] sm:$0xf]
        %v807 = vld [vmem:[#allocation2 + $0xa0] sm:$0xf]
        %v808 = vld [vmem:[#allocation2 + $0xa8] sm:$0xf]
        %v809 = vld [vmem:[#allocation2 + $0xac] sm:$0xf]
        %v810 = vld [vmem:[#allocation2 + $0xb4] sm:$0xf]
        %v811 = vld [vmem:[#allocation2 + $0xb8] sm:$0xf]
        %v844 = vunpack.c.l.b16 %v780
        %v845 = vunpack.c.l.b16 %v781
        %v846 = vunpack.c.l.b16 %v782
        %v847 = vunpack.c.l.b16 %v783
        %v848 = vunpack.c.l.b16 %v784
        %v849 = vunpack.c.l.b16 %v785
        %v850 = vunpack.c.l.b16 %v786
        %v851 = vunpack.c.l.b16 %v787
        %v852 = vunpack.c.l.b16 %v788
        %v853 = vunpack.c.l.b16 %v789
        %v854 = vunpack.c.l.b16 %v790
        %v855 = vunpack.c.l.b16 %v791
        %v856 = vunpack.c.l.b16 %v792
        %v857 = vunpack.c.l.b16 %v793
        %v858 = vunpack.c.l.b16 %v794
        %v859 = vunpack.c.l.b16 %v795
        %v860 = vunpack.c.l.b16 %v796
        %v861 = vunpack.c.l.b16 %v797
        %v862 = vunpack.c.l.b16 %v798
        %v863 = vunpack.c.l.b16 %v799
        %v864 = vunpack.c.l.b16 %v800
        %v865 = vunpack.c.l.b16 %v801
        %v866 = vunpack.c.l.b16 %v802
        %v867 = vunpack.c.l.b16 %v803
        %v868 = vunpack.c.l.b16 %v804
        %v869 = vunpack.c.l.b16 %v805
        %v870 = vunpack.c.l.b16 %v806
        %v871 = vunpack.c.l.b16 %v807
        %v872 = vunpack.c.l.b16 %v808
        %v873 = vunpack.c.l.b16 %v809
        %v874 = vunpack.c.l.b16 %v810
        %v875 = vunpack.c.l.b16 %v811
        %v876 = vpack.c.b16 %v845, %v844
        %v877 = vpack.c.b16 %v847, %v846
        %v878 = vpack.c.b16 %v849, %v848
        %v879 = vpack.c.b16 %v851, %v850
        %v880 = vpack.c.b16 %v853, %v852
        %v881 = vpack.c.b16 %v855, %v854
        %v882 = vpack.c.b16 %v857, %v856
        %v883 = vpack.c.b16 %v859, %v858
        %v884 = vpack.c.b16 %v861, %v860
        %v885 = vpack.c.b16 %v863, %v862
        %v886 = vpack.c.b16 %v865, %v864
        %v887 = vpack.c.b16 %v867, %v866
        %v888 = vpack.c.b16 %v869, %v868
        %v889 = vpack.c.b16 %v871, %v870
        %v890 = vpack.c.b16 %v873, %v872
        %v891 = vpack.c.b16 %v875, %v874
        %vm908 = vcmask 31744
        %909 = vst.msk [vmem:[#allocation3] sm:$0xff] %vm908, %v876
        %910 = vst.msk [vmem:[#allocation3 + $0x8] sm:$0xff] %vm908, %v877
        %911 = vst.msk [vmem:[#allocation3 + $0x10] sm:$0xff] %vm908, %v878
        %912 = vst.msk [vmem:[#allocation3 + $0x18] sm:$0xff] %vm908, %v879
        %913 = vst.msk [vmem:[#allocation3 + $0x20] sm:$0xff] %vm908, %v880
        %914 = vst.msk [vmem:[#allocation3 + $0x28] sm:$0xff] %vm908, %v881
        %915 = vst.msk [vmem:[#allocation3 + $0x30] sm:$0xff] %vm908, %v882
        %916 = vst.msk [vmem:[#allocation3 + $0x38] sm:$0xff] %vm908, %v883
        %917 = vst.msk [vmem:[#allocation3 + $0x40] sm:$0xff] %vm908, %v884
        %918 = vst.msk [vmem:[#allocation3 + $0x48] sm:$0xff] %vm908, %v885
        %919 = vst.msk [vmem:[#allocation3 + $0x50] sm:$0xff] %vm908, %v886
        %920 = vst.msk [vmem:[#allocation3 + $0x58] sm:$0xff] %vm908, %v887
        %921 = vst.msk [vmem:[#allocation3 + $0x60] sm:$0xff] %vm908, %v888
        %922 = vst.msk [vmem:[#allocation3 + $0x68] sm:$0xff] %vm908, %v889
        %923 = vst.msk [vmem:[#allocation3 + $0x70] sm:$0xff] %vm908, %v890
        %924 = vst.msk [vmem:[#allocation3 + $0x78] sm:$0xff] %vm908, %v891
        %v925 = vld [vmem:[#allocation2] sm:$0xf]
        %v926 = vld [vmem:[#allocation2 + $0x4] sm:$0xf]
        %v927 = vld [vmem:[#allocation2 + $0x8] sm:$0x1]
        %v928 = vld [vmem:[#allocation2 + $0xc] sm:$0xf]
        %v929 = vld [vmem:[#allocation2 + $0x10] sm:$0xf]
        %v930 = vld [vmem:[#allocation2 + $0x14] sm:$0x1]
        %v931 = vld [vmem:[#allocation2 + $0x18] sm:$0xf]
        %v932 = vld [vmem:[#allocation2 + $0x1c] sm:$0xf]
        %v933 = vld [vmem:[#allocation2 + $0x20] sm:$0x1]
        %v934 = vld [vmem:[#allocation2 + $0x24] sm:$0xf]
        %v935 = vld [vmem:[#allocation2 + $0x28] sm:$0xf]
        %v936 = vld [vmem:[#allocation2 + $0x2c] sm:$0x1]
        %v937 = vld [vmem:[#allocation2 + $0x30] sm:$0xf]
        %v938 = vld [vmem:[#allocation2 + $0x34] sm:$0xf]
        %v939 = vld [vmem:[#allocation2 + $0x38] sm:$0x1]
        %v940 = vld [vmem:[#allocation2 + $0x3c] sm:$0xf]
        %v941 = vld [vmem:[#allocation2 + $0x40] sm:$0xf]
        %v942 = vld [vmem:[#allocation2 + $0x44] sm:$0x1]
        %v943 = vld [vmem:[#allocation2 + $0x48] sm:$0xf]
        %v944 = vld [vmem:[#allocation2 + $0x4c] sm:$0xf]
        %v945 = vld [vmem:[#allocation2 + $0x50] sm:$0x1]
        %v946 = vld [vmem:[#allocation2 + $0x54] sm:$0xf]
        %v947 = vld [vmem:[#allocation2 + $0x58] sm:$0xf]
        %v948 = vld [vmem:[#allocation2 + $0x5c] sm:$0x1]
        %v949 = vld [vmem:[#allocation2 + $0x60] sm:$0xf]
        %v950 = vld [vmem:[#allocation2 + $0x64] sm:$0xf]
        %v951 = vld [vmem:[#allocation2 + $0x68] sm:$0x1]
        %v952 = vld [vmem:[#allocation2 + $0x6c] sm:$0xf]
        %v953 = vld [vmem:[#allocation2 + $0x70] sm:$0xf]
        %v954 = vld [vmem:[#allocation2 + $0x74] sm:$0x1]
        %v955 = vld [vmem:[#allocation2 + $0x78] sm:$0xf]
        %v956 = vld [vmem:[#allocation2 + $0x7c] sm:$0xf]
        %v957 = vld [vmem:[#allocation2 + $0x80] sm:$0x1]
        %v958 = vld [vmem:[#allocation2 + $0x84] sm:$0xf]
        %v959 = vld [vmem:[#allocation2 + $0x88] sm:$0xf]
        %v960 = vld [vmem:[#allocation2 + $0x8c] sm:$0x1]
        %v961 = vld [vmem:[#allocation2 + $0x90] sm:$0xf]
        %v962 = vld [vmem:[#allocation2 + $0x94] sm:$0xf]
        %v963 = vld [vmem:[#allocation2 + $0x98] sm:$0x1]
        %v964 = vld [vmem:[#allocation2 + $0x9c] sm:$0xf]
        %v965 = vld [vmem:[#allocation2 + $0xa0] sm:$0xf]
        %v966 = vld [vmem:[#allocation2 + $0xa4] sm:$0x1]
        %v967 = vld [vmem:[#allocation2 + $0xa8] sm:$0xf]
        %v968 = vld [vmem:[#allocation2 + $0xac] sm:$0xf]
        %v969 = vld [vmem:[#allocation2 + $0xb0] sm:$0x1]
        %v970 = vld [vmem:[#allocation2 + $0xb4] sm:$0xf]
        %v971 = vld [vmem:[#allocation2 + $0xb8] sm:$0xf]
        %v972 = vld [vmem:[#allocation2 + $0xbc] sm:$0x1]
        %v1021 = vunpack.c.l.b16 %v925
        %v1022 = vunpack.c.l.b16 %v926
        %v1023 = vunpack.c.l.b16 %v927
        %v1024 = vunpack.c.l.b16 %v928
        %v1025 = vunpack.c.l.b16 %v929
        %v1026 = vunpack.c.l.b16 %v930
        %v1027 = vunpack.c.l.b16 %v931
        %v1028 = vunpack.c.l.b16 %v932
        %v1029 = vunpack.c.l.b16 %v933
        %v1030 = vunpack.c.l.b16 %v934
        %v1031 = vunpack.c.l.b16 %v935
        %v1032 = vunpack.c.l.b16 %v936
        %v1033 = vunpack.c.l.b16 %v937
        %v1034 = vunpack.c.l.b16 %v938
        %v1035 = vunpack.c.l.b16 %v939
        %v1036 = vunpack.c.l.b16 %v940
        %v1037 = vunpack.c.l.b16 %v941
        %v1038 = vunpack.c.l.b16 %v942
        %v1039 = vunpack.c.l.b16 %v943
        %v1040 = vunpack.c.l.b16 %v944
        %v1041 = vunpack.c.l.b16 %v945
        %v1042 = vunpack.c.l.b16 %v946
        %v1043 = vunpack.c.l.b16 %v947
        %v1044 = vunpack.c.l.b16 %v948
        %v1045 = vunpack.c.l.b16 %v949
        %v1046 = vunpack.c.l.b16 %v950
        %v1047 = vunpack.c.l.b16 %v951
        %v1048 = vunpack.c.l.b16 %v952
        %v1049 = vunpack.c.l.b16 %v953
        %v1050 = vunpack.c.l.b16 %v954
        %v1051 = vunpack.c.l.b16 %v955
        %v1052 = vunpack.c.l.b16 %v956
        %v1053 = vunpack.c.l.b16 %v957
        %v1054 = vunpack.c.l.b16 %v958
        %v1055 = vunpack.c.l.b16 %v959
        %v1056 = vunpack.c.l.b16 %v960
        %v1057 = vunpack.c.l.b16 %v961
        %v1058 = vunpack.c.l.b16 %v962
        %v1059 = vunpack.c.l.b16 %v963
        %v1060 = vunpack.c.l.b16 %v964
        %v1061 = vunpack.c.l.b16 %v965
        %v1062 = vunpack.c.l.b16 %v966
        %v1063 = vunpack.c.l.b16 %v967
        %v1064 = vunpack.c.l.b16 %v968
        %v1065 = vunpack.c.l.b16 %v969
        %v1066 = vunpack.c.l.b16 %v970
        %v1067 = vunpack.c.l.b16 %v971
        %v1068 = vunpack.c.l.b16 %v972
        %v1069 = vpack.c.b16 %v1022, %v1021
        %v1070 = vpack.c.b16 %v1023, %v1023
        %v1071 = vpack.c.b16 %v1025, %v1024
        %v1072 = vpack.c.b16 %v1026, %v1026
        %v1073 = vpack.c.b16 %v1028, %v1027
        %v1074 = vpack.c.b16 %v1029, %v1029
        %v1075 = vpack.c.b16 %v1031, %v1030
        %v1076 = vpack.c.b16 %v1032, %v1032
        %v1077 = vpack.c.b16 %v1034, %v1033
        %v1078 = vpack.c.b16 %v1035, %v1035
        %v1079 = vpack.c.b16 %v1037, %v1036
        %v1080 = vpack.c.b16 %v1038, %v1038
        %v1081 = vpack.c.b16 %v1040, %v1039
        %v1082 = vpack.c.b16 %v1041, %v1041
        %v1083 = vpack.c.b16 %v1043, %v1042
        %v1084 = vpack.c.b16 %v1044, %v1044
        %v1085 = vpack.c.b16 %v1046, %v1045
        %v1086 = vpack.c.b16 %v1047, %v1047
        %v1087 = vpack.c.b16 %v1049, %v1048
        %v1088 = vpack.c.b16 %v1050, %v1050
        %v1089 = vpack.c.b16 %v1052, %v1051
        %v1090 = vpack.c.b16 %v1053, %v1053
        %v1091 = vpack.c.b16 %v1055, %v1054
        %v1092 = vpack.c.b16 %v1056, %v1056
        %v1093 = vpack.c.b16 %v1058, %v1057
        %v1094 = vpack.c.b16 %v1059, %v1059
        %v1095 = vpack.c.b16 %v1061, %v1060
        %v1096 = vpack.c.b16 %v1062, %v1062
        %v1097 = vpack.c.b16 %v1064, %v1063
        %v1098 = vpack.c.b16 %v1065, %v1065
        %v1099 = vpack.c.b16 %v1067, %v1066
        %v1100 = vpack.c.b16 %v1068, %v1068
        %vm1101 = vsmask.f32 7424
        %v1103 = vshrl.u32 %v1069, 16
        %v1105 = vshll.u32 %v1069, 16
        %v1107 = vrot.slane %v1105, 1
        %v1108 = vor.u32 %v1103, %v1107
        %v1110 = vshll.u32 %v1070, 16
        %v1112 = vrot.slane %v1110, 1
        %v1113 = vsel %vm1101, %v1108, %v1112
        %v1115 = vshrl.u32 %v1071, 16
        %v1117 = vshll.u32 %v1071, 16
        %v1119 = vrot.slane %v1117, 1
        %v1120 = vor.u32 %v1115, %v1119
        %v1122 = vshll.u32 %v1072, 16
        %v1124 = vrot.slane %v1122, 1
        %v1125 = vsel %vm1101, %v1120, %v1124
        %v1127 = vshrl.u32 %v1073, 16
        %v1129 = vshll.u32 %v1073, 16
        %v1131 = vrot.slane %v1129, 1
        %v1132 = vor.u32 %v1127, %v1131
        %v1134 = vshll.u32 %v1074, 16
        %v1136 = vrot.slane %v1134, 1
        %v1137 = vsel %vm1101, %v1132, %v1136
        %v1139 = vshrl.u32 %v1075, 16
        %v1141 = vshll.u32 %v1075, 16
        %v1143 = vrot.slane %v1141, 1
        %v1144 = vor.u32 %v1139, %v1143
        %v1146 = vshll.u32 %v1076, 16
        %v1148 = vrot.slane %v1146, 1
        %v1149 = vsel %vm1101, %v1144, %v1148
        %v1151 = vshrl.u32 %v1077, 16
        %v1153 = vshll.u32 %v1077, 16
        %v1155 = vrot.slane %v1153, 1
        %v1156 = vor.u32 %v1151, %v1155
        %v1158 = vshll.u32 %v1078, 16
        %v1160 = vrot.slane %v1158, 1
        %v1161 = vsel %vm1101, %v1156, %v1160
        %v1163 = vshrl.u32 %v1079, 16
        %v1165 = vshll.u32 %v1079, 16
        %v1167 = vrot.slane %v1165, 1
        %v1168 = vor.u32 %v1163, %v1167
        %v1170 = vshll.u32 %v1080, 16
        %v1172 = vrot.slane %v1170, 1
        %v1173 = vsel %vm1101, %v1168, %v1172
        %v1175 = vshrl.u32 %v1081, 16
        %v1177 = vshll.u32 %v1081, 16
        %v1179 = vrot.slane %v1177, 1
        %v1180 = vor.u32 %v1175, %v1179
        %v1182 = vshll.u32 %v1082, 16
        %v1184 = vrot.slane %v1182, 1
        %v1185 = vsel %vm1101, %v1180, %v1184
        %v1187 = vshrl.u32 %v1083, 16
        %v1189 = vshll.u32 %v1083, 16
        %v1191 = vrot.slane %v1189, 1
        %v1192 = vor.u32 %v1187, %v1191
        %v1194 = vshll.u32 %v1084, 16
        %v1196 = vrot.slane %v1194, 1
        %v1197 = vsel %vm1101, %v1192, %v1196
        %v1199 = vshrl.u32 %v1085, 16
        %v1201 = vshll.u32 %v1085, 16
        %v1203 = vrot.slane %v1201, 1
        %v1204 = vor.u32 %v1199, %v1203
        %v1206 = vshll.u32 %v1086, 16
        %v1208 = vrot.slane %v1206, 1
        %v1209 = vsel %vm1101, %v1204, %v1208
        %v1211 = vshrl.u32 %v1087, 16
        %v1213 = vshll.u32 %v1087, 16
        %v1215 = vrot.slane %v1213, 1
        %v1216 = vor.u32 %v1211, %v1215
        %v1218 = vshll.u32 %v1088, 16
        %v1220 = vrot.slane %v1218, 1
        %v1221 = vsel %vm1101, %v1216, %v1220
        %v1223 = vshrl.u32 %v1089, 16
        %v1225 = vshll.u32 %v1089, 16
        %v1227 = vrot.slane %v1225, 1
        %v1228 = vor.u32 %v1223, %v1227
        %v1230 = vshll.u32 %v1090, 16
        %v1232 = vrot.slane %v1230, 1
        %v1233 = vsel %vm1101, %v1228, %v1232
        %v1235 = vshrl.u32 %v1091, 16
        %v1237 = vshll.u32 %v1091, 16
        %v1239 = vrot.slane %v1237, 1
        %v1240 = vor.u32 %v1235, %v1239
        %v1242 = vshll.u32 %v1092, 16
        %v1244 = vrot.slane %v1242, 1
        %v1245 = vsel %vm1101, %v1240, %v1244
        %v1247 = vshrl.u32 %v1093, 16
        %v1249 = vshll.u32 %v1093, 16
        %v1251 = vrot.slane %v1249, 1
        %v1252 = vor.u32 %v1247, %v1251
        %v1254 = vshll.u32 %v1094, 16
        %v1256 = vrot.slane %v1254, 1
        %v1257 = vsel %vm1101, %v1252, %v1256
        %v1259 = vshrl.u32 %v1095, 16
        %v1261 = vshll.u32 %v1095, 16
        %v1263 = vrot.slane %v1261, 1
        %v1264 = vor.u32 %v1259, %v1263
        %v1266 = vshll.u32 %v1096, 16
        %v1268 = vrot.slane %v1266, 1
        %v1269 = vsel %vm1101, %v1264, %v1268
        %v1271 = vshrl.u32 %v1097, 16
        %v1273 = vshll.u32 %v1097, 16
        %v1275 = vrot.slane %v1273, 1
        %v1276 = vor.u32 %v1271, %v1275
        %v1278 = vshll.u32 %v1098, 16
        %v1280 = vrot.slane %v1278, 1
        %v1281 = vsel %vm1101, %v1276, %v1280
        %v1283 = vshrl.u32 %v1099, 16
        %v1285 = vshll.u32 %v1099, 16
        %v1287 = vrot.slane %v1285, 1
        %v1288 = vor.u32 %v1283, %v1287
        %v1290 = vshll.u32 %v1100, 16
        %v1292 = vrot.slane %v1290, 1
        %v1293 = vsel %vm1101, %v1288, %v1292
        %1294 = vrot.lane.b32.xlu0 %v1113, 4
        %v1295 = vpop.permute.xlu0 %1294
        %1296 = vrot.lane.b32.xlu0 %v1125, 4
        %v1297 = vpop.permute.xlu0 %1296
        %1298 = vrot.lane.b32.xlu0 %v1137, 4
        %v1299 = vpop.permute.xlu0 %1298
        %1300 = vrot.lane.b32.xlu0 %v1149, 4
        %v1301 = vpop.permute.xlu0 %1300
        %1302 = vrot.lane.b32.xlu0 %v1161, 4
        %v1303 = vpop.permute.xlu0 %1302
        %1304 = vrot.lane.b32.xlu0 %v1173, 4
        %v1305 = vpop.permute.xlu0 %1304
        %1306 = vrot.lane.b32.xlu0 %v1185, 4
        %v1307 = vpop.permute.xlu0 %1306
        %1308 = vrot.lane.b32.xlu0 %v1197, 4
        %v1309 = vpop.permute.xlu0 %1308
        %1310 = vrot.lane.b32.xlu0 %v1209, 4
        %v1311 = vpop.permute.xlu0 %1310
        %1312 = vrot.lane.b32.xlu0 %v1221, 4
        %v1313 = vpop.permute.xlu0 %1312
        %1314 = vrot.lane.b32.xlu0 %v1233, 4
        %v1315 = vpop.permute.xlu0 %1314
        %1316 = vrot.lane.b32.xlu0 %v1245, 4
        %v1317 = vpop.permute.xlu0 %1316
        %1318 = vrot.lane.b32.xlu0 %v1257, 4
        %v1319 = vpop.permute.xlu0 %1318
        %1320 = vrot.lane.b32.xlu0 %v1269, 4
        %v1321 = vpop.permute.xlu0 %1320
        %1322 = vrot.lane.b32.xlu0 %v1281, 4
        %v1323 = vpop.permute.xlu0 %1322
        %1324 = vrot.lane.b32.xlu0 %v1293, 4
        %v1325 = vpop.permute.xlu0 %1324
        %vm1342 = vcmask 64544
        %1343 = vst.msk [vmem:[#allocation3] sm:$0xff] %vm1342, %v1295
        %1344 = vst.msk [vmem:[#allocation3 + $0x8] sm:$0xff] %vm1342, %v1297
        %1345 = vst.msk [vmem:[#allocation3 + $0x10] sm:$0xff] %vm1342, %v1299
        %1346 = vst.msk [vmem:[#allocation3 + $0x18] sm:$0xff] %vm1342, %v1301
        %1347 = vst.msk [vmem:[#allocation3 + $0x20] sm:$0xff] %vm1342, %v1303
        %1348 = vst.msk [vmem:[#allocation3 + $0x28] sm:$0xff] %vm1342, %v1305
        %1349 = vst.msk [vmem:[#allocation3 + $0x30] sm:$0xff] %vm1342, %v1307
        %1350 = vst.msk [vmem:[#allocation3 + $0x38] sm:$0xff] %vm1342, %v1309
        %1351 = vst.msk [vmem:[#allocation3 + $0x40] sm:$0xff] %vm1342, %v1311
        %1352 = vst.msk [vmem:[#allocation3 + $0x48] sm:$0xff] %vm1342, %v1313
        %1353 = vst.msk [vmem:[#allocation3 + $0x50] sm:$0xff] %vm1342, %v1315
        %1354 = vst.msk [vmem:[#allocation3 + $0x58] sm:$0xff] %vm1342, %v1317
        %1355 = vst.msk [vmem:[#allocation3 + $0x60] sm:$0xff] %vm1342, %v1319
        %1356 = vst.msk [vmem:[#allocation3 + $0x68] sm:$0xff] %vm1342, %v1321
        %1357 = vst.msk [vmem:[#allocation3 + $0x70] sm:$0xff] %vm1342, %v1323
        %1358 = vst.msk [vmem:[#allocation3 + $0x78] sm:$0xff] %vm1342, %v1325
        %v1359 = vld [vmem:[#allocation2] sm:$0xe]
        %v1360 = vld [vmem:[#allocation2 + $0x4] sm:$0xf]
        %v1361 = vld [vmem:[#allocation2 + $0x8] sm:$0x1]
        %v1362 = vld [vmem:[#allocation2 + $0xc] sm:$0xe]
        %v1363 = vld [vmem:[#allocation2 + $0x10] sm:$0xf]
        %v1364 = vld [vmem:[#allocation2 + $0x14] sm:$0x1]
        %v1365 = vld [vmem:[#allocation2 + $0x18] sm:$0xe]
        %v1366 = vld [vmem:[#allocation2 + $0x1c] sm:$0xf]
        %v1367 = vld [vmem:[#allocation2 + $0x20] sm:$0x1]
        %v1368 = vld [vmem:[#allocation2 + $0x24] sm:$0xe]
        %v1369 = vld [vmem:[#allocation2 + $0x28] sm:$0xf]
        %v1370 = vld [vmem:[#allocation2 + $0x2c] sm:$0x1]
        %v1371 = vld [vmem:[#allocation2 + $0x30] sm:$0xe]
        %v1372 = vld [vmem:[#allocation2 + $0x34] sm:$0xf]
        %v1373 = vld [vmem:[#allocation2 + $0x38] sm:$0x1]
        %v1374 = vld [vmem:[#allocation2 + $0x3c] sm:$0xe]
        %v1375 = vld [vmem:[#allocation2 + $0x40] sm:$0xf]
        %v1376 = vld [vmem:[#allocation2 + $0x44] sm:$0x1]
        %v1377 = vld [vmem:[#allocation2 + $0x48] sm:$0xe]
        %v1378 = vld [vmem:[#allocation2 + $0x4c] sm:$0xf]
        %v1379 = vld [vmem:[#allocation2 + $0x50] sm:$0x1]
        %v1380 = vld [vmem:[#allocation2 + $0x54] sm:$0xe]
        %v1381 = vld [vmem:[#allocation2 + $0x58] sm:$0xf]
        %v1382 = vld [vmem:[#allocation2 + $0x5c] sm:$0x1]
        %v1383 = vld [vmem:[#allocation2 + $0x60] sm:$0xe]
        %v1384 = vld [vmem:[#allocation2 + $0x64] sm:$0xf]
        %v1385 = vld [vmem:[#allocation2 + $0x68] sm:$0x1]
        %v1386 = vld [vmem:[#allocation2 + $0x6c] sm:$0xe]
        %v1387 = vld [vmem:[#allocation2 + $0x70] sm:$0xf]
        %v1388 = vld [vmem:[#allocation2 + $0x74] sm:$0x1]
        %v1389 = vld [vmem:[#allocation2 + $0x78] sm:$0xe]
        %v1390 = vld [vmem:[#allocation2 + $0x7c] sm:$0xf]
        %v1391 = vld [vmem:[#allocation2 + $0x80] sm:$0x1]
        %v1392 = vld [vmem:[#allocation2 + $0x84] sm:$0xe]
        %v1393 = vld [vmem:[#allocation2 + $0x88] sm:$0xf]
        %v1394 = vld [vmem:[#allocation2 + $0x8c] sm:$0x1]
        %v1395 = vld [vmem:[#allocation2 + $0x90] sm:$0xe]
        %v1396 = vld [vmem:[#allocation2 + $0x94] sm:$0xf]
        %v1397 = vld [vmem:[#allocation2 + $0x98] sm:$0x1]
        %v1398 = vld [vmem:[#allocation2 + $0x9c] sm:$0xe]
        %v1399 = vld [vmem:[#allocation2 + $0xa0] sm:$0xf]
        %v1400 = vld [vmem:[#allocation2 + $0xa4] sm:$0x1]
        %v1401 = vld [vmem:[#allocation2 + $0xa8] sm:$0xe]
        %v1402 = vld [vmem:[#allocation2 + $0xac] sm:$0xf]
        %v1403 = vld [vmem:[#allocation2 + $0xb0] sm:$0x1]
        %v1404 = vld [vmem:[#allocation2 + $0xb4] sm:$0xe]
        %v1405 = vld [vmem:[#allocation2 + $0xb8] sm:$0xf]
        %v1406 = vld [vmem:[#allocation2 + $0xbc] sm:$0x1]
        %v1455 = vunpack.c.l.b16 %v1359
        %v1456 = vunpack.c.l.b16 %v1360
        %v1457 = vunpack.c.l.b16 %v1361
        %v1458 = vunpack.c.l.b16 %v1362
        %v1459 = vunpack.c.l.b16 %v1363
        %v1460 = vunpack.c.l.b16 %v1364
        %v1461 = vunpack.c.l.b16 %v1365
        %v1462 = vunpack.c.l.b16 %v1366
        %v1463 = vunpack.c.l.b16 %v1367
        %v1464 = vunpack.c.l.b16 %v1368
        %v1465 = vunpack.c.l.b16 %v1369
        %v1466 = vunpack.c.l.b16 %v1370
        %v1467 = vunpack.c.l.b16 %v1371
        %v1468 = vunpack.c.l.b16 %v1372
        %v1469 = vunpack.c.l.b16 %v1373
        %v1470 = vunpack.c.l.b16 %v1374
        %v1471 = vunpack.c.l.b16 %v1375
        %v1472 = vunpack.c.l.b16 %v1376
        %v1473 = vunpack.c.l.b16 %v1377
        %v1474 = vunpack.c.l.b16 %v1378
        %v1475 = vunpack.c.l.b16 %v1379
        %v1476 = vunpack.c.l.b16 %v1380
        %v1477 = vunpack.c.l.b16 %v1381
        %v1478 = vunpack.c.l.b16 %v1382
        %v1479 = vunpack.c.l.b16 %v1383
        %v1480 = vunpack.c.l.b16 %v1384
        %v1481 = vunpack.c.l.b16 %v1385
        %v1482 = vunpack.c.l.b16 %v1386
        %v1483 = vunpack.c.l.b16 %v1387
        %v1484 = vunpack.c.l.b16 %v1388
        %v1485 = vunpack.c.l.b16 %v1389
        %v1486 = vunpack.c.l.b16 %v1390
        %v1487 = vunpack.c.l.b16 %v1391
        %v1488 = vunpack.c.l.b16 %v1392
        %v1489 = vunpack.c.l.b16 %v1393
        %v1490 = vunpack.c.l.b16 %v1394
        %v1491 = vunpack.c.l.b16 %v1395
        %v1492 = vunpack.c.l.b16 %v1396
        %v1493 = vunpack.c.l.b16 %v1397
        %v1494 = vunpack.c.l.b16 %v1398
        %v1495 = vunpack.c.l.b16 %v1399
        %v1496 = vunpack.c.l.b16 %v1400
        %v1497 = vunpack.c.l.b16 %v1401
        %v1498 = vunpack.c.l.b16 %v1402
        %v1499 = vunpack.c.l.b16 %v1403
        %v1500 = vunpack.c.l.b16 %v1404
        %v1501 = vunpack.c.l.b16 %v1405
        %v1502 = vunpack.c.l.b16 %v1406
        %v1503 = vpack.c.b16 %v1456, %v1455
        %v1504 = vpack.c.b16 %v1457, %v1457
        %v1505 = vpack.c.b16 %v1459, %v1458
        %v1506 = vpack.c.b16 %v1460, %v1460
        %v1507 = vpack.c.b16 %v1462, %v1461
        %v1508 = vpack.c.b16 %v1463, %v1463
        %v1509 = vpack.c.b16 %v1465, %v1464
        %v1510 = vpack.c.b16 %v1466, %v1466
        %v1511 = vpack.c.b16 %v1468, %v1467
        %v1512 = vpack.c.b16 %v1469, %v1469
        %v1513 = vpack.c.b16 %v1471, %v1470
        %v1514 = vpack.c.b16 %v1472, %v1472
        %v1515 = vpack.c.b16 %v1474, %v1473
        %v1516 = vpack.c.b16 %v1475, %v1475
        %v1517 = vpack.c.b16 %v1477, %v1476
        %v1518 = vpack.c.b16 %v1478, %v1478
        %v1519 = vpack.c.b16 %v1480, %v1479
        %v1520 = vpack.c.b16 %v1481, %v1481
        %v1521 = vpack.c.b16 %v1483, %v1482
        %v1522 = vpack.c.b16 %v1484, %v1484
        %v1523 = vpack.c.b16 %v1486, %v1485
        %v1524 = vpack.c.b16 %v1487, %v1487
        %v1525 = vpack.c.b16 %v1489, %v1488
        %v1526 = vpack.c.b16 %v1490, %v1490
        %v1527 = vpack.c.b16 %v1492, %v1491
        %v1528 = vpack.c.b16 %v1493, %v1493
        %v1529 = vpack.c.b16 %v1495, %v1494
        %v1530 = vpack.c.b16 %v1496, %v1496
        %v1531 = vpack.c.b16 %v1498, %v1497
        %v1532 = vpack.c.b16 %v1499, %v1499
        %v1533 = vpack.c.b16 %v1501, %v1500
        %v1534 = vpack.c.b16 %v1502, %v1502
        %vm1535 = vcmask 1046528
        %v1536 = vrot.slane %v1503, 1
        %v1537 = vrot.slane %v1504, 1
        %v1538 = vsel %vm1535, %v1536, %v1537
        %v1539 = vrot.slane %v1505, 1
        %v1540 = vrot.slane %v1506, 1
        %v1541 = vsel %vm1535, %v1539, %v1540
        %v1542 = vrot.slane %v1507, 1
        %v1543 = vrot.slane %v1508, 1
        %v1544 = vsel %vm1535, %v1542, %v1543
        %v1545 = vrot.slane %v1509, 1
        %v1546 = vrot.slane %v1510, 1
        %v1547 = vsel %vm1535, %v1545, %v1546
        %v1548 = vrot.slane %v1511, 1
        %v1549 = vrot.slane %v1512, 1
        %v1550 = vsel %vm1535, %v1548, %v1549
        %v1551 = vrot.slane %v1513, 1
        %v1552 = vrot.slane %v1514, 1
        %v1553 = vsel %vm1535, %v1551, %v1552
        %v1554 = vrot.slane %v1515, 1
        %v1555 = vrot.slane %v1516, 1
        %v1556 = vsel %vm1535, %v1554, %v1555
        %v1557 = vrot.slane %v1517, 1
        %v1558 = vrot.slane %v1518, 1
        %v1559 = vsel %vm1535, %v1557, %v1558
        %v1560 = vrot.slane %v1519, 1
        %v1561 = vrot.slane %v1520, 1
        %v1562 = vsel %vm1535, %v1560, %v1561
        %v1563 = vrot.slane %v1521, 1
        %v1564 = vrot.slane %v1522, 1
        %v1565 = vsel %vm1535, %v1563, %v1564
        %v1566 = vrot.slane %v1523, 1
        %v1567 = vrot.slane %v1524, 1
        %v1568 = vsel %vm1535, %v1566, %v1567
        %v1569 = vrot.slane %v1525, 1
        %v1570 = vrot.slane %v1526, 1
        %v1571 = vsel %vm1535, %v1569, %v1570
        %v1572 = vrot.slane %v1527, 1
        %v1573 = vrot.slane %v1528, 1
        %v1574 = vsel %vm1535, %v1572, %v1573
        %v1575 = vrot.slane %v1529, 1
        %v1576 = vrot.slane %v1530, 1
        %v1577 = vsel %vm1535, %v1575, %v1576
        %v1578 = vrot.slane %v1531, 1
        %v1579 = vrot.slane %v1532, 1
        %v1580 = vsel %vm1535, %v1578, %v1579
        %v1581 = vrot.slane %v1533, 1
        %v1582 = vrot.slane %v1534, 1
        %v1583 = vsel %vm1535, %v1581, %v1582
        %1584 = vrot.lane.b32.xlu0 %v1538, 8
        %v1585 = vpop.permute.xlu0 %1584
        %1586 = vrot.lane.b32.xlu0 %v1541, 8
        %v1587 = vpop.permute.xlu0 %1586
        %1588 = vrot.lane.b32.xlu0 %v1544, 8
        %v1589 = vpop.permute.xlu0 %1588
        %1590 = vrot.lane.b32.xlu0 %v1547, 8
        %v1591 = vpop.permute.xlu0 %1590
        %1592 = vrot.lane.b32.xlu0 %v1550, 8
        %v1593 = vpop.permute.xlu0 %1592
        %1594 = vrot.lane.b32.xlu0 %v1553, 8
        %v1595 = vpop.permute.xlu0 %1594
        %1596 = vrot.lane.b32.xlu0 %v1556, 8
        %v1597 = vpop.permute.xlu0 %1596
        %1598 = vrot.lane.b32.xlu0 %v1559, 8
        %v1599 = vpop.permute.xlu0 %1598
        %1600 = vrot.lane.b32.xlu0 %v1562, 8
        %v1601 = vpop.permute.xlu0 %1600
        %1602 = vrot.lane.b32.xlu0 %v1565, 8
        %v1603 = vpop.permute.xlu0 %1602
        %1604 = vrot.lane.b32.xlu0 %v1568, 8
        %v1605 = vpop.permute.xlu0 %1604
        %1606 = vrot.lane.b32.xlu0 %v1571, 8
        %v1607 = vpop.permute.xlu0 %1606
        %1608 = vrot.lane.b32.xlu0 %v1574, 8
        %v1609 = vpop.permute.xlu0 %1608
        %1610 = vrot.lane.b32.xlu0 %v1577, 8
        %v1611 = vpop.permute.xlu0 %1610
        %1612 = vrot.lane.b32.xlu0 %v1580, 8
        %v1613 = vpop.permute.xlu0 %1612
        %1614 = vrot.lane.b32.xlu0 %v1583, 8
        %v1615 = vpop.permute.xlu0 %1614
        %vm1632 = vcmask 97344
        %1633 = vst.msk [vmem:[#allocation3] sm:$0xff] %vm1632, %v1585
        %1634 = vst.msk [vmem:[#allocation3 + $0x8] sm:$0xff] %vm1632, %v1587
        %1635 = vst.msk [vmem:[#allocation3 + $0x10] sm:$0xff] %vm1632, %v1589
        %1636 = vst.msk [vmem:[#allocation3 + $0x18] sm:$0xff] %vm1632, %v1591
        %1637 = vst.msk [vmem:[#allocation3 + $0x20] sm:$0xff] %vm1632, %v1593
        %1638 = vst.msk [vmem:[#allocation3 + $0x28] sm:$0xff] %vm1632, %v1595
        %1639 = vst.msk [vmem:[#allocation3 + $0x30] sm:$0xff] %vm1632, %v1597
        %1640 = vst.msk [vmem:[#allocation3 + $0x38] sm:$0xff] %vm1632, %v1599
        %1641 = vst.msk [vmem:[#allocation3 + $0x40] sm:$0xff] %vm1632, %v1601
        %1642 = vst.msk [vmem:[#allocation3 + $0x48] sm:$0xff] %vm1632, %v1603
        %1643 = vst.msk [vmem:[#allocation3 + $0x50] sm:$0xff] %vm1632, %v1605
        %1644 = vst.msk [vmem:[#allocation3 + $0x58] sm:$0xff] %vm1632, %v1607
        %1645 = vst.msk [vmem:[#allocation3 + $0x60] sm:$0xff] %vm1632, %v1609
        %1646 = vst.msk [vmem:[#allocation3 + $0x68] sm:$0xff] %vm1632, %v1611
        %1647 = vst.msk [vmem:[#allocation3 + $0x70] sm:$0xff] %vm1632, %v1613
        %1648 = vst.msk [vmem:[#allocation3 + $0x78] sm:$0xff] %vm1632, %v1615
        %v1649 = vld [vmem:[%s662] sm:$0xf]
        %v1650 = vld [vmem:[%s662 + $0x4] sm:$0xf]
        %v1651 = vld [vmem:[%s662 + $0xc] sm:$0xf]
        %v1652 = vld [vmem:[%s662 + $0x10] sm:$0xf]
        %v1653 = vld [vmem:[%s662 + $0x18] sm:$0xf]
        %v1654 = vld [vmem:[%s662 + $0x1c] sm:$0xf]
        %v1655 = vld [vmem:[%s662 + $0x24] sm:$0xf]
        %v1656 = vld [vmem:[%s662 + $0x28] sm:$0xf]
        %v1657 = vld [vmem:[%s662 + $0x30] sm:$0xf]
        %v1658 = vld [vmem:[%s662 + $0x34] sm:$0xf]
        %v1659 = vld [vmem:[%s662 + $0x3c] sm:$0xf]
        %v1660 = vld [vmem:[%s662 + $0x40] sm:$0xf]
        %v1661 = vld [vmem:[%s662 + $0x48] sm:$0xf]
        %v1662 = vld [vmem:[%s662 + $0x4c] sm:$0xf]
        %v1663 = vld [vmem:[%s662 + $0x54] sm:$0xf]
        %v1664 = vld [vmem:[%s662 + $0x58] sm:$0xf]
        %v1665 = vld [vmem:[%s662 + $0x60] sm:$0xf]
        %v1666 = vld [vmem:[%s662 + $0x64] sm:$0xf]
        %v1667 = vld [vmem:[%s662 + $0x6c] sm:$0xf]
        %v1668 = vld [vmem:[%s662 + $0x70] sm:$0xf]
        %v1669 = vld [vmem:[%s662 + $0x78] sm:$0xf]
        %v1670 = vld [vmem:[%s662 + $0x7c] sm:$0xf]
        %v1671 = vld [vmem:[%s662 + $0x84] sm:$0xf]
        %v1672 = vld [vmem:[%s662 + $0x88] sm:$0xf]
        %v1673 = vld [vmem:[%s662 + $0x90] sm:$0xf]
        %v1674 = vld [vmem:[%s662 + $0x94] sm:$0xf]
        %v1675 = vld [vmem:[%s662 + $0x9c] sm:$0xf]
        %v1676 = vld [vmem:[%s662 + $0xa0] sm:$0xf]
        %v1677 = vld [vmem:[%s662 + $0xa8] sm:$0xf]
        %v1678 = vld [vmem:[%s662 + $0xac] sm:$0xf]
        %v1679 = vld [vmem:[%s662 + $0xb4] sm:$0xf]
        %v1680 = vld [vmem:[%s662 + $0xb8] sm:$0xf]
        %v1713 = vunpack.c.l.b16 %v1649
        %v1714 = vunpack.c.l.b16 %v1650
        %v1715 = vunpack.c.l.b16 %v1651
        %v1716 = vunpack.c.l.b16 %v1652
        %v1717 = vunpack.c.l.b16 %v1653
        %v1718 = vunpack.c.l.b16 %v1654
        %v1719 = vunpack.c.l.b16 %v1655
        %v1720 = vunpack.c.l.b16 %v1656
        %v1721 = vunpack.c.l.b16 %v1657
        %v1722 = vunpack.c.l.b16 %v1658
        %v1723 = vunpack.c.l.b16 %v1659
        %v1724 = vunpack.c.l.b16 %v1660
        %v1725 = vunpack.c.l.b16 %v1661
        %v1726 = vunpack.c.l.b16 %v1662
        %v1727 = vunpack.c.l.b16 %v1663
        %v1728 = vunpack.c.l.b16 %v1664
        %v1729 = vunpack.c.l.b16 %v1665
        %v1730 = vunpack.c.l.b16 %v1666
        %v1731 = vunpack.c.l.b16 %v1667
        %v1732 = vunpack.c.l.b16 %v1668
        %v1733 = vunpack.c.l.b16 %v1669
        %v1734 = vunpack.c.l.b16 %v1670
        %v1735 = vunpack.c.l.b16 %v1671
        %v1736 = vunpack.c.l.b16 %v1672
        %v1737 = vunpack.c.l.b16 %v1673
        %v1738 = vunpack.c.l.b16 %v1674
        %v1739 = vunpack.c.l.b16 %v1675
        %v1740 = vunpack.c.l.b16 %v1676
        %v1741 = vunpack.c.l.b16 %v1677
        %v1742 = vunpack.c.l.b16 %v1678
        %v1743 = vunpack.c.l.b16 %v1679
        %v1744 = vunpack.c.l.b16 %v1680
        %v1745 = vpack.c.b16 %v1714, %v1713
        %v1746 = vpack.c.b16 %v1716, %v1715
        %v1747 = vpack.c.b16 %v1718, %v1717
        %v1748 = vpack.c.b16 %v1720, %v1719
        %v1749 = vpack.c.b16 %v1722, %v1721
        %v1750 = vpack.c.b16 %v1724, %v1723
        %v1751 = vpack.c.b16 %v1726, %v1725
        %v1752 = vpack.c.b16 %v1728, %v1727
        %v1753 = vpack.c.b16 %v1730, %v1729
        %v1754 = vpack.c.b16 %v1732, %v1731
        %v1755 = vpack.c.b16 %v1734, %v1733
        %v1756 = vpack.c.b16 %v1736, %v1735
        %v1757 = vpack.c.b16 %v1738, %v1737
        %v1758 = vpack.c.b16 %v1740, %v1739
        %v1759 = vpack.c.b16 %v1742, %v1741
        %v1760 = vpack.c.b16 %v1744, %v1743
        %1761 = vrot.lane.b32.xlu0 %v1745, 12
        %v1762 = vpop.permute.xlu0 %1761
        %1763 = vrot.lane.b32.xlu0 %v1746, 12
        %v1764 = vpop.permute.xlu0 %1763
        %1765 = vrot.lane.b32.xlu0 %v1747, 12
        %v1766 = vpop.permute.xlu0 %1765
        %1767 = vrot.lane.b32.xlu0 %v1748, 12
        %v1768 = vpop.permute.xlu0 %1767
        %1769 = vrot.lane.b32.xlu0 %v1749, 12
        %v1770 = vpop.permute.xlu0 %1769
        %1771 = vrot.lane.b32.xlu0 %v1750, 12
        %v1772 = vpop.permute.xlu0 %1771
        %1773 = vrot.lane.b32.xlu0 %v1751, 12
        %v1774 = vpop.permute.xlu0 %1773
        %1775 = vrot.lane.b32.xlu0 %v1752, 12
        %v1776 = vpop.permute.xlu0 %1775
        %1777 = vrot.lane.b32.xlu0 %v1753, 12
        %v1778 = vpop.permute.xlu0 %1777
        %1779 = vrot.lane.b32.xlu0 %v1754, 12
        %v1780 = vpop.permute.xlu0 %1779
        %1781 = vrot.lane.b32.xlu0 %v1755, 12
        %v1782 = vpop.permute.xlu0 %1781
        %1783 = vrot.lane.b32.xlu0 %v1756, 12
        %v1784 = vpop.permute.xlu0 %1783
        %1785 = vrot.lane.b32.xlu0 %v1757, 12
        %v1786 = vpop.permute.xlu0 %1785
        %1787 = vrot.lane.b32.xlu0 %v1758, 12
        %v1788 = vpop.permute.xlu0 %1787
        %1789 = vrot.lane.b32.xlu0 %v1759, 12
        %v1790 = vpop.permute.xlu0 %1789
        %1791 = vrot.lane.b32.xlu0 %v1760, 12
        %v1792 = vpop.permute.xlu0 %1791
        %vm1809 = vcmask 130144
        %1810 = vst.msk [vmem:[#allocation3] sm:$0xff] %vm1809, %v1762
        %1811 = vst.msk [vmem:[#allocation3 + $0x8] sm:$0xff] %vm1809, %v1764
        %1812 = vst.msk [vmem:[#allocation3 + $0x10] sm:$0xff] %vm1809, %v1766
        %1813 = vst.msk [vmem:[#allocation3 + $0x18] sm:$0xff] %vm1809, %v1768
        %1814 = vst.msk [vmem:[#allocation3 + $0x20] sm:$0xff] %vm1809, %v1770
        %1815 = vst.msk [vmem:[#allocation3 + $0x28] sm:$0xff] %vm1809, %v1772
        %1816 = vst.msk [vmem:[#allocation3 + $0x30] sm:$0xff] %vm1809, %v1774
        %1817 = vst.msk [vmem:[#allocation3 + $0x38] sm:$0xff] %vm1809, %v1776
        %1818 = vst.msk [vmem:[#allocation3 + $0x40] sm:$0xff] %vm1809, %v1778
        %1819 = vst.msk [vmem:[#allocation3 + $0x48] sm:$0xff] %vm1809, %v1780
        %1820 = vst.msk [vmem:[#allocation3 + $0x50] sm:$0xff] %vm1809, %v1782
        %1821 = vst.msk [vmem:[#allocation3 + $0x58] sm:$0xff] %vm1809, %v1784
        %1822 = vst.msk [vmem:[#allocation3 + $0x60] sm:$0xff] %vm1809, %v1786
        %1823 = vst.msk [vmem:[#allocation3 + $0x68] sm:$0xff] %vm1809, %v1788
        %1824 = vst.msk [vmem:[#allocation3 + $0x70] sm:$0xff] %vm1809, %v1790
        %1825 = vst.msk [vmem:[#allocation3 + $0x78] sm:$0xff] %vm1809, %v1792
        %v1826 = vld [vmem:[%s662] sm:$0xf]
        %v1827 = vld [vmem:[%s662 + $0x4] sm:$0xf]
        %v1828 = vld [vmem:[%s662 + $0x8] sm:$0x1]
        %v1829 = vld [vmem:[%s662 + $0xc] sm:$0xf]
        %v1830 = vld [vmem:[%s662 + $0x10] sm:$0xf]
        %v1831 = vld [vmem:[%s662 + $0x14] sm:$0x1]
        %v1832 = vld [vmem:[%s662 + $0x18] sm:$0xf]
        %v1833 = vld [vmem:[%s662 + $0x1c] sm:$0xf]
        %v1834 = vld [vmem:[%s662 + $0x20] sm:$0x1]
        %v1835 = vld [vmem:[%s662 + $0x24] sm:$0xf]
        %v1836 = vld [vmem:[%s662 + $0x28] sm:$0xf]
        %v1837 = vld [vmem:[%s662 + $0x2c] sm:$0x1]
        %v1838 = vld [vmem:[%s662 + $0x30] sm:$0xf]
        %v1839 = vld [vmem:[%s662 + $0x34] sm:$0xf]
        %v1840 = vld [vmem:[%s662 + $0x38] sm:$0x1]
        %v1841 = vld [vmem:[%s662 + $0x3c] sm:$0xf]
        %v1842 = vld [vmem:[%s662 + $0x40] sm:$0xf]
        %v1843 = vld [vmem:[%s662 + $0x44] sm:$0x1]
        %v1844 = vld [vmem:[%s662 + $0x48] sm:$0xf]
        %v1845 = vld [vmem:[%s662 + $0x4c] sm:$0xf]
        %v1846 = vld [vmem:[%s662 + $0x50] sm:$0x1]
        %v1847 = vld [vmem:[%s662 + $0x54] sm:$0xf]
        %v1848 = vld [vmem:[%s662 + $0x58] sm:$0xf]
        %v1849 = vld [vmem:[%s662 + $0x5c] sm:$0x1]
        %v1850 = vld [vmem:[%s662 + $0x60] sm:$0xf]
        %v1851 = vld [vmem:[%s662 + $0x64] sm:$0xf]
        %v1852 = vld [vmem:[%s662 + $0x68] sm:$0x1]
        %v1853 = vld [vmem:[%s662 + $0x6c] sm:$0xf]
        %v1854 = vld [vmem:[%s662 + $0x70] sm:$0xf]
        %v1855 = vld [vmem:[%s662 + $0x74] sm:$0x1]
        %v1856 = vld [vmem:[%s662 + $0x78] sm:$0xf]
        %v1857 = vld [vmem:[%s662 + $0x7c] sm:$0xf]
        %v1858 = vld [vmem:[%s662 + $0x80] sm:$0x1]
        %v1859 = vld [vmem:[%s662 + $0x84] sm:$0xf]
        %v1860 = vld [vmem:[%s662 + $0x88] sm:$0xf]
        %v1861 = vld [vmem:[%s662 + $0x8c] sm:$0x1]
        %v1862 = vld [vmem:[%s662 + $0x90] sm:$0xf]
        %v1863 = vld [vmem:[%s662 + $0x94] sm:$0xf]
        %v1864 = vld [vmem:[%s662 + $0x98] sm:$0x1]
        %v1865 = vld [vmem:[%s662 + $0x9c] sm:$0xf]
        %v1866 = vld [vmem:[%s662 + $0xa0] sm:$0xf]
        %v1867 = vld [vmem:[%s662 + $0xa4] sm:$0x1]
        %v1868 = vld [vmem:[%s662 + $0xa8] sm:$0xf]
        %v1869 = vld [vmem:[%s662 + $0xac] sm:$0xf]
        %v1870 = vld [vmem:[%s662 + $0xb0] sm:$0x1]
        %v1871 = vld [vmem:[%s662 + $0xb4] sm:$0xf]
        %v1872 = vld [vmem:[%s662 + $0xb8] sm:$0xf]
        %v1873 = vld [vmem:[%s662 + $0xbc] sm:$0x1]
        %v1922 = vunpack.c.l.b16 %v1826
        %v1923 = vunpack.c.l.b16 %v1827
        %v1924 = vunpack.c.l.b16 %v1828
        %v1925 = vunpack.c.l.b16 %v1829
        %v1926 = vunpack.c.l.b16 %v1830
        %v1927 = vunpack.c.l.b16 %v1831
        %v1928 = vunpack.c.l.b16 %v1832
        %v1929 = vunpack.c.l.b16 %v1833
        %v1930 = vunpack.c.l.b16 %v1834
        %v1931 = vunpack.c.l.b16 %v1835
        %v1932 = vunpack.c.l.b16 %v1836
        %v1933 = vunpack.c.l.b16 %v1837
        %v1934 = vunpack.c.l.b16 %v1838
        %v1935 = vunpack.c.l.b16 %v1839
        %v1936 = vunpack.c.l.b16 %v1840
        %v1937 = vunpack.c.l.b16 %v1841
        %v1938 = vunpack.c.l.b16 %v1842
        %v1939 = vunpack.c.l.b16 %v1843
        %v1940 = vunpack.c.l.b16 %v1844
        %v1941 = vunpack.c.l.b16 %v1845
        %v1942 = vunpack.c.l.b16 %v1846
        %v1943 = vunpack.c.l.b16 %v1847
        %v1944 = vunpack.c.l.b16 %v1848
        %v1945 = vunpack.c.l.b16 %v1849
        %v1946 = vunpack.c.l.b16 %v1850
        %v1947 = vunpack.c.l.b16 %v1851
        %v1948 = vunpack.c.l.b16 %v1852
        %v1949 = vunpack.c.l.b16 %v1853
        %v1950 = vunpack.c.l.b16 %v1854
        %v1951 = vunpack.c.l.b16 %v1855
        %v1952 = vunpack.c.l.b16 %v1856
        %v1953 = vunpack.c.l.b16 %v1857
        %v1954 = vunpack.c.l.b16 %v1858
        %v1955 = vunpack.c.l.b16 %v1859
        %v1956 = vunpack.c.l.b16 %v1860
        %v1957 = vunpack.c.l.b16 %v1861
        %v1958 = vunpack.c.l.b16 %v1862
        %v1959 = vunpack.c.l.b16 %v1863
        %v1960 = vunpack.c.l.b16 %v1864
        %v1961 = vunpack.c.l.b16 %v1865
        %v1962 = vunpack.c.l.b16 %v1866
        %v1963 = vunpack.c.l.b16 %v1867
        %v1964 = vunpack.c.l.b16 %v1868
        %v1965 = vunpack.c.l.b16 %v1869
        %v1966 = vunpack.c.l.b16 %v1870
        %v1967 = vunpack.c.l.b16 %v1871
        %v1968 = vunpack.c.l.b16 %v1872
        %v1969 = vunpack.c.l.b16 %v1873
        %v1970 = vpack.c.b16 %v1923, %v1922
        %v1971 = vpack.c.b16 %v1924, %v1924
        %v1972 = vpack.c.b16 %v1926, %v1925
        %v1973 = vpack.c.b16 %v1927, %v1927
        %v1974 = vpack.c.b16 %v1929, %v1928
        %v1975 = vpack.c.b16 %v1930, %v1930
        %v1976 = vpack.c.b16 %v1932, %v1931
        %v1977 = vpack.c.b16 %v1933, %v1933
        %v1978 = vpack.c.b16 %v1935, %v1934
        %v1979 = vpack.c.b16 %v1936, %v1936
        %v1980 = vpack.c.b16 %v1938, %v1937
        %v1981 = vpack.c.b16 %v1939, %v1939
        %v1982 = vpack.c.b16 %v1941, %v1940
        %v1983 = vpack.c.b16 %v1942, %v1942
        %v1984 = vpack.c.b16 %v1944, %v1943
        %v1985 = vpack.c.b16 %v1945, %v1945
        %v1986 = vpack.c.b16 %v1947, %v1946
        %v1987 = vpack.c.b16 %v1948, %v1948
        %v1988 = vpack.c.b16 %v1950, %v1949
        %v1989 = vpack.c.b16 %v1951, %v1951
        %v1990 = vpack.c.b16 %v1953, %v1952
        %v1991 = vpack.c.b16 %v1954, %v1954
        %v1992 = vpack.c.b16 %v1956, %v1955
        %v1993 = vpack.c.b16 %v1957, %v1957
        %v1994 = vpack.c.b16 %v1959, %v1958
        %v1995 = vpack.c.b16 %v1960, %v1960
        %v1996 = vpack.c.b16 %v1962, %v1961
        %v1997 = vpack.c.b16 %v1963, %v1963
        %v1998 = vpack.c.b16 %v1965, %v1964
        %v1999 = vpack.c.b16 %v1966, %v1966
        %v2000 = vpack.c.b16 %v1968, %v1967
        %v2001 = vpack.c.b16 %v1969, %v1969
        %v2003 = vshrl.u32 %v1970, 16
        %v2005 = vshll.u32 %v1970, 16
        %v2007 = vrot.slane %v2005, 1
        %v2008 = vor.u32 %v2003, %v2007
        %v2010 = vshll.u32 %v1971, 16
        %v2012 = vrot.slane %v2010, 1
        %v2013 = vsel %vm1101, %v2008, %v2012
        %v2015 = vshrl.u32 %v1972, 16
        %v2017 = vshll.u32 %v1972, 16
        %v2019 = vrot.slane %v2017, 1
        %v2020 = vor.u32 %v2015, %v2019
        %v2022 = vshll.u32 %v1973, 16
        %v2024 = vrot.slane %v2022, 1
        %v2025 = vsel %vm1101, %v2020, %v2024
        %v2027 = vshrl.u32 %v1974, 16
        %v2029 = vshll.u32 %v1974, 16
        %v2031 = vrot.slane %v2029, 1
        %v2032 = vor.u32 %v2027, %v2031
        %v2034 = vshll.u32 %v1975, 16
        %v2036 = vrot.slane %v2034, 1
        %v2037 = vsel %vm1101, %v2032, %v2036
        %v2039 = vshrl.u32 %v1976, 16
        %v2041 = vshll.u32 %v1976, 16
        %v2043 = vrot.slane %v2041, 1
        %v2044 = vor.u32 %v2039, %v2043
        %v2046 = vshll.u32 %v1977, 16
        %v2048 = vrot.slane %v2046, 1
        %v2049 = vsel %vm1101, %v2044, %v2048
        %v2051 = vshrl.u32 %v1978, 16
        %v2053 = vshll.u32 %v1978, 16
        %v2055 = vrot.slane %v2053, 1
        %v2056 = vor.u32 %v2051, %v2055
        %v2058 = vshll.u32 %v1979, 16
        %v2060 = vrot.slane %v2058, 1
        %v2061 = vsel %vm1101, %v2056, %v2060
        %v2063 = vshrl.u32 %v1980, 16
        %v2065 = vshll.u32 %v1980, 16
        %v2067 = vrot.slane %v2065, 1
        %v2068 = vor.u32 %v2063, %v2067
        %v2070 = vshll.u32 %v1981, 16
        %v2072 = vrot.slane %v2070, 1
        %v2073 = vsel %vm1101, %v2068, %v2072
        %v2075 = vshrl.u32 %v1982, 16
        %v2077 = vshll.u32 %v1982, 16
        %v2079 = vrot.slane %v2077, 1
        %v2080 = vor.u32 %v2075, %v2079
        %v2082 = vshll.u32 %v1983, 16
        %v2084 = vrot.slane %v2082, 1
        %v2085 = vsel %vm1101, %v2080, %v2084
        %v2087 = vshrl.u32 %v1984, 16
        %v2089 = vshll.u32 %v1984, 16
        %v2091 = vrot.slane %v2089, 1
        %v2092 = vor.u32 %v2087, %v2091
        %v2094 = vshll.u32 %v1985, 16
        %v2096 = vrot.slane %v2094, 1
        %v2097 = vsel %vm1101, %v2092, %v2096
        %v2099 = vshrl.u32 %v1986, 16
        %v2101 = vshll.u32 %v1986, 16
        %v2103 = vrot.slane %v2101, 1
        %v2104 = vor.u32 %v2099, %v2103
        %v2106 = vshll.u32 %v1987, 16
        %v2108 = vrot.slane %v2106, 1
        %v2109 = vsel %vm1101, %v2104, %v2108
        %v2111 = vshrl.u32 %v1988, 16
        %v2113 = vshll.u32 %v1988, 16
        %v2115 = vrot.slane %v2113, 1
        %v2116 = vor.u32 %v2111, %v2115
        %v2118 = vshll.u32 %v1989, 16
        %v2120 = vrot.slane %v2118, 1
        %v2121 = vsel %vm1101, %v2116, %v2120
        %v2123 = vshrl.u32 %v1990, 16
        %v2125 = vshll.u32 %v1990, 16
        %v2127 = vrot.slane %v2125, 1
        %v2128 = vor.u32 %v2123, %v2127
        %v2130 = vshll.u32 %v1991, 16
        %v2132 = vrot.slane %v2130, 1
        %v2133 = vsel %vm1101, %v2128, %v2132
        %v2135 = vshrl.u32 %v1992, 16
        %v2137 = vshll.u32 %v1992, 16
        %v2139 = vrot.slane %v2137, 1
        %v2140 = vor.u32 %v2135, %v2139
        %v2142 = vshll.u32 %v1993, 16
        %v2144 = vrot.slane %v2142, 1
        %v2145 = vsel %vm1101, %v2140, %v2144
        %v2147 = vshrl.u32 %v1994, 16
        %v2149 = vshll.u32 %v1994, 16
        %v2151 = vrot.slane %v2149, 1
        %v2152 = vor.u32 %v2147, %v2151
        %v2154 = vshll.u32 %v1995, 16
        %v2156 = vrot.slane %v2154, 1
        %v2157 = vsel %vm1101, %v2152, %v2156
        %v2159 = vshrl.u32 %v1996, 16
        %v2161 = vshll.u32 %v1996, 16
        %v2163 = vrot.slane %v2161, 1
        %v2164 = vor.u32 %v2159, %v2163
        %v2166 = vshll.u32 %v1997, 16
        %v2168 = vrot.slane %v2166, 1
        %v2169 = vsel %vm1101, %v2164, %v2168
        %v2171 = vshrl.u32 %v1998, 16
        %v2173 = vshll.u32 %v1998, 16
        %v2175 = vrot.slane %v2173, 1
        %v2176 = vor.u32 %v2171, %v2175
        %v2178 = vshll.u32 %v1999, 16
        %v2180 = vrot.slane %v2178, 1
        %v2181 = vsel %vm1101, %v2176, %v2180
        %v2183 = vshrl.u32 %v2000, 16
        %v2185 = vshll.u32 %v2000, 16
        %v2187 = vrot.slane %v2185, 1
        %v2188 = vor.u32 %v2183, %v2187
        %v2190 = vshll.u32 %v2001, 16
        %v2192 = vrot.slane %v2190, 1
        %v2193 = vsel %vm1101, %v2188, %v2192
        %2194 = vrot.lane.b32.xlu0 %v2013, 16
        %v2195 = vpop.permute.xlu0 %2194
        %2196 = vrot.lane.b32.xlu0 %v2025, 16
        %v2197 = vpop.permute.xlu0 %2196
        %2198 = vrot.lane.b32.xlu0 %v2037, 16
        %v2199 = vpop.permute.xlu0 %2198
        %2200 = vrot.lane.b32.xlu0 %v2049, 16
        %v2201 = vpop.permute.xlu0 %2200
        %2202 = vrot.lane.b32.xlu0 %v2061, 16
        %v2203 = vpop.permute.xlu0 %2202
        %2204 = vrot.lane.b32.xlu0 %v2073, 16
        %v2205 = vpop.permute.xlu0 %2204
        %2206 = vrot.lane.b32.xlu0 %v2085, 16
        %v2207 = vpop.permute.xlu0 %2206
        %2208 = vrot.lane.b32.xlu0 %v2097, 16
        %v2209 = vpop.permute.xlu0 %2208
        %2210 = vrot.lane.b32.xlu0 %v2109, 16
        %v2211 = vpop.permute.xlu0 %2210
        %2212 = vrot.lane.b32.xlu0 %v2121, 16
        %v2213 = vpop.permute.xlu0 %2212
        %2214 = vrot.lane.b32.xlu0 %v2133, 16
        %v2215 = vpop.permute.xlu0 %2214
        %2216 = vrot.lane.b32.xlu0 %v2145, 16
        %v2217 = vpop.permute.xlu0 %2216
        %2218 = vrot.lane.b32.xlu0 %v2157, 16
        %v2219 = vpop.permute.xlu0 %2218
        %2220 = vrot.lane.b32.xlu0 %v2169, 16
        %v2221 = vpop.permute.xlu0 %2220
        %2222 = vrot.lane.b32.xlu0 %v2181, 16
        %v2223 = vpop.permute.xlu0 %2222
        %2224 = vrot.lane.b32.xlu0 %v2193, 16
        %v2225 = vpop.permute.xlu0 %2224
        %vm2242 = vcmask 162944
        %2243 = vst.msk [vmem:[#allocation3] sm:$0xff] %vm2242, %v2195
        %2244 = vst.msk [vmem:[#allocation3 + $0x8] sm:$0xff] %vm2242, %v2197
        %2245 = vst.msk [vmem:[#allocation3 + $0x10] sm:$0xff] %vm2242, %v2199
        %2246 = vst.msk [vmem:[#allocation3 + $0x18] sm:$0xff] %vm2242, %v2201
        %2247 = vst.msk [vmem:[#allocation3 + $0x20] sm:$0xff] %vm2242, %v2203
        %2248 = vst.msk [vmem:[#allocation3 + $0x28] sm:$0xff] %vm2242, %v2205
        %2249 = vst.msk [vmem:[#allocation3 + $0x30] sm:$0xff] %vm2242, %v2207
        %2250 = vst.msk [vmem:[#allocation3 + $0x38] sm:$0xff] %vm2242, %v2209
        %2251 = vst.msk [vmem:[#allocation3 + $0x40] sm:$0xff] %vm2242, %v2211
        %2252 = vst.msk [vmem:[#allocation3 + $0x48] sm:$0xff] %vm2242, %v2213
        %2253 = vst.msk [vmem:[#allocation3 + $0x50] sm:$0xff] %vm2242, %v2215
        %2254 = vst.msk [vmem:[#allocation3 + $0x58] sm:$0xff] %vm2242, %v2217
        %2255 = vst.msk [vmem:[#allocation3 + $0x60] sm:$0xff] %vm2242, %v2219
        %2256 = vst.msk [vmem:[#allocation3 + $0x68] sm:$0xff] %vm2242, %v2221
        %2257 = vst.msk [vmem:[#allocation3 + $0x70] sm:$0xff] %vm2242, %v2223
        %2258 = vst.msk [vmem:[#allocation3 + $0x78] sm:$0xff] %vm2242, %v2225
        %v2259 = vld [vmem:[%s662] sm:$0xe]
        %v2260 = vld [vmem:[%s662 + $0x4] sm:$0xf]
        %v2261 = vld [vmem:[%s662 + $0x8] sm:$0x1]
        %v2262 = vld [vmem:[%s662 + $0xc] sm:$0xe]
        %v2263 = vld [vmem:[%s662 + $0x10] sm:$0xf]
        %v2264 = vld [vmem:[%s662 + $0x14] sm:$0x1]
        %v2265 = vld [vmem:[%s662 + $0x18] sm:$0xe]
        %v2266 = vld [vmem:[%s662 + $0x1c] sm:$0xf]
        %v2267 = vld [vmem:[%s662 + $0x20] sm:$0x1]
        %v2268 = vld [vmem:[%s662 + $0x24] sm:$0xe]
        %v2269 = vld [vmem:[%s662 + $0x28] sm:$0xf]
        %v2270 = vld [vmem:[%s662 + $0x2c] sm:$0x1]
        %v2271 = vld [vmem:[%s662 + $0x30] sm:$0xe]
        %v2272 = vld [vmem:[%s662 + $0x34] sm:$0xf]
        %v2273 = vld [vmem:[%s662 + $0x38] sm:$0x1]
        %v2274 = vld [vmem:[%s662 + $0x3c] sm:$0xe]
        %v2275 = vld [vmem:[%s662 + $0x40] sm:$0xf]
        %v2276 = vld [vmem:[%s662 + $0x44] sm:$0x1]
        %v2277 = vld [vmem:[%s662 + $0x48] sm:$0xe]
        %v2278 = vld [vmem:[%s662 + $0x4c] sm:$0xf]
        %v2279 = vld [vmem:[%s662 + $0x50] sm:$0x1]
        %v2280 = vld [vmem:[%s662 + $0x54] sm:$0xe]
        %v2281 = vld [vmem:[%s662 + $0x58] sm:$0xf]
        %v2282 = vld [vmem:[%s662 + $0x5c] sm:$0x1]
        %v2283 = vld [vmem:[%s662 + $0x60] sm:$0xe]
        %v2284 = vld [vmem:[%s662 + $0x64] sm:$0xf]
        %v2285 = vld [vmem:[%s662 + $0x68] sm:$0x1]
        %v2286 = vld [vmem:[%s662 + $0x6c] sm:$0xe]
        %v2287 = vld [vmem:[%s662 + $0x70] sm:$0xf]
        %v2288 = vld [vmem:[%s662 + $0x74] sm:$0x1]
        %v2289 = vld [vmem:[%s662 + $0x78] sm:$0xe]
        %v2290 = vld [vmem:[%s662 + $0x7c] sm:$0xf]
        %v2291 = vld [vmem:[%s662 + $0x80] sm:$0x1]
        %v2292 = vld [vmem:[%s662 + $0x84] sm:$0xe]
        %v2293 = vld [vmem:[%s662 + $0x88] sm:$0xf]
        %v2294 = vld [vmem:[%s662 + $0x8c] sm:$0x1]
        %v2295 = vld [vmem:[%s662 + $0x90] sm:$0xe]
        %v2296 = vld [vmem:[%s662 + $0x94] sm:$0xf]
        %v2297 = vld [vmem:[%s662 + $0x98] sm:$0x1]
        %v2298 = vld [vmem:[%s662 + $0x9c] sm:$0xe]
        %v2299 = vld [vmem:[%s662 + $0xa0] sm:$0xf]
        %v2300 = vld [vmem:[%s662 + $0xa4] sm:$0x1]
        %v2301 = vld [vmem:[%s662 + $0xa8] sm:$0xe]
        %v2302 = vld [vmem:[%s662 + $0xac] sm:$0xf]
        %v2303 = vld [vmem:[%s662 + $0xb0] sm:$0x1]
        %v2304 = vld [vmem:[%s662 + $0xb4] sm:$0xe]
        %v2305 = vld [vmem:[%s662 + $0xb8] sm:$0xf]
        %v2306 = vld [vmem:[%s662 + $0xbc] sm:$0x1]
        %v2355 = vunpack.c.l.b16 %v2259
        %v2356 = vunpack.c.l.b16 %v2260
        %v2357 = vunpack.c.l.b16 %v2261
        %v2358 = vunpack.c.l.b16 %v2262
        %v2359 = vunpack.c.l.b16 %v2263
        %v2360 = vunpack.c.l.b16 %v2264
        %v2361 = vunpack.c.l.b16 %v2265
        %v2362 = vunpack.c.l.b16 %v2266
        %v2363 = vunpack.c.l.b16 %v2267
        %v2364 = vunpack.c.l.b16 %v2268
        %v2365 = vunpack.c.l.b16 %v2269
        %v2366 = vunpack.c.l.b16 %v2270
        %v2367 = vunpack.c.l.b16 %v2271
        %v2368 = vunpack.c.l.b16 %v2272
        %v2369 = vunpack.c.l.b16 %v2273
        %v2370 = vunpack.c.l.b16 %v2274
        %v2371 = vunpack.c.l.b16 %v2275
        %v2372 = vunpack.c.l.b16 %v2276
        %v2373 = vunpack.c.l.b16 %v2277
        %v2374 = vunpack.c.l.b16 %v2278
        %v2375 = vunpack.c.l.b16 %v2279
        %v2376 = vunpack.c.l.b16 %v2280
        %v2377 = vunpack.c.l.b16 %v2281
        %v2378 = vunpack.c.l.b16 %v2282
        %v2379 = vunpack.c.l.b16 %v2283
        %v2380 = vunpack.c.l.b16 %v2284
        %v2381 = vunpack.c.l.b16 %v2285
        %v2382 = vunpack.c.l.b16 %v2286
        %v2383 = vunpack.c.l.b16 %v2287
        %v2384 = vunpack.c.l.b16 %v2288
        %v2385 = vunpack.c.l.b16 %v2289
        %v2386 = vunpack.c.l.b16 %v2290
        %v2387 = vunpack.c.l.b16 %v2291
        %v2388 = vunpack.c.l.b16 %v2292
        %v2389 = vunpack.c.l.b16 %v2293
        %v2390 = vunpack.c.l.b16 %v2294
        %v2391 = vunpack.c.l.b16 %v2295
        %v2392 = vunpack.c.l.b16 %v2296
        %v2393 = vunpack.c.l.b16 %v2297
        %v2394 = vunpack.c.l.b16 %v2298
        %v2395 = vunpack.c.l.b16 %v2299
        %v2396 = vunpack.c.l.b16 %v2300
        %v2397 = vunpack.c.l.b16 %v2301
        %v2398 = vunpack.c.l.b16 %v2302
        %v2399 = vunpack.c.l.b16 %v2303
        %v2400 = vunpack.c.l.b16 %v2304
        %v2401 = vunpack.c.l.b16 %v2305
        %v2402 = vunpack.c.l.b16 %v2306
        %v2403 = vpack.c.b16 %v2356, %v2355
        %v2404 = vpack.c.b16 %v2357, %v2357
        %v2405 = vpack.c.b16 %v2359, %v2358
        %v2406 = vpack.c.b16 %v2360, %v2360
        %v2407 = vpack.c.b16 %v2362, %v2361
        %v2408 = vpack.c.b16 %v2363, %v2363
        %v2409 = vpack.c.b16 %v2365, %v2364
        %v2410 = vpack.c.b16 %v2366, %v2366
        %v2411 = vpack.c.b16 %v2368, %v2367
        %v2412 = vpack.c.b16 %v2369, %v2369
        %v2413 = vpack.c.b16 %v2371, %v2370
        %v2414 = vpack.c.b16 %v2372, %v2372
        %v2415 = vpack.c.b16 %v2374, %v2373
        %v2416 = vpack.c.b16 %v2375, %v2375
        %v2417 = vpack.c.b16 %v2377, %v2376
        %v2418 = vpack.c.b16 %v2378, %v2378
        %v2419 = vpack.c.b16 %v2380, %v2379
        %v2420 = vpack.c.b16 %v2381, %v2381
        %v2421 = vpack.c.b16 %v2383, %v2382
        %v2422 = vpack.c.b16 %v2384, %v2384
        %v2423 = vpack.c.b16 %v2386, %v2385
        %v2424 = vpack.c.b16 %v2387, %v2387
        %v2425 = vpack.c.b16 %v2389, %v2388
        %v2426 = vpack.c.b16 %v2390, %v2390
        %v2427 = vpack.c.b16 %v2392, %v2391
        %v2428 = vpack.c.b16 %v2393, %v2393
        %v2429 = vpack.c.b16 %v2395, %v2394
        %v2430 = vpack.c.b16 %v2396, %v2396
        %v2431 = vpack.c.b16 %v2398, %v2397
        %v2432 = vpack.c.b16 %v2399, %v2399
        %v2433 = vpack.c.b16 %v2401, %v2400
        %v2434 = vpack.c.b16 %v2402, %v2402
        %v2435 = vrot.slane %v2403, 1
        %v2436 = vrot.slane %v2404, 1
        %v2437 = vsel %vm1535, %v2435, %v2436
        %v2438 = vrot.slane %v2405, 1
        %v2439 = vrot.slane %v2406, 1
        %v2440 = vsel %vm1535, %v2438, %v2439
        %v2441 = vrot.slane %v2407, 1
        %v2442 = vrot.slane %v2408, 1
        %v2443 = vsel %vm1535, %v2441, %v2442
        %v2444 = vrot.slane %v2409, 1
        %v2445 = vrot.slane %v2410, 1
        %v2446 = vsel %vm1535, %v2444, %v2445
        %v2447 = vrot.slane %v2411, 1
        %v2448 = vrot.slane %v2412, 1
        %v2449 = vsel %vm1535, %v2447, %v2448
        %v2450 = vrot.slane %v2413, 1
        %v2451 = vrot.slane %v2414, 1
        %v2452 = vsel %vm1535, %v2450, %v2451
        %v2453 = vrot.slane %v2415, 1
        %v2454 = vrot.slane %v2416, 1
        %v2455 = vsel %vm1535, %v2453, %v2454
        %v2456 = vrot.slane %v2417, 1
        %v2457 = vrot.slane %v2418, 1
        %v2458 = vsel %vm1535, %v2456, %v2457
        %v2459 = vrot.slane %v2419, 1
        %v2460 = vrot.slane %v2420, 1
        %v2461 = vsel %vm1535, %v2459, %v2460
        %v2462 = vrot.slane %v2421, 1
        %v2463 = vrot.slane %v2422, 1
        %v2464 = vsel %vm1535, %v2462, %v2463
        %v2465 = vrot.slane %v2423, 1
        %v2466 = vrot.slane %v2424, 1
        %v2467 = vsel %vm1535, %v2465, %v2466
        %v2468 = vrot.slane %v2425, 1
        %v2469 = vrot.slane %v2426, 1
        %v2470 = vsel %vm1535, %v2468, %v2469
        %v2471 = vrot.slane %v2427, 1
        %v2472 = vrot.slane %v2428, 1
        %v2473 = vsel %vm1535, %v2471, %v2472
        %v2474 = vrot.slane %v2429, 1
        %v2475 = vrot.slane %v2430, 1
        %v2476 = vsel %vm1535, %v2474, %v2475
        %v2477 = vrot.slane %v2431, 1
        %v2478 = vrot.slane %v2432, 1
        %v2479 = vsel %vm1535, %v2477, %v2478
        %v2480 = vrot.slane %v2433, 1
        %v2481 = vrot.slane %v2434, 1
        %v2482 = vsel %vm1535, %v2480, %v2481
        %2483 = vrot.lane.b32.xlu0 %v2437, 20
        %v2484 = vpop.permute.xlu0 %2483
        %2485 = vrot.lane.b32.xlu0 %v2440, 20
        %v2486 = vpop.permute.xlu0 %2485
        %2487 = vrot.lane.b32.xlu0 %v2443, 20
        %v2488 = vpop.permute.xlu0 %2487
        %2489 = vrot.lane.b32.xlu0 %v2446, 20
        %v2490 = vpop.permute.xlu0 %2489
        %2491 = vrot.lane.b32.xlu0 %v2449, 20
        %v2492 = vpop.permute.xlu0 %2491
        %2493 = vrot.lane.b32.xlu0 %v2452, 20
        %v2494 = vpop.permute.xlu0 %2493
        %2495 = vrot.lane.b32.xlu0 %v2455, 20
        %v2496 = vpop.permute.xlu0 %2495
        %2497 = vrot.lane.b32.xlu0 %v2458, 20
        %v2498 = vpop.permute.xlu0 %2497
        %2499 = vrot.lane.b32.xlu0 %v2461, 20
        %v2500 = vpop.permute.xlu0 %2499
        %2501 = vrot.lane.b32.xlu0 %v2464, 20
        %v2502 = vpop.permute.xlu0 %2501
        %2503 = vrot.lane.b32.xlu0 %v2467, 20
        %v2504 = vpop.permute.xlu0 %2503
        %2505 = vrot.lane.b32.xlu0 %v2470, 20
        %v2506 = vpop.permute.xlu0 %2505
        %2507 = vrot.lane.b32.xlu0 %v2473, 20
        %v2508 = vpop.permute.xlu0 %2507
        %2509 = vrot.lane.b32.xlu0 %v2476, 20
        %v2510 = vpop.permute.xlu0 %2509
        %2511 = vrot.lane.b32.xlu0 %v2479, 20
        %v2512 = vpop.permute.xlu0 %2511
        %2513 = vrot.lane.b32.xlu0 %v2482, 20
        %v2514 = vpop.permute.xlu0 %2513
        %vm2531 = vcmask 195744
        %2532 = vst.msk [vmem:[#allocation3] sm:$0xff] %vm2531, %v2484
        %2533 = vst.msk [vmem:[#allocation3 + $0x8] sm:$0xff] %vm2531, %v2486
        %2534 = vst.msk [vmem:[#allocation3 + $0x10] sm:$0xff] %vm2531, %v2488
        %2535 = vst.msk [vmem:[#allocation3 + $0x18] sm:$0xff] %vm2531, %v2490
        %2536 = vst.msk [vmem:[#allocation3 + $0x20] sm:$0xff] %vm2531, %v2492
        %2537 = vst.msk [vmem:[#allocation3 + $0x28] sm:$0xff] %vm2531, %v2494
        %2538 = vst.msk [vmem:[#allocation3 + $0x30] sm:$0xff] %vm2531, %v2496
        %2539 = vst.msk [vmem:[#allocation3 + $0x38] sm:$0xff] %vm2531, %v2498
        %2540 = vst.msk [vmem:[#allocation3 + $0x40] sm:$0xff] %vm2531, %v2500
        %2541 = vst.msk [vmem:[#allocation3 + $0x48] sm:$0xff] %vm2531, %v2502
        %2542 = vst.msk [vmem:[#allocation3 + $0x50] sm:$0xff] %vm2531, %v2504
        %2543 = vst.msk [vmem:[#allocation3 + $0x58] sm:$0xff] %vm2531, %v2506
        %2544 = vst.msk [vmem:[#allocation3 + $0x60] sm:$0xff] %vm2531, %v2508
        %2545 = vst.msk [vmem:[#allocation3 + $0x68] sm:$0xff] %vm2531, %v2510
        %2546 = vst.msk [vmem:[#allocation3 + $0x70] sm:$0xff] %vm2531, %v2512
        %2547 = vst.msk [vmem:[#allocation3 + $0x78] sm:$0xff] %vm2531, %v2514
        %s2548 = scalar_lea.vmem [#allocation2], 24
        %v2549 = vld [vmem:[%s2548] sm:$0xf]
        %v2550 = vld [vmem:[%s2548 + $0x4] sm:$0xf]
        %v2551 = vld [vmem:[%s2548 + $0xc] sm:$0xf]
        %v2552 = vld [vmem:[%s2548 + $0x10] sm:$0xf]
        %v2553 = vld [vmem:[%s2548 + $0x18] sm:$0xf]
        %v2554 = vld [vmem:[%s2548 + $0x1c] sm:$0xf]
        %v2555 = vld [vmem:[%s2548 + $0x24] sm:$0xf]
        %v2556 = vld [vmem:[%s2548 + $0x28] sm:$0xf]
        %v2557 = vld [vmem:[%s2548 + $0x30] sm:$0xf]
        %v2558 = vld [vmem:[%s2548 + $0x34] sm:$0xf]
        %v2559 = vld [vmem:[%s2548 + $0x3c] sm:$0xf]
        %v2560 = vld [vmem:[%s2548 + $0x40] sm:$0xf]
        %v2561 = vld [vmem:[%s2548 + $0x48] sm:$0xf]
        %v2562 = vld [vmem:[%s2548 + $0x4c] sm:$0xf]
        %v2563 = vld [vmem:[%s2548 + $0x54] sm:$0xf]
        %v2564 = vld [vmem:[%s2548 + $0x58] sm:$0xf]
        %v2565 = vld [vmem:[%s2548 + $0x60] sm:$0xf]
        %v2566 = vld [vmem:[%s2548 + $0x64] sm:$0xf]
        %v2567 = vld [vmem:[%s2548 + $0x6c] sm:$0xf]
        %v2568 = vld [vmem:[%s2548 + $0x70] sm:$0xf]
        %v2569 = vld [vmem:[%s2548 + $0x78] sm:$0xf]
        %v2570 = vld [vmem:[%s2548 + $0x7c] sm:$0xf]
        %v2571 = vld [vmem:[%s2548 + $0x84] sm:$0xf]
        %v2572 = vld [vmem:[%s2548 + $0x88] sm:$0xf]
        %v2573 = vld [vmem:[%s2548 + $0x90] sm:$0xf]
        %v2574 = vld [vmem:[%s2548 + $0x94] sm:$0xf]
        %v2575 = vld [vmem:[%s2548 + $0x9c] sm:$0xf]
        %v2576 = vld [vmem:[%s2548 + $0xa0] sm:$0xf]
        %v2577 = vld [vmem:[%s2548 + $0xa8] sm:$0xf]
        %v2578 = vld [vmem:[%s2548 + $0xac] sm:$0xf]
        %v2579 = vld [vmem:[%s2548 + $0xb4] sm:$0xf]
        %v2580 = vld [vmem:[%s2548 + $0xb8] sm:$0xf]
        %v2613 = vunpack.c.l.b16 %v2549
        %v2614 = vunpack.c.l.b16 %v2550
        %v2615 = vunpack.c.l.b16 %v2551
        %v2616 = vunpack.c.l.b16 %v2552
        %v2617 = vunpack.c.l.b16 %v2553
        %v2618 = vunpack.c.l.b16 %v2554
        %v2619 = vunpack.c.l.b16 %v2555
        %v2620 = vunpack.c.l.b16 %v2556
        %v2621 = vunpack.c.l.b16 %v2557
        %v2622 = vunpack.c.l.b16 %v2558
        %v2623 = vunpack.c.l.b16 %v2559
        %v2624 = vunpack.c.l.b16 %v2560
        %v2625 = vunpack.c.l.b16 %v2561
        %v2626 = vunpack.c.l.b16 %v2562
        %v2627 = vunpack.c.l.b16 %v2563
        %v2628 = vunpack.c.l.b16 %v2564
        %v2629 = vunpack.c.l.b16 %v2565
        %v2630 = vunpack.c.l.b16 %v2566
        %v2631 = vunpack.c.l.b16 %v2567
        %v2632 = vunpack.c.l.b16 %v2568
        %v2633 = vunpack.c.l.b16 %v2569
        %v2634 = vunpack.c.l.b16 %v2570
        %v2635 = vunpack.c.l.b16 %v2571
        %v2636 = vunpack.c.l.b16 %v2572
        %v2637 = vunpack.c.l.b16 %v2573
        %v2638 = vunpack.c.l.b16 %v2574
        %v2639 = vunpack.c.l.b16 %v2575
        %v2640 = vunpack.c.l.b16 %v2576
        %v2641 = vunpack.c.l.b16 %v2577
        %v2642 = vunpack.c.l.b16 %v2578
        %v2643 = vunpack.c.l.b16 %v2579
        %v2644 = vunpack.c.l.b16 %v2580
        %v2645 = vpack.c.b16 %v2614, %v2613
        %v2646 = vpack.c.b16 %v2616, %v2615
        %v2647 = vpack.c.b16 %v2618, %v2617
        %v2648 = vpack.c.b16 %v2620, %v2619
        %v2649 = vpack.c.b16 %v2622, %v2621
        %v2650 = vpack.c.b16 %v2624, %v2623
        %v2651 = vpack.c.b16 %v2626, %v2625
        %v2652 = vpack.c.b16 %v2628, %v2627
        %v2653 = vpack.c.b16 %v2630, %v2629
        %v2654 = vpack.c.b16 %v2632, %v2631
        %v2655 = vpack.c.b16 %v2634, %v2633
        %v2656 = vpack.c.b16 %v2636, %v2635
        %v2657 = vpack.c.b16 %v2638, %v2637
        %v2658 = vpack.c.b16 %v2640, %v2639
        %v2659 = vpack.c.b16 %v2642, %v2641
        %v2660 = vpack.c.b16 %v2644, %v2643
        %2661 = vrot.lane.b32.xlu0 %v2645, 24
        %v2662 = vpop.permute.xlu0 %2661
        %2663 = vrot.lane.b32.xlu0 %v2646, 24
        %v2664 = vpop.permute.xlu0 %2663
        %2665 = vrot.lane.b32.xlu0 %v2647, 24
        %v2666 = vpop.permute.xlu0 %2665
        %2667 = vrot.lane.b32.xlu0 %v2648, 24
        %v2668 = vpop.permute.xlu0 %2667
        %2669 = vrot.lane.b32.xlu0 %v2649, 24
        %v2670 = vpop.permute.xlu0 %2669
        %2671 = vrot.lane.b32.xlu0 %v2650, 24
        %v2672 = vpop.permute.xlu0 %2671
        %2673 = vrot.lane.b32.xlu0 %v2651, 24
        %v2674 = vpop.permute.xlu0 %2673
        %2675 = vrot.lane.b32.xlu0 %v2652, 24
        %v2676 = vpop.permute.xlu0 %2675
        %2677 = vrot.lane.b32.xlu0 %v2653, 24
        %v2678 = vpop.permute.xlu0 %2677
        %2679 = vrot.lane.b32.xlu0 %v2654, 24
        %v2680 = vpop.permute.xlu0 %2679
        %2681 = vrot.lane.b32.xlu0 %v2655, 24
        %v2682 = vpop.permute.xlu0 %2681
        %2683 = vrot.lane.b32.xlu0 %v2656, 24
        %v2684 = vpop.permute.xlu0 %2683
        %2685 = vrot.lane.b32.xlu0 %v2657, 24
        %v2686 = vpop.permute.xlu0 %2685
        %2687 = vrot.lane.b32.xlu0 %v2658, 24
        %v2688 = vpop.permute.xlu0 %2687
        %2689 = vrot.lane.b32.xlu0 %v2659, 24
        %v2690 = vpop.permute.xlu0 %2689
        %2691 = vrot.lane.b32.xlu0 %v2660, 24
        %v2692 = vpop.permute.xlu0 %2691
        %vm2709 = vcmask 228544
        %2710 = vst.msk [vmem:[#allocation3] sm:$0xff] %vm2709, %v2662
        %2711 = vst.msk [vmem:[#allocation3 + $0x8] sm:$0xff] %vm2709, %v2664
        %2712 = vst.msk [vmem:[#allocation3 + $0x10] sm:$0xff] %vm2709, %v2666
        %2713 = vst.msk [vmem:[#allocation3 + $0x18] sm:$0xff] %vm2709, %v2668
        %2714 = vst.msk [vmem:[#allocation3 + $0x20] sm:$0xff] %vm2709, %v2670
        %2715 = vst.msk [vmem:[#allocation3 + $0x28] sm:$0xff] %vm2709, %v2672
        %2716 = vst.msk [vmem:[#allocation3 + $0x30] sm:$0xff] %vm2709, %v2674
        %2717 = vst.msk [vmem:[#allocation3 + $0x38] sm:$0xff] %vm2709, %v2676
        %2718 = vst.msk [vmem:[#allocation3 + $0x40] sm:$0xff] %vm2709, %v2678
        %2719 = vst.msk [vmem:[#allocation3 + $0x48] sm:$0xff] %vm2709, %v2680
        %2720 = vst.msk [vmem:[#allocation3 + $0x50] sm:$0xff] %vm2709, %v2682
        %2721 = vst.msk [vmem:[#allocation3 + $0x58] sm:$0xff] %vm2709, %v2684
        %2722 = vst.msk [vmem:[#allocation3 + $0x60] sm:$0xff] %vm2709, %v2686
        %2723 = vst.msk [vmem:[#allocation3 + $0x68] sm:$0xff] %vm2709, %v2688
        %2724 = vst.msk [vmem:[#allocation3 + $0x70] sm:$0xff] %vm2709, %v2690
        %2725 = vst.msk [vmem:[#allocation3 + $0x78] sm:$0xff] %vm2709, %v2692
        %v2726 = vld [vmem:[%s2548] sm:$0xf]
        %v2727 = vld [vmem:[%s2548 + $0x4] sm:$0xf]
        %v2728 = vld [vmem:[%s2548 + $0x8] sm:$0x1]
        %v2729 = vld [vmem:[%s2548 + $0xc] sm:$0xf]
        %v2730 = vld [vmem:[%s2548 + $0x10] sm:$0xf]
        %v2731 = vld [vmem:[%s2548 + $0x14] sm:$0x1]
        %v2732 = vld [vmem:[%s2548 + $0x18] sm:$0xf]
        %v2733 = vld [vmem:[%s2548 + $0x1c] sm:$0xf]
        %v2734 = vld [vmem:[%s2548 + $0x20] sm:$0x1]
        %v2735 = vld [vmem:[%s2548 + $0x24] sm:$0xf]
        %v2736 = vld [vmem:[%s2548 + $0x28] sm:$0xf]
        %v2737 = vld [vmem:[%s2548 + $0x2c] sm:$0x1]
        %v2738 = vld [vmem:[%s2548 + $0x30] sm:$0xf]
        %v2739 = vld [vmem:[%s2548 + $0x34] sm:$0xf]
        %v2740 = vld [vmem:[%s2548 + $0x38] sm:$0x1]
        %v2741 = vld [vmem:[%s2548 + $0x3c] sm:$0xf]
        %v2742 = vld [vmem:[%s2548 + $0x40] sm:$0xf]
        %v2743 = vld [vmem:[%s2548 + $0x44] sm:$0x1]
        %v2744 = vld [vmem:[%s2548 + $0x48] sm:$0xf]
        %v2745 = vld [vmem:[%s2548 + $0x4c] sm:$0xf]
        %v2746 = vld [vmem:[%s2548 + $0x50] sm:$0x1]
        %v2747 = vld [vmem:[%s2548 + $0x54] sm:$0xf]
        %v2748 = vld [vmem:[%s2548 + $0x58] sm:$0xf]
        %v2749 = vld [vmem:[%s2548 + $0x5c] sm:$0x1]
        %v2750 = vld [vmem:[%s2548 + $0x60] sm:$0xf]
        %v2751 = vld [vmem:[%s2548 + $0x64] sm:$0xf]
        %v2752 = vld [vmem:[%s2548 + $0x68] sm:$0x1]
        %v2753 = vld [vmem:[%s2548 + $0x6c] sm:$0xf]
        %v2754 = vld [vmem:[%s2548 + $0x70] sm:$0xf]
        %v2755 = vld [vmem:[%s2548 + $0x74] sm:$0x1]
        %v2756 = vld [vmem:[%s2548 + $0x78] sm:$0xf]
        %v2757 = vld [vmem:[%s2548 + $0x7c] sm:$0xf]
        %v2758 = vld [vmem:[%s2548 + $0x80] sm:$0x1]
        %v2759 = vld [vmem:[%s2548 + $0x84] sm:$0xf]
        %v2760 = vld [vmem:[%s2548 + $0x88] sm:$0xf]
        %v2761 = vld [vmem:[%s2548 + $0x8c] sm:$0x1]
        %v2762 = vld [vmem:[%s2548 + $0x90] sm:$0xf]
        %v2763 = vld [vmem:[%s2548 + $0x94] sm:$0xf]
        %v2764 = vld [vmem:[%s2548 + $0x98] sm:$0x1]
        %v2765 = vld [vmem:[%s2548 + $0x9c] sm:$0xf]
        %v2766 = vld [vmem:[%s2548 + $0xa0] sm:$0xf]
        %v2767 = vld [vmem:[%s2548 + $0xa4] sm:$0x1]
        %v2768 = vld [vmem:[%s2548 + $0xa8] sm:$0xf]
        %v2769 = vld [vmem:[%s2548 + $0xac] sm:$0xf]
        %v2770 = vld [vmem:[%s2548 + $0xb0] sm:$0x1]
        %v2771 = vld [vmem:[%s2548 + $0xb4] sm:$0xf]
        %v2772 = vld [vmem:[%s2548 + $0xb8] sm:$0xf]
        %v2773 = vld [vmem:[%s2548 + $0xbc] sm:$0x1]
        %v2822 = vunpack.c.l.b16 %v2726
        %v2823 = vunpack.c.l.b16 %v2727
        %v2824 = vunpack.c.l.b16 %v2728
        %v2825 = vunpack.c.l.b16 %v2729
        %v2826 = vunpack.c.l.b16 %v2730
        %v2827 = vunpack.c.l.b16 %v2731
        %v2828 = vunpack.c.l.b16 %v2732
        %v2829 = vunpack.c.l.b16 %v2733
        %v2830 = vunpack.c.l.b16 %v2734
        %v2831 = vunpack.c.l.b16 %v2735
        %v2832 = vunpack.c.l.b16 %v2736
        %v2833 = vunpack.c.l.b16 %v2737
        %v2834 = vunpack.c.l.b16 %v2738
        %v2835 = vunpack.c.l.b16 %v2739
        %v2836 = vunpack.c.l.b16 %v2740
        %v2837 = vunpack.c.l.b16 %v2741
        %v2838 = vunpack.c.l.b16 %v2742
        %v2839 = vunpack.c.l.b16 %v2743
        %v2840 = vunpack.c.l.b16 %v2744
        %v2841 = vunpack.c.l.b16 %v2745
        %v2842 = vunpack.c.l.b16 %v2746
        %v2843 = vunpack.c.l.b16 %v2747
        %v2844 = vunpack.c.l.b16 %v2748
        %v2845 = vunpack.c.l.b16 %v2749
        %v2846 = vunpack.c.l.b16 %v2750
        %v2847 = vunpack.c.l.b16 %v2751
        %v2848 = vunpack.c.l.b16 %v2752
        %v2849 = vunpack.c.l.b16 %v2753
        %v2850 = vunpack.c.l.b16 %v2754
        %v2851 = vunpack.c.l.b16 %v2755
        %v2852 = vunpack.c.l.b16 %v2756
        %v2853 = vunpack.c.l.b16 %v2757
        %v2854 = vunpack.c.l.b16 %v2758
        %v2855 = vunpack.c.l.b16 %v2759
        %v2856 = vunpack.c.l.b16 %v2760
        %v2857 = vunpack.c.l.b16 %v2761
        %v2858 = vunpack.c.l.b16 %v2762
        %v2859 = vunpack.c.l.b16 %v2763
        %v2860 = vunpack.c.l.b16 %v2764
        %v2861 = vunpack.c.l.b16 %v2765
        %v2862 = vunpack.c.l.b16 %v2766
        %v2863 = vunpack.c.l.b16 %v2767
        %v2864 = vunpack.c.l.b16 %v2768
        %v2865 = vunpack.c.l.b16 %v2769
        %v2866 = vunpack.c.l.b16 %v2770
        %v2867 = vunpack.c.l.b16 %v2771
        %v2868 = vunpack.c.l.b16 %v2772
        %v2869 = vunpack.c.l.b16 %v2773
        %v2870 = vpack.c.b16 %v2823, %v2822
        %v2871 = vpack.c.b16 %v2824, %v2824
        %v2872 = vpack.c.b16 %v2826, %v2825
        %v2873 = vpack.c.b16 %v2827, %v2827
        %v2874 = vpack.c.b16 %v2829, %v2828
        %v2875 = vpack.c.b16 %v2830, %v2830
        %v2876 = vpack.c.b16 %v2832, %v2831
        %v2877 = vpack.c.b16 %v2833, %v2833
        %v2878 = vpack.c.b16 %v2835, %v2834
        %v2879 = vpack.c.b16 %v2836, %v2836
        %v2880 = vpack.c.b16 %v2838, %v2837
        %v2881 = vpack.c.b16 %v2839, %v2839
        %v2882 = vpack.c.b16 %v2841, %v2840
        %v2883 = vpack.c.b16 %v2842, %v2842
        %v2884 = vpack.c.b16 %v2844, %v2843
        %v2885 = vpack.c.b16 %v2845, %v2845
        %v2886 = vpack.c.b16 %v2847, %v2846
        %v2887 = vpack.c.b16 %v2848, %v2848
        %v2888 = vpack.c.b16 %v2850, %v2849
        %v2889 = vpack.c.b16 %v2851, %v2851
        %v2890 = vpack.c.b16 %v2853, %v2852
        %v2891 = vpack.c.b16 %v2854, %v2854
        %v2892 = vpack.c.b16 %v2856, %v2855
        %v2893 = vpack.c.b16 %v2857, %v2857
        %v2894 = vpack.c.b16 %v2859, %v2858
        %v2895 = vpack.c.b16 %v2860, %v2860
        %v2896 = vpack.c.b16 %v2862, %v2861
        %v2897 = vpack.c.b16 %v2863, %v2863
        %v2898 = vpack.c.b16 %v2865, %v2864
        %v2899 = vpack.c.b16 %v2866, %v2866
        %v2900 = vpack.c.b16 %v2868, %v2867
        %v2901 = vpack.c.b16 %v2869, %v2869
        %v2903 = vshrl.u32 %v2870, 16
        %v2905 = vshll.u32 %v2870, 16
        %v2907 = vrot.slane %v2905, 1
        %v2908 = vor.u32 %v2903, %v2907
        %v2910 = vshll.u32 %v2871, 16
        %v2912 = vrot.slane %v2910, 1
        %v2913 = vsel %vm1101, %v2908, %v2912
        %v2915 = vshrl.u32 %v2872, 16
        %v2917 = vshll.u32 %v2872, 16
        %v2919 = vrot.slane %v2917, 1
        %v2920 = vor.u32 %v2915, %v2919
        %v2922 = vshll.u32 %v2873, 16
        %v2924 = vrot.slane %v2922, 1
        %v2925 = vsel %vm1101, %v2920, %v2924
        %v2927 = vshrl.u32 %v2874, 16
        %v2929 = vshll.u32 %v2874, 16
        %v2931 = vrot.slane %v2929, 1
        %v2932 = vor.u32 %v2927, %v2931
        %v2934 = vshll.u32 %v2875, 16
        %v2936 = vrot.slane %v2934, 1
        %v2937 = vsel %vm1101, %v2932, %v2936
        %v2939 = vshrl.u32 %v2876, 16
        %v2941 = vshll.u32 %v2876, 16
        %v2943 = vrot.slane %v2941, 1
        %v2944 = vor.u32 %v2939, %v2943
        %v2946 = vshll.u32 %v2877, 16
        %v2948 = vrot.slane %v2946, 1
        %v2949 = vsel %vm1101, %v2944, %v2948
        %v2951 = vshrl.u32 %v2878, 16
        %v2953 = vshll.u32 %v2878, 16
        %v2955 = vrot.slane %v2953, 1
        %v2956 = vor.u32 %v2951, %v2955
        %v2958 = vshll.u32 %v2879, 16
        %v2960 = vrot.slane %v2958, 1
        %v2961 = vsel %vm1101, %v2956, %v2960
        %v2963 = vshrl.u32 %v2880, 16
        %v2965 = vshll.u32 %v2880, 16
        %v2967 = vrot.slane %v2965, 1
        %v2968 = vor.u32 %v2963, %v2967
        %v2970 = vshll.u32 %v2881, 16
        %v2972 = vrot.slane %v2970, 1
        %v2973 = vsel %vm1101, %v2968, %v2972
        %v2975 = vshrl.u32 %v2882, 16
        %v2977 = vshll.u32 %v2882, 16
        %v2979 = vrot.slane %v2977, 1
        %v2980 = vor.u32 %v2975, %v2979
        %v2982 = vshll.u32 %v2883, 16
        %v2984 = vrot.slane %v2982, 1
        %v2985 = vsel %vm1101, %v2980, %v2984
        %v2987 = vshrl.u32 %v2884, 16
        %v2989 = vshll.u32 %v2884, 16
        %v2991 = vrot.slane %v2989, 1
        %v2992 = vor.u32 %v2987, %v2991
        %v2994 = vshll.u32 %v2885, 16
        %v2996 = vrot.slane %v2994, 1
        %v2997 = vsel %vm1101, %v2992, %v2996
        %v2999 = vshrl.u32 %v2886, 16
        %v3001 = vshll.u32 %v2886, 16
        %v3003 = vrot.slane %v3001, 1
        %v3004 = vor.u32 %v2999, %v3003
        %v3006 = vshll.u32 %v2887, 16
        %v3008 = vrot.slane %v3006, 1
        %v3009 = vsel %vm1101, %v3004, %v3008
        %v3011 = vshrl.u32 %v2888, 16
        %v3013 = vshll.u32 %v2888, 16
        %v3015 = vrot.slane %v3013, 1
        %v3016 = vor.u32 %v3011, %v3015
        %v3018 = vshll.u32 %v2889, 16
        %v3020 = vrot.slane %v3018, 1
        %v3021 = vsel %vm1101, %v3016, %v3020
        %v3023 = vshrl.u32 %v2890, 16
        %v3025 = vshll.u32 %v2890, 16
        %v3027 = vrot.slane %v3025, 1
        %v3028 = vor.u32 %v3023, %v3027
        %v3030 = vshll.u32 %v2891, 16
        %v3032 = vrot.slane %v3030, 1
        %v3033 = vsel %vm1101, %v3028, %v3032
        %v3035 = vshrl.u32 %v2892, 16
        %v3037 = vshll.u32 %v2892, 16
        %v3039 = vrot.slane %v3037, 1
        %v3040 = vor.u32 %v3035, %v3039
        %v3042 = vshll.u32 %v2893, 16
        %v3044 = vrot.slane %v3042, 1
        %v3045 = vsel %vm1101, %v3040, %v3044
        %v3047 = vshrl.u32 %v2894, 16
        %v3049 = vshll.u32 %v2894, 16
        %v3051 = vrot.slane %v3049, 1
        %v3052 = vor.u32 %v3047, %v3051
        %v3054 = vshll.u32 %v2895, 16
        %v3056 = vrot.slane %v3054, 1
        %v3057 = vsel %vm1101, %v3052, %v3056
        %v3059 = vshrl.u32 %v2896, 16
        %v3061 = vshll.u32 %v2896, 16
        %v3063 = vrot.slane %v3061, 1
        %v3064 = vor.u32 %v3059, %v3063
        %v3066 = vshll.u32 %v2897, 16
        %v3068 = vrot.slane %v3066, 1
        %v3069 = vsel %vm1101, %v3064, %v3068
        %v3071 = vshrl.u32 %v2898, 16
        %v3073 = vshll.u32 %v2898, 16
        %v3075 = vrot.slane %v3073, 1
        %v3076 = vor.u32 %v3071, %v3075
        %v3078 = vshll.u32 %v2899, 16
        %v3080 = vrot.slane %v3078, 1
        %v3081 = vsel %vm1101, %v3076, %v3080
        %v3083 = vshrl.u32 %v2900, 16
        %v3085 = vshll.u32 %v2900, 16
        %v3087 = vrot.slane %v3085, 1
        %v3088 = vor.u32 %v3083, %v3087
        %v3090 = vshll.u32 %v2901, 16
        %v3092 = vrot.slane %v3090, 1
        %v3093 = vsel %vm1101, %v3088, %v3092
        %3094 = vrot.lane.b32.xlu0 %v2913, 28
        %v3095 = vpop.permute.xlu0 %3094
        %3096 = vrot.lane.b32.xlu0 %v2925, 28
        %v3097 = vpop.permute.xlu0 %3096
        %3098 = vrot.lane.b32.xlu0 %v2937, 28
        %v3099 = vpop.permute.xlu0 %3098
        %3100 = vrot.lane.b32.xlu0 %v2949, 28
        %v3101 = vpop.permute.xlu0 %3100
        %3102 = vrot.lane.b32.xlu0 %v2961, 28
        %v3103 = vpop.permute.xlu0 %3102
        %3104 = vrot.lane.b32.xlu0 %v2973, 28
        %v3105 = vpop.permute.xlu0 %3104
        %3106 = vrot.lane.b32.xlu0 %v2985, 28
        %v3107 = vpop.permute.xlu0 %3106
        %3108 = vrot.lane.b32.xlu0 %v2997, 28
        %v3109 = vpop.permute.xlu0 %3108
        %3110 = vrot.lane.b32.xlu0 %v3009, 28
        %v3111 = vpop.permute.xlu0 %3110
        %3112 = vrot.lane.b32.xlu0 %v3021, 28
        %v3113 = vpop.permute.xlu0 %3112
        %3114 = vrot.lane.b32.xlu0 %v3033, 28
        %v3115 = vpop.permute.xlu0 %3114
        %3116 = vrot.lane.b32.xlu0 %v3045, 28
        %v3117 = vpop.permute.xlu0 %3116
        %3118 = vrot.lane.b32.xlu0 %v3057, 28
        %v3119 = vpop.permute.xlu0 %3118
        %3120 = vrot.lane.b32.xlu0 %v3069, 28
        %v3121 = vpop.permute.xlu0 %3120
        %3122 = vrot.lane.b32.xlu0 %v3081, 28
        %v3123 = vpop.permute.xlu0 %3122
        %3124 = vrot.lane.b32.xlu0 %v3093, 28
        %v3125 = vpop.permute.xlu0 %3124
        %vm3142 = vcmask 261344
        %3143 = vst.msk [vmem:[#allocation3] sm:$0xff] %vm3142, %v3095
        %3144 = vst.msk [vmem:[#allocation3 + $0x8] sm:$0xff] %vm3142, %v3097
        %3145 = vst.msk [vmem:[#allocation3 + $0x10] sm:$0xff] %vm3142, %v3099
        %3146 = vst.msk [vmem:[#allocation3 + $0x18] sm:$0xff] %vm3142, %v3101
        %3147 = vst.msk [vmem:[#allocation3 + $0x20] sm:$0xff] %vm3142, %v3103
        %3148 = vst.msk [vmem:[#allocation3 + $0x28] sm:$0xff] %vm3142, %v3105
        %3149 = vst.msk [vmem:[#allocation3 + $0x30] sm:$0xff] %vm3142, %v3107
        %3150 = vst.msk [vmem:[#allocation3 + $0x38] sm:$0xff] %vm3142, %v3109
        %3151 = vst.msk [vmem:[#allocation3 + $0x40] sm:$0xff] %vm3142, %v3111
        %3152 = vst.msk [vmem:[#allocation3 + $0x48] sm:$0xff] %vm3142, %v3113
        %3153 = vst.msk [vmem:[#allocation3 + $0x50] sm:$0xff] %vm3142, %v3115
        %3154 = vst.msk [vmem:[#allocation3 + $0x58] sm:$0xff] %vm3142, %v3117
        %3155 = vst.msk [vmem:[#allocation3 + $0x60] sm:$0xff] %vm3142, %v3119
        %3156 = vst.msk [vmem:[#allocation3 + $0x68] sm:$0xff] %vm3142, %v3121
        %3157 = vst.msk [vmem:[#allocation3 + $0x70] sm:$0xff] %vm3142, %v3123
        %3158 = vst.msk [vmem:[#allocation3 + $0x78] sm:$0xff] %vm3142, %v3125
        %v3159 = vld [vmem:[%s2548] sm:$0xe]
        %v3160 = vld [vmem:[%s2548 + $0x4] sm:$0xf]
        %v3161 = vld [vmem:[%s2548 + $0x8] sm:$0x1]
        %v3162 = vld [vmem:[%s2548 + $0xc] sm:$0xe]
        %v3163 = vld [vmem:[%s2548 + $0x10] sm:$0xf]
        %v3164 = vld [vmem:[%s2548 + $0x14] sm:$0x1]
        %v3165 = vld [vmem:[%s2548 + $0x18] sm:$0xe]
        %v3166 = vld [vmem:[%s2548 + $0x1c] sm:$0xf]
        %v3167 = vld [vmem:[%s2548 + $0x20] sm:$0x1]
        %v3168 = vld [vmem:[%s2548 + $0x24] sm:$0xe]
        %v3169 = vld [vmem:[%s2548 + $0x28] sm:$0xf]
        %v3170 = vld [vmem:[%s2548 + $0x2c] sm:$0x1]
        %v3171 = vld [vmem:[%s2548 + $0x30] sm:$0xe]
        %v3172 = vld [vmem:[%s2548 + $0x34] sm:$0xf]
        %v3173 = vld [vmem:[%s2548 + $0x38] sm:$0x1]
        %v3174 = vld [vmem:[%s2548 + $0x3c] sm:$0xe]
        %v3175 = vld [vmem:[%s2548 + $0x40] sm:$0xf]
        %v3176 = vld [vmem:[%s2548 + $0x44] sm:$0x1]
        %v3177 = vld [vmem:[%s2548 + $0x48] sm:$0xe]
        %v3178 = vld [vmem:[%s2548 + $0x4c] sm:$0xf]
        %v3179 = vld [vmem:[%s2548 + $0x50] sm:$0x1]
        %v3180 = vld [vmem:[%s2548 + $0x54] sm:$0xe]
        %v3181 = vld [vmem:[%s2548 + $0x58] sm:$0xf]
        %v3182 = vld [vmem:[%s2548 + $0x5c] sm:$0x1]
        %v3183 = vld [vmem:[%s2548 + $0x60] sm:$0xe]
        %v3184 = vld [vmem:[%s2548 + $0x64] sm:$0xf]
        %v3185 = vld [vmem:[%s2548 + $0x68] sm:$0x1]
        %v3186 = vld [vmem:[%s2548 + $0x6c] sm:$0xe]
        %v3187 = vld [vmem:[%s2548 + $0x70] sm:$0xf]
        %v3188 = vld [vmem:[%s2548 + $0x74] sm:$0x1]
        %v3189 = vld [vmem:[%s2548 + $0x78] sm:$0xe]
        %v3190 = vld [vmem:[%s2548 + $0x7c] sm:$0xf]
        %v3191 = vld [vmem:[%s2548 + $0x80] sm:$0x1]
        %v3192 = vld [vmem:[%s2548 + $0x84] sm:$0xe]
        %v3193 = vld [vmem:[%s2548 + $0x88] sm:$0xf]
        %v3194 = vld [vmem:[%s2548 + $0x8c] sm:$0x1]
        %v3195 = vld [vmem:[%s2548 + $0x90] sm:$0xe]
        %v3196 = vld [vmem:[%s2548 + $0x94] sm:$0xf]
        %v3197 = vld [vmem:[%s2548 + $0x98] sm:$0x1]
        %v3198 = vld [vmem:[%s2548 + $0x9c] sm:$0xe]
        %v3199 = vld [vmem:[%s2548 + $0xa0] sm:$0xf]
        %v3200 = vld [vmem:[%s2548 + $0xa4] sm:$0x1]
        %v3201 = vld [vmem:[%s2548 + $0xa8] sm:$0xe]
        %v3202 = vld [vmem:[%s2548 + $0xac] sm:$0xf]
        %v3203 = vld [vmem:[%s2548 + $0xb0] sm:$0x1]
        %v3204 = vld [vmem:[%s2548 + $0xb4] sm:$0xe]
        %v3205 = vld [vmem:[%s2548 + $0xb8] sm:$0xf]
        %v3206 = vld [vmem:[%s2548 + $0xbc] sm:$0x1]
        %v3255 = vunpack.c.l.b16 %v3159
        %v3256 = vunpack.c.l.b16 %v3160
        %v3257 = vunpack.c.l.b16 %v3161
        %v3258 = vunpack.c.l.b16 %v3162
        %v3259 = vunpack.c.l.b16 %v3163
        %v3260 = vunpack.c.l.b16 %v3164
        %v3261 = vunpack.c.l.b16 %v3165
        %v3262 = vunpack.c.l.b16 %v3166
        %v3263 = vunpack.c.l.b16 %v3167
        %v3264 = vunpack.c.l.b16 %v3168
        %v3265 = vunpack.c.l.b16 %v3169
        %v3266 = vunpack.c.l.b16 %v3170
        %v3267 = vunpack.c.l.b16 %v3171
        %v3268 = vunpack.c.l.b16 %v3172
        %v3269 = vunpack.c.l.b16 %v3173
        %v3270 = vunpack.c.l.b16 %v3174
        %v3271 = vunpack.c.l.b16 %v3175
        %v3272 = vunpack.c.l.b16 %v3176
        %v3273 = vunpack.c.l.b16 %v3177
        %v3274 = vunpack.c.l.b16 %v3178
        %v3275 = vunpack.c.l.b16 %v3179
        %v3276 = vunpack.c.l.b16 %v3180
        %v3277 = vunpack.c.l.b16 %v3181
        %v3278 = vunpack.c.l.b16 %v3182
        %v3279 = vunpack.c.l.b16 %v3183
        %v3280 = vunpack.c.l.b16 %v3184
        %v3281 = vunpack.c.l.b16 %v3185
        %v3282 = vunpack.c.l.b16 %v3186
        %v3283 = vunpack.c.l.b16 %v3187
        %v3284 = vunpack.c.l.b16 %v3188
        %v3285 = vunpack.c.l.b16 %v3189
        %v3286 = vunpack.c.l.b16 %v3190
        %v3287 = vunpack.c.l.b16 %v3191
        %v3288 = vunpack.c.l.b16 %v3192
        %v3289 = vunpack.c.l.b16 %v3193
        %v3290 = vunpack.c.l.b16 %v3194
        %v3291 = vunpack.c.l.b16 %v3195
        %v3292 = vunpack.c.l.b16 %v3196
        %v3293 = vunpack.c.l.b16 %v3197
        %v3294 = vunpack.c.l.b16 %v3198
        %v3295 = vunpack.c.l.b16 %v3199
        %v3296 = vunpack.c.l.b16 %v3200
        %v3297 = vunpack.c.l.b16 %v3201
        %v3298 = vunpack.c.l.b16 %v3202
        %v3299 = vunpack.c.l.b16 %v3203
        %v3300 = vunpack.c.l.b16 %v3204
        %v3301 = vunpack.c.l.b16 %v3205
        %v3302 = vunpack.c.l.b16 %v3206
        %v3303 = vpack.c.b16 %v3256, %v3255
        %v3304 = vpack.c.b16 %v3257, %v3257
        %v3305 = vpack.c.b16 %v3259, %v3258
        %v3306 = vpack.c.b16 %v3260, %v3260
        %v3307 = vpack.c.b16 %v3262, %v3261
        %v3308 = vpack.c.b16 %v3263, %v3263
        %v3309 = vpack.c.b16 %v3265, %v3264
        %v3310 = vpack.c.b16 %v3266, %v3266
        %v3311 = vpack.c.b16 %v3268, %v3267
        %v3312 = vpack.c.b16 %v3269, %v3269
        %v3313 = vpack.c.b16 %v3271, %v3270
        %v3314 = vpack.c.b16 %v3272, %v3272
        %v3315 = vpack.c.b16 %v3274, %v3273
        %v3316 = vpack.c.b16 %v3275, %v3275
        %v3317 = vpack.c.b16 %v3277, %v3276
        %v3318 = vpack.c.b16 %v3278, %v3278
        %v3319 = vpack.c.b16 %v3280, %v3279
        %v3320 = vpack.c.b16 %v3281, %v3281
        %v3321 = vpack.c.b16 %v3283, %v3282
        %v3322 = vpack.c.b16 %v3284, %v3284
        %v3323 = vpack.c.b16 %v3286, %v3285
        %v3324 = vpack.c.b16 %v3287, %v3287
        %v3325 = vpack.c.b16 %v3289, %v3288
        %v3326 = vpack.c.b16 %v3290, %v3290
        %v3327 = vpack.c.b16 %v3292, %v3291
        %v3328 = vpack.c.b16 %v3293, %v3293
        %v3329 = vpack.c.b16 %v3295, %v3294
        %v3330 = vpack.c.b16 %v3296, %v3296
        %v3331 = vpack.c.b16 %v3298, %v3297
        %v3332 = vpack.c.b16 %v3299, %v3299
        %v3333 = vpack.c.b16 %v3301, %v3300
        %v3334 = vpack.c.b16 %v3302, %v3302
        %v3335 = vrot.slane %v3303, 1
        %v3336 = vrot.slane %v3304, 1
        %v3337 = vsel %vm1535, %v3335, %v3336
        %v3338 = vrot.slane %v3305, 1
        %v3339 = vrot.slane %v3306, 1
        %v3340 = vsel %vm1535, %v3338, %v3339
        %v3341 = vrot.slane %v3307, 1
        %v3342 = vrot.slane %v3308, 1
        %v3343 = vsel %vm1535, %v3341, %v3342
        %v3344 = vrot.slane %v3309, 1
        %v3345 = vrot.slane %v3310, 1
        %v3346 = vsel %vm1535, %v3344, %v3345
        %v3347 = vrot.slane %v3311, 1
        %v3348 = vrot.slane %v3312, 1
        %v3349 = vsel %vm1535, %v3347, %v3348
        %v3350 = vrot.slane %v3313, 1
        %v3351 = vrot.slane %v3314, 1
        %v3352 = vsel %vm1535, %v3350, %v3351
        %v3353 = vrot.slane %v3315, 1
        %v3354 = vrot.slane %v3316, 1
        %v3355 = vsel %vm1535, %v3353, %v3354
        %v3356 = vrot.slane %v3317, 1
        %v3357 = vrot.slane %v3318, 1
        %v3358 = vsel %vm1535, %v3356, %v3357
        %v3359 = vrot.slane %v3319, 1
        %v3360 = vrot.slane %v3320, 1
        %v3361 = vsel %vm1535, %v3359, %v3360
        %v3362 = vrot.slane %v3321, 1
        %v3363 = vrot.slane %v3322, 1
        %v3364 = vsel %vm1535, %v3362, %v3363
        %v3365 = vrot.slane %v3323, 1
        %v3366 = vrot.slane %v3324, 1
        %v3367 = vsel %vm1535, %v3365, %v3366
        %v3368 = vrot.slane %v3325, 1
        %v3369 = vrot.slane %v3326, 1
        %v3370 = vsel %vm1535, %v3368, %v3369
        %v3371 = vrot.slane %v3327, 1
        %v3372 = vrot.slane %v3328, 1
        %v3373 = vsel %vm1535, %v3371, %v3372
        %v3374 = vrot.slane %v3329, 1
        %v3375 = vrot.slane %v3330, 1
        %v3376 = vsel %vm1535, %v3374, %v3375
        %v3377 = vrot.slane %v3331, 1
        %v3378 = vrot.slane %v3332, 1
        %v3379 = vsel %vm1535, %v3377, %v3378
        %v3380 = vrot.slane %v3333, 1
        %v3381 = vrot.slane %v3334, 1
        %v3382 = vsel %vm1535, %v3380, %v3381
        %3383 = vrot.lane.b32.xlu0 %v3337, 32
        %v3384 = vpop.permute.xlu0 %3383
        %3385 = vrot.lane.b32.xlu0 %v3340, 32
        %v3386 = vpop.permute.xlu0 %3385
        %3387 = vrot.lane.b32.xlu0 %v3343, 32
        %v3388 = vpop.permute.xlu0 %3387
        %3389 = vrot.lane.b32.xlu0 %v3346, 32
        %v3390 = vpop.permute.xlu0 %3389
        %3391 = vrot.lane.b32.xlu0 %v3349, 32
        %v3392 = vpop.permute.xlu0 %3391
        %3393 = vrot.lane.b32.xlu0 %v3352, 32
        %v3394 = vpop.permute.xlu0 %3393
        %3395 = vrot.lane.b32.xlu0 %v3355, 32
        %v3396 = vpop.permute.xlu0 %3395
        %3397 = vrot.lane.b32.xlu0 %v3358, 32
        %v3398 = vpop.permute.xlu0 %3397
        %3399 = vrot.lane.b32.xlu0 %v3361, 32
        %v3400 = vpop.permute.xlu0 %3399
        %3401 = vrot.lane.b32.xlu0 %v3364, 32
        %v3402 = vpop.permute.xlu0 %3401
        %3403 = vrot.lane.b32.xlu0 %v3367, 32
        %v3404 = vpop.permute.xlu0 %3403
        %3405 = vrot.lane.b32.xlu0 %v3370, 32
        %v3406 = vpop.permute.xlu0 %3405
        %3407 = vrot.lane.b32.xlu0 %v3373, 32
        %v3408 = vpop.permute.xlu0 %3407
        %3409 = vrot.lane.b32.xlu0 %v3376, 32
        %v3410 = vpop.permute.xlu0 %3409
        %3411 = vrot.lane.b32.xlu0 %v3379, 32
        %v3412 = vpop.permute.xlu0 %3411
        %3413 = vrot.lane.b32.xlu0 %v3382, 32
        %v3414 = vpop.permute.xlu0 %3413
        %vm3431 = vcmask 294144
        %3432 = vst.msk [vmem:[#allocation3] sm:$0xff] %vm3431, %v3384
        %3433 = vst.msk [vmem:[#allocation3 + $0x8] sm:$0xff] %vm3431, %v3386
        %3434 = vst.msk [vmem:[#allocation3 + $0x10] sm:$0xff] %vm3431, %v3388
        %3435 = vst.msk [vmem:[#allocation3 + $0x18] sm:$0xff] %vm3431, %v3390
        %3436 = vst.msk [vmem:[#allocation3 + $0x20] sm:$0xff] %vm3431, %v3392
        %3437 = vst.msk [vmem:[#allocation3 + $0x28] sm:$0xff] %vm3431, %v3394
        %3438 = vst.msk [vmem:[#allocation3 + $0x30] sm:$0xff] %vm3431, %v3396
        %3439 = vst.msk [vmem:[#allocation3 + $0x38] sm:$0xff] %vm3431, %v3398
        %3440 = vst.msk [vmem:[#allocation3 + $0x40] sm:$0xff] %vm3431, %v3400
        %3441 = vst.msk [vmem:[#allocation3 + $0x48] sm:$0xff] %vm3431, %v3402
        %3442 = vst.msk [vmem:[#allocation3 + $0x50] sm:$0xff] %vm3431, %v3404
        %3443 = vst.msk [vmem:[#allocation3 + $0x58] sm:$0xff] %vm3431, %v3406
        %3444 = vst.msk [vmem:[#allocation3 + $0x60] sm:$0xff] %vm3431, %v3408
        %3445 = vst.msk [vmem:[#allocation3 + $0x68] sm:$0xff] %vm3431, %v3410
        %3446 = vst.msk [vmem:[#allocation3 + $0x70] sm:$0xff] %vm3431, %v3412
        %3447 = vst.msk [vmem:[#allocation3 + $0x78] sm:$0xff] %vm3431, %v3414
        %v3448 = vld [vmem:[#allocation3] sm:$0xff]
        %v3449 = vld [vmem:[#allocation3 + $0x8] sm:$0xff]
        %v3450 = vld [vmem:[#allocation3 + $0x10] sm:$0xff]
        %v3451 = vld [vmem:[#allocation3 + $0x18] sm:$0xff]
        %v3452 = vld [vmem:[#allocation3 + $0x20] sm:$0xff]
        %v3453 = vld [vmem:[#allocation3 + $0x28] sm:$0xff]
        %v3454 = vld [vmem:[#allocation3 + $0x30] sm:$0xff]
        %v3455 = vld [vmem:[#allocation3 + $0x38] sm:$0xff]
        %v3456 = vld [vmem:[#allocation3 + $0x40] sm:$0xff]
        %v3457 = vld [vmem:[#allocation3 + $0x48] sm:$0xff]
        %v3458 = vld [vmem:[#allocation3 + $0x50] sm:$0xff]
        %v3459 = vld [vmem:[#allocation3 + $0x58] sm:$0xff]
        %v3460 = vld [vmem:[#allocation3 + $0x60] sm:$0xff]
        %v3461 = vld [vmem:[#allocation3 + $0x68] sm:$0xff]
        %v3462 = vld [vmem:[#allocation3 + $0x70] sm:$0xff]
        %v3463 = vld [vmem:[#allocation3 + $0x78] sm:$0xff]
        %v3464 = vld [vmem:[%s1] sm:$0xf]
        %v3465 = vld [vmem:[%s1 + $0x4] sm:$0xf]
        %v3466 = vld [vmem:[%s1 + $0x8] sm:$0xf]
        %v3467 = vld [vmem:[%s1 + $0xc] sm:$0xf]
        %v3468 = vld [vmem:[%s1 + $0x10] sm:$0x3]
        %v3469 = vld [vmem:[%s2] sm:$0x1]
        %v3470 = vlaneseq
        %v3471 = vshrl.u32 %v3470, 7
        %v3472 = vsub.s32 0, %v3471
        %v3473 = vrot.slane %v3469, %v3472
        %v3479 = vunpack.c.l.b16 %v3464
        %v3480 = vunpack.c.l.b16 %v3465
        %v3481 = vunpack.c.l.b16 %v3466
        %v3482 = vunpack.c.l.b16 %v3467
        %v3483 = vunpack.c.l.b16 %v3468
        %v3484 = vpack.c.b16 %v3480, %v3479
        %v3485 = vpack.c.b16 %v3482, %v3481
        %v3486 = vpack.c.b16 %v3483, %v3483
        %vm3489 = vcmask 293888
        %v3491 = vsel %vm3489, %v3448, 0
        %v3494 = vsel %vm3489, %v3449, 0
        %v3497 = vsel %vm3489, %v3450, 0
        %v3500 = vsel %vm3489, %v3451, 0
        %v3503 = vsel %vm3489, %v3452, 0
        %v3506 = vsel %vm3489, %v3453, 0
        %v3509 = vsel %vm3489, %v3454, 0
        %v3512 = vsel %vm3489, %v3455, 0
        %v3515 = vsel %vm3489, %v3456, 0
        %v3518 = vsel %vm3489, %v3457, 0
        %v3521 = vsel %vm3489, %v3458, 0
        %v3524 = vsel %vm3489, %v3459, 0
        %v3527 = vsel %vm3489, %v3460, 0
        %v3530 = vsel %vm3489, %v3461, 0
        %v3533 = vsel %vm3489, %v3462, 0
        %v3536 = vsel %vm3489, %v3463, 0
        %vm3538 = vcmask 1041408
        %v3540 = vsel %vm3538, %v3486, 0
        %3542 = vmatprep.subr.bf16.mxu0 0
        %3543 = vmatpush1.bf16.msra.mxu0 %v3484
        %3544 = vmatprep.subr.bf16.mxu0 0
        %3545 = vmatpush1.bf16.msra.mxu0 %v3485
        %3546 = vmatprep.subr.bf16.mxu0 0
        %3547 = vmatpush1.bf16.msra.mxu0 %v3540
        %3548 = vmatprep.subr.bf16.mxu0 0
        %3549 = vmatpush1.bf16.msra.mxu0 0
        %3550 = vmatprep.subr.bf16.mxu0 0
        %3551 = vmatpush1.bf16.msra.mxu0 0
        %3552 = vmatprep.subr.bf16.mxu0 0
        %3553 = vmatpush1.bf16.msra.mxu0 0
        %3554 = vmatprep.subr.bf16.mxu0 0
        %3555 = vmatpush1.bf16.msra.mxu0 0
        %3556 = vmatprep.subr.bf16.mxu0 0
        %3557 = vmatpush1.bf16.msra.mxu0 0
        %3558 = vmatprep.subr.bf16.mxu0 0
        %3559 = vmatpush1.bf16.msra.mxu0 0
        %3560 = vmatprep.subr.bf16.mxu0 0
        %3561 = vmatpush1.bf16.msra.mxu0 0
        %3562 = vmatprep.subr.bf16.mxu0 0
        %3563 = vmatpush1.bf16.msra.mxu0 0
        %3564 = vmatprep.subr.bf16.mxu0 0
        %3565 = vmatpush1.bf16.msra.mxu0 0
        %3566 = vmatprep.subr.bf16.mxu0 0
        %3567 = vmatpush1.bf16.msra.mxu0 0
        %3568 = vmatprep.subr.bf16.mxu0 0
        %3569 = vmatpush1.bf16.msra.mxu0 0
        %3570 = vmatprep.subr.bf16.mxu0 0
        %3571 = vmatpush1.bf16.msra.mxu0 0
        %3572 = vmatprep.subr.bf16.mxu0 0
        %3573 = vmatpush1.bf16.msra.mxu0 0
        %3574 = vmatprep.mubr.bf16.mxu0 0
        %3575 = vmatmul.mubr.bf16.gmra.mrb[0].mxu0 %v3491
        %v3576 = vpop.f32.mrb[0].mxu0
        %v3577 = vadd.f32 %v3473, %v3576
        %v3578 = vpop.f32.mrb[0].mxu0
        %v3579 = vpop.f32.mrb[0].mxu0
        %v3580 = vadd.f32 %v3473, %v3579
        %v3581 = vpop.f32.mrb[0].mxu0
        %3582 = vmatprep.mubr.bf16.mxu0 0
        %3583 = vmatmul.mubr.bf16.gmra.mrb[0].mxu0 %v3494
        %v3584 = vpop.f32.mrb[0].mxu0
        %v3585 = vadd.f32 %v3473, %v3584
        %v3586 = vpop.f32.mrb[0].mxu0
        %v3587 = vpop.f32.mrb[0].mxu0
        %v3588 = vadd.f32 %v3473, %v3587
        %v3589 = vpop.f32.mrb[0].mxu0
        %3590 = vmatprep.mubr.bf16.mxu0 0
        %3591 = vmatmul.mubr.bf16.gmra.mrb[0].mxu0 %v3497
        %v3592 = vpop.f32.mrb[0].mxu0
        %v3593 = vadd.f32 %v3473, %v3592
        %v3594 = vpop.f32.mrb[0].mxu0
        %v3595 = vpop.f32.mrb[0].mxu0
        %v3596 = vadd.f32 %v3473, %v3595
        %v3597 = vpop.f32.mrb[0].mxu0
        %3598 = vmatprep.mubr.bf16.mxu0 0
        %3599 = vmatmul.mubr.bf16.gmra.mrb[0].mxu0 %v3500
        %v3600 = vpop.f32.mrb[0].mxu0
        %v3601 = vadd.f32 %v3473, %v3600
        %v3602 = vpop.f32.mrb[0].mxu0
        %v3603 = vpop.f32.mrb[0].mxu0
        %v3604 = vadd.f32 %v3473, %v3603
        %v3605 = vpop.f32.mrb[0].mxu0
        %3606 = vmatprep.mubr.bf16.mxu0 0
        %3607 = vmatmul.mubr.bf16.gmra.mrb[0].mxu0 %v3503
        %v3608 = vpop.f32.mrb[0].mxu0
        %v3609 = vadd.f32 %v3473, %v3608
        %v3610 = vpop.f32.mrb[0].mxu0
        %v3611 = vpop.f32.mrb[0].mxu0
        %v3612 = vadd.f32 %v3473, %v3611
        %v3613 = vpop.f32.mrb[0].mxu0
        %3614 = vmatprep.mubr.bf16.mxu0 0
        %3615 = vmatmul.mubr.bf16.gmra.mrb[0].mxu0 %v3506
        %v3616 = vpop.f32.mrb[0].mxu0
        %v3617 = vadd.f32 %v3473, %v3616
        %v3618 = vpop.f32.mrb[0].mxu0
        %v3619 = vpop.f32.mrb[0].mxu0
        %v3620 = vadd.f32 %v3473, %v3619
        %v3621 = vpop.f32.mrb[0].mxu0
        %3622 = vmatprep.mubr.bf16.mxu0 0
        %3623 = vmatmul.mubr.bf16.gmra.mrb[0].mxu0 %v3509
        %v3624 = vpop.f32.mrb[0].mxu0
        %v3625 = vadd.f32 %v3473, %v3624
        %v3626 = vpop.f32.mrb[0].mxu0
        %v3627 = vpop.f32.mrb[0].mxu0
        %v3628 = vadd.f32 %v3473, %v3627
        %v3629 = vpop.f32.mrb[0].mxu0
        %3630 = vmatprep.mubr.bf16.mxu0 0
        %3631 = vmatmul.mubr.bf16.gmra.mrb[0].mxu0 %v3512
        %v3632 = vpop.f32.mrb[0].mxu0
        %v3633 = vadd.f32 %v3473, %v3632
        %v3634 = vpop.f32.mrb[0].mxu0
        %v3635 = vpop.f32.mrb[0].mxu0
        %v3636 = vadd.f32 %v3473, %v3635
        %v3637 = vpop.f32.mrb[0].mxu0
        %3638 = vmatprep.mubr.bf16.mxu0 0
        %3639 = vmatmul.mubr.bf16.gmra.mrb[0].mxu0 %v3515
        %v3640 = vpop.f32.mrb[0].mxu0
        %v3641 = vadd.f32 %v3473, %v3640
        %v3642 = vpop.f32.mrb[0].mxu0
        %v3643 = vpop.f32.mrb[0].mxu0
        %v3644 = vadd.f32 %v3473, %v3643
        %v3645 = vpop.f32.mrb[0].mxu0
        %3646 = vmatprep.mubr.bf16.mxu0 0
        %3647 = vmatmul.mubr.bf16.gmra.mrb[0].mxu0 %v3518
        %v3648 = vpop.f32.mrb[0].mxu0
        %v3649 = vadd.f32 %v3473, %v3648
        %v3650 = vpop.f32.mrb[0].mxu0
        %v3651 = vpop.f32.mrb[0].mxu0
        %v3652 = vadd.f32 %v3473, %v3651
        %v3653 = vpop.f32.mrb[0].mxu0
        %3654 = vmatprep.mubr.bf16.mxu0 0
        %3655 = vmatmul.mubr.bf16.gmra.mrb[0].mxu0 %v3521
        %v3656 = vpop.f32.mrb[0].mxu0
        %v3657 = vadd.f32 %v3473, %v3656
        %v3658 = vpop.f32.mrb[0].mxu0
        %v3659 = vpop.f32.mrb[0].mxu0
        %v3660 = vadd.f32 %v3473, %v3659
        %v3661 = vpop.f32.mrb[0].mxu0
        %3662 = vmatprep.mubr.bf16.mxu0 0
        %3663 = vmatmul.mubr.bf16.gmra.mrb[0].mxu0 %v3524
        %v3664 = vpop.f32.mrb[0].mxu0
        %v3665 = vadd.f32 %v3473, %v3664
        %v3666 = vpop.f32.mrb[0].mxu0
        %v3667 = vpop.f32.mrb[0].mxu0
        %v3668 = vadd.f32 %v3473, %v3667
        %v3669 = vpop.f32.mrb[0].mxu0
        %3670 = vmatprep.mubr.bf16.mxu0 0
        %3671 = vmatmul.mubr.bf16.gmra.mrb[0].mxu0 %v3527
        %v3672 = vpop.f32.mrb[0].mxu0
        %v3673 = vadd.f32 %v3473, %v3672
        %v3674 = vpop.f32.mrb[0].mxu0
        %v3675 = vpop.f32.mrb[0].mxu0
        %v3676 = vadd.f32 %v3473, %v3675
        %v3677 = vpop.f32.mrb[0].mxu0
        %3678 = vmatprep.mubr.bf16.mxu0 0
        %3679 = vmatmul.mubr.bf16.gmra.mrb[0].mxu0 %v3530
        %v3680 = vpop.f32.mrb[0].mxu0
        %v3681 = vadd.f32 %v3473, %v3680
        %v3682 = vpop.f32.mrb[0].mxu0
        %v3683 = vpop.f32.mrb[0].mxu0
        %v3684 = vadd.f32 %v3473, %v3683
        %v3685 = vpop.f32.mrb[0].mxu0
        %3686 = vmatprep.mubr.bf16.mxu0 0
        %3687 = vmatmul.mubr.bf16.gmra.mrb[0].mxu0 %v3533
        %v3688 = vpop.f32.mrb[0].mxu0
        %v3689 = vadd.f32 %v3473, %v3688
        %v3690 = vpop.f32.mrb[0].mxu0
        %v3691 = vpop.f32.mrb[0].mxu0
        %v3692 = vadd.f32 %v3473, %v3691
        %v3693 = vpop.f32.mrb[0].mxu0
        %3694 = vmatprep.mubr.bf16.mxu0 0
        %3695 = vmatmul.mubr.bf16.gmra.mrb[0].mxu0 %v3536
        %v3696 = vpop.f32.mrb[0].mxu0
        %v3697 = vadd.f32 %v3473, %v3696
        %v3698 = vpop.f32.mrb[0].mxu0
        %v3699 = vpop.f32.mrb[0].mxu0
        %v3700 = vadd.f32 %v3473, %v3699
        %v3701 = vpop.f32.mrb[0].mxu0
        %3702 = vdwg.mxu0
        %v3703 = vld [vmem:[%s5] sm:$0xff]
        %v3704 = vld [vmem:[%s5 + $0x8] sm:$0xff]
        %v3705 = vld [vmem:[%s5 + $0x10] sm:$0xff]
        %v3706 = vld [vmem:[%s5 + $0x18] sm:$0xff]
        %vm3707 = vcmask 261120
        %v3708 = vsel %vm3707, %v3577, 0.0
        %v3709 = vsel %vm3707, %v3580, 0.0
        %v3710 = vadd.f32 %v3708, %v3709
        %v3711 = vsel %vm3707, %v3585, 0.0
        %v3712 = vadd.f32 %v3710, %v3711
        %v3713 = vsel %vm3707, %v3588, 0.0
        %v3714 = vadd.f32 %v3712, %v3713
        %v3715 = vsel %vm3707, %v3593, 0.0
        %v3716 = vadd.f32 %v3714, %v3715
        %v3717 = vsel %vm3707, %v3596, 0.0
        %v3718 = vadd.f32 %v3716, %v3717
        %v3719 = vsel %vm3707, %v3601, 0.0
        %v3720 = vadd.f32 %v3718, %v3719
        %v3721 = vsel %vm3707, %v3604, 0.0
        %v3722 = vadd.f32 %v3720, %v3721
        %v3723 = vsel %vm3707, %v3609, 0.0
        %v3724 = vadd.f32 %v3722, %v3723
        %v3725 = vsel %vm3707, %v3612, 0.0
        %v3726 = vadd.f32 %v3724, %v3725
        %v3727 = vsel %vm3707, %v3617, 0.0
        %v3728 = vadd.f32 %v3726, %v3727
        %v3729 = vsel %vm3707, %v3620, 0.0
        %v3730 = vadd.f32 %v3728, %v3729
        %v3731 = vsel %vm3707, %v3625, 0.0
        %v3732 = vadd.f32 %v3730, %v3731
        %v3733 = vsel %vm3707, %v3628, 0.0
        %v3734 = vadd.f32 %v3732, %v3733
        %v3735 = vsel %vm3707, %v3633, 0.0
        %v3736 = vadd.f32 %v3734, %v3735
        %v3737 = vsel %vm3707, %v3636, 0.0
        %v3738 = vadd.f32 %v3736, %v3737
        %v3739 = vsel %vm3707, %v3641, 0.0
        %v3740 = vadd.f32 %v3738, %v3739
        %v3741 = vsel %vm3707, %v3644, 0.0
        %v3742 = vadd.f32 %v3740, %v3741
        %v3743 = vsel %vm3707, %v3649, 0.0
        %v3744 = vadd.f32 %v3742, %v3743
        %v3745 = vsel %vm3707, %v3652, 0.0
        %v3746 = vadd.f32 %v3744, %v3745
        %v3747 = vsel %vm3707, %v3657, 0.0
        %v3748 = vadd.f32 %v3746, %v3747
        %v3749 = vsel %vm3707, %v3660, 0.0
        %v3750 = vadd.f32 %v3748, %v3749
        %v3751 = vsel %vm3707, %v3665, 0.0
        %v3752 = vadd.f32 %v3750, %v3751
        %v3753 = vsel %vm3707, %v3668, 0.0
        %v3754 = vadd.f32 %v3752, %v3753
        %v3755 = vsel %vm3707, %v3673, 0.0
        %v3756 = vadd.f32 %v3754, %v3755
        %v3757 = vsel %vm3707, %v3676, 0.0
        %v3758 = vadd.f32 %v3756, %v3757
        %v3759 = vsel %vm3707, %v3681, 0.0
        %v3760 = vadd.f32 %v3758, %v3759
        %v3761 = vsel %vm3707, %v3684, 0.0
        %v3762 = vadd.f32 %v3760, %v3761
        %v3763 = vsel %vm3707, %v3689, 0.0
        %v3764 = vadd.f32 %v3762, %v3763
        %v3765 = vsel %vm3707, %v3692, 0.0
        %v3766 = vadd.f32 %v3764, %v3765
        %v3767 = vsel %vm3707, %v3697, 0.0
        %v3768 = vadd.f32 %v3766, %v3767
        %v3769 = vsel %vm3707, %v3700, 0.0
        %v3770 = vadd.f32 %v3768, %v3769
        %v3771 = vrot.slane %v3770, 4
        %v3772 = vadd.f32 %v3770, %v3771
        %v3773 = vrot.slane %v3772, 2
        %v3774 = vadd.f32 %v3772, %v3773
        %v3775 = vrot.slane %v3774, 1
        %v3776 = vadd.f32 %v3774, %v3775
        %v3778 = vsel %vm3707, %v3776, 0
        %3780 = vmatprep.subr.mxu0 0.0
        %3781 = vmatpush1.msra.mxu0 %v3703
        %3782 = vmatprep.subr.mxu0 0.0
        %3783 = vmatpush1.msra.mxu0 %v3704
        %3784 = vmatprep.subr.mxu0 0.0
        %3785 = vmatpush1.msra.mxu0 %v3705
        %3786 = vmatprep.subr.mxu0 0.0
        %3787 = vmatpush1.msra.mxu0 %v3706
        %3788 = vmatprep.subr.mxu0 0.0
        %3789 = vmatpush1.msra.mxu0 0.0
        %3790 = vmatprep.subr.mxu0 0.0
        %3791 = vmatpush1.msra.mxu0 0.0
        %3792 = vmatprep.subr.mxu0 0.0
        %3793 = vmatpush1.msra.mxu0 0.0
        %3794 = vmatprep.subr.mxu0 0.0
        %3795 = vmatpush1.msra.mxu0 0.0
        %3796 = vmatprep.subr.mxu0 0.0
        %3797 = vmatpush1.msra.mxu0 0.0
        %3798 = vmatprep.subr.mxu0 0.0
        %3799 = vmatpush1.msra.mxu0 0.0
        %3800 = vmatprep.subr.mxu0 0.0
        %3801 = vmatpush1.msra.mxu0 0.0
        %3802 = vmatprep.subr.mxu0 0.0
        %3803 = vmatpush1.msra.mxu0 0.0
        %3804 = vmatprep.subr.mxu0 0.0
        %3805 = vmatpush1.msra.mxu0 0.0
        %3806 = vmatprep.subr.mxu0 0.0
        %3807 = vmatpush1.msra.mxu0 0.0
        %3808 = vmatprep.subr.mxu0 0.0
        %3809 = vmatpush1.msra.mxu0 0.0
        %3810 = vmatprep.subr.mxu0 0.0
        %3811 = vmatpush1.msra.mxu0 0.0
        %3812 = vmatprep.subr.mxu0 0.0
        %3813 = vmatpush1.msra.mxu0 0.0
        %3814 = vmatprep.subr.mxu0 0.0
        %3815 = vmatpush1.msra.mxu0 0.0
        %3816 = vmatprep.subr.mxu0 0.0
        %3817 = vmatpush1.msra.mxu0 0.0
        %3818 = vmatprep.subr.mxu0 0.0
        %3819 = vmatpush1.msra.mxu0 0.0
        %3820 = vmatprep.subr.mxu0 0.0
        %3821 = vmatpush1.msra.mxu0 0.0
        %3822 = vmatprep.subr.mxu0 0.0
        %3823 = vmatpush1.msra.mxu0 0.0
        %3824 = vmatprep.subr.mxu0 0.0
        %3825 = vmatpush1.msra.mxu0 0.0
        %3826 = vmatprep.subr.mxu0 0.0
        %3827 = vmatpush1.msra.mxu0 0.0
        %3828 = vmatprep.subr.mxu0 0.0
        %3829 = vmatpush1.msra.mxu0 0.0
        %3830 = vmatprep.subr.mxu0 0.0
        %3831 = vmatpush1.msra.mxu0 0.0
        %3832 = vmatprep.subr.mxu0 0.0
        %3833 = vmatpush1.msra.mxu0 0.0
        %3834 = vmatprep.subr.mxu0 0.0
        %3835 = vmatpush1.msra.mxu0 0.0
        %3836 = vmatprep.subr.mxu0 0.0
        %3837 = vmatpush1.msra.mxu0 0.0
        %3838 = vmatprep.subr.mxu0 0.0
        %3839 = vmatpush1.msra.mxu0 0.0
        %3840 = vmatprep.subr.mxu0 0.0
        %3841 = vmatpush1.msra.mxu0 0.0
        %3842 = vmatprep.subr.mxu0 0.0
        %3843 = vmatpush1.msra.mxu0 0.0
        %3844 = vmatprep.mubr.f32.mxu0 0.0
        %3845 = vmatmul.mubr.f32.gmra.mrb[0].mxu0 %v3778
        %v3846 = vpop.f32.mrb[0].mxu0
        %v3847 = vadd.f32 0.0, %v3846
        %v3848 = vpop.f32.mrb[0].mxu0
        %3849 = vdwg.mxu0
        %v3850 = vlaneseq
        %v3851 = vshrl.u32 %v3850, 7
        %v3852 = vsub.s32 0, %v3851
        %v3853 = vrot.slane %v3847, %v3852
        %v3854 = vsub.f32 %v3577, %v3853
        %v3855 = vsub.f32 %v3580, %v3853
        %v3856 = vsub.f32 %v3585, %v3853
        %v3857 = vsub.f32 %v3588, %v3853
        %v3858 = vsub.f32 %v3593, %v3853
        %v3859 = vsub.f32 %v3596, %v3853
        %v3860 = vsub.f32 %v3601, %v3853
        %v3861 = vsub.f32 %v3604, %v3853
        %v3862 = vsub.f32 %v3609, %v3853
        %v3863 = vsub.f32 %v3612, %v3853
        %v3864 = vsub.f32 %v3617, %v3853
        %v3865 = vsub.f32 %v3620, %v3853
        %v3866 = vsub.f32 %v3625, %v3853
        %v3867 = vsub.f32 %v3628, %v3853
        %v3868 = vsub.f32 %v3633, %v3853
        %v3869 = vsub.f32 %v3636, %v3853
        %v3870 = vsub.f32 %v3641, %v3853
        %v3871 = vsub.f32 %v3644, %v3853
        %v3872 = vsub.f32 %v3649, %v3853
        %v3873 = vsub.f32 %v3652, %v3853
        %v3874 = vsub.f32 %v3657, %v3853
        %v3875 = vsub.f32 %v3660, %v3853
        %v3876 = vsub.f32 %v3665, %v3853
        %v3877 = vsub.f32 %v3668, %v3853
        %v3878 = vsub.f32 %v3673, %v3853
        %v3879 = vsub.f32 %v3676, %v3853
        %v3880 = vsub.f32 %v3681, %v3853
        %v3881 = vsub.f32 %v3684, %v3853
        %v3882 = vsub.f32 %v3689, %v3853
        %v3883 = vsub.f32 %v3692, %v3853
        %v3884 = vsub.f32 %v3697, %v3853
        %v3885 = vsub.f32 %v3700, %v3853
        %v3886 = vmul.f32 %v3854, %v3854
        %v3887 = vmul.f32 %v3855, %v3855
        %v3888 = vmul.f32 %v3856, %v3856
        %v3889 = vmul.f32 %v3857, %v3857
        %v3890 = vmul.f32 %v3858, %v3858
        %v3891 = vmul.f32 %v3859, %v3859
        %v3892 = vmul.f32 %v3860, %v3860
        %v3893 = vmul.f32 %v3861, %v3861
        %v3894 = vmul.f32 %v3862, %v3862
        %v3895 = vmul.f32 %v3863, %v3863
        %v3896 = vmul.f32 %v3864, %v3864
        %v3897 = vmul.f32 %v3865, %v3865
        %v3898 = vmul.f32 %v3866, %v3866
        %v3899 = vmul.f32 %v3867, %v3867
        %v3900 = vmul.f32 %v3868, %v3868
        %v3901 = vmul.f32 %v3869, %v3869
        %v3902 = vmul.f32 %v3870, %v3870
        %v3903 = vmul.f32 %v3871, %v3871
        %v3904 = vmul.f32 %v3872, %v3872
        %v3905 = vmul.f32 %v3873, %v3873
        %v3906 = vmul.f32 %v3874, %v3874
        %v3907 = vmul.f32 %v3875, %v3875
        %v3908 = vmul.f32 %v3876, %v3876
        %v3909 = vmul.f32 %v3877, %v3877
        %v3910 = vmul.f32 %v3878, %v3878
        %v3911 = vmul.f32 %v3879, %v3879
        %v3912 = vmul.f32 %v3880, %v3880
        %v3913 = vmul.f32 %v3881, %v3881
        %v3914 = vmul.f32 %v3882, %v3882
        %v3915 = vmul.f32 %v3883, %v3883
        %v3916 = vmul.f32 %v3884, %v3884
        %v3917 = vmul.f32 %v3885, %v3885
        %v3918 = vsel %vm3707, %v3886, 0.0
        %v3919 = vsel %vm3707, %v3887, 0.0
        %v3920 = vadd.f32 %v3918, %v3919
        %v3921 = vsel %vm3707, %v3888, 0.0
        %v3922 = vadd.f32 %v3920, %v3921
        %v3923 = vsel %vm3707, %v3889, 0.0
        %v3924 = vadd.f32 %v3922, %v3923
        %v3925 = vsel %vm3707, %v3890, 0.0
        %v3926 = vadd.f32 %v3924, %v3925
        %v3927 = vsel %vm3707, %v3891, 0.0
        %v3928 = vadd.f32 %v3926, %v3927
        %v3929 = vsel %vm3707, %v3892, 0.0
        %v3930 = vadd.f32 %v3928, %v3929
        %v3931 = vsel %vm3707, %v3893, 0.0
        %v3932 = vadd.f32 %v3930, %v3931
        %v3933 = vsel %vm3707, %v3894, 0.0
        %v3934 = vadd.f32 %v3932, %v3933
        %v3935 = vsel %vm3707, %v3895, 0.0
        %v3936 = vadd.f32 %v3934, %v3935
        %v3937 = vsel %vm3707, %v3896, 0.0
        %v3938 = vadd.f32 %v3936, %v3937
        %v3939 = vsel %vm3707, %v3897, 0.0
        %v3940 = vadd.f32 %v3938, %v3939
        %v3941 = vsel %vm3707, %v3898, 0.0
        %v3942 = vadd.f32 %v3940, %v3941
        %v3943 = vsel %vm3707, %v3899, 0.0
        %v3944 = vadd.f32 %v3942, %v3943
        %v3945 = vsel %vm3707, %v3900, 0.0
        %v3946 = vadd.f32 %v3944, %v3945
        %v3947 = vsel %vm3707, %v3901, 0.0
        %v3948 = vadd.f32 %v3946, %v3947
        %v3949 = vsel %vm3707, %v3902, 0.0
        %v3950 = vadd.f32 %v3948, %v3949
        %v3951 = vsel %vm3707, %v3903, 0.0
        %v3952 = vadd.f32 %v3950, %v3951
        %v3953 = vsel %vm3707, %v3904, 0.0
        %v3954 = vadd.f32 %v3952, %v3953
        %v3955 = vsel %vm3707, %v3905, 0.0
        %v3956 = vadd.f32 %v3954, %v3955
        %v3957 = vsel %vm3707, %v3906, 0.0
        %v3958 = vadd.f32 %v3956, %v3957
        %v3959 = vsel %vm3707, %v3907, 0.0
        %v3960 = vadd.f32 %v3958, %v3959
        %v3961 = vsel %vm3707, %v3908, 0.0
        %v3962 = vadd.f32 %v3960, %v3961
        %v3963 = vsel %vm3707, %v3909, 0.0
        %v3964 = vadd.f32 %v3962, %v3963
        %v3965 = vsel %vm3707, %v3910, 0.0
        %v3966 = vadd.f32 %v3964, %v3965
        %v3967 = vsel %vm3707, %v3911, 0.0
        %v3968 = vadd.f32 %v3966, %v3967
        %v3969 = vsel %vm3707, %v3912, 0.0
        %v3970 = vadd.f32 %v3968, %v3969
        %v3971 = vsel %vm3707, %v3913, 0.0
        %v3972 = vadd.f32 %v3970, %v3971
        %v3973 = vsel %vm3707, %v3914, 0.0
        %v3974 = vadd.f32 %v3972, %v3973
        %v3975 = vsel %vm3707, %v3915, 0.0
        %v3976 = vadd.f32 %v3974, %v3975
        %v3977 = vsel %vm3707, %v3916, 0.0
        %v3978 = vadd.f32 %v3976, %v3977
        %v3979 = vsel %vm3707, %v3917, 0.0
        %v3980 = vadd.f32 %v3978, %v3979
        %v3981 = vrot.slane %v3980, 4
        %v3982 = vadd.f32 %v3980, %v3981
        %v3983 = vrot.slane %v3982, 2
        %v3984 = vadd.f32 %v3982, %v3983
        %v3985 = vrot.slane %v3984, 1
        %v3986 = vadd.f32 %v3984, %v3985
        %v3988 = vsel %vm3707, %v3986, 0
        %3990 = vmatprep.subr.mxu0 0.0
        %3991 = vmatpush1.msra.mxu0 %v3703
        %3992 = vmatprep.subr.mxu0 0.0
        %3993 = vmatpush1.msra.mxu0 %v3704
        %3994 = vmatprep.subr.mxu0 0.0
        %3995 = vmatpush1.msra.mxu0 %v3705
        %3996 = vmatprep.subr.mxu0 0.0
        %3997 = vmatpush1.msra.mxu0 %v3706
        %3998 = vmatprep.subr.mxu0 0.0
        %3999 = vmatpush1.msra.mxu0 0.0
        %4000 = vmatprep.subr.mxu0 0.0
        %4001 = vmatpush1.msra.mxu0 0.0
        %4002 = vmatprep.subr.mxu0 0.0
        %4003 = vmatpush1.msra.mxu0 0.0
        %4004 = vmatprep.subr.mxu0 0.0
        %4005 = vmatpush1.msra.mxu0 0.0
        %4006 = vmatprep.subr.mxu0 0.0
        %4007 = vmatpush1.msra.mxu0 0.0
        %4008 = vmatprep.subr.mxu0 0.0
        %4009 = vmatpush1.msra.mxu0 0.0
        %4010 = vmatprep.subr.mxu0 0.0
        %4011 = vmatpush1.msra.mxu0 0.0
        %4012 = vmatprep.subr.mxu0 0.0
        %4013 = vmatpush1.msra.mxu0 0.0
        %4014 = vmatprep.subr.mxu0 0.0
        %4015 = vmatpush1.msra.mxu0 0.0
        %4016 = vmatprep.subr.mxu0 0.0
        %4017 = vmatpush1.msra.mxu0 0.0
        %4018 = vmatprep.subr.mxu0 0.0
        %4019 = vmatpush1.msra.mxu0 0.0
        %4020 = vmatprep.subr.mxu0 0.0
        %4021 = vmatpush1.msra.mxu0 0.0
        %4022 = vmatprep.subr.mxu0 0.0
        %4023 = vmatpush1.msra.mxu0 0.0
        %4024 = vmatprep.subr.mxu0 0.0
        %4025 = vmatpush1.msra.mxu0 0.0
        %4026 = vmatprep.subr.mxu0 0.0
        %4027 = vmatpush1.msra.mxu0 0.0
        %4028 = vmatprep.subr.mxu0 0.0
        %4029 = vmatpush1.msra.mxu0 0.0
        %4030 = vmatprep.subr.mxu0 0.0
        %4031 = vmatpush1.msra.mxu0 0.0
        %4032 = vmatprep.subr.mxu0 0.0
        %4033 = vmatpush1.msra.mxu0 0.0
        %4034 = vmatprep.subr.mxu0 0.0
        %4035 = vmatpush1.msra.mxu0 0.0
        %4036 = vmatprep.subr.mxu0 0.0
        %4037 = vmatpush1.msra.mxu0 0.0
        %4038 = vmatprep.subr.mxu0 0.0
        %4039 = vmatpush1.msra.mxu0 0.0
        %4040 = vmatprep.subr.mxu0 0.0
        %4041 = vmatpush1.msra.mxu0 0.0
        %4042 = vmatprep.subr.mxu0 0.0
        %4043 = vmatpush1.msra.mxu0 0.0
        %4044 = vmatprep.subr.mxu0 0.0
        %4045 = vmatpush1.msra.mxu0 0.0
        %4046 = vmatprep.subr.mxu0 0.0
        %4047 = vmatpush1.msra.mxu0 0.0
        %4048 = vmatprep.subr.mxu0 0.0
        %4049 = vmatpush1.msra.mxu0 0.0
        %4050 = vmatprep.subr.mxu0 0.0
        %4051 = vmatpush1.msra.mxu0 0.0
        %4052 = vmatprep.subr.mxu0 0.0
        %4053 = vmatpush1.msra.mxu0 0.0
        %4054 = vmatprep.mubr.f32.mxu0 0.0
        %4055 = vmatmul.mubr.f32.gmra.mrb[0].mxu0 %v3988
        %v4056 = vpop.f32.mrb[0].mxu0
        %v4057 = vadd.f32 1e-05, %v4056
        %v4058 = vpop.f32.mrb[0].mxu0
        %4059 = vdwg.mxu0
        %v4060 = vrsqrt.pop %v4057
        %v4061 = vld [vmem:[%s2 + $0x1] sm:$0x1]
        %v4062 = vmul.f32 %v4060, %v4061
        %v4063 = vlaneseq
        %v4064 = vshrl.u32 %v4063, 7
        %v4065 = vsub.s32 0, %v4064
        %v4066 = vrot.slane %v4062, %v4065
        %v4067 = vmul.f32 %v3854, %v4066
        %v4068 = vmul.f32 %v3855, %v4066
        %v4069 = vmul.f32 %v3856, %v4066
        %v4070 = vmul.f32 %v3857, %v4066
        %v4071 = vmul.f32 %v3858, %v4066
        %v4072 = vmul.f32 %v3859, %v4066
        %v4073 = vmul.f32 %v3860, %v4066
        %v4074 = vmul.f32 %v3861, %v4066
        %v4075 = vmul.f32 %v3862, %v4066
        %v4076 = vmul.f32 %v3863, %v4066
        %v4077 = vmul.f32 %v3864, %v4066
        %v4078 = vmul.f32 %v3865, %v4066
        %v4079 = vmul.f32 %v3866, %v4066
        %v4080 = vmul.f32 %v3867, %v4066
        %v4081 = vmul.f32 %v3868, %v4066
        %v4082 = vmul.f32 %v3869, %v4066
        %v4083 = vmul.f32 %v3870, %v4066
        %v4084 = vmul.f32 %v3871, %v4066
        %v4085 = vmul.f32 %v3872, %v4066
        %v4086 = vmul.f32 %v3873, %v4066
        %v4087 = vmul.f32 %v3874, %v4066
        %v4088 = vmul.f32 %v3875, %v4066
        %v4089 = vmul.f32 %v3876, %v4066
        %v4090 = vmul.f32 %v3877, %v4066
        %v4091 = vmul.f32 %v3878, %v4066
        %v4092 = vmul.f32 %v3879, %v4066
        %v4093 = vmul.f32 %v3880, %v4066
        %v4094 = vmul.f32 %v3881, %v4066
        %v4095 = vmul.f32 %v3882, %v4066
        %v4096 = vmul.f32 %v3883, %v4066
        %v4097 = vmul.f32 %v3884, %v4066
        %v4098 = vmul.f32 %v3885, %v4066
        %v4099 = vld [vmem:[%s2 + $0x2] sm:$0x1]
        %v4100 = vlaneseq
        %v4101 = vshrl.u32 %v4100, 7
        %v4102 = vsub.s32 0, %v4101
        %v4103 = vrot.slane %v4099, %v4102
        %v4104 = vadd.f32 %v4067, %v4103
        %v4105 = vadd.f32 %v4068, %v4103
        %v4106 = vadd.f32 %v4069, %v4103
        %v4107 = vadd.f32 %v4070, %v4103
        %v4108 = vadd.f32 %v4071, %v4103
        %v4109 = vadd.f32 %v4072, %v4103
        %v4110 = vadd.f32 %v4073, %v4103
        %v4111 = vadd.f32 %v4074, %v4103
        %v4112 = vadd.f32 %v4075, %v4103
        %v4113 = vadd.f32 %v4076, %v4103
        %v4114 = vadd.f32 %v4077, %v4103
        %v4115 = vadd.f32 %v4078, %v4103
        %v4116 = vadd.f32 %v4079, %v4103
        %v4117 = vadd.f32 %v4080, %v4103
        %v4118 = vadd.f32 %v4081, %v4103
        %v4119 = vadd.f32 %v4082, %v4103
        %v4120 = vadd.f32 %v4083, %v4103
        %v4121 = vadd.f32 %v4084, %v4103
        %v4122 = vadd.f32 %v4085, %v4103
        %v4123 = vadd.f32 %v4086, %v4103
        %v4124 = vadd.f32 %v4087, %v4103
        %v4125 = vadd.f32 %v4088, %v4103
        %v4126 = vadd.f32 %v4089, %v4103
        %v4127 = vadd.f32 %v4090, %v4103
        %v4128 = vadd.f32 %v4091, %v4103
        %v4129 = vadd.f32 %v4092, %v4103
        %v4130 = vadd.f32 %v4093, %v4103
        %v4131 = vadd.f32 %v4094, %v4103
        %v4132 = vadd.f32 %v4095, %v4103
        %v4133 = vadd.f32 %v4096, %v4103
        %v4134 = vadd.f32 %v4097, %v4103
        %v4135 = vadd.f32 %v4098, %v4103
        %v4136 = vmax.f32 %v4104, 0.0
        %v4137 = vmax.f32 %v4105, 0.0
        %v4138 = vmax.f32 %v4106, 0.0
        %v4139 = vmax.f32 %v4107, 0.0
        %v4140 = vmax.f32 %v4108, 0.0
        %v4141 = vmax.f32 %v4109, 0.0
        %v4142 = vmax.f32 %v4110, 0.0
        %v4143 = vmax.f32 %v4111, 0.0
        %v4144 = vmax.f32 %v4112, 0.0
        %v4145 = vmax.f32 %v4113, 0.0
        %v4146 = vmax.f32 %v4114, 0.0
        %v4147 = vmax.f32 %v4115, 0.0
        %v4148 = vmax.f32 %v4116, 0.0
        %v4149 = vmax.f32 %v4117, 0.0
        %v4150 = vmax.f32 %v4118, 0.0
        %v4151 = vmax.f32 %v4119, 0.0
        %v4152 = vmax.f32 %v4120, 0.0
        %v4153 = vmax.f32 %v4121, 0.0
        %v4154 = vmax.f32 %v4122, 0.0
        %v4155 = vmax.f32 %v4123, 0.0
        %v4156 = vmax.f32 %v4124, 0.0
        %v4157 = vmax.f32 %v4125, 0.0
        %v4158 = vmax.f32 %v4126, 0.0
        %v4159 = vmax.f32 %v4127, 0.0
        %v4160 = vmax.f32 %v4128, 0.0
        %v4161 = vmax.f32 %v4129, 0.0
        %v4162 = vmax.f32 %v4130, 0.0
        %v4163 = vmax.f32 %v4131, 0.0
        %v4164 = vmax.f32 %v4132, 0.0
        %v4165 = vmax.f32 %v4133, 0.0
        %v4166 = vmax.f32 %v4134, 0.0
        %v4167 = vmax.f32 %v4135, 0.0
        %vm4168 = vcmask 257024
        %4169 = vst.msk [vmem:[#allocation4] sm:$0xf] %vm4168, 0
        %4170 = vst.msk [vmem:[#allocation4 + $0x4] sm:$0xf] %vm4168, 0
        %vm4171 = vcmask 253952
        %4172 = vst.msk [vmem:[#allocation4 + $0x8] sm:$0x1] %vm4171, 0
        %4173 = vst.msk [vmem:[#allocation4 + $0xc] sm:$0xf] %vm4168, 0
        %4174 = vst.msk [vmem:[#allocation4 + $0x10] sm:$0xf] %vm4168, 0
        %4175 = vst.msk [vmem:[#allocation4 + $0x14] sm:$0x1] %vm4171, 0
        %4176 = vst.msk [vmem:[#allocation4 + $0x18] sm:$0xf] %vm4168, 0
        %4177 = vst.msk [vmem:[#allocation4 + $0x1c] sm:$0xf] %vm4168, 0
        %4178 = vst.msk [vmem:[#allocation4 + $0x20] sm:$0x1] %vm4171, 0
        %4179 = vst.msk [vmem:[#allocation4 + $0x24] sm:$0xf] %vm4168, 0
        %4180 = vst.msk [vmem:[#allocation4 + $0x28] sm:$0xf] %vm4168, 0
        %4181 = vst.msk [vmem:[#allocation4 + $0x2c] sm:$0x1] %vm4171, 0
        %4182 = vst.msk [vmem:[#allocation4 + $0x30] sm:$0xf] %vm4168, 0
        %4183 = vst.msk [vmem:[#allocation4 + $0x34] sm:$0xf] %vm4168, 0
        %4184 = vst.msk [vmem:[#allocation4 + $0x38] sm:$0x1] %vm4171, 0
        %4185 = vst.msk [vmem:[#allocation4 + $0x3c] sm:$0xf] %vm4168, 0
        %4186 = vst.msk [vmem:[#allocation4 + $0x40] sm:$0xf] %vm4168, 0
        %4187 = vst.msk [vmem:[#allocation4 + $0x44] sm:$0x1] %vm4171, 0
        %4188 = vst.msk [vmem:[#allocation4 + $0x48] sm:$0xf] %vm4168, 0
        %4189 = vst.msk [vmem:[#allocation4 + $0x4c] sm:$0xf] %vm4168, 0
        %4190 = vst.msk [vmem:[#allocation4 + $0x50] sm:$0x1] %vm4171, 0
        %4191 = vst.msk [vmem:[#allocation4 + $0x54] sm:$0xf] %vm4168, 0
        %4192 = vst.msk [vmem:[#allocation4 + $0x58] sm:$0xf] %vm4168, 0
        %4193 = vst.msk [vmem:[#allocation4 + $0x5c] sm:$0x1] %vm4171, 0
        %4194 = vst.msk [vmem:[#allocation4 + $0x60] sm:$0xf] %vm4168, 0
        %4195 = vst.msk [vmem:[#allocation4 + $0x64] sm:$0xf] %vm4168, 0
        %4196 = vst.msk [vmem:[#allocation4 + $0x68] sm:$0x1] %vm4171, 0
        %4197 = vst.msk [vmem:[#allocation4 + $0x6c] sm:$0xf] %vm4168, 0
        %4198 = vst.msk [vmem:[#allocation4 + $0x70] sm:$0xf] %vm4168, 0
        %4199 = vst.msk [vmem:[#allocation4 + $0x74] sm:$0x1] %vm4171, 0
        %4200 = vst.msk [vmem:[#allocation4 + $0x78] sm:$0xf] %vm4168, 0
        %4201 = vst.msk [vmem:[#allocation4 + $0x7c] sm:$0xf] %vm4168, 0
        %4202 = vst.msk [vmem:[#allocation4 + $0x80] sm:$0x1] %vm4171, 0
        %4203 = vst.msk [vmem:[#allocation4 + $0x84] sm:$0xf] %vm4168, 0
        %4204 = vst.msk [vmem:[#allocation4 + $0x88] sm:$0xf] %vm4168, 0
        %4205 = vst.msk [vmem:[#allocation4 + $0x8c] sm:$0x1] %vm4171, 0
        %4206 = vst.msk [vmem:[#allocation4 + $0x90] sm:$0xf] %vm4168, 0
        %4207 = vst.msk [vmem:[#allocation4 + $0x94] sm:$0xf] %vm4168, 0
        %4208 = vst.msk [vmem:[#allocation4 + $0x98] sm:$0x1] %vm4171, 0
        %4209 = vst.msk [vmem:[#allocation4 + $0x9c] sm:$0xf] %vm4168, 0
        %4210 = vst.msk [vmem:[#allocation4 + $0xa0] sm:$0xf] %vm4168, 0
        %4211 = vst.msk [vmem:[#allocation4 + $0xa4] sm:$0x1] %vm4171, 0
        %4212 = vst.msk [vmem:[#allocation4 + $0xa8] sm:$0xf] %vm4168, 0
        %4213 = vst.msk [vmem:[#allocation4 + $0xac] sm:$0xf] %vm4168, 0
        %4214 = vst.msk [vmem:[#allocation4 + $0xb0] sm:$0x1] %vm4171, 0
        %4215 = vst.msk [vmem:[#allocation4 + $0xb4] sm:$0xf] %vm4168, 0
        %4216 = vst.msk [vmem:[#allocation4 + $0xb8] sm:$0xf] %vm4168, 0
        %4217 = vst.msk [vmem:[#allocation4 + $0xbc] sm:$0x1] %vm4171, 0
        %4218 = vst.msk [vmem:[#allocation4 + $0xc0] sm:$0xf] %vm4168, 0
        %4219 = vst.msk [vmem:[#allocation4 + $0xc4] sm:$0xf] %vm4168, 0
        %4220 = vst.msk [vmem:[#allocation4 + $0xc8] sm:$0x1] %vm4171, 0
        %4221 = vst.msk [vmem:[#allocation4 + $0xcc] sm:$0xf] %vm4168, 0
        %4222 = vst.msk [vmem:[#allocation4 + $0xd0] sm:$0xf] %vm4168, 0
        %4223 = vst.msk [vmem:[#allocation4 + $0xd4] sm:$0x1] %vm4171, 0
        %v4224 = vpack.c.bf16 %v4137, %v4136
        %v4225 = vpack.c.bf16 %v4139, %v4138
        %v4226 = vpack.c.bf16 %v4141, %v4140
        %v4227 = vpack.c.bf16 %v4143, %v4142
        %v4228 = vpack.c.bf16 %v4145, %v4144
        %v4229 = vpack.c.bf16 %v4147, %v4146
        %v4230 = vpack.c.bf16 %v4149, %v4148
        %v4231 = vpack.c.bf16 %v4151, %v4150
        %v4232 = vpack.c.bf16 %v4153, %v4152
        %v4233 = vpack.c.bf16 %v4155, %v4154
        %v4234 = vpack.c.bf16 %v4157, %v4156
        %v4235 = vpack.c.bf16 %v4159, %v4158
        %v4236 = vpack.c.bf16 %v4161, %v4160
        %v4237 = vpack.c.bf16 %v4163, %v4162
        %v4238 = vpack.c.bf16 %v4165, %v4164
        %v4239 = vpack.c.bf16 %v4167, %v4166
        %v4256 = vunpack.c.l.b16 %v4224
        %v4257 = vunpack.c.h.b16 %v4224
        %v4258 = vunpack.c.l.b16 %v4225
        %v4259 = vunpack.c.h.b16 %v4225
        %v4260 = vunpack.c.l.b16 %v4226
        %v4261 = vunpack.c.h.b16 %v4226
        %v4262 = vunpack.c.l.b16 %v4227
        %v4263 = vunpack.c.h.b16 %v4227
        %v4264 = vunpack.c.l.b16 %v4228
        %v4265 = vunpack.c.h.b16 %v4228
        %v4266 = vunpack.c.l.b16 %v4229
        %v4267 = vunpack.c.h.b16 %v4229
        %v4268 = vunpack.c.l.b16 %v4230
        %v4269 = vunpack.c.h.b16 %v4230
        %v4270 = vunpack.c.l.b16 %v4231
        %v4271 = vunpack.c.h.b16 %v4231
        %v4272 = vunpack.c.l.b16 %v4232
        %v4273 = vunpack.c.h.b16 %v4232
        %v4274 = vunpack.c.l.b16 %v4233
        %v4275 = vunpack.c.h.b16 %v4233
        %v4276 = vunpack.c.l.b16 %v4234
        %v4277 = vunpack.c.h.b16 %v4234
        %v4278 = vunpack.c.l.b16 %v4235
        %v4279 = vunpack.c.h.b16 %v4235
        %v4280 = vunpack.c.l.b16 %v4236
        %v4281 = vunpack.c.h.b16 %v4236
        %v4282 = vunpack.c.l.b16 %v4237
        %v4283 = vunpack.c.h.b16 %v4237
        %v4284 = vunpack.c.l.b16 %v4238
        %v4285 = vunpack.c.h.b16 %v4238
        %v4286 = vunpack.c.l.b16 %v4239
        %v4287 = vunpack.c.h.b16 %v4239
        %v4288 = vpack.c.b16 %v4256, %v4256
        %v4289 = vpack.c.b16 %v4257, %v4257
        %v4290 = vpack.c.b16 %v4258, %v4258
        %v4291 = vpack.c.b16 %v4259, %v4259
        %v4292 = vpack.c.b16 %v4260, %v4260
        %v4293 = vpack.c.b16 %v4261, %v4261
        %v4294 = vpack.c.b16 %v4262, %v4262
        %v4295 = vpack.c.b16 %v4263, %v4263
        %v4296 = vpack.c.b16 %v4264, %v4264
        %v4297 = vpack.c.b16 %v4265, %v4265
        %v4298 = vpack.c.b16 %v4266, %v4266
        %v4299 = vpack.c.b16 %v4267, %v4267
        %v4300 = vpack.c.b16 %v4268, %v4268
        %v4301 = vpack.c.b16 %v4269, %v4269
        %v4302 = vpack.c.b16 %v4270, %v4270
        %v4303 = vpack.c.b16 %v4271, %v4271
        %v4304 = vpack.c.b16 %v4272, %v4272
        %v4305 = vpack.c.b16 %v4273, %v4273
        %v4306 = vpack.c.b16 %v4274, %v4274
        %v4307 = vpack.c.b16 %v4275, %v4275
        %v4308 = vpack.c.b16 %v4276, %v4276
        %v4309 = vpack.c.b16 %v4277, %v4277
        %v4310 = vpack.c.b16 %v4278, %v4278
        %v4311 = vpack.c.b16 %v4279, %v4279
        %v4312 = vpack.c.b16 %v4280, %v4280
        %v4313 = vpack.c.b16 %v4281, %v4281
        %v4314 = vpack.c.b16 %v4282, %v4282
        %v4315 = vpack.c.b16 %v4283, %v4283
        %v4316 = vpack.c.b16 %v4284, %v4284
        %v4317 = vpack.c.b16 %v4285, %v4285
        %v4318 = vpack.c.b16 %v4286, %v4286
        %v4319 = vpack.c.b16 %v4287, %v4287
        %v4321 = vshrl.u32 %v4288, 16
        %v4323 = vrot.slane %v4321, 7
        %v4324 = vshll.u32 %v4288, 16
        %v4326 = vor.u32 %v4323, %v4324
        %v4327 = vrot.slane %v4323, 4
        %v4329 = vshrl.u32 %v4289, 16
        %v4331 = vrot.slane %v4329, 7
        %v4332 = vshll.u32 %v4289, 16
        %v4334 = vor.u32 %v4331, %v4332
        %v4335 = vsel %vm341, %v4327, %v4334
        %v4336 = vrot.slane %v4331, 4
        %v4338 = vshrl.u32 %v4290, 16
        %v4340 = vrot.slane %v4338, 7
        %v4341 = vshll.u32 %v4290, 16
        %v4343 = vor.u32 %v4340, %v4341
        %v4344 = vrot.slane %v4340, 4
        %v4346 = vshrl.u32 %v4291, 16
        %v4348 = vrot.slane %v4346, 7
        %v4349 = vshll.u32 %v4291, 16
        %v4351 = vor.u32 %v4348, %v4349
        %v4352 = vsel %vm341, %v4344, %v4351
        %v4353 = vrot.slane %v4348, 4
        %v4355 = vshrl.u32 %v4292, 16
        %v4357 = vrot.slane %v4355, 7
        %v4358 = vshll.u32 %v4292, 16
        %v4360 = vor.u32 %v4357, %v4358
        %v4361 = vrot.slane %v4357, 4
        %v4363 = vshrl.u32 %v4293, 16
        %v4365 = vrot.slane %v4363, 7
        %v4366 = vshll.u32 %v4293, 16
        %v4368 = vor.u32 %v4365, %v4366
        %v4369 = vsel %vm341, %v4361, %v4368
        %v4370 = vrot.slane %v4365, 4
        %v4372 = vshrl.u32 %v4294, 16
        %v4374 = vrot.slane %v4372, 7
        %v4375 = vshll.u32 %v4294, 16
        %v4377 = vor.u32 %v4374, %v4375
        %v4378 = vrot.slane %v4374, 4
        %v4380 = vshrl.u32 %v4295, 16
        %v4382 = vrot.slane %v4380, 7
        %v4383 = vshll.u32 %v4295, 16
        %v4385 = vor.u32 %v4382, %v4383
        %v4386 = vsel %vm341, %v4378, %v4385
        %v4387 = vrot.slane %v4382, 4
        %v4389 = vshrl.u32 %v4296, 16
        %v4391 = vrot.slane %v4389, 7
        %v4392 = vshll.u32 %v4296, 16
        %v4394 = vor.u32 %v4391, %v4392
        %v4395 = vrot.slane %v4391, 4
        %v4397 = vshrl.u32 %v4297, 16
        %v4399 = vrot.slane %v4397, 7
        %v4400 = vshll.u32 %v4297, 16
        %v4402 = vor.u32 %v4399, %v4400
        %v4403 = vsel %vm341, %v4395, %v4402
        %v4404 = vrot.slane %v4399, 4
        %v4406 = vshrl.u32 %v4298, 16
        %v4408 = vrot.slane %v4406, 7
        %v4409 = vshll.u32 %v4298, 16
        %v4411 = vor.u32 %v4408, %v4409
        %v4412 = vrot.slane %v4408, 4
        %v4414 = vshrl.u32 %v4299, 16
        %v4416 = vrot.slane %v4414, 7
        %v4417 = vshll.u32 %v4299, 16
        %v4419 = vor.u32 %v4416, %v4417
        %v4420 = vsel %vm341, %v4412, %v4419
        %v4421 = vrot.slane %v4416, 4
        %v4423 = vshrl.u32 %v4300, 16
        %v4425 = vrot.slane %v4423, 7
        %v4426 = vshll.u32 %v4300, 16
        %v4428 = vor.u32 %v4425, %v4426
        %v4429 = vrot.slane %v4425, 4
        %v4431 = vshrl.u32 %v4301, 16
        %v4433 = vrot.slane %v4431, 7
        %v4434 = vshll.u32 %v4301, 16
        %v4436 = vor.u32 %v4433, %v4434
        %v4437 = vsel %vm341, %v4429, %v4436
        %v4438 = vrot.slane %v4433, 4
        %v4440 = vshrl.u32 %v4302, 16
        %v4442 = vrot.slane %v4440, 7
        %v4443 = vshll.u32 %v4302, 16
        %v4445 = vor.u32 %v4442, %v4443
        %v4446 = vrot.slane %v4442, 4
        %v4448 = vshrl.u32 %v4303, 16
        %v4450 = vrot.slane %v4448, 7
        %v4451 = vshll.u32 %v4303, 16
        %v4453 = vor.u32 %v4450, %v4451
        %v4454 = vsel %vm341, %v4446, %v4453
        %v4455 = vrot.slane %v4450, 4
        %v4457 = vshrl.u32 %v4304, 16
        %v4459 = vrot.slane %v4457, 7
        %v4460 = vshll.u32 %v4304, 16
        %v4462 = vor.u32 %v4459, %v4460
        %v4463 = vrot.slane %v4459, 4
        %v4465 = vshrl.u32 %v4305, 16
        %v4467 = vrot.slane %v4465, 7
        %v4468 = vshll.u32 %v4305, 16
        %v4470 = vor.u32 %v4467, %v4468
        %v4471 = vsel %vm341, %v4463, %v4470
        %v4472 = vrot.slane %v4467, 4
        %v4474 = vshrl.u32 %v4306, 16
        %v4476 = vrot.slane %v4474, 7
        %v4477 = vshll.u32 %v4306, 16
        %v4479 = vor.u32 %v4476, %v4477
        %v4480 = vrot.slane %v4476, 4
        %v4482 = vshrl.u32 %v4307, 16
        %v4484 = vrot.slane %v4482, 7
        %v4485 = vshll.u32 %v4307, 16
        %v4487 = vor.u32 %v4484, %v4485
        %v4488 = vsel %vm341, %v4480, %v4487
        %v4489 = vrot.slane %v4484, 4
        %v4491 = vshrl.u32 %v4308, 16
        %v4493 = vrot.slane %v4491, 7
        %v4494 = vshll.u32 %v4308, 16
        %v4496 = vor.u32 %v4493, %v4494
        %v4497 = vrot.slane %v4493, 4
        %v4499 = vshrl.u32 %v4309, 16
        %v4501 = vrot.slane %v4499, 7
        %v4502 = vshll.u32 %v4309, 16
        %v4504 = vor.u32 %v4501, %v4502
        %v4505 = vsel %vm341, %v4497, %v4504
        %v4506 = vrot.slane %v4501, 4
        %v4508 = vshrl.u32 %v4310, 16
        %v4510 = vrot.slane %v4508, 7
        %v4511 = vshll.u32 %v4310, 16
        %v4513 = vor.u32 %v4510, %v4511
        %v4514 = vrot.slane %v4510, 4
        %v4516 = vshrl.u32 %v4311, 16
        %v4518 = vrot.slane %v4516, 7
        %v4519 = vshll.u32 %v4311, 16
        %v4521 = vor.u32 %v4518, %v4519
        %v4522 = vsel %vm341, %v4514, %v4521
        %v4523 = vrot.slane %v4518, 4
        %v4525 = vshrl.u32 %v4312, 16
        %v4527 = vrot.slane %v4525, 7
        %v4528 = vshll.u32 %v4312, 16
        %v4530 = vor.u32 %v4527, %v4528
        %v4531 = vrot.slane %v4527, 4
        %v4533 = vshrl.u32 %v4313, 16
        %v4535 = vrot.slane %v4533, 7
        %v4536 = vshll.u32 %v4313, 16
        %v4538 = vor.u32 %v4535, %v4536
        %v4539 = vsel %vm341, %v4531, %v4538
        %v4540 = vrot.slane %v4535, 4
        %v4542 = vshrl.u32 %v4314, 16
        %v4544 = vrot.slane %v4542, 7
        %v4545 = vshll.u32 %v4314, 16
        %v4547 = vor.u32 %v4544, %v4545
        %v4548 = vrot.slane %v4544, 4
        %v4550 = vshrl.u32 %v4315, 16
        %v4552 = vrot.slane %v4550, 7
        %v4553 = vshll.u32 %v4315, 16
        %v4555 = vor.u32 %v4552, %v4553
        %v4556 = vsel %vm341, %v4548, %v4555
        %v4557 = vrot.slane %v4552, 4
        %v4559 = vshrl.u32 %v4316, 16
        %v4561 = vrot.slane %v4559, 7
        %v4562 = vshll.u32 %v4316, 16
        %v4564 = vor.u32 %v4561, %v4562
        %v4565 = vrot.slane %v4561, 4
        %v4567 = vshrl.u32 %v4317, 16
        %v4569 = vrot.slane %v4567, 7
        %v4570 = vshll.u32 %v4317, 16
        %v4572 = vor.u32 %v4569, %v4570
        %v4573 = vsel %vm341, %v4565, %v4572
        %v4574 = vrot.slane %v4569, 4
        %v4576 = vshrl.u32 %v4318, 16
        %v4578 = vrot.slane %v4576, 7
        %v4579 = vshll.u32 %v4318, 16
        %v4581 = vor.u32 %v4578, %v4579
        %v4582 = vrot.slane %v4578, 4
        %v4584 = vshrl.u32 %v4319, 16
        %v4586 = vrot.slane %v4584, 7
        %v4587 = vshll.u32 %v4319, 16
        %v4589 = vor.u32 %v4586, %v4587
        %v4590 = vsel %vm341, %v4582, %v4589
        %v4591 = vrot.slane %v4586, 4
        %s4640 = scalar_lea.vmem [#allocation4], 12
        %vm4641 = vcmask 257024
        %vm4642 = vmand %vm4641, %vm664
        %v4643 = vld [vmem:[%s4640] sm:$0xf]
        %v4644 = vsel %vm4642, %v4326, %v4643
        %4645 = vst [vmem:[%s4640] sm:$0xf] %v4644
        %4646 = vst.msk [vmem:[%s4640 + $0x4] sm:$0xf] %vm4168, %v4335
        %vm4647 = vcmask 253952
        %vm4648 = vmand %vm4647, %vm339
        %v4649 = vld [vmem:[%s4640 + $0x8] sm:$0x1]
        %v4650 = vsel %vm4648, %v4336, %v4649
        %4651 = vst [vmem:[%s4640 + $0x8] sm:$0x1] %v4650
        %v4652 = vld [vmem:[%s4640 + $0xc] sm:$0xf]
        %v4653 = vsel %vm4642, %v4343, %v4652
        %4654 = vst [vmem:[%s4640 + $0xc] sm:$0xf] %v4653
        %4655 = vst.msk [vmem:[%s4640 + $0x10] sm:$0xf] %vm4168, %v4352
        %v4656 = vld [vmem:[%s4640 + $0x14] sm:$0x1]
        %v4657 = vsel %vm4648, %v4353, %v4656
        %4658 = vst [vmem:[%s4640 + $0x14] sm:$0x1] %v4657
        %v4659 = vld [vmem:[%s4640 + $0x18] sm:$0xf]
        %v4660 = vsel %vm4642, %v4360, %v4659
        %4661 = vst [vmem:[%s4640 + $0x18] sm:$0xf] %v4660
        %4662 = vst.msk [vmem:[%s4640 + $0x1c] sm:$0xf] %vm4168, %v4369
        %v4663 = vld [vmem:[%s4640 + $0x20] sm:$0x1]
        %v4664 = vsel %vm4648, %v4370, %v4663
        %4665 = vst [vmem:[%s4640 + $0x20] sm:$0x1] %v4664
        %v4666 = vld [vmem:[%s4640 + $0x24] sm:$0xf]
        %v4667 = vsel %vm4642, %v4377, %v4666
        %4668 = vst [vmem:[%s4640 + $0x24] sm:$0xf] %v4667
        %4669 = vst.msk [vmem:[%s4640 + $0x28] sm:$0xf] %vm4168, %v4386
        %v4670 = vld [vmem:[%s4640 + $0x2c] sm:$0x1]
        %v4671 = vsel %vm4648, %v4387, %v4670
        %4672 = vst [vmem:[%s4640 + $0x2c] sm:$0x1] %v4671
        %v4673 = vld [vmem:[%s4640 + $0x30] sm:$0xf]
        %v4674 = vsel %vm4642, %v4394, %v4673
        %4675 = vst [vmem:[%s4640 + $0x30] sm:$0xf] %v4674
        %4676 = vst.msk [vmem:[%s4640 + $0x34] sm:$0xf] %vm4168, %v4403
        %v4677 = vld [vmem:[%s4640 + $0x38] sm:$0x1]
        %v4678 = vsel %vm4648, %v4404, %v4677
        %4679 = vst [vmem:[%s4640 + $0x38] sm:$0x1] %v4678
        %v4680 = vld [vmem:[%s4640 + $0x3c] sm:$0xf]
        %v4681 = vsel %vm4642, %v4411, %v4680
        %4682 = vst [vmem:[%s4640 + $0x3c] sm:$0xf] %v4681
        %4683 = vst.msk [vmem:[%s4640 + $0x40] sm:$0xf] %vm4168, %v4420
        %v4684 = vld [vmem:[%s4640 + $0x44] sm:$0x1]
        %v4685 = vsel %vm4648, %v4421, %v4684
        %4686 = vst [vmem:[%s4640 + $0x44] sm:$0x1] %v4685
        %v4687 = vld [vmem:[%s4640 + $0x48] sm:$0xf]
        %v4688 = vsel %vm4642, %v4428, %v4687
        %4689 = vst [vmem:[%s4640 + $0x48] sm:$0xf] %v4688
        %4690 = vst.msk [vmem:[%s4640 + $0x4c] sm:$0xf] %vm4168, %v4437
        %v4691 = vld [vmem:[%s4640 + $0x50] sm:$0x1]
        %v4692 = vsel %vm4648, %v4438, %v4691
        %4693 = vst [vmem:[%s4640 + $0x50] sm:$0x1] %v4692
        %v4694 = vld [vmem:[%s4640 + $0x54] sm:$0xf]
        %v4695 = vsel %vm4642, %v4445, %v4694
        %4696 = vst [vmem:[%s4640 + $0x54] sm:$0xf] %v4695
        %4697 = vst.msk [vmem:[%s4640 + $0x58] sm:$0xf] %vm4168, %v4454
        %v4698 = vld [vmem:[%s4640 + $0x5c] sm:$0x1]
        %v4699 = vsel %vm4648, %v4455, %v4698
        %4700 = vst [vmem:[%s4640 + $0x5c] sm:$0x1] %v4699
        %v4701 = vld [vmem:[%s4640 + $0x60] sm:$0xf]
        %v4702 = vsel %vm4642, %v4462, %v4701
        %4703 = vst [vmem:[%s4640 + $0x60] sm:$0xf] %v4702
        %4704 = vst.msk [vmem:[%s4640 + $0x64] sm:$0xf] %vm4168, %v4471
        %v4705 = vld [vmem:[%s4640 + $0x68] sm:$0x1]
        %v4706 = vsel %vm4648, %v4472, %v4705
        %4707 = vst [vmem:[%s4640 + $0x68] sm:$0x1] %v4706
        %v4708 = vld [vmem:[%s4640 + $0x6c] sm:$0xf]
        %v4709 = vsel %vm4642, %v4479, %v4708
        %4710 = vst [vmem:[%s4640 + $0x6c] sm:$0xf] %v4709
        %4711 = vst.msk [vmem:[%s4640 + $0x70] sm:$0xf] %vm4168, %v4488
        %v4712 = vld [vmem:[%s4640 + $0x74] sm:$0x1]
        %v4713 = vsel %vm4648, %v4489, %v4712
        %4714 = vst [vmem:[%s4640 + $0x74] sm:$0x1] %v4713
        %v4715 = vld [vmem:[%s4640 + $0x78] sm:$0xf]
        %v4716 = vsel %vm4642, %v4496, %v4715
        %4717 = vst [vmem:[%s4640 + $0x78] sm:$0xf] %v4716
        %4718 = vst.msk [vmem:[%s4640 + $0x7c] sm:$0xf] %vm4168, %v4505
        %v4719 = vld [vmem:[%s4640 + $0x80] sm:$0x1]
        %v4720 = vsel %vm4648, %v4506, %v4719
        %4721 = vst [vmem:[%s4640 + $0x80] sm:$0x1] %v4720
        %v4722 = vld [vmem:[%s4640 + $0x84] sm:$0xf]
        %v4723 = vsel %vm4642, %v4513, %v4722
        %4724 = vst [vmem:[%s4640 + $0x84] sm:$0xf] %v4723
        %4725 = vst.msk [vmem:[%s4640 + $0x88] sm:$0xf] %vm4168, %v4522
        %v4726 = vld [vmem:[%s4640 + $0x8c] sm:$0x1]
        %v4727 = vsel %vm4648, %v4523, %v4726
        %4728 = vst [vmem:[%s4640 + $0x8c] sm:$0x1] %v4727
        %v4729 = vld [vmem:[%s4640 + $0x90] sm:$0xf]
        %v4730 = vsel %vm4642, %v4530, %v4729
        %4731 = vst [vmem:[%s4640 + $0x90] sm:$0xf] %v4730
        %4732 = vst.msk [vmem:[%s4640 + $0x94] sm:$0xf] %vm4168, %v4539
        %v4733 = vld [vmem:[%s4640 + $0x98] sm:$0x1]
        %v4734 = vsel %vm4648, %v4540, %v4733
        %4735 = vst [vmem:[%s4640 + $0x98] sm:$0x1] %v4734
        %v4736 = vld [vmem:[%s4640 + $0x9c] sm:$0xf]
        %v4737 = vsel %vm4642, %v4547, %v4736
        %4738 = vst [vmem:[%s4640 + $0x9c] sm:$0xf] %v4737
        %4739 = vst.msk [vmem:[%s4640 + $0xa0] sm:$0xf] %vm4168, %v4556
        %v4740 = vld [vmem:[%s4640 + $0xa4] sm:$0x1]
        %v4741 = vsel %vm4648, %v4557, %v4740
        %4742 = vst [vmem:[%s4640 + $0xa4] sm:$0x1] %v4741
        %v4743 = vld [vmem:[%s4640 + $0xa8] sm:$0xf]
        %v4744 = vsel %vm4642, %v4564, %v4743
        %4745 = vst [vmem:[%s4640 + $0xa8] sm:$0xf] %v4744
        %4746 = vst.msk [vmem:[%s4640 + $0xac] sm:$0xf] %vm4168, %v4573
        %v4747 = vld [vmem:[%s4640 + $0xb0] sm:$0x1]
        %v4748 = vsel %vm4648, %v4574, %v4747
        %4749 = vst [vmem:[%s4640 + $0xb0] sm:$0x1] %v4748
        %v4750 = vld [vmem:[%s4640 + $0xb4] sm:$0xf]
        %v4751 = vsel %vm4642, %v4581, %v4750
        %4752 = vst [vmem:[%s4640 + $0xb4] sm:$0xf] %v4751
        %4753 = vst.msk [vmem:[%s4640 + $0xb8] sm:$0xf] %vm4168, %v4590
        %v4754 = vld [vmem:[%s4640 + $0xbc] sm:$0x1]
        %v4755 = vsel %vm4648, %v4591, %v4754
        %4756 = vst [vmem:[%s4640 + $0xbc] sm:$0x1] %v4755
        %v4757 = vld [vmem:[#allocation4] sm:$0xf]
        %v4758 = vld [vmem:[#allocation4 + $0x4] sm:$0xf]
        %v4759 = vld [vmem:[#allocation4 + $0xc] sm:$0xf]
        %v4760 = vld [vmem:[#allocation4 + $0x10] sm:$0xf]
        %v4761 = vld [vmem:[#allocation4 + $0x18] sm:$0xf]
        %v4762 = vld [vmem:[#allocation4 + $0x1c] sm:$0xf]
        %v4763 = vld [vmem:[#allocation4 + $0x24] sm:$0xf]
        %v4764 = vld [vmem:[#allocation4 + $0x28] sm:$0xf]
        %v4765 = vld [vmem:[#allocation4 + $0x30] sm:$0xf]
        %v4766 = vld [vmem:[#allocation4 + $0x34] sm:$0xf]
        %v4767 = vld [vmem:[#allocation4 + $0x3c] sm:$0xf]
        %v4768 = vld [vmem:[#allocation4 + $0x40] sm:$0xf]
        %v4769 = vld [vmem:[#allocation4 + $0x48] sm:$0xf]
        %v4770 = vld [vmem:[#allocation4 + $0x4c] sm:$0xf]
        %v4771 = vld [vmem:[#allocation4 + $0x54] sm:$0xf]
        %v4772 = vld [vmem:[#allocation4 + $0x58] sm:$0xf]
        %v4773 = vld [vmem:[#allocation4 + $0x60] sm:$0xf]
        %v4774 = vld [vmem:[#allocation4 + $0x64] sm:$0xf]
        %v4775 = vld [vmem:[#allocation4 + $0x6c] sm:$0xf]
        %v4776 = vld [vmem:[#allocation4 + $0x70] sm:$0xf]
        %v4777 = vld [vmem:[#allocation4 + $0x78] sm:$0xf]
        %v4778 = vld [vmem:[#allocation4 + $0x7c] sm:$0xf]
        %v4779 = vld [vmem:[#allocation4 + $0x84] sm:$0xf]
        %v4780 = vld [vmem:[#allocation4 + $0x88] sm:$0xf]
        %v4781 = vld [vmem:[#allocation4 + $0x90] sm:$0xf]
        %v4782 = vld [vmem:[#allocation4 + $0x94] sm:$0xf]
        %v4783 = vld [vmem:[#allocation4 + $0x9c] sm:$0xf]
        %v4784 = vld [vmem:[#allocation4 + $0xa0] sm:$0xf]
        %v4785 = vld [vmem:[#allocation4 + $0xa8] sm:$0xf]
        %v4786 = vld [vmem:[#allocation4 + $0xac] sm:$0xf]
        %v4787 = vld [vmem:[#allocation4 + $0xb4] sm:$0xf]
        %v4788 = vld [vmem:[#allocation4 + $0xb8] sm:$0xf]
        %v4821 = vunpack.c.l.b16 %v4757
        %v4822 = vunpack.c.l.b16 %v4758
        %v4823 = vunpack.c.l.b16 %v4759
        %v4824 = vunpack.c.l.b16 %v4760
        %v4825 = vunpack.c.l.b16 %v4761
        %v4826 = vunpack.c.l.b16 %v4762
        %v4827 = vunpack.c.l.b16 %v4763
        %v4828 = vunpack.c.l.b16 %v4764
        %v4829 = vunpack.c.l.b16 %v4765
        %v4830 = vunpack.c.l.b16 %v4766
        %v4831 = vunpack.c.l.b16 %v4767
        %v4832 = vunpack.c.l.b16 %v4768
        %v4833 = vunpack.c.l.b16 %v4769
        %v4834 = vunpack.c.l.b16 %v4770
        %v4835 = vunpack.c.l.b16 %v4771
        %v4836 = vunpack.c.l.b16 %v4772
        %v4837 = vunpack.c.l.b16 %v4773
        %v4838 = vunpack.c.l.b16 %v4774
        %v4839 = vunpack.c.l.b16 %v4775
        %v4840 = vunpack.c.l.b16 %v4776
        %v4841 = vunpack.c.l.b16 %v4777
        %v4842 = vunpack.c.l.b16 %v4778
        %v4843 = vunpack.c.l.b16 %v4779
        %v4844 = vunpack.c.l.b16 %v4780
        %v4845 = vunpack.c.l.b16 %v4781
        %v4846 = vunpack.c.l.b16 %v4782
        %v4847 = vunpack.c.l.b16 %v4783
        %v4848 = vunpack.c.l.b16 %v4784
        %v4849 = vunpack.c.l.b16 %v4785
        %v4850 = vunpack.c.l.b16 %v4786
        %v4851 = vunpack.c.l.b16 %v4787
        %v4852 = vunpack.c.l.b16 %v4788
        %v4853 = vpack.c.b16 %v4822, %v4821
        %v4854 = vpack.c.b16 %v4824, %v4823
        %v4855 = vpack.c.b16 %v4826, %v4825
        %v4856 = vpack.c.b16 %v4828, %v4827
        %v4857 = vpack.c.b16 %v4830, %v4829
        %v4858 = vpack.c.b16 %v4832, %v4831
        %v4859 = vpack.c.b16 %v4834, %v4833
        %v4860 = vpack.c.b16 %v4836, %v4835
        %v4861 = vpack.c.b16 %v4838, %v4837
        %v4862 = vpack.c.b16 %v4840, %v4839
        %v4863 = vpack.c.b16 %v4842, %v4841
        %v4864 = vpack.c.b16 %v4844, %v4843
        %v4865 = vpack.c.b16 %v4846, %v4845
        %v4866 = vpack.c.b16 %v4848, %v4847
        %v4867 = vpack.c.b16 %v4850, %v4849
        %v4868 = vpack.c.b16 %v4852, %v4851
        %4885 = vst.msk [vmem:[#allocation5] sm:$0xff] %vm3707, %v4853
        %4886 = vst.msk [vmem:[#allocation5 + $0x18] sm:$0xff] %vm3707, %v4854
        %4887 = vst.msk [vmem:[#allocation5 + $0x30] sm:$0xff] %vm3707, %v4855
        %4888 = vst.msk [vmem:[#allocation5 + $0x48] sm:$0xff] %vm3707, %v4856
        %4889 = vst.msk [vmem:[#allocation5 + $0x60] sm:$0xff] %vm3707, %v4857
        %4890 = vst.msk [vmem:[#allocation5 + $0x78] sm:$0xff] %vm3707, %v4858
        %4891 = vst.msk [vmem:[#allocation5 + $0x90] sm:$0xff] %vm3707, %v4859
        %4892 = vst.msk [vmem:[#allocation5 + $0xa8] sm:$0xff] %vm3707, %v4860
        %4893 = vst.msk [vmem:[#allocation5 + $0xc0] sm:$0xff] %vm3707, %v4861
        %4894 = vst.msk [vmem:[#allocation5 + $0xd8] sm:$0xff] %vm3707, %v4862
        %4895 = vst.msk [vmem:[#allocation5 + $0xf0] sm:$0xff] %vm3707, %v4863
        %4896 = vst.msk [vmem:[#allocation5 + $0x108] sm:$0xff] %vm3707, %v4864
        %4897 = vst.msk [vmem:[#allocation5 + $0x120] sm:$0xff] %vm3707, %v4865
        %4898 = vst.msk [vmem:[#allocation5 + $0x138] sm:$0xff] %vm3707, %v4866
        %4899 = vst.msk [vmem:[#allocation5 + $0x150] sm:$0xff] %vm3707, %v4867
        %4900 = vst.msk [vmem:[#allocation5 + $0x168] sm:$0xff] %vm3707, %v4868
        %v4901 = vld [vmem:[#allocation4] sm:$0xf]
        %v4902 = vld [vmem:[#allocation4 + $0x4] sm:$0xf]
        %v4903 = vld [vmem:[#allocation4 + $0x8] sm:$0x1]
        %v4904 = vld [vmem:[#allocation4 + $0xc] sm:$0xf]
        %v4905 = vld [vmem:[#allocation4 + $0x10] sm:$0xf]
        %v4906 = vld [vmem:[#allocation4 + $0x14] sm:$0x1]
        %v4907 = vld [vmem:[#allocation4 + $0x18] sm:$0xf]
        %v4908 = vld [vmem:[#allocation4 + $0x1c] sm:$0xf]
        %v4909 = vld [vmem:[#allocation4 + $0x20] sm:$0x1]
        %v4910 = vld [vmem:[#allocation4 + $0x24] sm:$0xf]
        %v4911 = vld [vmem:[#allocation4 + $0x28] sm:$0xf]
        %v4912 = vld [vmem:[#allocation4 + $0x2c] sm:$0x1]
        %v4913 = vld [vmem:[#allocation4 + $0x30] sm:$0xf]
        %v4914 = vld [vmem:[#allocation4 + $0x34] sm:$0xf]
        %v4915 = vld [vmem:[#allocation4 + $0x38] sm:$0x1]
        %v4916 = vld [vmem:[#allocation4 + $0x3c] sm:$0xf]
        %v4917 = vld [vmem:[#allocation4 + $0x40] sm:$0xf]
        %v4918 = vld [vmem:[#allocation4 + $0x44] sm:$0x1]
        %v4919 = vld [vmem:[#allocation4 + $0x48] sm:$0xf]
        %v4920 = vld [vmem:[#allocation4 + $0x4c] sm:$0xf]
        %v4921 = vld [vmem:[#allocation4 + $0x50] sm:$0x1]
        %v4922 = vld [vmem:[#allocation4 + $0x54] sm:$0xf]
        %v4923 = vld [vmem:[#allocation4 + $0x58] sm:$0xf]
        %v4924 = vld [vmem:[#allocation4 + $0x5c] sm:$0x1]
        %v4925 = vld [vmem:[#allocation4 + $0x60] sm:$0xf]
        %v4926 = vld [vmem:[#allocation4 + $0x64] sm:$0xf]
        %v4927 = vld [vmem:[#allocation4 + $0x68] sm:$0x1]
        %v4928 = vld [vmem:[#allocation4 + $0x6c] sm:$0xf]
        %v4929 = vld [vmem:[#allocation4 + $0x70] sm:$0xf]
        %v4930 = vld [vmem:[#allocation4 + $0x74] sm:$0x1]
        %v4931 = vld [vmem:[#allocation4 + $0x78] sm:$0xf]
        %v4932 = vld [vmem:[#allocation4 + $0x7c] sm:$0xf]
        %v4933 = vld [vmem:[#allocation4 + $0x80] sm:$0x1]
        %v4934 = vld [vmem:[#allocation4 + $0x84] sm:$0xf]
        %v4935 = vld [vmem:[#allocation4 + $0x88] sm:$0xf]
        %v4936 = vld [vmem:[#allocation4 + $0x8c] sm:$0x1]
        %v4937 = vld [vmem:[#allocation4 + $0x90] sm:$0xf]
        %v4938 = vld [vmem:[#allocation4 + $0x94] sm:$0xf]
        %v4939 = vld [vmem:[#allocation4 + $0x98] sm:$0x1]
        %v4940 = vld [vmem:[#allocation4 + $0x9c] sm:$0xf]
        %v4941 = vld [vmem:[#allocation4 + $0xa0] sm:$0xf]
        %v4942 = vld [vmem:[#allocation4 + $0xa4] sm:$0x1]
        %v4943 = vld [vmem:[#allocation4 + $0xa8] sm:$0xf]
        %v4944 = vld [vmem:[#allocation4 + $0xac] sm:$0xf]
        %v4945 = vld [vmem:[#allocation4 + $0xb0] sm:$0x1]
        %v4946 = vld [vmem:[#allocation4 + $0xb4] sm:$0xf]
        %v4947 = vld [vmem:[#allocation4 + $0xb8] sm:$0xf]
        %v4948 = vld [vmem:[#allocation4 + $0xbc] sm:$0x1]
        %v4997 = vunpack.c.l.b16 %v4901
        %v4998 = vunpack.c.l.b16 %v4902
        %v4999 = vunpack.c.l.b16 %v4903
        %v5000 = vunpack.c.l.b16 %v4904
        %v5001 = vunpack.c.l.b16 %v4905
        %v5002 = vunpack.c.l.b16 %v4906
        %v5003 = vunpack.c.l.b16 %v4907
        %v5004 = vunpack.c.l.b16 %v4908
        %v5005 = vunpack.c.l.b16 %v4909
        %v5006 = vunpack.c.l.b16 %v4910
        %v5007 = vunpack.c.l.b16 %v4911
        %v5008 = vunpack.c.l.b16 %v4912
        %v5009 = vunpack.c.l.b16 %v4913
        %v5010 = vunpack.c.l.b16 %v4914
        %v5011 = vunpack.c.l.b16 %v4915
        %v5012 = vunpack.c.l.b16 %v4916
        %v5013 = vunpack.c.l.b16 %v4917
        %v5014 = vunpack.c.l.b16 %v4918
        %v5015 = vunpack.c.l.b16 %v4919
        %v5016 = vunpack.c.l.b16 %v4920
        %v5017 = vunpack.c.l.b16 %v4921
        %v5018 = vunpack.c.l.b16 %v4922
        %v5019 = vunpack.c.l.b16 %v4923
        %v5020 = vunpack.c.l.b16 %v4924
        %v5021 = vunpack.c.l.b16 %v4925
        %v5022 = vunpack.c.l.b16 %v4926
        %v5023 = vunpack.c.l.b16 %v4927
        %v5024 = vunpack.c.l.b16 %v4928
        %v5025 = vunpack.c.l.b16 %v4929
        %v5026 = vunpack.c.l.b16 %v4930
        %v5027 = vunpack.c.l.b16 %v4931
        %v5028 = vunpack.c.l.b16 %v4932
        %v5029 = vunpack.c.l.b16 %v4933
        %v5030 = vunpack.c.l.b16 %v4934
        %v5031 = vunpack.c.l.b16 %v4935
        %v5032 = vunpack.c.l.b16 %v4936
        %v5033 = vunpack.c.l.b16 %v4937
        %v5034 = vunpack.c.l.b16 %v4938
        %v5035 = vunpack.c.l.b16 %v4939
        %v5036 = vunpack.c.l.b16 %v4940
        %v5037 = vunpack.c.l.b16 %v4941
        %v5038 = vunpack.c.l.b16 %v4942
        %v5039 = vunpack.c.l.b16 %v4943
        %v5040 = vunpack.c.l.b16 %v4944
        %v5041 = vunpack.c.l.b16 %v4945
        %v5042 = vunpack.c.l.b16 %v4946
        %v5043 = vunpack.c.l.b16 %v4947
        %v5044 = vunpack.c.l.b16 %v4948
        %v5045 = vpack.c.b16 %v4998, %v4997
        %v5046 = vpack.c.b16 %v4999, %v4999
        %v5047 = vpack.c.b16 %v5001, %v5000
        %v5048 = vpack.c.b16 %v5002, %v5002
        %v5049 = vpack.c.b16 %v5004, %v5003
        %v5050 = vpack.c.b16 %v5005, %v5005
        %v5051 = vpack.c.b16 %v5007, %v5006
        %v5052 = vpack.c.b16 %v5008, %v5008
        %v5053 = vpack.c.b16 %v5010, %v5009
        %v5054 = vpack.c.b16 %v5011, %v5011
        %v5055 = vpack.c.b16 %v5013, %v5012
        %v5056 = vpack.c.b16 %v5014, %v5014
        %v5057 = vpack.c.b16 %v5016, %v5015
        %v5058 = vpack.c.b16 %v5017, %v5017
        %v5059 = vpack.c.b16 %v5019, %v5018
        %v5060 = vpack.c.b16 %v5020, %v5020
        %v5061 = vpack.c.b16 %v5022, %v5021
        %v5062 = vpack.c.b16 %v5023, %v5023
        %v5063 = vpack.c.b16 %v5025, %v5024
        %v5064 = vpack.c.b16 %v5026, %v5026
        %v5065 = vpack.c.b16 %v5028, %v5027
        %v5066 = vpack.c.b16 %v5029, %v5029
        %v5067 = vpack.c.b16 %v5031, %v5030
        %v5068 = vpack.c.b16 %v5032, %v5032
        %v5069 = vpack.c.b16 %v5034, %v5033
        %v5070 = vpack.c.b16 %v5035, %v5035
        %v5071 = vpack.c.b16 %v5037, %v5036
        %v5072 = vpack.c.b16 %v5038, %v5038
        %v5073 = vpack.c.b16 %v5040, %v5039
        %v5074 = vpack.c.b16 %v5041, %v5041
        %v5075 = vpack.c.b16 %v5043, %v5042
        %v5076 = vpack.c.b16 %v5044, %v5044
        %v5078 = vshrl.u32 %v5045, 16
        %v5080 = vshll.u32 %v5045, 16
        %v5082 = vrot.slane %v5080, 1
        %v5083 = vor.u32 %v5078, %v5082
        %v5085 = vshll.u32 %v5046, 16
        %v5087 = vrot.slane %v5085, 1
        %v5088 = vsel %vm1101, %v5083, %v5087
        %v5090 = vshrl.u32 %v5047, 16
        %v5092 = vshll.u32 %v5047, 16
        %v5094 = vrot.slane %v5092, 1
        %v5095 = vor.u32 %v5090, %v5094
        %v5097 = vshll.u32 %v5048, 16
        %v5099 = vrot.slane %v5097, 1
        %v5100 = vsel %vm1101, %v5095, %v5099
        %v5102 = vshrl.u32 %v5049, 16
        %v5104 = vshll.u32 %v5049, 16
        %v5106 = vrot.slane %v5104, 1
        %v5107 = vor.u32 %v5102, %v5106
        %v5109 = vshll.u32 %v5050, 16
        %v5111 = vrot.slane %v5109, 1
        %v5112 = vsel %vm1101, %v5107, %v5111
        %v5114 = vshrl.u32 %v5051, 16
        %v5116 = vshll.u32 %v5051, 16
        %v5118 = vrot.slane %v5116, 1
        %v5119 = vor.u32 %v5114, %v5118
        %v5121 = vshll.u32 %v5052, 16
        %v5123 = vrot.slane %v5121, 1
        %v5124 = vsel %vm1101, %v5119, %v5123
        %v5126 = vshrl.u32 %v5053, 16
        %v5128 = vshll.u32 %v5053, 16
        %v5130 = vrot.slane %v5128, 1
        %v5131 = vor.u32 %v5126, %v5130
        %v5133 = vshll.u32 %v5054, 16
        %v5135 = vrot.slane %v5133, 1
        %v5136 = vsel %vm1101, %v5131, %v5135
        %v5138 = vshrl.u32 %v5055, 16
        %v5140 = vshll.u32 %v5055, 16
        %v5142 = vrot.slane %v5140, 1
        %v5143 = vor.u32 %v5138, %v5142
        %v5145 = vshll.u32 %v5056, 16
        %v5147 = vrot.slane %v5145, 1
        %v5148 = vsel %vm1101, %v5143, %v5147
        %v5150 = vshrl.u32 %v5057, 16
        %v5152 = vshll.u32 %v5057, 16
        %v5154 = vrot.slane %v5152, 1
        %v5155 = vor.u32 %v5150, %v5154
        %v5157 = vshll.u32 %v5058, 16
        %v5159 = vrot.slane %v5157, 1
        %v5160 = vsel %vm1101, %v5155, %v5159
        %v5162 = vshrl.u32 %v5059, 16
        %v5164 = vshll.u32 %v5059, 16
        %v5166 = vrot.slane %v5164, 1
        %v5167 = vor.u32 %v5162, %v5166
        %v5169 = vshll.u32 %v5060, 16
        %v5171 = vrot.slane %v5169, 1
        %v5172 = vsel %vm1101, %v5167, %v5171
        %v5174 = vshrl.u32 %v5061, 16
        %v5176 = vshll.u32 %v5061, 16
        %v5178 = vrot.slane %v5176, 1
        %v5179 = vor.u32 %v5174, %v5178
        %v5181 = vshll.u32 %v5062, 16
        %v5183 = vrot.slane %v5181, 1
        %v5184 = vsel %vm1101, %v5179, %v5183
        %v5186 = vshrl.u32 %v5063, 16
        %v5188 = vshll.u32 %v5063, 16
        %v5190 = vrot.slane %v5188, 1
        %v5191 = vor.u32 %v5186, %v5190
        %v5193 = vshll.u32 %v5064, 16
        %v5195 = vrot.slane %v5193, 1
        %v5196 = vsel %vm1101, %v5191, %v5195
        %v5198 = vshrl.u32 %v5065, 16
        %v5200 = vshll.u32 %v5065, 16
        %v5202 = vrot.slane %v5200, 1
        %v5203 = vor.u32 %v5198, %v5202
        %v5205 = vshll.u32 %v5066, 16
        %v5207 = vrot.slane %v5205, 1
        %v5208 = vsel %vm1101, %v5203, %v5207
        %v5210 = vshrl.u32 %v5067, 16
        %v5212 = vshll.u32 %v5067, 16
        %v5214 = vrot.slane %v5212, 1
        %v5215 = vor.u32 %v5210, %v5214
        %v5217 = vshll.u32 %v5068, 16
        %v5219 = vrot.slane %v5217, 1
        %v5220 = vsel %vm1101, %v5215, %v5219
        %v5222 = vshrl.u32 %v5069, 16
        %v5224 = vshll.u32 %v5069, 16
        %v5226 = vrot.slane %v5224, 1
        %v5227 = vor.u32 %v5222, %v5226
        %v5229 = vshll.u32 %v5070, 16
        %v5231 = vrot.slane %v5229, 1
        %v5232 = vsel %vm1101, %v5227, %v5231
        %v5234 = vshrl.u32 %v5071, 16
        %v5236 = vshll.u32 %v5071, 16
        %v5238 = vrot.slane %v5236, 1
        %v5239 = vor.u32 %v5234, %v5238
        %v5241 = vshll.u32 %v5072, 16
        %v5243 = vrot.slane %v5241, 1
        %v5244 = vsel %vm1101, %v5239, %v5243
        %v5246 = vshrl.u32 %v5073, 16
        %v5248 = vshll.u32 %v5073, 16
        %v5250 = vrot.slane %v5248, 1
        %v5251 = vor.u32 %v5246, %v5250
        %v5253 = vshll.u32 %v5074, 16
        %v5255 = vrot.slane %v5253, 1
        %v5256 = vsel %vm1101, %v5251, %v5255
        %v5258 = vshrl.u32 %v5075, 16
        %v5260 = vshll.u32 %v5075, 16
        %v5262 = vrot.slane %v5260, 1
        %v5263 = vor.u32 %v5258, %v5262
        %v5265 = vshll.u32 %v5076, 16
        %v5267 = vrot.slane %v5265, 1
        %v5268 = vsel %vm1101, %v5263, %v5267
        %5269 = vrot.lane.b32.xlu0 %v5088, 32
        %v5270 = vpop.permute.xlu0 %5269
        %5271 = vrot.lane.b32.xlu0 %v5100, 32
        %v5272 = vpop.permute.xlu0 %5271
        %5273 = vrot.lane.b32.xlu0 %v5112, 32
        %v5274 = vpop.permute.xlu0 %5273
        %5275 = vrot.lane.b32.xlu0 %v5124, 32
        %v5276 = vpop.permute.xlu0 %5275
        %5277 = vrot.lane.b32.xlu0 %v5136, 32
        %v5278 = vpop.permute.xlu0 %5277
        %5279 = vrot.lane.b32.xlu0 %v5148, 32
        %v5280 = vpop.permute.xlu0 %5279
        %5281 = vrot.lane.b32.xlu0 %v5160, 32
        %v5282 = vpop.permute.xlu0 %5281
        %5283 = vrot.lane.b32.xlu0 %v5172, 32
        %v5284 = vpop.permute.xlu0 %5283
        %5285 = vrot.lane.b32.xlu0 %v5184, 32
        %v5286 = vpop.permute.xlu0 %5285
        %5287 = vrot.lane.b32.xlu0 %v5196, 32
        %v5288 = vpop.permute.xlu0 %5287
        %5289 = vrot.lane.b32.xlu0 %v5208, 32
        %v5290 = vpop.permute.xlu0 %5289
        %5291 = vrot.lane.b32.xlu0 %v5220, 32
        %v5292 = vpop.permute.xlu0 %5291
        %5293 = vrot.lane.b32.xlu0 %v5232, 32
        %v5294 = vpop.permute.xlu0 %5293
        %5295 = vrot.lane.b32.xlu0 %v5244, 32
        %v5296 = vpop.permute.xlu0 %5295
        %5297 = vrot.lane.b32.xlu0 %v5256, 32
        %v5298 = vpop.permute.xlu0 %5297
        %5299 = vrot.lane.b32.xlu0 %v5268, 32
        %v5300 = vpop.permute.xlu0 %5299
        %vm5317 = vcmask 523520
        %5318 = vst.msk [vmem:[#allocation5] sm:$0xff] %vm5317, %v5270
        %5319 = vst.msk [vmem:[#allocation5 + $0x18] sm:$0xff] %vm5317, %v5272
        %5320 = vst.msk [vmem:[#allocation5 + $0x30] sm:$0xff] %vm5317, %v5274
        %5321 = vst.msk [vmem:[#allocation5 + $0x48] sm:$0xff] %vm5317, %v5276
        %5322 = vst.msk [vmem:[#allocation5 + $0x60] sm:$0xff] %vm5317, %v5278
        %5323 = vst.msk [vmem:[#allocation5 + $0x78] sm:$0xff] %vm5317, %v5280
        %5324 = vst.msk [vmem:[#allocation5 + $0x90] sm:$0xff] %vm5317, %v5282
        %5325 = vst.msk [vmem:[#allocation5 + $0xa8] sm:$0xff] %vm5317, %v5284
        %5326 = vst.msk [vmem:[#allocation5 + $0xc0] sm:$0xff] %vm5317, %v5286
        %5327 = vst.msk [vmem:[#allocation5 + $0xd8] sm:$0xff] %vm5317, %v5288
        %5328 = vst.msk [vmem:[#allocation5 + $0xf0] sm:$0xff] %vm5317, %v5290
        %5329 = vst.msk [vmem:[#allocation5 + $0x108] sm:$0xff] %vm5317, %v5292
        %5330 = vst.msk [vmem:[#allocation5 + $0x120] sm:$0xff] %vm5317, %v5294
        %5331 = vst.msk [vmem:[#allocation5 + $0x138] sm:$0xff] %vm5317, %v5296
        %5332 = vst.msk [vmem:[#allocation5 + $0x150] sm:$0xff] %vm5317, %v5298
        %5333 = vst.msk [vmem:[#allocation5 + $0x168] sm:$0xff] %vm5317, %v5300
        %v5334 = vld [vmem:[#allocation4] sm:$0xe]
        %v5335 = vld [vmem:[#allocation4 + $0x4] sm:$0xf]
        %v5336 = vld [vmem:[#allocation4 + $0x8] sm:$0x1]
        %v5337 = vld [vmem:[#allocation4 + $0xc] sm:$0xe]
        %v5338 = vld [vmem:[#allocation4 + $0x10] sm:$0xf]
        %v5339 = vld [vmem:[#allocation4 + $0x14] sm:$0x1]
        %v5340 = vld [vmem:[#allocation4 + $0x18] sm:$0xe]
        %v5341 = vld [vmem:[#allocation4 + $0x1c] sm:$0xf]
        %v5342 = vld [vmem:[#allocation4 + $0x20] sm:$0x1]
        %v5343 = vld [vmem:[#allocation4 + $0x24] sm:$0xe]
        %v5344 = vld [vmem:[#allocation4 + $0x28] sm:$0xf]
        %v5345 = vld [vmem:[#allocation4 + $0x2c] sm:$0x1]
        %v5346 = vld [vmem:[#allocation4 + $0x30] sm:$0xe]
        %v5347 = vld [vmem:[#allocation4 + $0x34] sm:$0xf]
        %v5348 = vld [vmem:[#allocation4 + $0x38] sm:$0x1]
        %v5349 = vld [vmem:[#allocation4 + $0x3c] sm:$0xe]
        %v5350 = vld [vmem:[#allocation4 + $0x40] sm:$0xf]
        %v5351 = vld [vmem:[#allocation4 + $0x44] sm:$0x1]
        %v5352 = vld [vmem:[#allocation4 + $0x48] sm:$0xe]
        %v5353 = vld [vmem:[#allocation4 + $0x4c] sm:$0xf]
        %v5354 = vld [vmem:[#allocation4 + $0x50] sm:$0x1]
        %v5355 = vld [vmem:[#allocation4 + $0x54] sm:$0xe]
        %v5356 = vld [vmem:[#allocation4 + $0x58] sm:$0xf]
        %v5357 = vld [vmem:[#allocation4 + $0x5c] sm:$0x1]
        %v5358 = vld [vmem:[#allocation4 + $0x60] sm:$0xe]
        %v5359 = vld [vmem:[#allocation4 + $0x64] sm:$0xf]
        %v5360 = vld [vmem:[#allocation4 + $0x68] sm:$0x1]
        %v5361 = vld [vmem:[#allocation4 + $0x6c] sm:$0xe]
        %v5362 = vld [vmem:[#allocation4 + $0x70] sm:$0xf]
        %v5363 = vld [vmem:[#allocation4 + $0x74] sm:$0x1]
        %v5364 = vld [vmem:[#allocation4 + $0x78] sm:$0xe]
        %v5365 = vld [vmem:[#allocation4 + $0x7c] sm:$0xf]
        %v5366 = vld [vmem:[#allocation4 + $0x80] sm:$0x1]
        %v5367 = vld [vmem:[#allocation4 + $0x84] sm:$0xe]
        %v5368 = vld [vmem:[#allocation4 + $0x88] sm:$0xf]
        %v5369 = vld [vmem:[#allocation4 + $0x8c] sm:$0x1]
        %v5370 = vld [vmem:[#allocation4 + $0x90] sm:$0xe]
        %v5371 = vld [vmem:[#allocation4 + $0x94] sm:$0xf]
        %v5372 = vld [vmem:[#allocation4 + $0x98] sm:$0x1]
        %v5373 = vld [vmem:[#allocation4 + $0x9c] sm:$0xe]
        %v5374 = vld [vmem:[#allocation4 + $0xa0] sm:$0xf]
        %v5375 = vld [vmem:[#allocation4 + $0xa4] sm:$0x1]
        %v5376 = vld [vmem:[#allocation4 + $0xa8] sm:$0xe]
        %v5377 = vld [vmem:[#allocation4 + $0xac] sm:$0xf]
        %v5378 = vld [vmem:[#allocation4 + $0xb0] sm:$0x1]
        %v5379 = vld [vmem:[#allocation4 + $0xb4] sm:$0xe]
        %v5380 = vld [vmem:[#allocation4 + $0xb8] sm:$0xf]
        %v5381 = vld [vmem:[#allocation4 + $0xbc] sm:$0x1]
        %v5430 = vunpack.c.l.b16 %v5334
        %v5431 = vunpack.c.l.b16 %v5335
        %v5432 = vunpack.c.l.b16 %v5336
        %v5433 = vunpack.c.l.b16 %v5337
        %v5434 = vunpack.c.l.b16 %v5338
        %v5435 = vunpack.c.l.b16 %v5339
        %v5436 = vunpack.c.l.b16 %v5340
        %v5437 = vunpack.c.l.b16 %v5341
        %v5438 = vunpack.c.l.b16 %v5342
        %v5439 = vunpack.c.l.b16 %v5343
        %v5440 = vunpack.c.l.b16 %v5344
        %v5441 = vunpack.c.l.b16 %v5345
        %v5442 = vunpack.c.l.b16 %v5346
        %v5443 = vunpack.c.l.b16 %v5347
        %v5444 = vunpack.c.l.b16 %v5348
        %v5445 = vunpack.c.l.b16 %v5349
        %v5446 = vunpack.c.l.b16 %v5350
        %v5447 = vunpack.c.l.b16 %v5351
        %v5448 = vunpack.c.l.b16 %v5352
        %v5449 = vunpack.c.l.b16 %v5353
        %v5450 = vunpack.c.l.b16 %v5354
        %v5451 = vunpack.c.l.b16 %v5355
        %v5452 = vunpack.c.l.b16 %v5356
        %v5453 = vunpack.c.l.b16 %v5357
        %v5454 = vunpack.c.l.b16 %v5358
        %v5455 = vunpack.c.l.b16 %v5359
        %v5456 = vunpack.c.l.b16 %v5360
        %v5457 = vunpack.c.l.b16 %v5361
        %v5458 = vunpack.c.l.b16 %v5362
        %v5459 = vunpack.c.l.b16 %v5363
        %v5460 = vunpack.c.l.b16 %v5364
        %v5461 = vunpack.c.l.b16 %v5365
        %v5462 = vunpack.c.l.b16 %v5366
        %v5463 = vunpack.c.l.b16 %v5367
        %v5464 = vunpack.c.l.b16 %v5368
        %v5465 = vunpack.c.l.b16 %v5369
        %v5466 = vunpack.c.l.b16 %v5370
        %v5467 = vunpack.c.l.b16 %v5371
        %v5468 = vunpack.c.l.b16 %v5372
        %v5469 = vunpack.c.l.b16 %v5373
        %v5470 = vunpack.c.l.b16 %v5374
        %v5471 = vunpack.c.l.b16 %v5375
        %v5472 = vunpack.c.l.b16 %v5376
        %v5473 = vunpack.c.l.b16 %v5377
        %v5474 = vunpack.c.l.b16 %v5378
        %v5475 = vunpack.c.l.b16 %v5379
        %v5476 = vunpack.c.l.b16 %v5380
        %v5477 = vunpack.c.l.b16 %v5381
        %v5478 = vpack.c.b16 %v5431, %v5430
        %v5479 = vpack.c.b16 %v5432, %v5432
        %v5480 = vpack.c.b16 %v5434, %v5433
        %v5481 = vpack.c.b16 %v5435, %v5435
        %v5482 = vpack.c.b16 %v5437, %v5436
        %v5483 = vpack.c.b16 %v5438, %v5438
        %v5484 = vpack.c.b16 %v5440, %v5439
        %v5485 = vpack.c.b16 %v5441, %v5441
        %v5486 = vpack.c.b16 %v5443, %v5442
        %v5487 = vpack.c.b16 %v5444, %v5444
        %v5488 = vpack.c.b16 %v5446, %v5445
        %v5489 = vpack.c.b16 %v5447, %v5447
        %v5490 = vpack.c.b16 %v5449, %v5448
        %v5491 = vpack.c.b16 %v5450, %v5450
        %v5492 = vpack.c.b16 %v5452, %v5451
        %v5493 = vpack.c.b16 %v5453, %v5453
        %v5494 = vpack.c.b16 %v5455, %v5454
        %v5495 = vpack.c.b16 %v5456, %v5456
        %v5496 = vpack.c.b16 %v5458, %v5457
        %v5497 = vpack.c.b16 %v5459, %v5459
        %v5498 = vpack.c.b16 %v5461, %v5460
        %v5499 = vpack.c.b16 %v5462, %v5462
        %v5500 = vpack.c.b16 %v5464, %v5463
        %v5501 = vpack.c.b16 %v5465, %v5465
        %v5502 = vpack.c.b16 %v5467, %v5466
        %v5503 = vpack.c.b16 %v5468, %v5468
        %v5504 = vpack.c.b16 %v5470, %v5469
        %v5505 = vpack.c.b16 %v5471, %v5471
        %v5506 = vpack.c.b16 %v5473, %v5472
        %v5507 = vpack.c.b16 %v5474, %v5474
        %v5508 = vpack.c.b16 %v5476, %v5475
        %v5509 = vpack.c.b16 %v5477, %v5477
        %v5510 = vrot.slane %v5478, 1
        %v5511 = vrot.slane %v5479, 1
        %v5512 = vsel %vm1535, %v5510, %v5511
        %v5513 = vrot.slane %v5480, 1
        %v5514 = vrot.slane %v5481, 1
        %v5515 = vsel %vm1535, %v5513, %v5514
        %v5516 = vrot.slane %v5482, 1
        %v5517 = vrot.slane %v5483, 1
        %v5518 = vsel %vm1535, %v5516, %v5517
        %v5519 = vrot.slane %v5484, 1
        %v5520 = vrot.slane %v5485, 1
        %v5521 = vsel %vm1535, %v5519, %v5520
        %v5522 = vrot.slane %v5486, 1
        %v5523 = vrot.slane %v5487, 1
        %v5524 = vsel %vm1535, %v5522, %v5523
        %v5525 = vrot.slane %v5488, 1
        %v5526 = vrot.slane %v5489, 1
        %v5527 = vsel %vm1535, %v5525, %v5526
        %v5528 = vrot.slane %v5490, 1
        %v5529 = vrot.slane %v5491, 1
        %v5530 = vsel %vm1535, %v5528, %v5529
        %v5531 = vrot.slane %v5492, 1
        %v5532 = vrot.slane %v5493, 1
        %v5533 = vsel %vm1535, %v5531, %v5532
        %v5534 = vrot.slane %v5494, 1
        %v5535 = vrot.slane %v5495, 1
        %v5536 = vsel %vm1535, %v5534, %v5535
        %v5537 = vrot.slane %v5496, 1
        %v5538 = vrot.slane %v5497, 1
        %v5539 = vsel %vm1535, %v5537, %v5538
        %v5540 = vrot.slane %v5498, 1
        %v5541 = vrot.slane %v5499, 1
        %v5542 = vsel %vm1535, %v5540, %v5541
        %v5543 = vrot.slane %v5500, 1
        %v5544 = vrot.slane %v5501, 1
        %v5545 = vsel %vm1535, %v5543, %v5544
        %v5546 = vrot.slane %v5502, 1
        %v5547 = vrot.slane %v5503, 1
        %v5548 = vsel %vm1535, %v5546, %v5547
        %v5549 = vrot.slane %v5504, 1
        %v5550 = vrot.slane %v5505, 1
        %v5551 = vsel %vm1535, %v5549, %v5550
        %v5552 = vrot.slane %v5506, 1
        %v5553 = vrot.slane %v5507, 1
        %v5554 = vsel %vm1535, %v5552, %v5553
        %v5555 = vrot.slane %v5508, 1
        %v5556 = vrot.slane %v5509, 1
        %v5557 = vsel %vm1535, %v5555, %v5556
        %5558 = vrot.lane.b32.xlu0 %v5512, 64
        %v5559 = vpop.permute.xlu0 %5558
        %5560 = vrot.lane.b32.xlu0 %v5515, 64
        %v5561 = vpop.permute.xlu0 %5560
        %5562 = vrot.lane.b32.xlu0 %v5518, 64
        %v5563 = vpop.permute.xlu0 %5562
        %5564 = vrot.lane.b32.xlu0 %v5521, 64
        %v5565 = vpop.permute.xlu0 %5564
        %5566 = vrot.lane.b32.xlu0 %v5524, 64
        %v5567 = vpop.permute.xlu0 %5566
        %5568 = vrot.lane.b32.xlu0 %v5527, 64
        %v5569 = vpop.permute.xlu0 %5568
        %5570 = vrot.lane.b32.xlu0 %v5530, 64
        %v5571 = vpop.permute.xlu0 %5570
        %5572 = vrot.lane.b32.xlu0 %v5533, 64
        %v5573 = vpop.permute.xlu0 %5572
        %5574 = vrot.lane.b32.xlu0 %v5536, 64
        %v5575 = vpop.permute.xlu0 %5574
        %5576 = vrot.lane.b32.xlu0 %v5539, 64
        %v5577 = vpop.permute.xlu0 %5576
        %5578 = vrot.lane.b32.xlu0 %v5542, 64
        %v5579 = vpop.permute.xlu0 %5578
        %5580 = vrot.lane.b32.xlu0 %v5545, 64
        %v5581 = vpop.permute.xlu0 %5580
        %5582 = vrot.lane.b32.xlu0 %v5548, 64
        %v5583 = vpop.permute.xlu0 %5582
        %5584 = vrot.lane.b32.xlu0 %v5551, 64
        %v5585 = vpop.permute.xlu0 %5584
        %5586 = vrot.lane.b32.xlu0 %v5554, 64
        %v5587 = vpop.permute.xlu0 %5586
        %5588 = vrot.lane.b32.xlu0 %v5557, 64
        %v5589 = vpop.permute.xlu0 %5588
        %vm5606 = vcmask 785920
        %5607 = vst.msk [vmem:[#allocation5] sm:$0xff] %vm5606, %v5559
        %5608 = vst.msk [vmem:[#allocation5 + $0x18] sm:$0xff] %vm5606, %v5561
        %5609 = vst.msk [vmem:[#allocation5 + $0x30] sm:$0xff] %vm5606, %v5563
        %5610 = vst.msk [vmem:[#allocation5 + $0x48] sm:$0xff] %vm5606, %v5565
        %5611 = vst.msk [vmem:[#allocation5 + $0x60] sm:$0xff] %vm5606, %v5567
        %5612 = vst.msk [vmem:[#allocation5 + $0x78] sm:$0xff] %vm5606, %v5569
        %5613 = vst.msk [vmem:[#allocation5 + $0x90] sm:$0xff] %vm5606, %v5571
        %5614 = vst.msk [vmem:[#allocation5 + $0xa8] sm:$0xff] %vm5606, %v5573
        %5615 = vst.msk [vmem:[#allocation5 + $0xc0] sm:$0xff] %vm5606, %v5575
        %5616 = vst.msk [vmem:[#allocation5 + $0xd8] sm:$0xff] %vm5606, %v5577
        %5617 = vst.msk [vmem:[#allocation5 + $0xf0] sm:$0xff] %vm5606, %v5579
        %5618 = vst.msk [vmem:[#allocation5 + $0x108] sm:$0xff] %vm5606, %v5581
        %5619 = vst.msk [vmem:[#allocation5 + $0x120] sm:$0xff] %vm5606, %v5583
        %5620 = vst.msk [vmem:[#allocation5 + $0x138] sm:$0xff] %vm5606, %v5585
        %5621 = vst.msk [vmem:[#allocation5 + $0x150] sm:$0xff] %vm5606, %v5587
        %5622 = vst.msk [vmem:[#allocation5 + $0x168] sm:$0xff] %vm5606, %v5589
        %v5623 = vld [vmem:[%s4640] sm:$0xf]
        %v5624 = vld [vmem:[%s4640 + $0x4] sm:$0xf]
        %v5625 = vld [vmem:[%s4640 + $0xc] sm:$0xf]
        %v5626 = vld [vmem:[%s4640 + $0x10] sm:$0xf]
        %v5627 = vld [vmem:[%s4640 + $0x18] sm:$0xf]
        %v5628 = vld [vmem:[%s4640 + $0x1c] sm:$0xf]
        %v5629 = vld [vmem:[%s4640 + $0x24] sm:$0xf]
        %v5630 = vld [vmem:[%s4640 + $0x28] sm:$0xf]
        %v5631 = vld [vmem:[%s4640 + $0x30] sm:$0xf]
        %v5632 = vld [vmem:[%s4640 + $0x34] sm:$0xf]
        %v5633 = vld [vmem:[%s4640 + $0x3c] sm:$0xf]
        %v5634 = vld [vmem:[%s4640 + $0x40] sm:$0xf]
        %v5635 = vld [vmem:[%s4640 + $0x48] sm:$0xf]
        %v5636 = vld [vmem:[%s4640 + $0x4c] sm:$0xf]
        %v5637 = vld [vmem:[%s4640 + $0x54] sm:$0xf]
        %v5638 = vld [vmem:[%s4640 + $0x58] sm:$0xf]
        %v5639 = vld [vmem:[%s4640 + $0x60] sm:$0xf]
        %v5640 = vld [vmem:[%s4640 + $0x64] sm:$0xf]
        %v5641 = vld [vmem:[%s4640 + $0x6c] sm:$0xf]
        %v5642 = vld [vmem:[%s4640 + $0x70] sm:$0xf]
        %v5643 = vld [vmem:[%s4640 + $0x78] sm:$0xf]
        %v5644 = vld [vmem:[%s4640 + $0x7c] sm:$0xf]
        %v5645 = vld [vmem:[%s4640 + $0x84] sm:$0xf]
        %v5646 = vld [vmem:[%s4640 + $0x88] sm:$0xf]
        %v5647 = vld [vmem:[%s4640 + $0x90] sm:$0xf]
        %v5648 = vld [vmem:[%s4640 + $0x94] sm:$0xf]
        %v5649 = vld [vmem:[%s4640 + $0x9c] sm:$0xf]
        %v5650 = vld [vmem:[%s4640 + $0xa0] sm:$0xf]
        %v5651 = vld [vmem:[%s4640 + $0xa8] sm:$0xf]
        %v5652 = vld [vmem:[%s4640 + $0xac] sm:$0xf]
        %v5653 = vld [vmem:[%s4640 + $0xb4] sm:$0xf]
        %v5654 = vld [vmem:[%s4640 + $0xb8] sm:$0xf]
        %v5687 = vunpack.c.l.b16 %v5623
        %v5688 = vunpack.c.l.b16 %v5624
        %v5689 = vunpack.c.l.b16 %v5625
        %v5690 = vunpack.c.l.b16 %v5626
        %v5691 = vunpack.c.l.b16 %v5627
        %v5692 = vunpack.c.l.b16 %v5628
        %v5693 = vunpack.c.l.b16 %v5629
        %v5694 = vunpack.c.l.b16 %v5630
        %v5695 = vunpack.c.l.b16 %v5631
        %v5696 = vunpack.c.l.b16 %v5632
        %v5697 = vunpack.c.l.b16 %v5633
        %v5698 = vunpack.c.l.b16 %v5634
        %v5699 = vunpack.c.l.b16 %v5635
        %v5700 = vunpack.c.l.b16 %v5636
        %v5701 = vunpack.c.l.b16 %v5637
        %v5702 = vunpack.c.l.b16 %v5638
        %v5703 = vunpack.c.l.b16 %v5639
        %v5704 = vunpack.c.l.b16 %v5640
        %v5705 = vunpack.c.l.b16 %v5641
        %v5706 = vunpack.c.l.b16 %v5642
        %v5707 = vunpack.c.l.b16 %v5643
        %v5708 = vunpack.c.l.b16 %v5644
        %v5709 = vunpack.c.l.b16 %v5645
        %v5710 = vunpack.c.l.b16 %v5646
        %v5711 = vunpack.c.l.b16 %v5647
        %v5712 = vunpack.c.l.b16 %v5648
        %v5713 = vunpack.c.l.b16 %v5649
        %v5714 = vunpack.c.l.b16 %v5650
        %v5715 = vunpack.c.l.b16 %v5651
        %v5716 = vunpack.c.l.b16 %v5652
        %v5717 = vunpack.c.l.b16 %v5653
        %v5718 = vunpack.c.l.b16 %v5654
        %v5719 = vpack.c.b16 %v5688, %v5687
        %v5720 = vpack.c.b16 %v5690, %v5689
        %v5721 = vpack.c.b16 %v5692, %v5691
        %v5722 = vpack.c.b16 %v5694, %v5693
        %v5723 = vpack.c.b16 %v5696, %v5695
        %v5724 = vpack.c.b16 %v5698, %v5697
        %v5725 = vpack.c.b16 %v5700, %v5699
        %v5726 = vpack.c.b16 %v5702, %v5701
        %v5727 = vpack.c.b16 %v5704, %v5703
        %v5728 = vpack.c.b16 %v5706, %v5705
        %v5729 = vpack.c.b16 %v5708, %v5707
        %v5730 = vpack.c.b16 %v5710, %v5709
        %v5731 = vpack.c.b16 %v5712, %v5711
        %v5732 = vpack.c.b16 %v5714, %v5713
        %v5733 = vpack.c.b16 %v5716, %v5715
        %v5734 = vpack.c.b16 %v5718, %v5717
        %5735 = vrot.lane.b32.xlu0 %v5719, 96
        %v5736 = vpop.permute.xlu0 %5735
        %5737 = vrot.lane.b32.xlu0 %v5720, 96
        %v5738 = vpop.permute.xlu0 %5737
        %5739 = vrot.lane.b32.xlu0 %v5721, 96
        %v5740 = vpop.permute.xlu0 %5739
        %5741 = vrot.lane.b32.xlu0 %v5722, 96
        %v5742 = vpop.permute.xlu0 %5741
        %5743 = vrot.lane.b32.xlu0 %v5723, 96
        %v5744 = vpop.permute.xlu0 %5743
        %5745 = vrot.lane.b32.xlu0 %v5724, 96
        %v5746 = vpop.permute.xlu0 %5745
        %5747 = vrot.lane.b32.xlu0 %v5725, 96
        %v5748 = vpop.permute.xlu0 %5747
        %5749 = vrot.lane.b32.xlu0 %v5726, 96
        %v5750 = vpop.permute.xlu0 %5749
        %5751 = vrot.lane.b32.xlu0 %v5727, 96
        %v5752 = vpop.permute.xlu0 %5751
        %5753 = vrot.lane.b32.xlu0 %v5728, 96
        %v5754 = vpop.permute.xlu0 %5753
        %5755 = vrot.lane.b32.xlu0 %v5729, 96
        %v5756 = vpop.permute.xlu0 %5755
        %5757 = vrot.lane.b32.xlu0 %v5730, 96
        %v5758 = vpop.permute.xlu0 %5757
        %5759 = vrot.lane.b32.xlu0 %v5731, 96
        %v5760 = vpop.permute.xlu0 %5759
        %5761 = vrot.lane.b32.xlu0 %v5732, 96
        %v5762 = vpop.permute.xlu0 %5761
        %5763 = vrot.lane.b32.xlu0 %v5733, 96
        %v5764 = vpop.permute.xlu0 %5763
        %5765 = vrot.lane.b32.xlu0 %v5734, 96
        %v5766 = vpop.permute.xlu0 %5765
        %vm5783 = vcmask 1048320
        %5784 = vst.msk [vmem:[#allocation5] sm:$0xff] %vm5783, %v5736
        %5785 = vst.msk [vmem:[#allocation5 + $0x18] sm:$0xff] %vm5783, %v5738
        %5786 = vst.msk [vmem:[#allocation5 + $0x30] sm:$0xff] %vm5783, %v5740
        %5787 = vst.msk [vmem:[#allocation5 + $0x48] sm:$0xff] %vm5783, %v5742
        %5788 = vst.msk [vmem:[#allocation5 + $0x60] sm:$0xff] %vm5783, %v5744
        %5789 = vst.msk [vmem:[#allocation5 + $0x78] sm:$0xff] %vm5783, %v5746
        %5790 = vst.msk [vmem:[#allocation5 + $0x90] sm:$0xff] %vm5783, %v5748
        %5791 = vst.msk [vmem:[#allocation5 + $0xa8] sm:$0xff] %vm5783, %v5750
        %5792 = vst.msk [vmem:[#allocation5 + $0xc0] sm:$0xff] %vm5783, %v5752
        %5793 = vst.msk [vmem:[#allocation5 + $0xd8] sm:$0xff] %vm5783, %v5754
        %5794 = vst.msk [vmem:[#allocation5 + $0xf0] sm:$0xff] %vm5783, %v5756
        %5795 = vst.msk [vmem:[#allocation5 + $0x108] sm:$0xff] %vm5783, %v5758
        %5796 = vst.msk [vmem:[#allocation5 + $0x120] sm:$0xff] %vm5783, %v5760
        %5797 = vst.msk [vmem:[#allocation5 + $0x138] sm:$0xff] %vm5783, %v5762
        %5798 = vst.msk [vmem:[#allocation5 + $0x150] sm:$0xff] %vm5783, %v5764
        %5799 = vst.msk [vmem:[#allocation5 + $0x168] sm:$0xff] %vm5783, %v5766
        %v5800 = vld [vmem:[%s4640] sm:$0xf]
        %v5801 = vld [vmem:[%s4640 + $0x4] sm:$0xf]
        %v5802 = vld [vmem:[%s4640 + $0x8] sm:$0x1]
        %v5803 = vld [vmem:[%s4640 + $0xc] sm:$0xf]
        %v5804 = vld [vmem:[%s4640 + $0x10] sm:$0xf]
        %v5805 = vld [vmem:[%s4640 + $0x14] sm:$0x1]
        %v5806 = vld [vmem:[%s4640 + $0x18] sm:$0xf]
        %v5807 = vld [vmem:[%s4640 + $0x1c] sm:$0xf]
        %v5808 = vld [vmem:[%s4640 + $0x20] sm:$0x1]
        %v5809 = vld [vmem:[%s4640 + $0x24] sm:$0xf]
        %v5810 = vld [vmem:[%s4640 + $0x28] sm:$0xf]
        %v5811 = vld [vmem:[%s4640 + $0x2c] sm:$0x1]
        %v5812 = vld [vmem:[%s4640 + $0x30] sm:$0xf]
        %v5813 = vld [vmem:[%s4640 + $0x34] sm:$0xf]
        %v5814 = vld [vmem:[%s4640 + $0x38] sm:$0x1]
        %v5815 = vld [vmem:[%s4640 + $0x3c] sm:$0xf]
        %v5816 = vld [vmem:[%s4640 + $0x40] sm:$0xf]
        %v5817 = vld [vmem:[%s4640 + $0x44] sm:$0x1]
        %v5818 = vld [vmem:[%s4640 + $0x48] sm:$0xf]
        %v5819 = vld [vmem:[%s4640 + $0x4c] sm:$0xf]
        %v5820 = vld [vmem:[%s4640 + $0x50] sm:$0x1]
        %v5821 = vld [vmem:[%s4640 + $0x54] sm:$0xf]
        %v5822 = vld [vmem:[%s4640 + $0x58] sm:$0xf]
        %v5823 = vld [vmem:[%s4640 + $0x5c] sm:$0x1]
        %v5824 = vld [vmem:[%s4640 + $0x60] sm:$0xf]
        %v5825 = vld [vmem:[%s4640 + $0x64] sm:$0xf]
        %v5826 = vld [vmem:[%s4640 + $0x68] sm:$0x1]
        %v5827 = vld [vmem:[%s4640 + $0x6c] sm:$0xf]
        %v5828 = vld [vmem:[%s4640 + $0x70] sm:$0xf]
        %v5829 = vld [vmem:[%s4640 + $0x74] sm:$0x1]
        %v5830 = vld [vmem:[%s4640 + $0x78] sm:$0xf]
        %v5831 = vld [vmem:[%s4640 + $0x7c] sm:$0xf]
        %v5832 = vld [vmem:[%s4640 + $0x80] sm:$0x1]
        %v5833 = vld [vmem:[%s4640 + $0x84] sm:$0xf]
        %v5834 = vld [vmem:[%s4640 + $0x88] sm:$0xf]
        %v5835 = vld [vmem:[%s4640 + $0x8c] sm:$0x1]
        %v5836 = vld [vmem:[%s4640 + $0x90] sm:$0xf]
        %v5837 = vld [vmem:[%s4640 + $0x94] sm:$0xf]
        %v5838 = vld [vmem:[%s4640 + $0x98] sm:$0x1]
        %v5839 = vld [vmem:[%s4640 + $0x9c] sm:$0xf]
        %v5840 = vld [vmem:[%s4640 + $0xa0] sm:$0xf]
        %v5841 = vld [vmem:[%s4640 + $0xa4] sm:$0x1]
        %v5842 = vld [vmem:[%s4640 + $0xa8] sm:$0xf]
        %v5843 = vld [vmem:[%s4640 + $0xac] sm:$0xf]
        %v5844 = vld [vmem:[%s4640 + $0xb0] sm:$0x1]
        %v5845 = vld [vmem:[%s4640 + $0xb4] sm:$0xf]
        %v5846 = vld [vmem:[%s4640 + $0xb8] sm:$0xf]
        %v5847 = vld [vmem:[%s4640 + $0xbc] sm:$0x1]
        %v5896 = vunpack.c.l.b16 %v5800
        %v5897 = vunpack.c.l.b16 %v5801
        %v5898 = vunpack.c.l.b16 %v5802
        %v5899 = vunpack.c.l.b16 %v5803
        %v5900 = vunpack.c.l.b16 %v5804
        %v5901 = vunpack.c.l.b16 %v5805
        %v5902 = vunpack.c.l.b16 %v5806
        %v5903 = vunpack.c.l.b16 %v5807
        %v5904 = vunpack.c.l.b16 %v5808
        %v5905 = vunpack.c.l.b16 %v5809
        %v5906 = vunpack.c.l.b16 %v5810
        %v5907 = vunpack.c.l.b16 %v5811
        %v5908 = vunpack.c.l.b16 %v5812
        %v5909 = vunpack.c.l.b16 %v5813
        %v5910 = vunpack.c.l.b16 %v5814
        %v5911 = vunpack.c.l.b16 %v5815
        %v5912 = vunpack.c.l.b16 %v5816
        %v5913 = vunpack.c.l.b16 %v5817
        %v5914 = vunpack.c.l.b16 %v5818
        %v5915 = vunpack.c.l.b16 %v5819
        %v5916 = vunpack.c.l.b16 %v5820
        %v5917 = vunpack.c.l.b16 %v5821
        %v5918 = vunpack.c.l.b16 %v5822
        %v5919 = vunpack.c.l.b16 %v5823
        %v5920 = vunpack.c.l.b16 %v5824
        %v5921 = vunpack.c.l.b16 %v5825
        %v5922 = vunpack.c.l.b16 %v5826
        %v5923 = vunpack.c.l.b16 %v5827
        %v5924 = vunpack.c.l.b16 %v5828
        %v5925 = vunpack.c.l.b16 %v5829
        %v5926 = vunpack.c.l.b16 %v5830
        %v5927 = vunpack.c.l.b16 %v5831
        %v5928 = vunpack.c.l.b16 %v5832
        %v5929 = vunpack.c.l.b16 %v5833
        %v5930 = vunpack.c.l.b16 %v5834
        %v5931 = vunpack.c.l.b16 %v5835
        %v5932 = vunpack.c.l.b16 %v5836
        %v5933 = vunpack.c.l.b16 %v5837
        %v5934 = vunpack.c.l.b16 %v5838
        %v5935 = vunpack.c.l.b16 %v5839
        %v5936 = vunpack.c.l.b16 %v5840
        %v5937 = vunpack.c.l.b16 %v5841
        %v5938 = vunpack.c.l.b16 %v5842
        %v5939 = vunpack.c.l.b16 %v5843
        %v5940 = vunpack.c.l.b16 %v5844
        %v5941 = vunpack.c.l.b16 %v5845
        %v5942 = vunpack.c.l.b16 %v5846
        %v5943 = vunpack.c.l.b16 %v5847
        %v5944 = vpack.c.b16 %v5897, %v5896
        %v5945 = vpack.c.b16 %v5898, %v5898
        %v5946 = vpack.c.b16 %v5900, %v5899
        %v5947 = vpack.c.b16 %v5901, %v5901
        %v5948 = vpack.c.b16 %v5903, %v5902
        %v5949 = vpack.c.b16 %v5904, %v5904
        %v5950 = vpack.c.b16 %v5906, %v5905
        %v5951 = vpack.c.b16 %v5907, %v5907
        %v5952 = vpack.c.b16 %v5909, %v5908
        %v5953 = vpack.c.b16 %v5910, %v5910
        %v5954 = vpack.c.b16 %v5912, %v5911
        %v5955 = vpack.c.b16 %v5913, %v5913
        %v5956 = vpack.c.b16 %v5915, %v5914
        %v5957 = vpack.c.b16 %v5916, %v5916
        %v5958 = vpack.c.b16 %v5918, %v5917
        %v5959 = vpack.c.b16 %v5919, %v5919
        %v5960 = vpack.c.b16 %v5921, %v5920
        %v5961 = vpack.c.b16 %v5922, %v5922
        %v5962 = vpack.c.b16 %v5924, %v5923
        %v5963 = vpack.c.b16 %v5925, %v5925
        %v5964 = vpack.c.b16 %v5927, %v5926
        %v5965 = vpack.c.b16 %v5928, %v5928
        %v5966 = vpack.c.b16 %v5930, %v5929
        %v5967 = vpack.c.b16 %v5931, %v5931
        %v5968 = vpack.c.b16 %v5933, %v5932
        %v5969 = vpack.c.b16 %v5934, %v5934
        %v5970 = vpack.c.b16 %v5936, %v5935
        %v5971 = vpack.c.b16 %v5937, %v5937
        %v5972 = vpack.c.b16 %v5939, %v5938
        %v5973 = vpack.c.b16 %v5940, %v5940
        %v5974 = vpack.c.b16 %v5942, %v5941
        %v5975 = vpack.c.b16 %v5943, %v5943
        %v5977 = vshrl.u32 %v5944, 16
        %v5979 = vshll.u32 %v5944, 16
        %v5981 = vrot.slane %v5979, 1
        %v5982 = vor.u32 %v5977, %v5981
        %v5984 = vshll.u32 %v5945, 16
        %v5986 = vrot.slane %v5984, 1
        %v5987 = vsel %vm1101, %v5982, %v5986
        %v5989 = vshrl.u32 %v5946, 16
        %v5991 = vshll.u32 %v5946, 16
        %v5993 = vrot.slane %v5991, 1
        %v5994 = vor.u32 %v5989, %v5993
        %v5996 = vshll.u32 %v5947, 16
        %v5998 = vrot.slane %v5996, 1
        %v5999 = vsel %vm1101, %v5994, %v5998
        %v6001 = vshrl.u32 %v5948, 16
        %v6003 = vshll.u32 %v5948, 16
        %v6005 = vrot.slane %v6003, 1
        %v6006 = vor.u32 %v6001, %v6005
        %v6008 = vshll.u32 %v5949, 16
        %v6010 = vrot.slane %v6008, 1
        %v6011 = vsel %vm1101, %v6006, %v6010
        %v6013 = vshrl.u32 %v5950, 16
        %v6015 = vshll.u32 %v5950, 16
        %v6017 = vrot.slane %v6015, 1
        %v6018 = vor.u32 %v6013, %v6017
        %v6020 = vshll.u32 %v5951, 16
        %v6022 = vrot.slane %v6020, 1
        %v6023 = vsel %vm1101, %v6018, %v6022
        %v6025 = vshrl.u32 %v5952, 16
        %v6027 = vshll.u32 %v5952, 16
        %v6029 = vrot.slane %v6027, 1
        %v6030 = vor.u32 %v6025, %v6029
        %v6032 = vshll.u32 %v5953, 16
        %v6034 = vrot.slane %v6032, 1
        %v6035 = vsel %vm1101, %v6030, %v6034
        %v6037 = vshrl.u32 %v5954, 16
        %v6039 = vshll.u32 %v5954, 16
        %v6041 = vrot.slane %v6039, 1
        %v6042 = vor.u32 %v6037, %v6041
        %v6044 = vshll.u32 %v5955, 16
        %v6046 = vrot.slane %v6044, 1
        %v6047 = vsel %vm1101, %v6042, %v6046
        %v6049 = vshrl.u32 %v5956, 16
        %v6051 = vshll.u32 %v5956, 16
        %v6053 = vrot.slane %v6051, 1
        %v6054 = vor.u32 %v6049, %v6053
        %v6056 = vshll.u32 %v5957, 16
        %v6058 = vrot.slane %v6056, 1
        %v6059 = vsel %vm1101, %v6054, %v6058
        %v6061 = vshrl.u32 %v5958, 16
        %v6063 = vshll.u32 %v5958, 16
        %v6065 = vrot.slane %v6063, 1
        %v6066 = vor.u32 %v6061, %v6065
        %v6068 = vshll.u32 %v5959, 16
        %v6070 = vrot.slane %v6068, 1
        %v6071 = vsel %vm1101, %v6066, %v6070
        %v6073 = vshrl.u32 %v5960, 16
        %v6075 = vshll.u32 %v5960, 16
        %v6077 = vrot.slane %v6075, 1
        %v6078 = vor.u32 %v6073, %v6077
        %v6080 = vshll.u32 %v5961, 16
        %v6082 = vrot.slane %v6080, 1
        %v6083 = vsel %vm1101, %v6078, %v6082
        %v6085 = vshrl.u32 %v5962, 16
        %v6087 = vshll.u32 %v5962, 16
        %v6089 = vrot.slane %v6087, 1
        %v6090 = vor.u32 %v6085, %v6089
        %v6092 = vshll.u32 %v5963, 16
        %v6094 = vrot.slane %v6092, 1
        %v6095 = vsel %vm1101, %v6090, %v6094
        %v6097 = vshrl.u32 %v5964, 16
        %v6099 = vshll.u32 %v5964, 16
        %v6101 = vrot.slane %v6099, 1
        %v6102 = vor.u32 %v6097, %v6101
        %v6104 = vshll.u32 %v5965, 16
        %v6106 = vrot.slane %v6104, 1
        %v6107 = vsel %vm1101, %v6102, %v6106
        %v6109 = vshrl.u32 %v5966, 16
        %v6111 = vshll.u32 %v5966, 16
        %v6113 = vrot.slane %v6111, 1
        %v6114 = vor.u32 %v6109, %v6113
        %v6116 = vshll.u32 %v5967, 16
        %v6118 = vrot.slane %v6116, 1
        %v6119 = vsel %vm1101, %v6114, %v6118
        %v6121 = vshrl.u32 %v5968, 16
        %v6123 = vshll.u32 %v5968, 16
        %v6125 = vrot.slane %v6123, 1
        %v6126 = vor.u32 %v6121, %v6125
        %v6128 = vshll.u32 %v5969, 16
        %v6130 = vrot.slane %v6128, 1
        %v6131 = vsel %vm1101, %v6126, %v6130
        %v6133 = vshrl.u32 %v5970, 16
        %v6135 = vshll.u32 %v5970, 16
        %v6137 = vrot.slane %v6135, 1
        %v6138 = vor.u32 %v6133, %v6137
        %v6140 = vshll.u32 %v5971, 16
        %v6142 = vrot.slane %v6140, 1
        %v6143 = vsel %vm1101, %v6138, %v6142
        %v6145 = vshrl.u32 %v5972, 16
        %v6147 = vshll.u32 %v5972, 16
        %v6149 = vrot.slane %v6147, 1
        %v6150 = vor.u32 %v6145, %v6149
        %v6152 = vshll.u32 %v5973, 16
        %v6154 = vrot.slane %v6152, 1
        %v6155 = vsel %vm1101, %v6150, %v6154
        %v6157 = vshrl.u32 %v5974, 16
        %v6159 = vshll.u32 %v5974, 16
        %v6161 = vrot.slane %v6159, 1
        %v6162 = vor.u32 %v6157, %v6161
        %v6164 = vshll.u32 %v5975, 16
        %v6166 = vrot.slane %v6164, 1
        %v6167 = vsel %vm1101, %v6162, %v6166
        %6184 = vst.msk [vmem:[#allocation5 + $0x8] sm:$0xff] %vm3707, %v5987
        %6185 = vst.msk [vmem:[#allocation5 + $0x20] sm:$0xff] %vm3707, %v5999
        %6186 = vst.msk [vmem:[#allocation5 + $0x38] sm:$0xff] %vm3707, %v6011
        %6187 = vst.msk [vmem:[#allocation5 + $0x50] sm:$0xff] %vm3707, %v6023
        %6188 = vst.msk [vmem:[#allocation5 + $0x68] sm:$0xff] %vm3707, %v6035
        %6189 = vst.msk [vmem:[#allocation5 + $0x80] sm:$0xff] %vm3707, %v6047
        %6190 = vst.msk [vmem:[#allocation5 + $0x98] sm:$0xff] %vm3707, %v6059
        %6191 = vst.msk [vmem:[#allocation5 + $0xb0] sm:$0xff] %vm3707, %v6071
        %6192 = vst.msk [vmem:[#allocation5 + $0xc8] sm:$0xff] %vm3707, %v6083
        %6193 = vst.msk [vmem:[#allocation5 + $0xe0] sm:$0xff] %vm3707, %v6095
        %6194 = vst.msk [vmem:[#allocation5 + $0xf8] sm:$0xff] %vm3707, %v6107
        %6195 = vst.msk [vmem:[#allocation5 + $0x110] sm:$0xff] %vm3707, %v6119
        %6196 = vst.msk [vmem:[#allocation5 + $0x128] sm:$0xff] %vm3707, %v6131
        %6197 = vst.msk [vmem:[#allocation5 + $0x140] sm:$0xff] %vm3707, %v6143
        %6198 = vst.msk [vmem:[#allocation5 + $0x158] sm:$0xff] %vm3707, %v6155
        %6199 = vst.msk [vmem:[#allocation5 + $0x170] sm:$0xff] %vm3707, %v6167
        %v6200 = vld [vmem:[%s4640] sm:$0xe]
        %v6201 = vld [vmem:[%s4640 + $0x4] sm:$0xf]
        %v6202 = vld [vmem:[%s4640 + $0x8] sm:$0x1]
        %v6203 = vld [vmem:[%s4640 + $0xc] sm:$0xe]
        %v6204 = vld [vmem:[%s4640 + $0x10] sm:$0xf]
        %v6205 = vld [vmem:[%s4640 + $0x14] sm:$0x1]
        %v6206 = vld [vmem:[%s4640 + $0x18] sm:$0xe]
        %v6207 = vld [vmem:[%s4640 + $0x1c] sm:$0xf]
        %v6208 = vld [vmem:[%s4640 + $0x20] sm:$0x1]
        %v6209 = vld [vmem:[%s4640 + $0x24] sm:$0xe]
        %v6210 = vld [vmem:[%s4640 + $0x28] sm:$0xf]
        %v6211 = vld [vmem:[%s4640 + $0x2c] sm:$0x1]
        %v6212 = vld [vmem:[%s4640 + $0x30] sm:$0xe]
        %v6213 = vld [vmem:[%s4640 + $0x34] sm:$0xf]
        %v6214 = vld [vmem:[%s4640 + $0x38] sm:$0x1]
        %v6215 = vld [vmem:[%s4640 + $0x3c] sm:$0xe]
        %v6216 = vld [vmem:[%s4640 + $0x40] sm:$0xf]
        %v6217 = vld [vmem:[%s4640 + $0x44] sm:$0x1]
        %v6218 = vld [vmem:[%s4640 + $0x48] sm:$0xe]
        %v6219 = vld [vmem:[%s4640 + $0x4c] sm:$0xf]
        %v6220 = vld [vmem:[%s4640 + $0x50] sm:$0x1]
        %v6221 = vld [vmem:[%s4640 + $0x54] sm:$0xe]
        %v6222 = vld [vmem:[%s4640 + $0x58] sm:$0xf]
        %v6223 = vld [vmem:[%s4640 + $0x5c] sm:$0x1]
        %v6224 = vld [vmem:[%s4640 + $0x60] sm:$0xe]
        %v6225 = vld [vmem:[%s4640 + $0x64] sm:$0xf]
        %v6226 = vld [vmem:[%s4640 + $0x68] sm:$0x1]
        %v6227 = vld [vmem:[%s4640 + $0x6c] sm:$0xe]
        %v6228 = vld [vmem:[%s4640 + $0x70] sm:$0xf]
        %v6229 = vld [vmem:[%s4640 + $0x74] sm:$0x1]
        %v6230 = vld [vmem:[%s4640 + $0x78] sm:$0xe]
        %v6231 = vld [vmem:[%s4640 + $0x7c] sm:$0xf]
        %v6232 = vld [vmem:[%s4640 + $0x80] sm:$0x1]
        %v6233 = vld [vmem:[%s4640 + $0x84] sm:$0xe]
        %v6234 = vld [vmem:[%s4640 + $0x88] sm:$0xf]
        %v6235 = vld [vmem:[%s4640 + $0x8c] sm:$0x1]
        %v6236 = vld [vmem:[%s4640 + $0x90] sm:$0xe]
        %v6237 = vld [vmem:[%s4640 + $0x94] sm:$0xf]
        %v6238 = vld [vmem:[%s4640 + $0x98] sm:$0x1]
        %v6239 = vld [vmem:[%s4640 + $0x9c] sm:$0xe]
        %v6240 = vld [vmem:[%s4640 + $0xa0] sm:$0xf]
        %v6241 = vld [vmem:[%s4640 + $0xa4] sm:$0x1]
        %v6242 = vld [vmem:[%s4640 + $0xa8] sm:$0xe]
        %v6243 = vld [vmem:[%s4640 + $0xac] sm:$0xf]
        %v6244 = vld [vmem:[%s4640 + $0xb0] sm:$0x1]
        %v6245 = vld [vmem:[%s4640 + $0xb4] sm:$0xe]
        %v6246 = vld [vmem:[%s4640 + $0xb8] sm:$0xf]
        %v6247 = vld [vmem:[%s4640 + $0xbc] sm:$0x1]
        %v6296 = vunpack.c.l.b16 %v6200
        %v6297 = vunpack.c.l.b16 %v6201
        %v6298 = vunpack.c.l.b16 %v6202
        %v6299 = vunpack.c.l.b16 %v6203
        %v6300 = vunpack.c.l.b16 %v6204
        %v6301 = vunpack.c.l.b16 %v6205
        %v6302 = vunpack.c.l.b16 %v6206
        %v6303 = vunpack.c.l.b16 %v6207
        %v6304 = vunpack.c.l.b16 %v6208
        %v6305 = vunpack.c.l.b16 %v6209
        %v6306 = vunpack.c.l.b16 %v6210
        %v6307 = vunpack.c.l.b16 %v6211
        %v6308 = vunpack.c.l.b16 %v6212
        %v6309 = vunpack.c.l.b16 %v6213
        %v6310 = vunpack.c.l.b16 %v6214
        %v6311 = vunpack.c.l.b16 %v6215
        %v6312 = vunpack.c.l.b16 %v6216
        %v6313 = vunpack.c.l.b16 %v6217
        %v6314 = vunpack.c.l.b16 %v6218
        %v6315 = vunpack.c.l.b16 %v6219
        %v6316 = vunpack.c.l.b16 %v6220
        %v6317 = vunpack.c.l.b16 %v6221
        %v6318 = vunpack.c.l.b16 %v6222
        %v6319 = vunpack.c.l.b16 %v6223
        %v6320 = vunpack.c.l.b16 %v6224
        %v6321 = vunpack.c.l.b16 %v6225
        %v6322 = vunpack.c.l.b16 %v6226
        %v6323 = vunpack.c.l.b16 %v6227
        %v6324 = vunpack.c.l.b16 %v6228
        %v6325 = vunpack.c.l.b16 %v6229
        %v6326 = vunpack.c.l.b16 %v6230
        %v6327 = vunpack.c.l.b16 %v6231
        %v6328 = vunpack.c.l.b16 %v6232
        %v6329 = vunpack.c.l.b16 %v6233
        %v6330 = vunpack.c.l.b16 %v6234
        %v6331 = vunpack.c.l.b16 %v6235
        %v6332 = vunpack.c.l.b16 %v6236
        %v6333 = vunpack.c.l.b16 %v6237
        %v6334 = vunpack.c.l.b16 %v6238
        %v6335 = vunpack.c.l.b16 %v6239
        %v6336 = vunpack.c.l.b16 %v6240
        %v6337 = vunpack.c.l.b16 %v6241
        %v6338 = vunpack.c.l.b16 %v6242
        %v6339 = vunpack.c.l.b16 %v6243
        %v6340 = vunpack.c.l.b16 %v6244
        %v6341 = vunpack.c.l.b16 %v6245
        %v6342 = vunpack.c.l.b16 %v6246
        %v6343 = vunpack.c.l.b16 %v6247
        %v6344 = vpack.c.b16 %v6297, %v6296
        %v6345 = vpack.c.b16 %v6298, %v6298
        %v6346 = vpack.c.b16 %v6300, %v6299
        %v6347 = vpack.c.b16 %v6301, %v6301
        %v6348 = vpack.c.b16 %v6303, %v6302
        %v6349 = vpack.c.b16 %v6304, %v6304
        %v6350 = vpack.c.b16 %v6306, %v6305
        %v6351 = vpack.c.b16 %v6307, %v6307
        %v6352 = vpack.c.b16 %v6309, %v6308
        %v6353 = vpack.c.b16 %v6310, %v6310
        %v6354 = vpack.c.b16 %v6312, %v6311
        %v6355 = vpack.c.b16 %v6313, %v6313
        %v6356 = vpack.c.b16 %v6315, %v6314
        %v6357 = vpack.c.b16 %v6316, %v6316
        %v6358 = vpack.c.b16 %v6318, %v6317
        %v6359 = vpack.c.b16 %v6319, %v6319
        %v6360 = vpack.c.b16 %v6321, %v6320
        %v6361 = vpack.c.b16 %v6322, %v6322
        %v6362 = vpack.c.b16 %v6324, %v6323
        %v6363 = vpack.c.b16 %v6325, %v6325
        %v6364 = vpack.c.b16 %v6327, %v6326
        %v6365 = vpack.c.b16 %v6328, %v6328
        %v6366 = vpack.c.b16 %v6330, %v6329
        %v6367 = vpack.c.b16 %v6331, %v6331
        %v6368 = vpack.c.b16 %v6333, %v6332
        %v6369 = vpack.c.b16 %v6334, %v6334
        %v6370 = vpack.c.b16 %v6336, %v6335
        %v6371 = vpack.c.b16 %v6337, %v6337
        %v6372 = vpack.c.b16 %v6339, %v6338
        %v6373 = vpack.c.b16 %v6340, %v6340
        %v6374 = vpack.c.b16 %v6342, %v6341
        %v6375 = vpack.c.b16 %v6343, %v6343
        %v6376 = vrot.slane %v6344, 1
        %v6377 = vrot.slane %v6345, 1
        %v6378 = vsel %vm1535, %v6376, %v6377
        %v6379 = vrot.slane %v6346, 1
        %v6380 = vrot.slane %v6347, 1
        %v6381 = vsel %vm1535, %v6379, %v6380
        %v6382 = vrot.slane %v6348, 1
        %v6383 = vrot.slane %v6349, 1
        %v6384 = vsel %vm1535, %v6382, %v6383
        %v6385 = vrot.slane %v6350, 1
        %v6386 = vrot.slane %v6351, 1
        %v6387 = vsel %vm1535, %v6385, %v6386
        %v6388 = vrot.slane %v6352, 1
        %v6389 = vrot.slane %v6353, 1
        %v6390 = vsel %vm1535, %v6388, %v6389
        %v6391 = vrot.slane %v6354, 1
        %v6392 = vrot.slane %v6355, 1
        %v6393 = vsel %vm1535, %v6391, %v6392
        %v6394 = vrot.slane %v6356, 1
        %v6395 = vrot.slane %v6357, 1
        %v6396 = vsel %vm1535, %v6394, %v6395
        %v6397 = vrot.slane %v6358, 1
        %v6398 = vrot.slane %v6359, 1
        %v6399 = vsel %vm1535, %v6397, %v6398
        %v6400 = vrot.slane %v6360, 1
        %v6401 = vrot.slane %v6361, 1
        %v6402 = vsel %vm1535, %v6400, %v6401
        %v6403 = vrot.slane %v6362, 1
        %v6404 = vrot.slane %v6363, 1
        %v6405 = vsel %vm1535, %v6403, %v6404
        %v6406 = vrot.slane %v6364, 1
        %v6407 = vrot.slane %v6365, 1
        %v6408 = vsel %vm1535, %v6406, %v6407
        %v6409 = vrot.slane %v6366, 1
        %v6410 = vrot.slane %v6367, 1
        %v6411 = vsel %vm1535, %v6409, %v6410
        %v6412 = vrot.slane %v6368, 1
        %v6413 = vrot.slane %v6369, 1
        %v6414 = vsel %vm1535, %v6412, %v6413
        %v6415 = vrot.slane %v6370, 1
        %v6416 = vrot.slane %v6371, 1
        %v6417 = vsel %vm1535, %v6415, %v6416
        %v6418 = vrot.slane %v6372, 1
        %v6419 = vrot.slane %v6373, 1
        %v6420 = vsel %vm1535, %v6418, %v6419
        %v6421 = vrot.slane %v6374, 1
        %v6422 = vrot.slane %v6375, 1
        %v6423 = vsel %vm1535, %v6421, %v6422
        %6424 = vrot.lane.b32.xlu0 %v6378, 32
        %v6425 = vpop.permute.xlu0 %6424
        %6426 = vrot.lane.b32.xlu0 %v6381, 32
        %v6427 = vpop.permute.xlu0 %6426
        %6428 = vrot.lane.b32.xlu0 %v6384, 32
        %v6429 = vpop.permute.xlu0 %6428
        %6430 = vrot.lane.b32.xlu0 %v6387, 32
        %v6431 = vpop.permute.xlu0 %6430
        %6432 = vrot.lane.b32.xlu0 %v6390, 32
        %v6433 = vpop.permute.xlu0 %6432
        %6434 = vrot.lane.b32.xlu0 %v6393, 32
        %v6435 = vpop.permute.xlu0 %6434
        %6436 = vrot.lane.b32.xlu0 %v6396, 32
        %v6437 = vpop.permute.xlu0 %6436
        %6438 = vrot.lane.b32.xlu0 %v6399, 32
        %v6439 = vpop.permute.xlu0 %6438
        %6440 = vrot.lane.b32.xlu0 %v6402, 32
        %v6441 = vpop.permute.xlu0 %6440
        %6442 = vrot.lane.b32.xlu0 %v6405, 32
        %v6443 = vpop.permute.xlu0 %6442
        %6444 = vrot.lane.b32.xlu0 %v6408, 32
        %v6445 = vpop.permute.xlu0 %6444
        %6446 = vrot.lane.b32.xlu0 %v6411, 32
        %v6447 = vpop.permute.xlu0 %6446
        %6448 = vrot.lane.b32.xlu0 %v6414, 32
        %v6449 = vpop.permute.xlu0 %6448
        %6450 = vrot.lane.b32.xlu0 %v6417, 32
        %v6451 = vpop.permute.xlu0 %6450
        %6452 = vrot.lane.b32.xlu0 %v6420, 32
        %v6453 = vpop.permute.xlu0 %6452
        %6454 = vrot.lane.b32.xlu0 %v6423, 32
        %v6455 = vpop.permute.xlu0 %6454
        %6472 = vst.msk [vmem:[#allocation5 + $0x8] sm:$0xff] %vm5317, %v6425
        %6473 = vst.msk [vmem:[#allocation5 + $0x20] sm:$0xff] %vm5317, %v6427
        %6474 = vst.msk [vmem:[#allocation5 + $0x38] sm:$0xff] %vm5317, %v6429
        %6475 = vst.msk [vmem:[#allocation5 + $0x50] sm:$0xff] %vm5317, %v6431
        %6476 = vst.msk [vmem:[#allocation5 + $0x68] sm:$0xff] %vm5317, %v6433
        %6477 = vst.msk [vmem:[#allocation5 + $0x80] sm:$0xff] %vm5317, %v6435
        %6478 = vst.msk [vmem:[#allocation5 + $0x98] sm:$0xff] %vm5317, %v6437
        %6479 = vst.msk [vmem:[#allocation5 + $0xb0] sm:$0xff] %vm5317, %v6439
        %6480 = vst.msk [vmem:[#allocation5 + $0xc8] sm:$0xff] %vm5317, %v6441
        %6481 = vst.msk [vmem:[#allocation5 + $0xe0] sm:$0xff] %vm5317, %v6443
        %6482 = vst.msk [vmem:[#allocation5 + $0xf8] sm:$0xff] %vm5317, %v6445
        %6483 = vst.msk [vmem:[#allocation5 + $0x110] sm:$0xff] %vm5317, %v6447
        %6484 = vst.msk [vmem:[#allocation5 + $0x128] sm:$0xff] %vm5317, %v6449
        %6485 = vst.msk [vmem:[#allocation5 + $0x140] sm:$0xff] %vm5317, %v6451
        %6486 = vst.msk [vmem:[#allocation5 + $0x158] sm:$0xff] %vm5317, %v6453
        %6487 = vst.msk [vmem:[#allocation5 + $0x170] sm:$0xff] %vm5317, %v6455
        %s6488 = scalar_lea.vmem [#allocation4], 24
        %v6489 = vld [vmem:[%s6488] sm:$0xf]
        %v6490 = vld [vmem:[%s6488 + $0x4] sm:$0xf]
        %v6491 = vld [vmem:[%s6488 + $0xc] sm:$0xf]
        %v6492 = vld [vmem:[%s6488 + $0x10] sm:$0xf]
        %v6493 = vld [vmem:[%s6488 + $0x18] sm:$0xf]
        %v6494 = vld [vmem:[%s6488 + $0x1c] sm:$0xf]
        %v6495 = vld [vmem:[%s6488 + $0x24] sm:$0xf]
        %v6496 = vld [vmem:[%s6488 + $0x28] sm:$0xf]
        %v6497 = vld [vmem:[%s6488 + $0x30] sm:$0xf]
        %v6498 = vld [vmem:[%s6488 + $0x34] sm:$0xf]
        %v6499 = vld [vmem:[%s6488 + $0x3c] sm:$0xf]
        %v6500 = vld [vmem:[%s6488 + $0x40] sm:$0xf]
        %v6501 = vld [vmem:[%s6488 + $0x48] sm:$0xf]
        %v6502 = vld [vmem:[%s6488 + $0x4c] sm:$0xf]
        %v6503 = vld [vmem:[%s6488 + $0x54] sm:$0xf]
        %v6504 = vld [vmem:[%s6488 + $0x58] sm:$0xf]
        %v6505 = vld [vmem:[%s6488 + $0x60] sm:$0xf]
        %v6506 = vld [vmem:[%s6488 + $0x64] sm:$0xf]
        %v6507 = vld [vmem:[%s6488 + $0x6c] sm:$0xf]
        %v6508 = vld [vmem:[%s6488 + $0x70] sm:$0xf]
        %v6509 = vld [vmem:[%s6488 + $0x78] sm:$0xf]
        %v6510 = vld [vmem:[%s6488 + $0x7c] sm:$0xf]
        %v6511 = vld [vmem:[%s6488 + $0x84] sm:$0xf]
        %v6512 = vld [vmem:[%s6488 + $0x88] sm:$0xf]
        %v6513 = vld [vmem:[%s6488 + $0x90] sm:$0xf]
        %v6514 = vld [vmem:[%s6488 + $0x94] sm:$0xf]
        %v6515 = vld [vmem:[%s6488 + $0x9c] sm:$0xf]
        %v6516 = vld [vmem:[%s6488 + $0xa0] sm:$0xf]
        %v6517 = vld [vmem:[%s6488 + $0xa8] sm:$0xf]
        %v6518 = vld [vmem:[%s6488 + $0xac] sm:$0xf]
        %v6519 = vld [vmem:[%s6488 + $0xb4] sm:$0xf]
        %v6520 = vld [vmem:[%s6488 + $0xb8] sm:$0xf]
        %v6553 = vunpack.c.l.b16 %v6489
        %v6554 = vunpack.c.l.b16 %v6490
        %v6555 = vunpack.c.l.b16 %v6491
        %v6556 = vunpack.c.l.b16 %v6492
        %v6557 = vunpack.c.l.b16 %v6493
        %v6558 = vunpack.c.l.b16 %v6494
        %v6559 = vunpack.c.l.b16 %v6495
        %v6560 = vunpack.c.l.b16 %v6496
        %v6561 = vunpack.c.l.b16 %v6497
        %v6562 = vunpack.c.l.b16 %v6498
        %v6563 = vunpack.c.l.b16 %v6499
        %v6564 = vunpack.c.l.b16 %v6500
        %v6565 = vunpack.c.l.b16 %v6501
        %v6566 = vunpack.c.l.b16 %v6502
        %v6567 = vunpack.c.l.b16 %v6503
        %v6568 = vunpack.c.l.b16 %v6504
        %v6569 = vunpack.c.l.b16 %v6505
        %v6570 = vunpack.c.l.b16 %v6506
        %v6571 = vunpack.c.l.b16 %v6507
        %v6572 = vunpack.c.l.b16 %v6508
        %v6573 = vunpack.c.l.b16 %v6509
        %v6574 = vunpack.c.l.b16 %v6510
        %v6575 = vunpack.c.l.b16 %v6511
        %v6576 = vunpack.c.l.b16 %v6512
        %v6577 = vunpack.c.l.b16 %v6513
        %v6578 = vunpack.c.l.b16 %v6514
        %v6579 = vunpack.c.l.b16 %v6515
        %v6580 = vunpack.c.l.b16 %v6516
        %v6581 = vunpack.c.l.b16 %v6517
        %v6582 = vunpack.c.l.b16 %v6518
        %v6583 = vunpack.c.l.b16 %v6519
        %v6584 = vunpack.c.l.b16 %v6520
        %v6585 = vpack.c.b16 %v6554, %v6553
        %v6586 = vpack.c.b16 %v6556, %v6555
        %v6587 = vpack.c.b16 %v6558, %v6557
        %v6588 = vpack.c.b16 %v6560, %v6559
        %v6589 = vpack.c.b16 %v6562, %v6561
        %v6590 = vpack.c.b16 %v6564, %v6563
        %v6591 = vpack.c.b16 %v6566, %v6565
        %v6592 = vpack.c.b16 %v6568, %v6567
        %v6593 = vpack.c.b16 %v6570, %v6569
        %v6594 = vpack.c.b16 %v6572, %v6571
        %v6595 = vpack.c.b16 %v6574, %v6573
        %v6596 = vpack.c.b16 %v6576, %v6575
        %v6597 = vpack.c.b16 %v6578, %v6577
        %v6598 = vpack.c.b16 %v6580, %v6579
        %v6599 = vpack.c.b16 %v6582, %v6581
        %v6600 = vpack.c.b16 %v6584, %v6583
        %6601 = vrot.lane.b32.xlu0 %v6585, 64
        %v6602 = vpop.permute.xlu0 %6601
        %6603 = vrot.lane.b32.xlu0 %v6586, 64
        %v6604 = vpop.permute.xlu0 %6603
        %6605 = vrot.lane.b32.xlu0 %v6587, 64
        %v6606 = vpop.permute.xlu0 %6605
        %6607 = vrot.lane.b32.xlu0 %v6588, 64
        %v6608 = vpop.permute.xlu0 %6607
        %6609 = vrot.lane.b32.xlu0 %v6589, 64
        %v6610 = vpop.permute.xlu0 %6609
        %6611 = vrot.lane.b32.xlu0 %v6590, 64
        %v6612 = vpop.permute.xlu0 %6611
        %6613 = vrot.lane.b32.xlu0 %v6591, 64
        %v6614 = vpop.permute.xlu0 %6613
        %6615 = vrot.lane.b32.xlu0 %v6592, 64
        %v6616 = vpop.permute.xlu0 %6615
        %6617 = vrot.lane.b32.xlu0 %v6593, 64
        %v6618 = vpop.permute.xlu0 %6617
        %6619 = vrot.lane.b32.xlu0 %v6594, 64
        %v6620 = vpop.permute.xlu0 %6619
        %6621 = vrot.lane.b32.xlu0 %v6595, 64
        %v6622 = vpop.permute.xlu0 %6621
        %6623 = vrot.lane.b32.xlu0 %v6596, 64
        %v6624 = vpop.permute.xlu0 %6623
        %6625 = vrot.lane.b32.xlu0 %v6597, 64
        %v6626 = vpop.permute.xlu0 %6625
        %6627 = vrot.lane.b32.xlu0 %v6598, 64
        %v6628 = vpop.permute.xlu0 %6627
        %6629 = vrot.lane.b32.xlu0 %v6599, 64
        %v6630 = vpop.permute.xlu0 %6629
        %6631 = vrot.lane.b32.xlu0 %v6600, 64
        %v6632 = vpop.permute.xlu0 %6631
        %6649 = vst.msk [vmem:[#allocation5 + $0x8] sm:$0xff] %vm5606, %v6602
        %6650 = vst.msk [vmem:[#allocation5 + $0x20] sm:$0xff] %vm5606, %v6604
        %6651 = vst.msk [vmem:[#allocation5 + $0x38] sm:$0xff] %vm5606, %v6606
        %6652 = vst.msk [vmem:[#allocation5 + $0x50] sm:$0xff] %vm5606, %v6608
        %6653 = vst.msk [vmem:[#allocation5 + $0x68] sm:$0xff] %vm5606, %v6610
        %6654 = vst.msk [vmem:[#allocation5 + $0x80] sm:$0xff] %vm5606, %v6612
        %6655 = vst.msk [vmem:[#allocation5 + $0x98] sm:$0xff] %vm5606, %v6614
        %6656 = vst.msk [vmem:[#allocation5 + $0xb0] sm:$0xff] %vm5606, %v6616
        %6657 = vst.msk [vmem:[#allocation5 + $0xc8] sm:$0xff] %vm5606, %v6618
        %6658 = vst.msk [vmem:[#allocation5 + $0xe0] sm:$0xff] %vm5606, %v6620
        %6659 = vst.msk [vmem:[#allocation5 + $0xf8] sm:$0xff] %vm5606, %v6622
        %6660 = vst.msk [vmem:[#allocation5 + $0x110] sm:$0xff] %vm5606, %v6624
        %6661 = vst.msk [vmem:[#allocation5 + $0x128] sm:$0xff] %vm5606, %v6626
        %6662 = vst.msk [vmem:[#allocation5 + $0x140] sm:$0xff] %vm5606, %v6628
        %6663 = vst.msk [vmem:[#allocation5 + $0x158] sm:$0xff] %vm5606, %v6630
        %6664 = vst.msk [vmem:[#allocation5 + $0x170] sm:$0xff] %vm5606, %v6632
        %v6665 = vld [vmem:[%s6488] sm:$0xf]
        %v6666 = vld [vmem:[%s6488 + $0x4] sm:$0xf]
        %v6667 = vld [vmem:[%s6488 + $0x8] sm:$0x1]
        %v6668 = vld [vmem:[%s6488 + $0xc] sm:$0xf]
        %v6669 = vld [vmem:[%s6488 + $0x10] sm:$0xf]
        %v6670 = vld [vmem:[%s6488 + $0x14] sm:$0x1]
        %v6671 = vld [vmem:[%s6488 + $0x18] sm:$0xf]
        %v6672 = vld [vmem:[%s6488 + $0x1c] sm:$0xf]
        %v6673 = vld [vmem:[%s6488 + $0x20] sm:$0x1]
        %v6674 = vld [vmem:[%s6488 + $0x24] sm:$0xf]
        %v6675 = vld [vmem:[%s6488 + $0x28] sm:$0xf]
        %v6676 = vld [vmem:[%s6488 + $0x2c] sm:$0x1]
        %v6677 = vld [vmem:[%s6488 + $0x30] sm:$0xf]
        %v6678 = vld [vmem:[%s6488 + $0x34] sm:$0xf]
        %v6679 = vld [vmem:[%s6488 + $0x38] sm:$0x1]
        %v6680 = vld [vmem:[%s6488 + $0x3c] sm:$0xf]
        %v6681 = vld [vmem:[%s6488 + $0x40] sm:$0xf]
        %v6682 = vld [vmem:[%s6488 + $0x44] sm:$0x1]
        %v6683 = vld [vmem:[%s6488 + $0x48] sm:$0xf]
        %v6684 = vld [vmem:[%s6488 + $0x4c] sm:$0xf]
        %v6685 = vld [vmem:[%s6488 + $0x50] sm:$0x1]
        %v6686 = vld [vmem:[%s6488 + $0x54] sm:$0xf]
        %v6687 = vld [vmem:[%s6488 + $0x58] sm:$0xf]
        %v6688 = vld [vmem:[%s6488 + $0x5c] sm:$0x1]
        %v6689 = vld [vmem:[%s6488 + $0x60] sm:$0xf]
        %v6690 = vld [vmem:[%s6488 + $0x64] sm:$0xf]
        %v6691 = vld [vmem:[%s6488 + $0x68] sm:$0x1]
        %v6692 = vld [vmem:[%s6488 + $0x6c] sm:$0xf]
        %v6693 = vld [vmem:[%s6488 + $0x70] sm:$0xf]
        %v6694 = vld [vmem:[%s6488 + $0x74] sm:$0x1]
        %v6695 = vld [vmem:[%s6488 + $0x78] sm:$0xf]
        %v6696 = vld [vmem:[%s6488 + $0x7c] sm:$0xf]
        %v6697 = vld [vmem:[%s6488 + $0x80] sm:$0x1]
        %v6698 = vld [vmem:[%s6488 + $0x84] sm:$0xf]
        %v6699 = vld [vmem:[%s6488 + $0x88] sm:$0xf]
        %v6700 = vld [vmem:[%s6488 + $0x8c] sm:$0x1]
        %v6701 = vld [vmem:[%s6488 + $0x90] sm:$0xf]
        %v6702 = vld [vmem:[%s6488 + $0x94] sm:$0xf]
        %v6703 = vld [vmem:[%s6488 + $0x98] sm:$0x1]
        %v6704 = vld [vmem:[%s6488 + $0x9c] sm:$0xf]
        %v6705 = vld [vmem:[%s6488 + $0xa0] sm:$0xf]
        %v6706 = vld [vmem:[%s6488 + $0xa4] sm:$0x1]
        %v6707 = vld [vmem:[%s6488 + $0xa8] sm:$0xf]
        %v6708 = vld [vmem:[%s6488 + $0xac] sm:$0xf]
        %v6709 = vld [vmem:[%s6488 + $0xb0] sm:$0x1]
        %v6710 = vld [vmem:[%s6488 + $0xb4] sm:$0xf]
        %v6711 = vld [vmem:[%s6488 + $0xb8] sm:$0xf]
        %v6712 = vld [vmem:[%s6488 + $0xbc] sm:$0x1]
        %v6761 = vunpack.c.l.b16 %v6665
        %v6762 = vunpack.c.l.b16 %v6666
        %v6763 = vunpack.c.l.b16 %v6667
        %v6764 = vunpack.c.l.b16 %v6668
        %v6765 = vunpack.c.l.b16 %v6669
        %v6766 = vunpack.c.l.b16 %v6670
        %v6767 = vunpack.c.l.b16 %v6671
        %v6768 = vunpack.c.l.b16 %v6672
        %v6769 = vunpack.c.l.b16 %v6673
        %v6770 = vunpack.c.l.b16 %v6674
        %v6771 = vunpack.c.l.b16 %v6675
        %v6772 = vunpack.c.l.b16 %v6676
        %v6773 = vunpack.c.l.b16 %v6677
        %v6774 = vunpack.c.l.b16 %v6678
        %v6775 = vunpack.c.l.b16 %v6679
        %v6776 = vunpack.c.l.b16 %v6680
        %v6777 = vunpack.c.l.b16 %v6681
        %v6778 = vunpack.c.l.b16 %v6682
        %v6779 = vunpack.c.l.b16 %v6683
        %v6780 = vunpack.c.l.b16 %v6684
        %v6781 = vunpack.c.l.b16 %v6685
        %v6782 = vunpack.c.l.b16 %v6686
        %v6783 = vunpack.c.l.b16 %v6687
        %v6784 = vunpack.c.l.b16 %v6688
        %v6785 = vunpack.c.l.b16 %v6689
        %v6786 = vunpack.c.l.b16 %v6690
        %v6787 = vunpack.c.l.b16 %v6691
        %v6788 = vunpack.c.l.b16 %v6692
        %v6789 = vunpack.c.l.b16 %v6693
        %v6790 = vunpack.c.l.b16 %v6694
        %v6791 = vunpack.c.l.b16 %v6695
        %v6792 = vunpack.c.l.b16 %v6696
        %v6793 = vunpack.c.l.b16 %v6697
        %v6794 = vunpack.c.l.b16 %v6698
        %v6795 = vunpack.c.l.b16 %v6699
        %v6796 = vunpack.c.l.b16 %v6700
        %v6797 = vunpack.c.l.b16 %v6701
        %v6798 = vunpack.c.l.b16 %v6702
        %v6799 = vunpack.c.l.b16 %v6703
        %v6800 = vunpack.c.l.b16 %v6704
        %v6801 = vunpack.c.l.b16 %v6705
        %v6802 = vunpack.c.l.b16 %v6706
        %v6803 = vunpack.c.l.b16 %v6707
        %v6804 = vunpack.c.l.b16 %v6708
        %v6805 = vunpack.c.l.b16 %v6709
        %v6806 = vunpack.c.l.b16 %v6710
        %v6807 = vunpack.c.l.b16 %v6711
        %v6808 = vunpack.c.l.b16 %v6712
        %v6809 = vpack.c.b16 %v6762, %v6761
        %v6810 = vpack.c.b16 %v6763, %v6763
        %v6811 = vpack.c.b16 %v6765, %v6764
        %v6812 = vpack.c.b16 %v6766, %v6766
        %v6813 = vpack.c.b16 %v6768, %v6767
        %v6814 = vpack.c.b16 %v6769, %v6769
        %v6815 = vpack.c.b16 %v6771, %v6770
        %v6816 = vpack.c.b16 %v6772, %v6772
        %v6817 = vpack.c.b16 %v6774, %v6773
        %v6818 = vpack.c.b16 %v6775, %v6775
        %v6819 = vpack.c.b16 %v6777, %v6776
        %v6820 = vpack.c.b16 %v6778, %v6778
        %v6821 = vpack.c.b16 %v6780, %v6779
        %v6822 = vpack.c.b16 %v6781, %v6781
        %v6823 = vpack.c.b16 %v6783, %v6782
        %v6824 = vpack.c.b16 %v6784, %v6784
        %v6825 = vpack.c.b16 %v6786, %v6785
        %v6826 = vpack.c.b16 %v6787, %v6787
        %v6827 = vpack.c.b16 %v6789, %v6788
        %v6828 = vpack.c.b16 %v6790, %v6790
        %v6829 = vpack.c.b16 %v6792, %v6791
        %v6830 = vpack.c.b16 %v6793, %v6793
        %v6831 = vpack.c.b16 %v6795, %v6794
        %v6832 = vpack.c.b16 %v6796, %v6796
        %v6833 = vpack.c.b16 %v6798, %v6797
        %v6834 = vpack.c.b16 %v6799, %v6799
        %v6835 = vpack.c.b16 %v6801, %v6800
        %v6836 = vpack.c.b16 %v6802, %v6802
        %v6837 = vpack.c.b16 %v6804, %v6803
        %v6838 = vpack.c.b16 %v6805, %v6805
        %v6839 = vpack.c.b16 %v6807, %v6806
        %v6840 = vpack.c.b16 %v6808, %v6808
        %v6842 = vshrl.u32 %v6809, 16
        %v6844 = vshll.u32 %v6809, 16
        %v6846 = vrot.slane %v6844, 1
        %v6847 = vor.u32 %v6842, %v6846
        %v6849 = vshll.u32 %v6810, 16
        %v6851 = vrot.slane %v6849, 1
        %v6852 = vsel %vm1101, %v6847, %v6851
        %v6854 = vshrl.u32 %v6811, 16
        %v6856 = vshll.u32 %v6811, 16
        %v6858 = vrot.slane %v6856, 1
        %v6859 = vor.u32 %v6854, %v6858
        %v6861 = vshll.u32 %v6812, 16
        %v6863 = vrot.slane %v6861, 1
        %v6864 = vsel %vm1101, %v6859, %v6863
        %v6866 = vshrl.u32 %v6813, 16
        %v6868 = vshll.u32 %v6813, 16
        %v6870 = vrot.slane %v6868, 1
        %v6871 = vor.u32 %v6866, %v6870
        %v6873 = vshll.u32 %v6814, 16
        %v6875 = vrot.slane %v6873, 1
        %v6876 = vsel %vm1101, %v6871, %v6875
        %v6878 = vshrl.u32 %v6815, 16
        %v6880 = vshll.u32 %v6815, 16
        %v6882 = vrot.slane %v6880, 1
        %v6883 = vor.u32 %v6878, %v6882
        %v6885 = vshll.u32 %v6816, 16
        %v6887 = vrot.slane %v6885, 1
        %v6888 = vsel %vm1101, %v6883, %v6887
        %v6890 = vshrl.u32 %v6817, 16
        %v6892 = vshll.u32 %v6817, 16
        %v6894 = vrot.slane %v6892, 1
        %v6895 = vor.u32 %v6890, %v6894
        %v6897 = vshll.u32 %v6818, 16
        %v6899 = vrot.slane %v6897, 1
        %v6900 = vsel %vm1101, %v6895, %v6899
        %v6902 = vshrl.u32 %v6819, 16
        %v6904 = vshll.u32 %v6819, 16
        %v6906 = vrot.slane %v6904, 1
        %v6907 = vor.u32 %v6902, %v6906
        %v6909 = vshll.u32 %v6820, 16
        %v6911 = vrot.slane %v6909, 1
        %v6912 = vsel %vm1101, %v6907, %v6911
        %v6914 = vshrl.u32 %v6821, 16
        %v6916 = vshll.u32 %v6821, 16
        %v6918 = vrot.slane %v6916, 1
        %v6919 = vor.u32 %v6914, %v6918
        %v6921 = vshll.u32 %v6822, 16
        %v6923 = vrot.slane %v6921, 1
        %v6924 = vsel %vm1101, %v6919, %v6923
        %v6926 = vshrl.u32 %v6823, 16
        %v6928 = vshll.u32 %v6823, 16
        %v6930 = vrot.slane %v6928, 1
        %v6931 = vor.u32 %v6926, %v6930
        %v6933 = vshll.u32 %v6824, 16
        %v6935 = vrot.slane %v6933, 1
        %v6936 = vsel %vm1101, %v6931, %v6935
        %v6938 = vshrl.u32 %v6825, 16
        %v6940 = vshll.u32 %v6825, 16
        %v6942 = vrot.slane %v6940, 1
        %v6943 = vor.u32 %v6938, %v6942
        %v6945 = vshll.u32 %v6826, 16
        %v6947 = vrot.slane %v6945, 1
        %v6948 = vsel %vm1101, %v6943, %v6947
        %v6950 = vshrl.u32 %v6827, 16
        %v6952 = vshll.u32 %v6827, 16
        %v6954 = vrot.slane %v6952, 1
        %v6955 = vor.u32 %v6950, %v6954
        %v6957 = vshll.u32 %v6828, 16
        %v6959 = vrot.slane %v6957, 1
        %v6960 = vsel %vm1101, %v6955, %v6959
        %v6962 = vshrl.u32 %v6829, 16
        %v6964 = vshll.u32 %v6829, 16
        %v6966 = vrot.slane %v6964, 1
        %v6967 = vor.u32 %v6962, %v6966
        %v6969 = vshll.u32 %v6830, 16
        %v6971 = vrot.slane %v6969, 1
        %v6972 = vsel %vm1101, %v6967, %v6971
        %v6974 = vshrl.u32 %v6831, 16
        %v6976 = vshll.u32 %v6831, 16
        %v6978 = vrot.slane %v6976, 1
        %v6979 = vor.u32 %v6974, %v6978
        %v6981 = vshll.u32 %v6832, 16
        %v6983 = vrot.slane %v6981, 1
        %v6984 = vsel %vm1101, %v6979, %v6983
        %v6986 = vshrl.u32 %v6833, 16
        %v6988 = vshll.u32 %v6833, 16
        %v6990 = vrot.slane %v6988, 1
        %v6991 = vor.u32 %v6986, %v6990
        %v6993 = vshll.u32 %v6834, 16
        %v6995 = vrot.slane %v6993, 1
        %v6996 = vsel %vm1101, %v6991, %v6995
        %v6998 = vshrl.u32 %v6835, 16
        %v7000 = vshll.u32 %v6835, 16
        %v7002 = vrot.slane %v7000, 1
        %v7003 = vor.u32 %v6998, %v7002
        %v7005 = vshll.u32 %v6836, 16
        %v7007 = vrot.slane %v7005, 1
        %v7008 = vsel %vm1101, %v7003, %v7007
        %v7010 = vshrl.u32 %v6837, 16
        %v7012 = vshll.u32 %v6837, 16
        %v7014 = vrot.slane %v7012, 1
        %v7015 = vor.u32 %v7010, %v7014
        %v7017 = vshll.u32 %v6838, 16
        %v7019 = vrot.slane %v7017, 1
        %v7020 = vsel %vm1101, %v7015, %v7019
        %v7022 = vshrl.u32 %v6839, 16
        %v7024 = vshll.u32 %v6839, 16
        %v7026 = vrot.slane %v7024, 1
        %v7027 = vor.u32 %v7022, %v7026
        %v7029 = vshll.u32 %v6840, 16
        %v7031 = vrot.slane %v7029, 1
        %v7032 = vsel %vm1101, %v7027, %v7031
        %7033 = vrot.lane.b32.xlu0 %v6852, 96
        %v7034 = vpop.permute.xlu0 %7033
        %7035 = vrot.lane.b32.xlu0 %v6864, 96
        %v7036 = vpop.permute.xlu0 %7035
        %7037 = vrot.lane.b32.xlu0 %v6876, 96
        %v7038 = vpop.permute.xlu0 %7037
        %7039 = vrot.lane.b32.xlu0 %v6888, 96
        %v7040 = vpop.permute.xlu0 %7039
        %7041 = vrot.lane.b32.xlu0 %v6900, 96
        %v7042 = vpop.permute.xlu0 %7041
        %7043 = vrot.lane.b32.xlu0 %v6912, 96
        %v7044 = vpop.permute.xlu0 %7043
        %7045 = vrot.lane.b32.xlu0 %v6924, 96
        %v7046 = vpop.permute.xlu0 %7045
        %7047 = vrot.lane.b32.xlu0 %v6936, 96
        %v7048 = vpop.permute.xlu0 %7047
        %7049 = vrot.lane.b32.xlu0 %v6948, 96
        %v7050 = vpop.permute.xlu0 %7049
        %7051 = vrot.lane.b32.xlu0 %v6960, 96
        %v7052 = vpop.permute.xlu0 %7051
        %7053 = vrot.lane.b32.xlu0 %v6972, 96
        %v7054 = vpop.permute.xlu0 %7053
        %7055 = vrot.lane.b32.xlu0 %v6984, 96
        %v7056 = vpop.permute.xlu0 %7055
        %7057 = vrot.lane.b32.xlu0 %v6996, 96
        %v7058 = vpop.permute.xlu0 %7057
        %7059 = vrot.lane.b32.xlu0 %v7008, 96
        %v7060 = vpop.permute.xlu0 %7059
        %7061 = vrot.lane.b32.xlu0 %v7020, 96
        %v7062 = vpop.permute.xlu0 %7061
        %7063 = vrot.lane.b32.xlu0 %v7032, 96
        %v7064 = vpop.permute.xlu0 %7063
        %7081 = vst.msk [vmem:[#allocation5 + $0x8] sm:$0xff] %vm5783, %v7034
        %7082 = vst.msk [vmem:[#allocation5 + $0x20] sm:$0xff] %vm5783, %v7036
        %7083 = vst.msk [vmem:[#allocation5 + $0x38] sm:$0xff] %vm5783, %v7038
        %7084 = vst.msk [vmem:[#allocation5 + $0x50] sm:$0xff] %vm5783, %v7040
        %7085 = vst.msk [vmem:[#allocation5 + $0x68] sm:$0xff] %vm5783, %v7042
        %7086 = vst.msk [vmem:[#allocation5 + $0x80] sm:$0xff] %vm5783, %v7044
        %7087 = vst.msk [vmem:[#allocation5 + $0x98] sm:$0xff] %vm5783, %v7046
        %7088 = vst.msk [vmem:[#allocation5 + $0xb0] sm:$0xff] %vm5783, %v7048
        %7089 = vst.msk [vmem:[#allocation5 + $0xc8] sm:$0xff] %vm5783, %v7050
        %7090 = vst.msk [vmem:[#allocation5 + $0xe0] sm:$0xff] %vm5783, %v7052
        %7091 = vst.msk [vmem:[#allocation5 + $0xf8] sm:$0xff] %vm5783, %v7054
        %7092 = vst.msk [vmem:[#allocation5 + $0x110] sm:$0xff] %vm5783, %v7056
        %7093 = vst.msk [vmem:[#allocation5 + $0x128] sm:$0xff] %vm5783, %v7058
        %7094 = vst.msk [vmem:[#allocation5 + $0x140] sm:$0xff] %vm5783, %v7060
        %7095 = vst.msk [vmem:[#allocation5 + $0x158] sm:$0xff] %vm5783, %v7062
        %7096 = vst.msk [vmem:[#allocation5 + $0x170] sm:$0xff] %vm5783, %v7064
        %v7097 = vld [vmem:[%s6488] sm:$0xe]
        %v7098 = vld [vmem:[%s6488 + $0x4] sm:$0xf]
        %v7099 = vld [vmem:[%s6488 + $0x8] sm:$0x1]
        %v7100 = vld [vmem:[%s6488 + $0xc] sm:$0xe]
        %v7101 = vld [vmem:[%s6488 + $0x10] sm:$0xf]
        %v7102 = vld [vmem:[%s6488 + $0x14] sm:$0x1]
        %v7103 = vld [vmem:[%s6488 + $0x18] sm:$0xe]
        %v7104 = vld [vmem:[%s6488 + $0x1c] sm:$0xf]
        %v7105 = vld [vmem:[%s6488 + $0x20] sm:$0x1]
        %v7106 = vld [vmem:[%s6488 + $0x24] sm:$0xe]
        %v7107 = vld [vmem:[%s6488 + $0x28] sm:$0xf]
        %v7108 = vld [vmem:[%s6488 + $0x2c] sm:$0x1]
        %v7109 = vld [vmem:[%s6488 + $0x30] sm:$0xe]
        %v7110 = vld [vmem:[%s6488 + $0x34] sm:$0xf]
        %v7111 = vld [vmem:[%s6488 + $0x38] sm:$0x1]
        %v7112 = vld [vmem:[%s6488 + $0x3c] sm:$0xe]
        %v7113 = vld [vmem:[%s6488 + $0x40] sm:$0xf]
        %v7114 = vld [vmem:[%s6488 + $0x44] sm:$0x1]
        %v7115 = vld [vmem:[%s6488 + $0x48] sm:$0xe]
        %v7116 = vld [vmem:[%s6488 + $0x4c] sm:$0xf]
        %v7117 = vld [vmem:[%s6488 + $0x50] sm:$0x1]
        %v7118 = vld [vmem:[%s6488 + $0x54] sm:$0xe]
        %v7119 = vld [vmem:[%s6488 + $0x58] sm:$0xf]
        %v7120 = vld [vmem:[%s6488 + $0x5c] sm:$0x1]
        %v7121 = vld [vmem:[%s6488 + $0x60] sm:$0xe]
        %v7122 = vld [vmem:[%s6488 + $0x64] sm:$0xf]
        %v7123 = vld [vmem:[%s6488 + $0x68] sm:$0x1]
        %v7124 = vld [vmem:[%s6488 + $0x6c] sm:$0xe]
        %v7125 = vld [vmem:[%s6488 + $0x70] sm:$0xf]
        %v7126 = vld [vmem:[%s6488 + $0x74] sm:$0x1]
        %v7127 = vld [vmem:[%s6488 + $0x78] sm:$0xe]
        %v7128 = vld [vmem:[%s6488 + $0x7c] sm:$0xf]
        %v7129 = vld [vmem:[%s6488 + $0x80] sm:$0x1]
        %v7130 = vld [vmem:[%s6488 + $0x84] sm:$0xe]
        %v7131 = vld [vmem:[%s6488 + $0x88] sm:$0xf]
        %v7132 = vld [vmem:[%s6488 + $0x8c] sm:$0x1]
        %v7133 = vld [vmem:[%s6488 + $0x90] sm:$0xe]
        %v7134 = vld [vmem:[%s6488 + $0x94] sm:$0xf]
        %v7135 = vld [vmem:[%s6488 + $0x98] sm:$0x1]
        %v7136 = vld [vmem:[%s6488 + $0x9c] sm:$0xe]
        %v7137 = vld [vmem:[%s6488 + $0xa0] sm:$0xf]
        %v7138 = vld [vmem:[%s6488 + $0xa4] sm:$0x1]
        %v7139 = vld [vmem:[%s6488 + $0xa8] sm:$0xe]
        %v7140 = vld [vmem:[%s6488 + $0xac] sm:$0xf]
        %v7141 = vld [vmem:[%s6488 + $0xb0] sm:$0x1]
        %v7142 = vld [vmem:[%s6488 + $0xb4] sm:$0xe]
        %v7143 = vld [vmem:[%s6488 + $0xb8] sm:$0xf]
        %v7144 = vld [vmem:[%s6488 + $0xbc] sm:$0x1]
        %v7193 = vunpack.c.l.b16 %v7097
        %v7194 = vunpack.c.l.b16 %v7098
        %v7195 = vunpack.c.l.b16 %v7099
        %v7196 = vunpack.c.l.b16 %v7100
        %v7197 = vunpack.c.l.b16 %v7101
        %v7198 = vunpack.c.l.b16 %v7102
        %v7199 = vunpack.c.l.b16 %v7103
        %v7200 = vunpack.c.l.b16 %v7104
        %v7201 = vunpack.c.l.b16 %v7105
        %v7202 = vunpack.c.l.b16 %v7106
        %v7203 = vunpack.c.l.b16 %v7107
        %v7204 = vunpack.c.l.b16 %v7108
        %v7205 = vunpack.c.l.b16 %v7109
        %v7206 = vunpack.c.l.b16 %v7110
        %v7207 = vunpack.c.l.b16 %v7111
        %v7208 = vunpack.c.l.b16 %v7112
        %v7209 = vunpack.c.l.b16 %v7113
        %v7210 = vunpack.c.l.b16 %v7114
        %v7211 = vunpack.c.l.b16 %v7115
        %v7212 = vunpack.c.l.b16 %v7116
        %v7213 = vunpack.c.l.b16 %v7117
        %v7214 = vunpack.c.l.b16 %v7118
        %v7215 = vunpack.c.l.b16 %v7119
        %v7216 = vunpack.c.l.b16 %v7120
        %v7217 = vunpack.c.l.b16 %v7121
        %v7218 = vunpack.c.l.b16 %v7122
        %v7219 = vunpack.c.l.b16 %v7123
        %v7220 = vunpack.c.l.b16 %v7124
        %v7221 = vunpack.c.l.b16 %v7125
        %v7222 = vunpack.c.l.b16 %v7126
        %v7223 = vunpack.c.l.b16 %v7127
        %v7224 = vunpack.c.l.b16 %v7128
        %v7225 = vunpack.c.l.b16 %v7129
        %v7226 = vunpack.c.l.b16 %v7130
        %v7227 = vunpack.c.l.b16 %v7131
        %v7228 = vunpack.c.l.b16 %v7132
        %v7229 = vunpack.c.l.b16 %v7133
        %v7230 = vunpack.c.l.b16 %v7134
        %v7231 = vunpack.c.l.b16 %v7135
        %v7232 = vunpack.c.l.b16 %v7136
        %v7233 = vunpack.c.l.b16 %v7137
        %v7234 = vunpack.c.l.b16 %v7138
        %v7235 = vunpack.c.l.b16 %v7139
        %v7236 = vunpack.c.l.b16 %v7140
        %v7237 = vunpack.c.l.b16 %v7141
        %v7238 = vunpack.c.l.b16 %v7142
        %v7239 = vunpack.c.l.b16 %v7143
        %v7240 = vunpack.c.l.b16 %v7144
        %v7241 = vpack.c.b16 %v7194, %v7193
        %v7242 = vpack.c.b16 %v7195, %v7195
        %v7243 = vpack.c.b16 %v7197, %v7196
        %v7244 = vpack.c.b16 %v7198, %v7198
        %v7245 = vpack.c.b16 %v7200, %v7199
        %v7246 = vpack.c.b16 %v7201, %v7201
        %v7247 = vpack.c.b16 %v7203, %v7202
        %v7248 = vpack.c.b16 %v7204, %v7204
        %v7249 = vpack.c.b16 %v7206, %v7205
        %v7250 = vpack.c.b16 %v7207, %v7207
        %v7251 = vpack.c.b16 %v7209, %v7208
        %v7252 = vpack.c.b16 %v7210, %v7210
        %v7253 = vpack.c.b16 %v7212, %v7211
        %v7254 = vpack.c.b16 %v7213, %v7213
        %v7255 = vpack.c.b16 %v7215, %v7214
        %v7256 = vpack.c.b16 %v7216, %v7216
        %v7257 = vpack.c.b16 %v7218, %v7217
        %v7258 = vpack.c.b16 %v7219, %v7219
        %v7259 = vpack.c.b16 %v7221, %v7220
        %v7260 = vpack.c.b16 %v7222, %v7222
        %v7261 = vpack.c.b16 %v7224, %v7223
        %v7262 = vpack.c.b16 %v7225, %v7225
        %v7263 = vpack.c.b16 %v7227, %v7226
        %v7264 = vpack.c.b16 %v7228, %v7228
        %v7265 = vpack.c.b16 %v7230, %v7229
        %v7266 = vpack.c.b16 %v7231, %v7231
        %v7267 = vpack.c.b16 %v7233, %v7232
        %v7268 = vpack.c.b16 %v7234, %v7234
        %v7269 = vpack.c.b16 %v7236, %v7235
        %v7270 = vpack.c.b16 %v7237, %v7237
        %v7271 = vpack.c.b16 %v7239, %v7238
        %v7272 = vpack.c.b16 %v7240, %v7240
        %v7273 = vrot.slane %v7241, 1
        %v7274 = vrot.slane %v7242, 1
        %v7275 = vsel %vm1535, %v7273, %v7274
        %v7276 = vrot.slane %v7243, 1
        %v7277 = vrot.slane %v7244, 1
        %v7278 = vsel %vm1535, %v7276, %v7277
        %v7279 = vrot.slane %v7245, 1
        %v7280 = vrot.slane %v7246, 1
        %v7281 = vsel %vm1535, %v7279, %v7280
        %v7282 = vrot.slane %v7247, 1
        %v7283 = vrot.slane %v7248, 1
        %v7284 = vsel %vm1535, %v7282, %v7283
        %v7285 = vrot.slane %v7249, 1
        %v7286 = vrot.slane %v7250, 1
        %v7287 = vsel %vm1535, %v7285, %v7286
        %v7288 = vrot.slane %v7251, 1
        %v7289 = vrot.slane %v7252, 1
        %v7290 = vsel %vm1535, %v7288, %v7289
        %v7291 = vrot.slane %v7253, 1
        %v7292 = vrot.slane %v7254, 1
        %v7293 = vsel %vm1535, %v7291, %v7292
        %v7294 = vrot.slane %v7255, 1
        %v7295 = vrot.slane %v7256, 1
        %v7296 = vsel %vm1535, %v7294, %v7295
        %v7297 = vrot.slane %v7257, 1
        %v7298 = vrot.slane %v7258, 1
        %v7299 = vsel %vm1535, %v7297, %v7298
        %v7300 = vrot.slane %v7259, 1
        %v7301 = vrot.slane %v7260, 1
        %v7302 = vsel %vm1535, %v7300, %v7301
        %v7303 = vrot.slane %v7261, 1
        %v7304 = vrot.slane %v7262, 1
        %v7305 = vsel %vm1535, %v7303, %v7304
        %v7306 = vrot.slane %v7263, 1
        %v7307 = vrot.slane %v7264, 1
        %v7308 = vsel %vm1535, %v7306, %v7307
        %v7309 = vrot.slane %v7265, 1
        %v7310 = vrot.slane %v7266, 1
        %v7311 = vsel %vm1535, %v7309, %v7310
        %v7312 = vrot.slane %v7267, 1
        %v7313 = vrot.slane %v7268, 1
        %v7314 = vsel %vm1535, %v7312, %v7313
        %v7315 = vrot.slane %v7269, 1
        %v7316 = vrot.slane %v7270, 1
        %v7317 = vsel %vm1535, %v7315, %v7316
        %v7318 = vrot.slane %v7271, 1
        %v7319 = vrot.slane %v7272, 1
        %v7320 = vsel %vm1535, %v7318, %v7319
        %7337 = vst.msk [vmem:[#allocation5 + $0x10] sm:$0xff] %vm3707, %v7275
        %7338 = vst.msk [vmem:[#allocation5 + $0x28] sm:$0xff] %vm3707, %v7278
        %7339 = vst.msk [vmem:[#allocation5 + $0x40] sm:$0xff] %vm3707, %v7281
        %7340 = vst.msk [vmem:[#allocation5 + $0x58] sm:$0xff] %vm3707, %v7284
        %7341 = vst.msk [vmem:[#allocation5 + $0x70] sm:$0xff] %vm3707, %v7287
        %7342 = vst.msk [vmem:[#allocation5 + $0x88] sm:$0xff] %vm3707, %v7290
        %7343 = vst.msk [vmem:[#allocation5 + $0xa0] sm:$0xff] %vm3707, %v7293
        %7344 = vst.msk [vmem:[#allocation5 + $0xb8] sm:$0xff] %vm3707, %v7296
        %7345 = vst.msk [vmem:[#allocation5 + $0xd0] sm:$0xff] %vm3707, %v7299
        %7346 = vst.msk [vmem:[#allocation5 + $0xe8] sm:$0xff] %vm3707, %v7302
        %7347 = vst.msk [vmem:[#allocation5 + $0x100] sm:$0xff] %vm3707, %v7305
        %7348 = vst.msk [vmem:[#allocation5 + $0x118] sm:$0xff] %vm3707, %v7308
        %7349 = vst.msk [vmem:[#allocation5 + $0x130] sm:$0xff] %vm3707, %v7311
        %7350 = vst.msk [vmem:[#allocation5 + $0x148] sm:$0xff] %vm3707, %v7314
        %7351 = vst.msk [vmem:[#allocation5 + $0x160] sm:$0xff] %vm3707, %v7317
        %7352 = vst.msk [vmem:[#allocation5 + $0x178] sm:$0xff] %vm3707, %v7320
        %v7353 = vld [vmem:[#allocation5] sm:$0xff]
        %v7354 = vld [vmem:[#allocation5 + $0x8] sm:$0xff]
        %v7355 = vld [vmem:[#allocation5 + $0x10] sm:$0xff]
        %v7356 = vld [vmem:[#allocation5 + $0x18] sm:$0xff]
        %v7357 = vld [vmem:[#allocation5 + $0x20] sm:$0xff]
        %v7358 = vld [vmem:[#allocation5 + $0x28] sm:$0xff]
        %v7359 = vld [vmem:[#allocation5 + $0x30] sm:$0xff]
        %v7360 = vld [vmem:[#allocation5 + $0x38] sm:$0xff]
        %v7361 = vld [vmem:[#allocation5 + $0x40] sm:$0xff]
        %v7362 = vld [vmem:[#allocation5 + $0x48] sm:$0xff]
        %v7363 = vld [vmem:[#allocation5 + $0x50] sm:$0xff]
        %v7364 = vld [vmem:[#allocation5 + $0x58] sm:$0xff]
        %v7365 = vld [vmem:[#allocation5 + $0x60] sm:$0xff]
        %v7366 = vld [vmem:[#allocation5 + $0x68] sm:$0xff]
        %v7367 = vld [vmem:[#allocation5 + $0x70] sm:$0xff]
        %v7368 = vld [vmem:[#allocation5 + $0x78] sm:$0xff]
        %v7369 = vld [vmem:[#allocation5 + $0x80] sm:$0xff]
        %v7370 = vld [vmem:[#allocation5 + $0x88] sm:$0xff]
        %v7371 = vld [vmem:[#allocation5 + $0x90] sm:$0xff]
        %v7372 = vld [vmem:[#allocation5 + $0x98] sm:$0xff]
        %v7373 = vld [vmem:[#allocation5 + $0xa0] sm:$0xff]
        %v7374 = vld [vmem:[#allocation5 + $0xa8] sm:$0xff]
        %v7375 = vld [vmem:[#allocation5 + $0xb0] sm:$0xff]
        %v7376 = vld [vmem:[#allocation5 + $0xb8] sm:$0xff]
        %v7377 = vld [vmem:[#allocation5 + $0xc0] sm:$0xff]
        %v7378 = vld [vmem:[#allocation5 + $0xc8] sm:$0xff]
        %v7379 = vld [vmem:[#allocation5 + $0xd0] sm:$0xff]
        %v7380 = vld [vmem:[#allocation5 + $0xd8] sm:$0xff]
        %v7381 = vld [vmem:[#allocation5 + $0xe0] sm:$0xff]
        %v7382 = vld [vmem:[#allocation5 + $0xe8] sm:$0xff]
        %v7383 = vld [vmem:[#allocation5 + $0xf0] sm:$0xff]
        %v7384 = vld [vmem:[#allocation5 + $0xf8] sm:$0xff]
        %v7385 = vld [vmem:[#allocation5 + $0x100] sm:$0xff]
        %v7386 = vld [vmem:[#allocation5 + $0x108] sm:$0xff]
        %v7387 = vld [vmem:[#allocation5 + $0x110] sm:$0xff]
        %v7388 = vld [vmem:[#allocation5 + $0x118] sm:$0xff]
        %v7389 = vld [vmem:[#allocation5 + $0x120] sm:$0xff]
        %v7390 = vld [vmem:[#allocation5 + $0x128] sm:$0xff]
        %v7391 = vld [vmem:[#allocation5 + $0x130] sm:$0xff]
        %v7392 = vld [vmem:[#allocation5 + $0x138] sm:$0xff]
        %v7393 = vld [vmem:[#allocation5 + $0x140] sm:$0xff]
        %v7394 = vld [vmem:[#allocation5 + $0x148] sm:$0xff]
        %v7395 = vld [vmem:[#allocation5 + $0x150] sm:$0xff]
        %v7396 = vld [vmem:[#allocation5 + $0x158] sm:$0xff]
        %v7397 = vld [vmem:[#allocation5 + $0x160] sm:$0xff]
        %v7398 = vld [vmem:[#allocation5 + $0x168] sm:$0xff]
        %v7399 = vld [vmem:[#allocation5 + $0x170] sm:$0xff]
        %v7400 = vld [vmem:[#allocation5 + $0x178] sm:$0xff]
        %v7401 = vld [vmem:[%s3] sm:$0xf]
        %v7402 = vld [vmem:[%s3 + $0x4] sm:$0xf]
        %v7403 = vld [vmem:[%s3 + $0x8] sm:$0xf]
        %v7404 = vld [vmem:[%s3 + $0xc] sm:$0xf]
        %v7405 = vld [vmem:[%s3 + $0x10] sm:$0xf]
        %v7406 = vld [vmem:[%s3 + $0x14] sm:$0xf]
        %v7407 = vld [vmem:[%s3 + $0x18] sm:$0xf]
        %v7408 = vld [vmem:[%s3 + $0x1c] sm:$0xf]
        %v7409 = vld [vmem:[%s3 + $0x20] sm:$0xf]
        %v7410 = vld [vmem:[%s3 + $0x24] sm:$0xf]
        %v7411 = vld [vmem:[%s3 + $0x28] sm:$0xf]
        %v7412 = vld [vmem:[%s3 + $0x2c] sm:$0xf]
        %v7413 = vld [vmem:[%s3 + $0x30] sm:$0xf]
        %v7414 = vld [vmem:[%s3 + $0x34] sm:$0xf]
        %v7415 = vld [vmem:[%s3 + $0x38] sm:$0xf]
        %v7416 = vld [vmem:[%s3 + $0x3c] sm:$0xf]
        %v7417 = vld [vmem:[%s3 + $0x40] sm:$0xf]
        %v7418 = vld [vmem:[%s3 + $0x44] sm:$0xf]
        %v7419 = vld [vmem:[%s3 + $0x48] sm:$0xf]
        %v7420 = vld [vmem:[%s3 + $0x4c] sm:$0xf]
        %v7421 = vld [vmem:[%s3 + $0x50] sm:$0xf]
        %v7422 = vld [vmem:[%s3 + $0x54] sm:$0xf]
        %v7423 = vld [vmem:[%s3 + $0x58] sm:$0xf]
        %v7424 = vld [vmem:[%s3 + $0x5c] sm:$0xf]
        %v7425 = vld [vmem:[%s3 + $0x60] sm:$0xf]
        %v7426 = vld [vmem:[%s3 + $0x64] sm:$0xf]
        %v7427 = vld [vmem:[%s3 + $0x68] sm:$0xf]
        %v7428 = vld [vmem:[%s3 + $0x6c] sm:$0xf]
        %v7429 = vld [vmem:[%s3 + $0x70] sm:$0xf]
        %v7430 = vld [vmem:[%s3 + $0x74] sm:$0xf]
        %v7431 = vld [vmem:[%s3 + $0x78] sm:$0xf]
        %v7432 = vld [vmem:[%s3 + $0x7c] sm:$0xf]
        %v7433 = vld [vmem:[%s3 + $0x80] sm:$0xf]
        %v7434 = vld [vmem:[%s3 + $0x84] sm:$0xf]
        %v7435 = vld [vmem:[%s3 + $0x88] sm:$0xf]
        %v7436 = vld [vmem:[%s3 + $0x8c] sm:$0xf]
        %v7437 = vld [vmem:[%s4] sm:$0x1]
        %v7438 = vlaneseq
        %v7439 = vshrl.u32 %v7438, 7
        %v7440 = vsub.s32 0, %v7439
        %v7441 = vrot.slane %v7437, %v7440
        %v7478 = vunpack.c.l.b16 %v7401
        %v7479 = vunpack.c.l.b16 %v7402
        %v7480 = vunpack.c.l.b16 %v7403
        %v7481 = vunpack.c.l.b16 %v7404
        %v7482 = vunpack.c.l.b16 %v7405
        %v7483 = vunpack.c.l.b16 %v7406
        %v7484 = vunpack.c.l.b16 %v7407
        %v7485 = vunpack.c.l.b16 %v7408
        %v7486 = vunpack.c.l.b16 %v7409
        %v7487 = vunpack.c.l.b16 %v7410
        %v7488 = vunpack.c.l.b16 %v7411
        %v7489 = vunpack.c.l.b16 %v7412
        %v7490 = vunpack.c.l.b16 %v7413
        %v7491 = vunpack.c.l.b16 %v7414
        %v7492 = vunpack.c.l.b16 %v7415
        %v7493 = vunpack.c.l.b16 %v7416
        %v7494 = vunpack.c.l.b16 %v7417
        %v7495 = vunpack.c.l.b16 %v7418
        %v7496 = vunpack.c.l.b16 %v7419
        %v7497 = vunpack.c.l.b16 %v7420
        %v7498 = vunpack.c.l.b16 %v7421
        %v7499 = vunpack.c.l.b16 %v7422
        %v7500 = vunpack.c.l.b16 %v7423
        %v7501 = vunpack.c.l.b16 %v7424
        %v7502 = vunpack.c.l.b16 %v7425
        %v7503 = vunpack.c.l.b16 %v7426
        %v7504 = vunpack.c.l.b16 %v7427
        %v7505 = vunpack.c.l.b16 %v7428
        %v7506 = vunpack.c.l.b16 %v7429
        %v7507 = vunpack.c.l.b16 %v7430
        %v7508 = vunpack.c.l.b16 %v7431
        %v7509 = vunpack.c.l.b16 %v7432
        %v7510 = vunpack.c.l.b16 %v7433
        %v7511 = vunpack.c.l.b16 %v7434
        %v7512 = vunpack.c.l.b16 %v7435
        %v7513 = vunpack.c.l.b16 %v7436
        %v7514 = vpack.c.b16 %v7479, %v7478
        %v7515 = vpack.c.b16 %v7481, %v7480
        %v7516 = vpack.c.b16 %v7483, %v7482
        %v7517 = vpack.c.b16 %v7485, %v7484
        %v7518 = vpack.c.b16 %v7487, %v7486
        %v7519 = vpack.c.b16 %v7489, %v7488
        %v7520 = vpack.c.b16 %v7491, %v7490
        %v7521 = vpack.c.b16 %v7493, %v7492
        %v7522 = vpack.c.b16 %v7495, %v7494
        %v7523 = vpack.c.b16 %v7497, %v7496
        %v7524 = vpack.c.b16 %v7499, %v7498
        %v7525 = vpack.c.b16 %v7501, %v7500
        %v7526 = vpack.c.b16 %v7503, %v7502
        %v7527 = vpack.c.b16 %v7505, %v7504
        %v7528 = vpack.c.b16 %v7507, %v7506
        %v7529 = vpack.c.b16 %v7509, %v7508
        %v7530 = vpack.c.b16 %v7511, %v7510
        %v7531 = vpack.c.b16 %v7513, %v7512
        %v7551 = vsel %vm3707, %v7355, 0
        %v7554 = vsel %vm3707, %v7358, 0
        %v7557 = vsel %vm3707, %v7361, 0
        %v7560 = vsel %vm3707, %v7364, 0
        %v7563 = vsel %vm3707, %v7367, 0
        %v7566 = vsel %vm3707, %v7370, 0
        %v7569 = vsel %vm3707, %v7373, 0
        %v7572 = vsel %vm3707, %v7376, 0
        %v7575 = vsel %vm3707, %v7379, 0
        %v7578 = vsel %vm3707, %v7382, 0
        %v7581 = vsel %vm3707, %v7385, 0
        %v7584 = vsel %vm3707, %v7388, 0
        %v7587 = vsel %vm3707, %v7391, 0
        %v7590 = vsel %vm3707, %v7394, 0
        %v7593 = vsel %vm3707, %v7397, 0
        %v7596 = vsel %vm3707, %v7400, 0
        %7598 = vmatprep.subr.bf16.mxu0 0
        %7599 = vmatpush1.bf16.msra.mxu0 %v7514
        %7600 = vmatprep.subr.bf16.mxu0 0
        %7601 = vmatpush1.bf16.msra.mxu0 %v7515
        %7602 = vmatprep.subr.bf16.mxu0 0
        %7603 = vmatpush1.bf16.msra.mxu0 %v7516
        %7604 = vmatprep.subr.bf16.mxu0 0
        %7605 = vmatpush1.bf16.msra.mxu0 %v7517
        %7606 = vmatprep.subr.bf16.mxu0 0
        %7607 = vmatpush1.bf16.msra.mxu0 %v7518
        %7608 = vmatprep.subr.bf16.mxu0 0
        %7609 = vmatpush1.bf16.msra.mxu0 %v7519
        %7610 = vmatprep.subr.bf16.mxu0 0
        %7611 = vmatpush1.bf16.msra.mxu0 %v7520
        %7612 = vmatprep.subr.bf16.mxu0 0
        %7613 = vmatpush1.bf16.msra.mxu0 %v7521
        %7614 = vmatprep.subr.bf16.mxu0 0
        %7615 = vmatpush1.bf16.msra.mxu0 %v7522
        %7616 = vmatprep.subr.bf16.mxu0 0
        %7617 = vmatpush1.bf16.msra.mxu0 %v7523
        %7618 = vmatprep.subr.bf16.mxu0 0
        %7619 = vmatpush1.bf16.msra.mxu0 %v7524
        %7620 = vmatprep.subr.bf16.mxu0 0
        %7621 = vmatpush1.bf16.msra.mxu0 %v7525
        %7622 = vmatprep.subr.bf16.mxu0 0
        %7623 = vmatpush1.bf16.msra.mxu0 %v7526
        %7624 = vmatprep.subr.bf16.mxu0 0
        %7625 = vmatpush1.bf16.msra.mxu0 %v7527
        %7626 = vmatprep.subr.bf16.mxu0 0
        %7627 = vmatpush1.bf16.msra.mxu0 %v7528
        %7628 = vmatprep.subr.bf16.mxu0 0
        %7629 = vmatpush1.bf16.msra.mxu0 %v7529
        %7630 = vmatprep.mubr.bf16.mxu0 %v7354
        %7631 = vmatmul.mubr.bf16.gmra.mrb[0].mxu0 %v7353
        %v7632 = vpop.f32.mrb[0].mxu0
        %v7633 = vadd.f32 %v7441, %v7632
        %v7634 = vpop.f32.mrb[0].mxu0
        %v7635 = vpop.f32.mrb[0].mxu0
        %v7636 = vadd.f32 %v7441, %v7635
        %v7637 = vpop.f32.mrb[0].mxu0
        %7638 = vmatprep.mubr.bf16.mxu0 %v7357
        %7639 = vmatmul.mubr.bf16.gmra.mrb[0].mxu0 %v7356
        %v7640 = vpop.f32.mrb[0].mxu0
        %v7641 = vadd.f32 %v7441, %v7640
        %v7642 = vpop.f32.mrb[0].mxu0
        %v7643 = vpop.f32.mrb[0].mxu0
        %v7644 = vadd.f32 %v7441, %v7643
        %v7645 = vpop.f32.mrb[0].mxu0
        %7646 = vmatprep.mubr.bf16.mxu0 %v7360
        %7647 = vmatmul.mubr.bf16.gmra.mrb[0].mxu0 %v7359
        %v7648 = vpop.f32.mrb[0].mxu0
        %v7649 = vadd.f32 %v7441, %v7648
        %v7650 = vpop.f32.mrb[0].mxu0
        %v7651 = vpop.f32.mrb[0].mxu0
        %v7652 = vadd.f32 %v7441, %v7651
        %v7653 = vpop.f32.mrb[0].mxu0
        %7654 = vmatprep.mubr.bf16.mxu0 %v7363
        %7655 = vmatmul.mubr.bf16.gmra.mrb[0].mxu0 %v7362
        %v7656 = vpop.f32.mrb[0].mxu0
        %v7657 = vadd.f32 %v7441, %v7656
        %v7658 = vpop.f32.mrb[0].mxu0
        %v7659 = vpop.f32.mrb[0].mxu0
        %v7660 = vadd.f32 %v7441, %v7659
        %v7661 = vpop.f32.mrb[0].mxu0
        %7662 = vmatprep.mubr.bf16.mxu0 %v7366
        %7663 = vmatmul.mubr.bf16.gmra.mrb[0].mxu0 %v7365
        %v7664 = vpop.f32.mrb[0].mxu0
        %v7665 = vadd.f32 %v7441, %v7664
        %v7666 = vpop.f32.mrb[0].mxu0
        %v7667 = vpop.f32.mrb[0].mxu0
        %v7668 = vadd.f32 %v7441, %v7667
        %v7669 = vpop.f32.mrb[0].mxu0
        %7670 = vmatprep.mubr.bf16.mxu0 %v7369
        %7671 = vmatmul.mubr.bf16.gmra.mrb[0].mxu0 %v7368
        %v7672 = vpop.f32.mrb[0].mxu0
        %v7673 = vadd.f32 %v7441, %v7672
        %v7674 = vpop.f32.mrb[0].mxu0
        %v7675 = vpop.f32.mrb[0].mxu0
        %v7676 = vadd.f32 %v7441, %v7675
        %v7677 = vpop.f32.mrb[0].mxu0
        %7678 = vmatprep.mubr.bf16.mxu0 %v7372
        %7679 = vmatmul.mubr.bf16.gmra.mrb[0].mxu0 %v7371
        %v7680 = vpop.f32.mrb[0].mxu0
        %v7681 = vadd.f32 %v7441, %v7680
        %v7682 = vpop.f32.mrb[0].mxu0
        %v7683 = vpop.f32.mrb[0].mxu0
        %v7684 = vadd.f32 %v7441, %v7683
        %v7685 = vpop.f32.mrb[0].mxu0
        %7686 = vmatprep.mubr.bf16.mxu0 %v7375
        %7687 = vmatmul.mubr.bf16.gmra.mrb[0].mxu0 %v7374
        %v7688 = vpop.f32.mrb[0].mxu0
        %v7689 = vadd.f32 %v7441, %v7688
        %v7690 = vpop.f32.mrb[0].mxu0
        %v7691 = vpop.f32.mrb[0].mxu0
        %v7692 = vadd.f32 %v7441, %v7691
        %v7693 = vpop.f32.mrb[0].mxu0
        %7694 = vmatprep.mubr.bf16.mxu0 %v7378
        %7695 = vmatmul.mubr.bf16.gmra.mrb[0].mxu0 %v7377
        %v7696 = vpop.f32.mrb[0].mxu0
        %v7697 = vadd.f32 %v7441, %v7696
        %v7698 = vpop.f32.mrb[0].mxu0
        %v7699 = vpop.f32.mrb[0].mxu0
        %v7700 = vadd.f32 %v7441, %v7699
        %v7701 = vpop.f32.mrb[0].mxu0
        %7702 = vmatprep.mubr.bf16.mxu0 %v7381
        %7703 = vmatmul.mubr.bf16.gmra.mrb[0].mxu0 %v7380
        %v7704 = vpop.f32.mrb[0].mxu0
        %v7705 = vadd.f32 %v7441, %v7704
        %v7706 = vpop.f32.mrb[0].mxu0
        %v7707 = vpop.f32.mrb[0].mxu0
        %v7708 = vadd.f32 %v7441, %v7707
        %v7709 = vpop.f32.mrb[0].mxu0
        %7710 = vmatprep.mubr.bf16.mxu0 %v7384
        %7711 = vmatmul.mubr.bf16.gmra.mrb[0].mxu0 %v7383
        %v7712 = vpop.f32.mrb[0].mxu0
        %v7713 = vadd.f32 %v7441, %v7712
        %v7714 = vpop.f32.mrb[0].mxu0
        %v7715 = vpop.f32.mrb[0].mxu0
        %v7716 = vadd.f32 %v7441, %v7715
        %v7717 = vpop.f32.mrb[0].mxu0
        %7718 = vmatprep.mubr.bf16.mxu0 %v7387
        %7719 = vmatmul.mubr.bf16.gmra.mrb[0].mxu0 %v7386
        %v7720 = vpop.f32.mrb[0].mxu0
        %v7721 = vadd.f32 %v7441, %v7720
        %v7722 = vpop.f32.mrb[0].mxu0
        %v7723 = vpop.f32.mrb[0].mxu0
        %v7724 = vadd.f32 %v7441, %v7723
        %v7725 = vpop.f32.mrb[0].mxu0
        %7726 = vmatprep.mubr.bf16.mxu0 %v7390
        %7727 = vmatmul.mubr.bf16.gmra.mrb[0].mxu0 %v7389
        %v7728 = vpop.f32.mrb[0].mxu0
        %v7729 = vadd.f32 %v7441, %v7728
        %v7730 = vpop.f32.mrb[0].mxu0
        %v7731 = vpop.f32.mrb[0].mxu0
        %v7732 = vadd.f32 %v7441, %v7731
        %v7733 = vpop.f32.mrb[0].mxu0
        %7734 = vmatprep.mubr.bf16.mxu0 %v7393
        %7735 = vmatmul.mubr.bf16.gmra.mrb[0].mxu0 %v7392
        %v7736 = vpop.f32.mrb[0].mxu0
        %v7737 = vadd.f32 %v7441, %v7736
        %v7738 = vpop.f32.mrb[0].mxu0
        %v7739 = vpop.f32.mrb[0].mxu0
        %v7740 = vadd.f32 %v7441, %v7739
        %v7741 = vpop.f32.mrb[0].mxu0
        %7742 = vmatprep.mubr.bf16.mxu0 %v7396
        %7743 = vmatmul.mubr.bf16.gmra.mrb[0].mxu0 %v7395
        %v7744 = vpop.f32.mrb[0].mxu0
        %v7745 = vadd.f32 %v7441, %v7744
        %v7746 = vpop.f32.mrb[0].mxu0
        %v7747 = vpop.f32.mrb[0].mxu0
        %v7748 = vadd.f32 %v7441, %v7747
        %v7749 = vpop.f32.mrb[0].mxu0
        %7750 = vmatprep.mubr.bf16.mxu0 %v7399
        %7751 = vmatmul.mubr.bf16.gmra.mrb[0].mxu0 %v7398
        %v7752 = vpop.f32.mrb[0].mxu0
        %v7753 = vadd.f32 %v7441, %v7752
        %v7754 = vpop.f32.mrb[0].mxu0
        %v7755 = vpop.f32.mrb[0].mxu0
        %v7756 = vadd.f32 %v7441, %v7755
        %v7757 = vpop.f32.mrb[0].mxu0
        %7758 = vdwg.mxu0
        %7759 = vmatprep.subr.bf16.mxu0 0
        %7760 = vmatpush1.bf16.msra.mxu0 %v7530
        %7761 = vmatprep.subr.bf16.mxu0 0
        %7762 = vmatpush1.bf16.msra.mxu0 %v7531
        %7763 = vmatprep.subr.bf16.mxu0 0
        %7764 = vmatpush1.bf16.msra.mxu0 0
        %7765 = vmatprep.subr.bf16.mxu0 0
        %7766 = vmatpush1.bf16.msra.mxu0 0
        %7767 = vmatprep.subr.bf16.mxu0 0
        %7768 = vmatpush1.bf16.msra.mxu0 0
        %7769 = vmatprep.subr.bf16.mxu0 0
        %7770 = vmatpush1.bf16.msra.mxu0 0
        %7771 = vmatprep.subr.bf16.mxu0 0
        %7772 = vmatpush1.bf16.msra.mxu0 0
        %7773 = vmatprep.subr.bf16.mxu0 0
        %7774 = vmatpush1.bf16.msra.mxu0 0
        %7775 = vmatprep.subr.bf16.mxu0 0
        %7776 = vmatpush1.bf16.msra.mxu0 0
        %7777 = vmatprep.subr.bf16.mxu0 0
        %7778 = vmatpush1.bf16.msra.mxu0 0
        %7779 = vmatprep.subr.bf16.mxu0 0
        %7780 = vmatpush1.bf16.msra.mxu0 0
        %7781 = vmatprep.subr.bf16.mxu0 0
        %7782 = vmatpush1.bf16.msra.mxu0 0
        %7783 = vmatprep.subr.bf16.mxu0 0
        %7784 = vmatpush1.bf16.msra.mxu0 0
        %7785 = vmatprep.subr.bf16.mxu0 0
        %7786 = vmatpush1.bf16.msra.mxu0 0
        %7787 = vmatprep.subr.bf16.mxu0 0
        %7788 = vmatpush1.bf16.msra.mxu0 0
        %7789 = vmatprep.subr.bf16.mxu0 0
        %7790 = vmatpush1.bf16.msra.mxu0 0
        %7791 = vmatprep.mubr.bf16.mxu0 0
        %7792 = vmatmul.mubr.bf16.gmra.mrb[0].mxu0 %v7551
        %v7793 = vpop.f32.mrb[0].mxu0
        %v7794 = vadd.f32 %v7633, %v7793
        %v7795 = vpop.f32.mrb[0].mxu0
        %v7796 = vpop.f32.mrb[0].mxu0
        %v7797 = vadd.f32 %v7636, %v7796
        %v7798 = vpop.f32.mrb[0].mxu0
        %7799 = vmatprep.mubr.bf16.mxu0 0
        %7800 = vmatmul.mubr.bf16.gmra.mrb[0].mxu0 %v7554
        %v7801 = vpop.f32.mrb[0].mxu0
        %v7802 = vadd.f32 %v7641, %v7801
        %v7803 = vpop.f32.mrb[0].mxu0
        %v7804 = vpop.f32.mrb[0].mxu0
        %v7805 = vadd.f32 %v7644, %v7804
        %v7806 = vpop.f32.mrb[0].mxu0
        %7807 = vmatprep.mubr.bf16.mxu0 0
        %7808 = vmatmul.mubr.bf16.gmra.mrb[0].mxu0 %v7557
        %v7809 = vpop.f32.mrb[0].mxu0
        %v7810 = vadd.f32 %v7649, %v7809
        %v7811 = vpop.f32.mrb[0].mxu0
        %v7812 = vpop.f32.mrb[0].mxu0
        %v7813 = vadd.f32 %v7652, %v7812
        %v7814 = vpop.f32.mrb[0].mxu0
        %7815 = vmatprep.mubr.bf16.mxu0 0
        %7816 = vmatmul.mubr.bf16.gmra.mrb[0].mxu0 %v7560
        %v7817 = vpop.f32.mrb[0].mxu0
        %v7818 = vadd.f32 %v7657, %v7817
        %v7819 = vpop.f32.mrb[0].mxu0
        %v7820 = vpop.f32.mrb[0].mxu0
        %v7821 = vadd.f32 %v7660, %v7820
        %v7822 = vpop.f32.mrb[0].mxu0
        %7823 = vmatprep.mubr.bf16.mxu0 0
        %7824 = vmatmul.mubr.bf16.gmra.mrb[0].mxu0 %v7563
        %v7825 = vpop.f32.mrb[0].mxu0
        %v7826 = vadd.f32 %v7665, %v7825
        %v7827 = vpop.f32.mrb[0].mxu0
        %v7828 = vpop.f32.mrb[0].mxu0
        %v7829 = vadd.f32 %v7668, %v7828
        %v7830 = vpop.f32.mrb[0].mxu0
        %7831 = vmatprep.mubr.bf16.mxu0 0
        %7832 = vmatmul.mubr.bf16.gmra.mrb[0].mxu0 %v7566
        %v7833 = vpop.f32.mrb[0].mxu0
        %v7834 = vadd.f32 %v7673, %v7833
        %v7835 = vpop.f32.mrb[0].mxu0
        %v7836 = vpop.f32.mrb[0].mxu0
        %v7837 = vadd.f32 %v7676, %v7836
        %v7838 = vpop.f32.mrb[0].mxu0
        %7839 = vmatprep.mubr.bf16.mxu0 0
        %7840 = vmatmul.mubr.bf16.gmra.mrb[0].mxu0 %v7569
        %v7841 = vpop.f32.mrb[0].mxu0
        %v7842 = vadd.f32 %v7681, %v7841
        %v7843 = vpop.f32.mrb[0].mxu0
        %v7844 = vpop.f32.mrb[0].mxu0
        %v7845 = vadd.f32 %v7684, %v7844
        %v7846 = vpop.f32.mrb[0].mxu0
        %7847 = vmatprep.mubr.bf16.mxu0 0
        %7848 = vmatmul.mubr.bf16.gmra.mrb[0].mxu0 %v7572
        %v7849 = vpop.f32.mrb[0].mxu0
        %v7850 = vadd.f32 %v7689, %v7849
        %v7851 = vpop.f32.mrb[0].mxu0
        %v7852 = vpop.f32.mrb[0].mxu0
        %v7853 = vadd.f32 %v7692, %v7852
        %v7854 = vpop.f32.mrb[0].mxu0
        %7855 = vmatprep.mubr.bf16.mxu0 0
        %7856 = vmatmul.mubr.bf16.gmra.mrb[0].mxu0 %v7575
        %v7857 = vpop.f32.mrb[0].mxu0
        %v7858 = vadd.f32 %v7697, %v7857
        %v7859 = vpop.f32.mrb[0].mxu0
        %v7860 = vpop.f32.mrb[0].mxu0
        %v7861 = vadd.f32 %v7700, %v7860
        %v7862 = vpop.f32.mrb[0].mxu0
        %7863 = vmatprep.mubr.bf16.mxu0 0
        %7864 = vmatmul.mubr.bf16.gmra.mrb[0].mxu0 %v7578
        %v7865 = vpop.f32.mrb[0].mxu0
        %v7866 = vadd.f32 %v7705, %v7865
        %v7867 = vpop.f32.mrb[0].mxu0
        %v7868 = vpop.f32.mrb[0].mxu0
        %v7869 = vadd.f32 %v7708, %v7868
        %v7870 = vpop.f32.mrb[0].mxu0
        %7871 = vmatprep.mubr.bf16.mxu0 0
        %7872 = vmatmul.mubr.bf16.gmra.mrb[0].mxu0 %v7581
        %v7873 = vpop.f32.mrb[0].mxu0
        %v7874 = vadd.f32 %v7713, %v7873
        %v7875 = vpop.f32.mrb[0].mxu0
        %v7876 = vpop.f32.mrb[0].mxu0
        %v7877 = vadd.f32 %v7716, %v7876
        %v7878 = vpop.f32.mrb[0].mxu0
        %7879 = vmatprep.mubr.bf16.mxu0 0
        %7880 = vmatmul.mubr.bf16.gmra.mrb[0].mxu0 %v7584
        %v7881 = vpop.f32.mrb[0].mxu0
        %v7882 = vadd.f32 %v7721, %v7881
        %v7883 = vpop.f32.mrb[0].mxu0
        %v7884 = vpop.f32.mrb[0].mxu0
        %v7885 = vadd.f32 %v7724, %v7884
        %v7886 = vpop.f32.mrb[0].mxu0
        %7887 = vmatprep.mubr.bf16.mxu0 0
        %7888 = vmatmul.mubr.bf16.gmra.mrb[0].mxu0 %v7587
        %v7889 = vpop.f32.mrb[0].mxu0
        %v7890 = vadd.f32 %v7729, %v7889
        %v7891 = vpop.f32.mrb[0].mxu0
        %v7892 = vpop.f32.mrb[0].mxu0
        %v7893 = vadd.f32 %v7732, %v7892
        %v7894 = vpop.f32.mrb[0].mxu0
        %7895 = vmatprep.mubr.bf16.mxu0 0
        %7896 = vmatmul.mubr.bf16.gmra.mrb[0].mxu0 %v7590
        %v7897 = vpop.f32.mrb[0].mxu0
        %v7898 = vadd.f32 %v7737, %v7897
        %v7899 = vpop.f32.mrb[0].mxu0
        %v7900 = vpop.f32.mrb[0].mxu0
        %v7901 = vadd.f32 %v7740, %v7900
        %v7902 = vpop.f32.mrb[0].mxu0
        %7903 = vmatprep.mubr.bf16.mxu0 0
        %7904 = vmatmul.mubr.bf16.gmra.mrb[0].mxu0 %v7593
        %v7905 = vpop.f32.mrb[0].mxu0
        %v7906 = vadd.f32 %v7745, %v7905
        %v7907 = vpop.f32.mrb[0].mxu0
        %v7908 = vpop.f32.mrb[0].mxu0
        %v7909 = vadd.f32 %v7748, %v7908
        %v7910 = vpop.f32.mrb[0].mxu0
        %7911 = vmatprep.mubr.bf16.mxu0 0
        %7912 = vmatmul.mubr.bf16.gmra.mrb[0].mxu0 %v7596
        %v7913 = vpop.f32.mrb[0].mxu0
        %v7914 = vadd.f32 %v7753, %v7913
        %v7915 = vpop.f32.mrb[0].mxu0
        %v7916 = vpop.f32.mrb[0].mxu0
        %v7917 = vadd.f32 %v7756, %v7916
        %v7918 = vpop.f32.mrb[0].mxu0
        %7919 = vdwg.mxu0
        %v7920 = vld [vmem:[%s5] sm:$0xff]
        %v7921 = vld [vmem:[%s5 + $0x8] sm:$0xff]
        %v7922 = vld [vmem:[%s5 + $0x10] sm:$0xff]
        %v7923 = vld [vmem:[%s5 + $0x18] sm:$0xff]
        %v7924 = vsel %vm3707, %v7794, 0.0
        %v7925 = vsel %vm3707, %v7797, 0.0
        %v7926 = vadd.f32 %v7924, %v7925
        %v7927 = vsel %vm3707, %v7802, 0.0
        %v7928 = vadd.f32 %v7926, %v7927
        %v7929 = vsel %vm3707, %v7805, 0.0
        %v7930 = vadd.f32 %v7928, %v7929
        %v7931 = vsel %vm3707, %v7810, 0.0
        %v7932 = vadd.f32 %v7930, %v7931
        %v7933 = vsel %vm3707, %v7813, 0.0
        %v7934 = vadd.f32 %v7932, %v7933
        %v7935 = vsel %vm3707, %v7818, 0.0
        %v7936 = vadd.f32 %v7934, %v7935
        %v7937 = vsel %vm3707, %v7821, 0.0
        %v7938 = vadd.f32 %v7936, %v7937
        %v7939 = vsel %vm3707, %v7826, 0.0
        %v7940 = vadd.f32 %v7938, %v7939
        %v7941 = vsel %vm3707, %v7829, 0.0
        %v7942 = vadd.f32 %v7940, %v7941
        %v7943 = vsel %vm3707, %v7834, 0.0
        %v7944 = vadd.f32 %v7942, %v7943
        %v7945 = vsel %vm3707, %v7837, 0.0
        %v7946 = vadd.f32 %v7944, %v7945
        %v7947 = vsel %vm3707, %v7842, 0.0
        %v7948 = vadd.f32 %v7946, %v7947
        %v7949 = vsel %vm3707, %v7845, 0.0
        %v7950 = vadd.f32 %v7948, %v7949
        %v7951 = vsel %vm3707, %v7850, 0.0
        %v7952 = vadd.f32 %v7950, %v7951
        %v7953 = vsel %vm3707, %v7853, 0.0
        %v7954 = vadd.f32 %v7952, %v7953
        %v7955 = vsel %vm3707, %v7858, 0.0
        %v7956 = vadd.f32 %v7954, %v7955
        %v7957 = vsel %vm3707, %v7861, 0.0
        %v7958 = vadd.f32 %v7956, %v7957
        %v7959 = vsel %vm3707, %v7866, 0.0
        %v7960 = vadd.f32 %v7958, %v7959
        %v7961 = vsel %vm3707, %v7869, 0.0
        %v7962 = vadd.f32 %v7960, %v7961
        %v7963 = vsel %vm3707, %v7874, 0.0
        %v7964 = vadd.f32 %v7962, %v7963
        %v7965 = vsel %vm3707, %v7877, 0.0
        %v7966 = vadd.f32 %v7964, %v7965
        %v7967 = vsel %vm3707, %v7882, 0.0
        %v7968 = vadd.f32 %v7966, %v7967
        %v7969 = vsel %vm3707, %v7885, 0.0
        %v7970 = vadd.f32 %v7968, %v7969
        %v7971 = vsel %vm3707, %v7890, 0.0
        %v7972 = vadd.f32 %v7970, %v7971
        %v7973 = vsel %vm3707, %v7893, 0.0
        %v7974 = vadd.f32 %v7972, %v7973
        %v7975 = vsel %vm3707, %v7898, 0.0
        %v7976 = vadd.f32 %v7974, %v7975
        %v7977 = vsel %vm3707, %v7901, 0.0
        %v7978 = vadd.f32 %v7976, %v7977
        %v7979 = vsel %vm3707, %v7906, 0.0
        %v7980 = vadd.f32 %v7978, %v7979
        %v7981 = vsel %vm3707, %v7909, 0.0
        %v7982 = vadd.f32 %v7980, %v7981
        %v7983 = vsel %vm3707, %v7914, 0.0
        %v7984 = vadd.f32 %v7982, %v7983
        %v7985 = vsel %vm3707, %v7917, 0.0
        %v7986 = vadd.f32 %v7984, %v7985
        %v7987 = vrot.slane %v7986, 4
        %v7988 = vadd.f32 %v7986, %v7987
        %v7989 = vrot.slane %v7988, 2
        %v7990 = vadd.f32 %v7988, %v7989
        %v7991 = vrot.slane %v7990, 1
        %v7992 = vadd.f32 %v7990, %v7991
        %v7994 = vsel %vm3707, %v7992, 0
        %7996 = vmatprep.subr.mxu0 0.0
        %7997 = vmatpush1.msra.mxu0 %v7920
        %7998 = vmatprep.subr.mxu0 0.0
        %7999 = vmatpush1.msra.mxu0 %v7921
        %8000 = vmatprep.subr.mxu0 0.0
        %8001 = vmatpush1.msra.mxu0 %v7922
        %8002 = vmatprep.subr.mxu0 0.0
        %8003 = vmatpush1.msra.mxu0 %v7923
        %8004 = vmatprep.subr.mxu0 0.0
        %8005 = vmatpush1.msra.mxu0 0.0
        %8006 = vmatprep.subr.mxu0 0.0
        %8007 = vmatpush1.msra.mxu0 0.0
        %8008 = vmatprep.subr.mxu0 0.0
        %8009 = vmatpush1.msra.mxu0 0.0
        %8010 = vmatprep.subr.mxu0 0.0
        %8011 = vmatpush1.msra.mxu0 0.0
        %8012 = vmatprep.subr.mxu0 0.0
        %8013 = vmatpush1.msra.mxu0 0.0
        %8014 = vmatprep.subr.mxu0 0.0
        %8015 = vmatpush1.msra.mxu0 0.0
        %8016 = vmatprep.subr.mxu0 0.0
        %8017 = vmatpush1.msra.mxu0 0.0
        %8018 = vmatprep.subr.mxu0 0.0
        %8019 = vmatpush1.msra.mxu0 0.0
        %8020 = vmatprep.subr.mxu0 0.0
        %8021 = vmatpush1.msra.mxu0 0.0
        %8022 = vmatprep.subr.mxu0 0.0
        %8023 = vmatpush1.msra.mxu0 0.0
        %8024 = vmatprep.subr.mxu0 0.0
        %8025 = vmatpush1.msra.mxu0 0.0
        %8026 = vmatprep.subr.mxu0 0.0
        %8027 = vmatpush1.msra.mxu0 0.0
        %8028 = vmatprep.subr.mxu0 0.0
        %8029 = vmatpush1.msra.mxu0 0.0
        %8030 = vmatprep.subr.mxu0 0.0
        %8031 = vmatpush1.msra.mxu0 0.0
        %8032 = vmatprep.subr.mxu0 0.0
        %8033 = vmatpush1.msra.mxu0 0.0
        %8034 = vmatprep.subr.mxu0 0.0
        %8035 = vmatpush1.msra.mxu0 0.0
        %8036 = vmatprep.subr.mxu0 0.0
        %8037 = vmatpush1.msra.mxu0 0.0
        %8038 = vmatprep.subr.mxu0 0.0
        %8039 = vmatpush1.msra.mxu0 0.0
        %8040 = vmatprep.subr.mxu0 0.0
        %8041 = vmatpush1.msra.mxu0 0.0
        %8042 = vmatprep.subr.mxu0 0.0
        %8043 = vmatpush1.msra.mxu0 0.0
        %8044 = vmatprep.subr.mxu0 0.0
        %8045 = vmatpush1.msra.mxu0 0.0
        %8046 = vmatprep.subr.mxu0 0.0
        %8047 = vmatpush1.msra.mxu0 0.0
        %8048 = vmatprep.subr.mxu0 0.0
        %8049 = vmatpush1.msra.mxu0 0.0
        %8050 = vmatprep.subr.mxu0 0.0
        %8051 = vmatpush1.msra.mxu0 0.0
        %8052 = vmatprep.subr.mxu0 0.0
        %8053 = vmatpush1.msra.mxu0 0.0
        %8054 = vmatprep.subr.mxu0 0.0
        %8055 = vmatpush1.msra.mxu0 0.0
        %8056 = vmatprep.subr.mxu0 0.0
        %8057 = vmatpush1.msra.mxu0 0.0
        %8058 = vmatprep.subr.mxu0 0.0
        %8059 = vmatpush1.msra.mxu0 0.0
        %8060 = vmatprep.mubr.f32.mxu0 0.0
        %8061 = vmatmul.mubr.f32.gmra.mrb[0].mxu0 %v7994
        %v8062 = vpop.f32.mrb[0].mxu0
        %v8063 = vadd.f32 0.0, %v8062
        %v8064 = vpop.f32.mrb[0].mxu0
        %8065 = vdwg.mxu0
        %v8066 = vlaneseq
        %v8067 = vshrl.u32 %v8066, 7
        %v8068 = vsub.s32 0, %v8067
        %v8069 = vrot.slane %v8063, %v8068
        %v8070 = vsub.f32 %v7794, %v8069
        %v8071 = vsub.f32 %v7797, %v8069
        %v8072 = vsub.f32 %v7802, %v8069
        %v8073 = vsub.f32 %v7805, %v8069
        %v8074 = vsub.f32 %v7810, %v8069
        %v8075 = vsub.f32 %v7813, %v8069
        %v8076 = vsub.f32 %v7818, %v8069
        %v8077 = vsub.f32 %v7821, %v8069
        %v8078 = vsub.f32 %v7826, %v8069
        %v8079 = vsub.f32 %v7829, %v8069
        %v8080 = vsub.f32 %v7834, %v8069
        %v8081 = vsub.f32 %v7837, %v8069
        %v8082 = vsub.f32 %v7842, %v8069
        %v8083 = vsub.f32 %v7845, %v8069
        %v8084 = vsub.f32 %v7850, %v8069
        %v8085 = vsub.f32 %v7853, %v8069
        %v8086 = vsub.f32 %v7858, %v8069
        %v8087 = vsub.f32 %v7861, %v8069
        %v8088 = vsub.f32 %v7866, %v8069
        %v8089 = vsub.f32 %v7869, %v8069
        %v8090 = vsub.f32 %v7874, %v8069
        %v8091 = vsub.f32 %v7877, %v8069
        %v8092 = vsub.f32 %v7882, %v8069
        %v8093 = vsub.f32 %v7885, %v8069
        %v8094 = vsub.f32 %v7890, %v8069
        %v8095 = vsub.f32 %v7893, %v8069
        %v8096 = vsub.f32 %v7898, %v8069
        %v8097 = vsub.f32 %v7901, %v8069
        %v8098 = vsub.f32 %v7906, %v8069
        %v8099 = vsub.f32 %v7909, %v8069
        %v8100 = vsub.f32 %v7914, %v8069
        %v8101 = vsub.f32 %v7917, %v8069
        %v8102 = vmul.f32 %v8070, %v8070
        %v8103 = vmul.f32 %v8071, %v8071
        %v8104 = vmul.f32 %v8072, %v8072
        %v8105 = vmul.f32 %v8073, %v8073
        %v8106 = vmul.f32 %v8074, %v8074
        %v8107 = vmul.f32 %v8075, %v8075
        %v8108 = vmul.f32 %v8076, %v8076
        %v8109 = vmul.f32 %v8077, %v8077
        %v8110 = vmul.f32 %v8078, %v8078
        %v8111 = vmul.f32 %v8079, %v8079
        %v8112 = vmul.f32 %v8080, %v8080
        %v8113 = vmul.f32 %v8081, %v8081
        %v8114 = vmul.f32 %v8082, %v8082
        %v8115 = vmul.f32 %v8083, %v8083
        %v8116 = vmul.f32 %v8084, %v8084
        %v8117 = vmul.f32 %v8085, %v8085
        %v8118 = vmul.f32 %v8086, %v8086
        %v8119 = vmul.f32 %v8087, %v8087
        %v8120 = vmul.f32 %v8088, %v8088
        %v8121 = vmul.f32 %v8089, %v8089
        %v8122 = vmul.f32 %v8090, %v8090
        %v8123 = vmul.f32 %v8091, %v8091
        %v8124 = vmul.f32 %v8092, %v8092
        %v8125 = vmul.f32 %v8093, %v8093
        %v8126 = vmul.f32 %v8094, %v8094
        %v8127 = vmul.f32 %v8095, %v8095
        %v8128 = vmul.f32 %v8096, %v8096
        %v8129 = vmul.f32 %v8097, %v8097
        %v8130 = vmul.f32 %v8098, %v8098
        %v8131 = vmul.f32 %v8099, %v8099
        %v8132 = vmul.f32 %v8100, %v8100
        %v8133 = vmul.f32 %v8101, %v8101
        %v8134 = vsel %vm3707, %v8102, 0.0
        %v8135 = vsel %vm3707, %v8103, 0.0
        %v8136 = vadd.f32 %v8134, %v8135
        %v8137 = vsel %vm3707, %v8104, 0.0
        %v8138 = vadd.f32 %v8136, %v8137
        %v8139 = vsel %vm3707, %v8105, 0.0
        %v8140 = vadd.f32 %v8138, %v8139
        %v8141 = vsel %vm3707, %v8106, 0.0
        %v8142 = vadd.f32 %v8140, %v8141
        %v8143 = vsel %vm3707, %v8107, 0.0
        %v8144 = vadd.f32 %v8142, %v8143
        %v8145 = vsel %vm3707, %v8108, 0.0
        %v8146 = vadd.f32 %v8144, %v8145
        %v8147 = vsel %vm3707, %v8109, 0.0
        %v8148 = vadd.f32 %v8146, %v8147
        %v8149 = vsel %vm3707, %v8110, 0.0
        %v8150 = vadd.f32 %v8148, %v8149
        %v8151 = vsel %vm3707, %v8111, 0.0
        %v8152 = vadd.f32 %v8150, %v8151
        %v8153 = vsel %vm3707, %v8112, 0.0
        %v8154 = vadd.f32 %v8152, %v8153
        %v8155 = vsel %vm3707, %v8113, 0.0
        %v8156 = vadd.f32 %v8154, %v8155
        %v8157 = vsel %vm3707, %v8114, 0.0
        %v8158 = vadd.f32 %v8156, %v8157
        %v8159 = vsel %vm3707, %v8115, 0.0
        %v8160 = vadd.f32 %v8158, %v8159
        %v8161 = vsel %vm3707, %v8116, 0.0
        %v8162 = vadd.f32 %v8160, %v8161
        %v8163 = vsel %vm3707, %v8117, 0.0
        %v8164 = vadd.f32 %v8162, %v8163
        %v8165 = vsel %vm3707, %v8118, 0.0
        %v8166 = vadd.f32 %v8164, %v8165
        %v8167 = vsel %vm3707, %v8119, 0.0
        %v8168 = vadd.f32 %v8166, %v8167
        %v8169 = vsel %vm3707, %v8120, 0.0
        %v8170 = vadd.f32 %v8168, %v8169
        %v8171 = vsel %vm3707, %v8121, 0.0
        %v8172 = vadd.f32 %v8170, %v8171
        %v8173 = vsel %vm3707, %v8122, 0.0
        %v8174 = vadd.f32 %v8172, %v8173
        %v8175 = vsel %vm3707, %v8123, 0.0
        %v8176 = vadd.f32 %v8174, %v8175
        %v8177 = vsel %vm3707, %v8124, 0.0
        %v8178 = vadd.f32 %v8176, %v8177
        %v8179 = vsel %vm3707, %v8125, 0.0
        %v8180 = vadd.f32 %v8178, %v8179
        %v8181 = vsel %vm3707, %v8126, 0.0
        %v8182 = vadd.f32 %v8180, %v8181
        %v8183 = vsel %vm3707, %v8127, 0.0
        %v8184 = vadd.f32 %v8182, %v8183
        %v8185 = vsel %vm3707, %v8128, 0.0
        %v8186 = vadd.f32 %v8184, %v8185
        %v8187 = vsel %vm3707, %v8129, 0.0
        %v8188 = vadd.f32 %v8186, %v8187
        %v8189 = vsel %vm3707, %v8130, 0.0
        %v8190 = vadd.f32 %v8188, %v8189
        %v8191 = vsel %vm3707, %v8131, 0.0
        %v8192 = vadd.f32 %v8190, %v8191
        %v8193 = vsel %vm3707, %v8132, 0.0
        %v8194 = vadd.f32 %v8192, %v8193
        %v8195 = vsel %vm3707, %v8133, 0.0
        %v8196 = vadd.f32 %v8194, %v8195
        %v8197 = vrot.slane %v8196, 4
        %v8198 = vadd.f32 %v8196, %v8197
        %v8199 = vrot.slane %v8198, 2
        %v8200 = vadd.f32 %v8198, %v8199
        %v8201 = vrot.slane %v8200, 1
        %v8202 = vadd.f32 %v8200, %v8201
        %v8204 = vsel %vm3707, %v8202, 0
        %8206 = vmatprep.subr.mxu0 0.0
        %8207 = vmatpush1.msra.mxu0 %v7920
        %8208 = vmatprep.subr.mxu0 0.0
        %8209 = vmatpush1.msra.mxu0 %v7921
        %8210 = vmatprep.subr.mxu0 0.0
        %8211 = vmatpush1.msra.mxu0 %v7922
        %8212 = vmatprep.subr.mxu0 0.0
        %8213 = vmatpush1.msra.mxu0 %v7923
        %8214 = vmatprep.subr.mxu0 0.0
        %8215 = vmatpush1.msra.mxu0 0.0
        %8216 = vmatprep.subr.mxu0 0.0
        %8217 = vmatpush1.msra.mxu0 0.0
        %8218 = vmatprep.subr.mxu0 0.0
        %8219 = vmatpush1.msra.mxu0 0.0
        %8220 = vmatprep.subr.mxu0 0.0
        %8221 = vmatpush1.msra.mxu0 0.0
        %8222 = vmatprep.subr.mxu0 0.0
        %8223 = vmatpush1.msra.mxu0 0.0
        %8224 = vmatprep.subr.mxu0 0.0
        %8225 = vmatpush1.msra.mxu0 0.0
        %8226 = vmatprep.subr.mxu0 0.0
        %8227 = vmatpush1.msra.mxu0 0.0
        %8228 = vmatprep.subr.mxu0 0.0
        %8229 = vmatpush1.msra.mxu0 0.0
        %8230 = vmatprep.subr.mxu0 0.0
        %8231 = vmatpush1.msra.mxu0 0.0
        %8232 = vmatprep.subr.mxu0 0.0
        %8233 = vmatpush1.msra.mxu0 0.0
        %8234 = vmatprep.subr.mxu0 0.0
        %8235 = vmatpush1.msra.mxu0 0.0
        %8236 = vmatprep.subr.mxu0 0.0
        %8237 = vmatpush1.msra.mxu0 0.0
        %8238 = vmatprep.subr.mxu0 0.0
        %8239 = vmatpush1.msra.mxu0 0.0
        %8240 = vmatprep.subr.mxu0 0.0
        %8241 = vmatpush1.msra.mxu0 0.0
        %8242 = vmatprep.subr.mxu0 0.0
        %8243 = vmatpush1.msra.mxu0 0.0
        %8244 = vmatprep.subr.mxu0 0.0
        %8245 = vmatpush1.msra.mxu0 0.0
        %8246 = vmatprep.subr.mxu0 0.0
        %8247 = vmatpush1.msra.mxu0 0.0
        %8248 = vmatprep.subr.mxu0 0.0
        %8249 = vmatpush1.msra.mxu0 0.0
        %8250 = vmatprep.subr.mxu0 0.0
        %8251 = vmatpush1.msra.mxu0 0.0
        %8252 = vmatprep.subr.mxu0 0.0
        %8253 = vmatpush1.msra.mxu0 0.0
        %8254 = vmatprep.subr.mxu0 0.0
        %8255 = vmatpush1.msra.mxu0 0.0
        %8256 = vmatprep.subr.mxu0 0.0
        %8257 = vmatpush1.msra.mxu0 0.0
        %8258 = vmatprep.subr.mxu0 0.0
        %8259 = vmatpush1.msra.mxu0 0.0
        %8260 = vmatprep.subr.mxu0 0.0
        %8261 = vmatpush1.msra.mxu0 0.0
        %8262 = vmatprep.subr.mxu0 0.0
        %8263 = vmatpush1.msra.mxu0 0.0
        %8264 = vmatprep.subr.mxu0 0.0
        %8265 = vmatpush1.msra.mxu0 0.0
        %8266 = vmatprep.subr.mxu0 0.0
        %8267 = vmatpush1.msra.mxu0 0.0
        %8268 = vmatprep.subr.mxu0 0.0
        %8269 = vmatpush1.msra.mxu0 0.0
        %8270 = vmatprep.mubr.f32.mxu0 0.0
        %8271 = vmatmul.mubr.f32.gmra.mrb[0].mxu0 %v8204
        %v8272 = vpop.f32.mrb[0].mxu0
        %v8273 = vadd.f32 1e-05, %v8272
        %v8274 = vpop.f32.mrb[0].mxu0
        %8275 = vdwg.mxu0
        %v8276 = vrsqrt.pop %v8273
        %v8277 = vld [vmem:[%s4 + $0x1] sm:$0x1]
        %v8278 = vmul.f32 %v8276, %v8277
        %v8279 = vlaneseq
        %v8280 = vshrl.u32 %v8279, 7
        %v8281 = vsub.s32 0, %v8280
        %v8282 = vrot.slane %v8278, %v8281
        %v8283 = vmul.f32 %v8070, %v8282
        %v8284 = vmul.f32 %v8071, %v8282
        %v8285 = vmul.f32 %v8072, %v8282
        %v8286 = vmul.f32 %v8073, %v8282
        %v8287 = vmul.f32 %v8074, %v8282
        %v8288 = vmul.f32 %v8075, %v8282
        %v8289 = vmul.f32 %v8076, %v8282
        %v8290 = vmul.f32 %v8077, %v8282
        %v8291 = vmul.f32 %v8078, %v8282
        %v8292 = vmul.f32 %v8079, %v8282
        %v8293 = vmul.f32 %v8080, %v8282
        %v8294 = vmul.f32 %v8081, %v8282
        %v8295 = vmul.f32 %v8082, %v8282
        %v8296 = vmul.f32 %v8083, %v8282
        %v8297 = vmul.f32 %v8084, %v8282
        %v8298 = vmul.f32 %v8085, %v8282
        %v8299 = vmul.f32 %v8086, %v8282
        %v8300 = vmul.f32 %v8087, %v8282
        %v8301 = vmul.f32 %v8088, %v8282
        %v8302 = vmul.f32 %v8089, %v8282
        %v8303 = vmul.f32 %v8090, %v8282
        %v8304 = vmul.f32 %v8091, %v8282
        %v8305 = vmul.f32 %v8092, %v8282
        %v8306 = vmul.f32 %v8093, %v8282
        %v8307 = vmul.f32 %v8094, %v8282
        %v8308 = vmul.f32 %v8095, %v8282
        %v8309 = vmul.f32 %v8096, %v8282
        %v8310 = vmul.f32 %v8097, %v8282
        %v8311 = vmul.f32 %v8098, %v8282
        %v8312 = vmul.f32 %v8099, %v8282
        %v8313 = vmul.f32 %v8100, %v8282
        %v8314 = vmul.f32 %v8101, %v8282
        %v8315 = vld [vmem:[%s4 + $0x2] sm:$0x1]
        %v8316 = vlaneseq
        %v8317 = vshrl.u32 %v8316, 7
        %v8318 = vsub.s32 0, %v8317
        %v8319 = vrot.slane %v8315, %v8318
        %v8320 = vadd.f32 %v8283, %v8319
        %v8321 = vadd.f32 %v8284, %v8319
        %v8322 = vadd.f32 %v8285, %v8319
        %v8323 = vadd.f32 %v8286, %v8319
        %v8324 = vadd.f32 %v8287, %v8319
        %v8325 = vadd.f32 %v8288, %v8319
        %v8326 = vadd.f32 %v8289, %v8319
        %v8327 = vadd.f32 %v8290, %v8319
        %v8328 = vadd.f32 %v8291, %v8319
        %v8329 = vadd.f32 %v8292, %v8319
        %v8330 = vadd.f32 %v8293, %v8319
        %v8331 = vadd.f32 %v8294, %v8319
        %v8332 = vadd.f32 %v8295, %v8319
        %v8333 = vadd.f32 %v8296, %v8319
        %v8334 = vadd.f32 %v8297, %v8319
        %v8335 = vadd.f32 %v8298, %v8319
        %v8336 = vadd.f32 %v8299, %v8319
        %v8337 = vadd.f32 %v8300, %v8319
        %v8338 = vadd.f32 %v8301, %v8319
        %v8339 = vadd.f32 %v8302, %v8319
        %v8340 = vadd.f32 %v8303, %v8319
        %v8341 = vadd.f32 %v8304, %v8319
        %v8342 = vadd.f32 %v8305, %v8319
        %v8343 = vadd.f32 %v8306, %v8319
        %v8344 = vadd.f32 %v8307, %v8319
        %v8345 = vadd.f32 %v8308, %v8319
        %v8346 = vadd.f32 %v8309, %v8319
        %v8347 = vadd.f32 %v8310, %v8319
        %v8348 = vadd.f32 %v8311, %v8319
        %v8349 = vadd.f32 %v8312, %v8319
        %v8350 = vadd.f32 %v8313, %v8319
        %v8351 = vadd.f32 %v8314, %v8319
        %v8352 = vmax.f32 %v8320, 0.0
        %v8353 = vmax.f32 %v8321, 0.0
        %v8354 = vmax.f32 %v8322, 0.0
        %v8355 = vmax.f32 %v8323, 0.0
        %v8356 = vmax.f32 %v8324, 0.0
        %v8357 = vmax.f32 %v8325, 0.0
        %v8358 = vmax.f32 %v8326, 0.0
        %v8359 = vmax.f32 %v8327, 0.0
        %v8360 = vmax.f32 %v8328, 0.0
        %v8361 = vmax.f32 %v8329, 0.0
        %v8362 = vmax.f32 %v8330, 0.0
        %v8363 = vmax.f32 %v8331, 0.0
        %v8364 = vmax.f32 %v8332, 0.0
        %v8365 = vmax.f32 %v8333, 0.0
        %v8366 = vmax.f32 %v8334, 0.0
        %v8367 = vmax.f32 %v8335, 0.0
        %v8368 = vmax.f32 %v8336, 0.0
        %v8369 = vmax.f32 %v8337, 0.0
        %v8370 = vmax.f32 %v8338, 0.0
        %v8371 = vmax.f32 %v8339, 0.0
        %v8372 = vmax.f32 %v8340, 0.0
        %v8373 = vmax.f32 %v8341, 0.0
        %v8374 = vmax.f32 %v8342, 0.0
        %v8375 = vmax.f32 %v8343, 0.0
        %v8376 = vmax.f32 %v8344, 0.0
        %v8377 = vmax.f32 %v8345, 0.0
        %v8378 = vmax.f32 %v8346, 0.0
        %v8379 = vmax.f32 %v8347, 0.0
        %v8380 = vmax.f32 %v8348, 0.0
        %v8381 = vmax.f32 %v8349, 0.0
        %v8382 = vmax.f32 %v8350, 0.0
        %v8383 = vmax.f32 %v8351, 0.0
        %8384 = vst.msk [vmem:[%s244] sm:$0xff] %vm3707, %v8352
        %8385 = vst.msk [vmem:[%s244 + $0x8] sm:$0xff] %vm3707, %v8353
        %8386 = vst.msk [vmem:[%s244 + $0x10] sm:$0xff] %vm3707, %v8354
        %8387 = vst.msk [vmem:[%s244 + $0x18] sm:$0xff] %vm3707, %v8355
        %8388 = vst.msk [vmem:[%s244 + $0x20] sm:$0xff] %vm3707, %v8356
        %8389 = vst.msk [vmem:[%s244 + $0x28] sm:$0xff] %vm3707, %v8357
        %8390 = vst.msk [vmem:[%s244 + $0x30] sm:$0xff] %vm3707, %v8358
        %8391 = vst.msk [vmem:[%s244 + $0x38] sm:$0xff] %vm3707, %v8359
        %8392 = vst.msk [vmem:[%s244 + $0x40] sm:$0xff] %vm3707, %v8360
        %8393 = vst.msk [vmem:[%s244 + $0x48] sm:$0xff] %vm3707, %v8361
        %8394 = vst.msk [vmem:[%s244 + $0x50] sm:$0xff] %vm3707, %v8362
        %8395 = vst.msk [vmem:[%s244 + $0x58] sm:$0xff] %vm3707, %v8363
        %8396 = vst.msk [vmem:[%s244 + $0x60] sm:$0xff] %vm3707, %v8364
        %8397 = vst.msk [vmem:[%s244 + $0x68] sm:$0xff] %vm3707, %v8365
        %8398 = vst.msk [vmem:[%s244 + $0x70] sm:$0xff] %vm3707, %v8366
        %8399 = vst.msk [vmem:[%s244 + $0x78] sm:$0xff] %vm3707, %v8367
        %8400 = vst.msk [vmem:[%s244 + $0x80] sm:$0xff] %vm3707, %v8368
        %8401 = vst.msk [vmem:[%s244 + $0x88] sm:$0xff] %vm3707, %v8369
        %8402 = vst.msk [vmem:[%s244 + $0x90] sm:$0xff] %vm3707, %v8370
        %8403 = vst.msk [vmem:[%s244 + $0x98] sm:$0xff] %vm3707, %v8371
        %8404 = vst.msk [vmem:[%s244 + $0xa0] sm:$0xff] %vm3707, %v8372
        %8405 = vst.msk [vmem:[%s244 + $0xa8] sm:$0xff] %vm3707, %v8373
        %8406 = vst.msk [vmem:[%s244 + $0xb0] sm:$0xff] %vm3707, %v8374
        %8407 = vst.msk [vmem:[%s244 + $0xb8] sm:$0xff] %vm3707, %v8375
        %8408 = vst.msk [vmem:[%s244 + $0xc0] sm:$0xff] %vm3707, %v8376
        %8409 = vst.msk [vmem:[%s244 + $0xc8] sm:$0xff] %vm3707, %v8377
        %8410 = vst.msk [vmem:[%s244 + $0xd0] sm:$0xff] %vm3707, %v8378
        %8411 = vst.msk [vmem:[%s244 + $0xd8] sm:$0xff] %vm3707, %v8379
        %8412 = vst.msk [vmem:[%s244 + $0xe0] sm:$0xff] %vm3707, %v8380
        %8413 = vst.msk [vmem:[%s244 + $0xe8] sm:$0xff] %vm3707, %v8381
        %8414 = vst.msk [vmem:[%s244 + $0xf0] sm:$0xff] %vm3707, %v8382
        %8415 = vst.msk [vmem:[%s244 + $0xf8] sm:$0xff] %vm3707, %v8383
        %s8416 = sand.u32 %s159, 1
        %s8417 = scalar_lea.sflag [#allocation7], %s8416
        %s8418 = sand.u32 %s159, 1
        %s8419 = smul.addr %s8418, 256
        %s8420 = scalar_lea.vmem [#allocation6], %s8419
        // Predicated region
        $region45: #{tpu_custom_call.1} parent=43 // pred_check
          %p8421 = pneg %p169
        $region46: #{tpu_custom_call.1} parent=43 // pred_check_branch
          %8423 = sbr.rel (%p8421) target = $region48
        $region47: #{tpu_custom_call.1} parent=43 // pred_region
          %s8425 = ssub.s32 4096, 4096
          %8426 = vsyncadd %s8417, %s8425
          %s8427 = smul.addr %s20, 32
          %s8428 = smul.addr %s8427, 128
          %s8429 = scalar_lea.hbm %s6, %s8428
          %s8430 = sshll.u32 %s8420, 4
          %s8431 = int_to_ptr.vmem [resolvable:$true] %s8430
          %8436 = dma.vmem_to_hbm [thread:$0]  %s8431, 4096, %s8429, %s8417, 128, 128, 8
        $region48: #{tpu_custom_call.1} parent=43 // pred_fallthru
          _
      $region44: #{tpu_custom_call.1} parent=5 // pred_fallthru
        _
      %p8437 = scmp.le.s32.totalorder 2, %s15
      // Predicated region
      $region49: #{tpu_custom_call.1} parent=5 // pred_check
        %p8438 = pneg %p8437
      $region50: #{tpu_custom_call.1} parent=5 // pred_check_branch
        %8440 = sbr.rel (%p8438) target = $region52
      $region51: #{tpu_custom_call.1} parent=5 // pred_region
        %s8441 = ssub.s32 %s15, 2
        // Predicated region
        $region53: #{tpu_custom_call.1} parent=51 // pred_check
          %p8442 = pneg %p175
        $region54: #{tpu_custom_call.1} parent=51 // pred_check_branch
          %8444 = sbr.rel (%p8442) target = $region56
        $region55: #{tpu_custom_call.1} parent=51 // pred_region
          %s8445 = sand.u32 %s160, 1
          %s8446 = scalar_lea.sflag [#allocation7], %s8445
          %s8447 = sand.u32 %s160, 1
          %s8448 = smul.addr %s8447, 256
          %s8449 = scalar_lea.vmem [#allocation6], %s8448
          %8450 = dma.done %s8446, 4096
        $region56: #{tpu_custom_call.1} parent=51 // pred_fallthru
          _
      $region52: #{tpu_custom_call.1} parent=5 // pred_fallthru
        _
    $region6: #{tpu_custom_call.1} parent=1 // loop_footer
      %s19 = sadd.s32 1, %s15
    $region7: #{tpu_custom_call.1} parent=1 // loop_footer_branch
      %14 = sbr.rel target = $region3
    $region8: #{tpu_custom_call.1} parent=1 // loop_exit
      _
    %8451 = vsyncpa [#allocation7], 1
    %s8452 = scalar_lea.sflag [#allocation7], 1
    %8453 = vsyncpa %s8452, 1

</llo_original>
